<compile_context>
chip_gen: v7x
topology: tpu7x:2x2x1
jax: 0.10.0
libtpu: 0.0.40
codegen_flags: <defaults>
</compile_context>

<pallas_src>
import jax
import jax.numpy as jnp
from jax import lax
from jax.experimental import pallas as pl
from jax.experimental.pallas import tpu as pltpu

MODEL_DIM = 30          # LSTM input feature dim (module default)
HIDDEN = 256
EMBEDDING_DIM = 32
OUT_PAD = 128           # lane-dense output width (EMBEDDING_DIM zero-padded)
NEG_SLOPE = 0.01        # F.leaky_relu default
NORM_EPS = 1e-12        # F.normalize default
T_CHUNK_MAX = 16        # time-chunk for the hoisted layer-0 projection


def _lstm_kernel(x_ref,      # (T*Bt, D)   bf16, time-major rows within the batch tile
                 wi0_ref,    # (D, 4H)     bf16  layer-0 input weights (transposed)
                 wh0_ref,    # (H, 4H)     bf16  layer-0 recurrent weights (transposed)
                 b0_ref,     # (1, 4H)     f32   fused b_ih0 + b_hh0
                 wih1_ref,   # (H, 4H)     bf16  layer-1 input weights (transposed)
                 whh1_ref,   # (H, 4H)     bf16  layer-1 recurrent weights (transposed)
                 b1_ref,     # (1, 4H)     f32   fused b_ih1 + b_hh1
                 wo_ref,     # (H, 128)    bf16  output projection (zero-padded cols)
                 bo_ref,     # (1, 128)    f32   output bias (zero-padded cols)
                 out_ref,    # (Bt, 128)   f32
                 gx_ref):    # VMEM scratch (Tc*Bt, 4H) f32 — chunked x-projection
    Bt = out_ref.shape[0]
    T = x_ref.shape[0] // Bt
    Tc = gx_ref.shape[0] // Bt
    H = HIDDEN
    G = 4 * H

    # Loop-invariant operands hoisted once.
    wi0 = wi0_ref[...]
    wh0 = wh0_ref[...]
    wih1 = wih1_ref[...]
    whh1 = whh1_ref[...]
    b0 = b0_ref[...]
    b1 = jnp.broadcast_to(b1_ref[...], (Bt, G))

    def gates(g):
        i_g = jax.nn.sigmoid(g[:, 0 * H:1 * H])
        f_g = jax.nn.sigmoid(g[:, 1 * H:2 * H])
        g_g = jnp.tanh(g[:, 2 * H:3 * H])
        o_g = jax.nn.sigmoid(g[:, 3 * H:4 * H])
        return i_g, f_g, g_g, o_g

    def step(t, carry):
        h1, c1, h2, c2 = carry
        # Layer-1 recurrent half depends only on the *previous* step's h2:
        # issue it first so it overlaps layer-0 gate math.
        r1 = jnp.dot(h2.astype(jnp.bfloat16), whh1,
                     preferred_element_type=jnp.float32)
        # Layer 0: input projection was hoisted (gx); only h1 @ W_hh0 is serial.
        row = pl.multiple_of(t * Bt, 8)
        g0 = gx_ref[pl.ds(row, Bt), :] + jnp.dot(
            h1.astype(jnp.bfloat16), wh0, preferred_element_type=jnp.float32)
        i0, f0, gg0, o0 = gates(g0)
        c1 = f0 * c1 + i0 * gg0
        h1 = o0 * jnp.tanh(c1)
        # Layer 1: second (input) half of the gate pre-activation.
        g1 = r1 + jnp.dot(h1.astype(jnp.bfloat16), wih1,
                          preferred_element_type=jnp.float32) + b1
        i1, f1, gg1, o1 = gates(g1)
        c2 = f1 * c2 + i1 * gg1
        h2 = o1 * jnp.tanh(c2)
        return (h1, c1, h2, c2)

    def project(row0, nsteps):
        # Hoisted layer-0 input projection for one time chunk: a single
        # (nsteps*Bt, D) @ (D, 4H) MXU matmul with the fused bias folded in.
        xc = x_ref[pl.ds(row0, nsteps * Bt), :]
        gx_ref[pl.ds(0, nsteps * Bt), :] = (
            jnp.dot(xc, wi0, preferred_element_type=jnp.float32) + b0)

    zeros = jnp.zeros((Bt, H), jnp.float32)
    carry = (zeros, zeros, zeros, zeros)

    n_full = T // Tc            # static Python ints at trace time
    rem = T - n_full * Tc

    if n_full > 0:
        def chunk_body(ci, carry):
            base = pl.multiple_of(ci * (Tc * Bt), 8)
            project(base, Tc)
            return lax.fori_loop(0, Tc, step, carry, unroll=min(Tc, 8))
        carry = lax.fori_loop(0, n_full, chunk_body, carry)

    if rem > 0:
        project(n_full * Tc * Bt, rem)
        carry = lax.fori_loop(0, rem, step, carry, unroll=min(rem, 8))

    # out = Linear(leaky_relu(h_T)); then L2-normalize rows (eps = 1e-12).
    # Padded output columns are exactly zero (zero weight/bias columns), so the
    # norm over 128 lanes equals the norm over the real 32.
    h2 = carry[2]
    a = jnp.where(h2 > 0, h2, NEG_SLOPE * h2)
    y = jnp.dot(a.astype(jnp.bfloat16), wo_ref[...],
                preferred_element_type=jnp.float32) + bo_ref[...]
    norm = jnp.sqrt(jnp.sum(y * y, axis=-1, keepdims=True))
    out_ref[...] = y / jnp.maximum(norm, NORM_EPS)


def init_params(key):
    """Deterministic synthetic parameters (PyTorch-style uniform init).

    Gate order matches PyTorch: [i, f, g, o]; weights stored transposed as
    (in_dim, 4H) so gate pre-activations are single `x @ W` matmuls.
    """
    ks = jax.random.split(key, 10)
    bound = 1.0 / jnp.sqrt(HIDDEN)

    def u(k, shape):
        return jax.random.uniform(k, shape, jnp.float32, -bound, bound)

    # layer 0 (input dim 30)
    w_ih0 = u(ks[0], (MODEL_DIM, 4 * HIDDEN))
    w_hh0 = u(ks[1], (HIDDEN, 4 * HIDDEN))
    b0 = (u(ks[2], (4 * HIDDEN,)) + u(ks[3], (4 * HIDDEN,)))[None, :]   # b_ih + b_hh
    # layer 1
    w_ih1 = u(ks[4], (HIDDEN, 4 * HIDDEN))
    w_hh1 = u(ks[5], (HIDDEN, 4 * HIDDEN))
    b1 = (u(ks[6], (4 * HIDDEN,)) + u(ks[7], (4 * HIDDEN,)))[None, :]
    # output projection (nn.Linear(256, 32))
    lbound = 1.0 / jnp.sqrt(HIDDEN)
    w_out = jax.random.uniform(ks[8], (HIDDEN, EMBEDDING_DIM), jnp.float32, -lbound, lbound)
    b_out = jax.random.uniform(ks[9], (1, EMBEDDING_DIM), jnp.float32, -lbound, lbound)
    return (w_ih0, w_hh0, b0, w_ih1, w_hh1, b1, w_out, b_out)


def _round_up(x, m):
    return (x + m - 1) // m * m


@jax.jit
def lstm_forward(x, params):
    """x: (B, T, MODEL_DIM) float32 (PyTorch batch_first). Returns (B, 32)."""
    w_ih0, w_hh0, b0, w_ih1, w_hh1, b1, w_out, b_out = params
    B, T, D = x.shape
    G = 4 * HIDDEN

    # Batch tiling: multiple of 8 sublanes, capped at 128 for MXU/VMEM; split
    # into >=2 tiles for larger batches so the "parallel" grid axis can feed
    # both TensorCores on v7x.
    B8 = _round_up(B, 8)
    B_TILE = min(B8, 128)
    if B8 >= 64:
        B_TILE = min(B_TILE, _round_up((B8 + 1) // 2, 8))
    B_pad = _round_up(B, B_TILE)
    n_tiles = B_pad // B_TILE

    Tc = min(T, T_CHUNK_MAX)   # time-chunk for the hoisted projection scratch

    # (B, T, D) -> (n_tiles, T*B_TILE, D) bf16, time-major rows inside each tile.
    x_p = jnp.pad(x.astype(jnp.float32), ((0, B_pad - B), (0, 0), (0, 0)))
    x_tiles = (x_p.reshape(n_tiles, B_TILE, T, D)
               .transpose(0, 2, 1, 3)
               .reshape(n_tiles, T * B_TILE, D)
               .astype(jnp.bfloat16))

    # bf16 weights (MXU-native); biases and accumulators stay f32.
    wi0 = w_ih0.astype(jnp.bfloat16)
    wh0 = w_hh0.astype(jnp.bfloat16)
    wih1 = w_ih1.astype(jnp.bfloat16)
    whh1 = w_hh1.astype(jnp.bfloat16)
    # Lane-dense output projection: pad 32 -> 128 columns with zeros.
    wo = jnp.zeros((HIDDEN, OUT_PAD), jnp.float32).at[:, :EMBEDDING_DIM].set(w_out)
    wo = wo.astype(jnp.bfloat16)
    bo = jnp.zeros((1, OUT_PAD), jnp.float32).at[:, :EMBEDDING_DIM].set(b_out)

    grid_spec = pltpu.PrefetchScalarGridSpec(
        num_scalar_prefetch=0,
        grid=(n_tiles,),
        in_specs=[
            pl.BlockSpec((None, T * B_TILE, D), lambda n: (n, 0, 0)),    # x tile
            pl.BlockSpec((D, G), lambda n: (0, 0)),                      # wi0
            pl.BlockSpec((HIDDEN, G), lambda n: (0, 0)),                 # wh0
            pl.BlockSpec((1, G), lambda n: (0, 0)),                      # b0
            pl.BlockSpec((HIDDEN, G), lambda n: (0, 0)),                 # wih1
            pl.BlockSpec((HIDDEN, G), lambda n: (0, 0)),                 # whh1
            pl.BlockSpec((1, G), lambda n: (0, 0)),                      # b1
            pl.BlockSpec((HIDDEN, OUT_PAD), lambda n: (0, 0)),           # wo
            pl.BlockSpec((1, OUT_PAD), lambda n: (0, 0)),                # bo
        ],
        out_specs=pl.BlockSpec((B_TILE, OUT_PAD), lambda n: (n, 0)),
        scratch_shapes=[pltpu.VMEM((Tc * B_TILE, G), jnp.float32)],      # chunked gx
    )

    out = pl.pallas_call(
        _lstm_kernel,
        out_shape=jax.ShapeDtypeStruct((B_pad, OUT_PAD), jnp.float32),
        grid_spec=grid_spec,
        compiler_params=pltpu.CompilerParams(
            dimension_semantics=("parallel",),        # batch tiles: megacore on v7x
            vmem_limit_bytes=32 * 1024 * 1024,
        ),
    )(x_tiles, wi0, wh0, b0, wih1, whh1, b1, wo, bo)
    return out[:B, :EMBEDDING_DIM]


def _reference_forward(x, params):
    """Pure-JAX f32 reference of the PyTorch module forward (correctness check)."""
    w_ih0, w_hh0, b0, w_ih1, w_hh1, b1, w_out, b_out = params
    B, T, D = x.shape
    H = HIDDEN

    def cell(x_t, h, c, wi, wh, b):
        g = x_t @ wi + h @ wh + b
        i = jax.nn.sigmoid(g[:, :H])
        f = jax.nn.sigmoid(g[:, H:2 * H])
        gg = jnp.tanh(g[:, 2 * H:3 * H])
        o = jax.nn.sigmoid(g[:, 3 * H:])
        c = f * c + i * gg
        return o * jnp.tanh(c), c

    def scan_fn(carry, x_t):
        h1, c1, h2, c2 = carry
        h1, c1 = cell(x_t, h1, c1, w_ih0, w_hh0, b0)
        h2, c2 = cell(h1, h2, c2, w_ih1, w_hh1, b1)
        return (h1, c1, h2, c2), None

    z = jnp.zeros((B, H), jnp.float32)
    (_, _, h2, _), _ = lax.scan(scan_fn, (z, z, z, z), jnp.transpose(x, (1, 0, 2)))
    a = jnp.where(h2 > 0, h2, NEG_SLOPE * h2)
    y = a @ w_out + b_out
    n = jnp.sqrt(jnp.sum(y * y, axis=-1, keepdims=True))
    return y / jnp.maximum(n, NORM_EPS)


if __name__ == "__main__":
    key = jax.random.PRNGKey(0)
    k_x, k_p = jax.random.split(key)

    B, T = 2, 8
    x = jax.random.normal(k_x, (B, T, MODEL_DIM), jnp.float32)
    params = init_params(k_p)

    out = jax.block_until_ready(lstm_forward(x, params))

    assert out.shape == (B, EMBEDDING_DIM)
    assert bool(jnp.all(jnp.isfinite(out)))
    # rows are L2-normalized
    assert bool(jnp.allclose(jnp.linalg.norm(out, axis=-1), 1.0, atol=1e-5))
    # matches the pure-JAX f32 reference of the PyTorch forward (bf16 matmuls)
    ref = _reference_forward(x, params)
    assert bool(jnp.allclose(out, ref, atol=1e-2, rtol=1e-2))
    print("KERNEL_OK")
</pallas_src>

<mosaic_0001>
module attributes {stable_mosaic.version = 11 : i64} {
  func.func @_lstm_kernel(%arg0: i32, %arg1: memref<1x64x30xbf16, #tpu.memory_space<vmem>>, %arg2: memref<30x1024xbf16, #tpu.memory_space<vmem>>, %arg3: memref<256x1024xbf16, #tpu.memory_space<vmem>>, %arg4: memref<1x1024xf32, #tpu.memory_space<vmem>>, %arg5: memref<256x1024xbf16, #tpu.memory_space<vmem>>, %arg6: memref<256x1024xbf16, #tpu.memory_space<vmem>>, %arg7: memref<1x1024xf32, #tpu.memory_space<vmem>>, %arg8: memref<256x128xbf16, #tpu.memory_space<vmem>>, %arg9: memref<1x128xf32, #tpu.memory_space<vmem>>, %arg10: memref<8x128xf32, #tpu.memory_space<vmem>>, %arg11: memref<64x1024xf32, #tpu.memory_space<vmem>>) attributes {dimension_semantics = [#tpu.dimension_semantics<parallel>], iteration_bounds = array<i64: 1>, scalar_prefetch = 0 : i64, scratch_operands = 1 : i64, tpu.core_type = #tpu.core_type<tc>, window_params = [{transform_indices = @transform_0, window_bounds = array<i64: 1, 64, 30>}, {pipeline_mode = #tpu.pipeline_mode<synchronous>, transform_indices = @transform_1, window_bounds = array<i64: 30, 1024>}, {pipeline_mode = #tpu.pipeline_mode<synchronous>, transform_indices = @transform_2, window_bounds = array<i64: 256, 1024>}, {pipeline_mode = #tpu.pipeline_mode<synchronous>, transform_indices = @transform_3, window_bounds = array<i64: 1, 1024>}, {pipeline_mode = #tpu.pipeline_mode<synchronous>, transform_indices = @transform_4, window_bounds = array<i64: 256, 1024>}, {pipeline_mode = #tpu.pipeline_mode<synchronous>, transform_indices = @transform_5, window_bounds = array<i64: 256, 1024>}, {pipeline_mode = #tpu.pipeline_mode<synchronous>, transform_indices = @transform_6, window_bounds = array<i64: 1, 1024>}, {pipeline_mode = #tpu.pipeline_mode<synchronous>, transform_indices = @transform_7, window_bounds = array<i64: 256, 128>}, {pipeline_mode = #tpu.pipeline_mode<synchronous>, transform_indices = @transform_8, window_bounds = array<i64: 1, 128>}, {transform_indices = @transform_9, window_bounds = array<i64: 8, 128>}]} {
    %c0 = arith.constant 0 : index
    %c0_0 = arith.constant 0 : index
    %0 = vector.load %arg2[%c0, %c0_0] : memref<30x1024xbf16, #tpu.memory_space<vmem>>, vector<30x1024xbf16>
    %c0_1 = arith.constant 0 : index
    %c0_2 = arith.constant 0 : index
    %1 = vector.load %arg3[%c0_1, %c0_2] : memref<256x1024xbf16, #tpu.memory_space<vmem>>, vector<256x1024xbf16>
    %c0_3 = arith.constant 0 : index
    %c0_4 = arith.constant 0 : index
    %2 = vector.load %arg5[%c0_3, %c0_4] : memref<256x1024xbf16, #tpu.memory_space<vmem>>, vector<256x1024xbf16>
    %c0_5 = arith.constant 0 : index
    %c0_6 = arith.constant 0 : index
    %3 = vector.load %arg6[%c0_5, %c0_6] : memref<256x1024xbf16, #tpu.memory_space<vmem>>, vector<256x1024xbf16>
    %c0_7 = arith.constant 0 : index
    %c0_8 = arith.constant 0 : index
    %4 = vector.load %arg4[%c0_7, %c0_8] : memref<1x1024xf32, #tpu.memory_space<vmem>>, vector<1x1024xf32>
    %c0_9 = arith.constant 0 : index
    %c0_10 = arith.constant 0 : index
    %5 = vector.load %arg7[%c0_9, %c0_10] : memref<1x1024xf32, #tpu.memory_space<vmem>>, vector<1x1024xf32>
    %6 = vector.shape_cast %5 : vector<1x1024xf32> to vector<1x1024xf32>
    %7 = vector.broadcast %6 : vector<1x1024xf32> to vector<8x1024xf32>
    %cst = arith.constant 0.000000e+00 : f32
    %8 = vector.broadcast %cst : f32 to vector<8x256xf32>
    %c0_i32 = arith.constant 0 : i32
    %c64_i32 = arith.constant 64 : i32
    %9 = arith.muli %c0_i32, %c64_i32 : i32
    %10 = tpu.assume_multiple %9, 8 : i32
    %c0_11 = arith.constant 0 : index
    %11 = arith.index_cast %10 : i32 to index
    %c0_12 = arith.constant 0 : index
    %12 = vector.load %arg1[%c0_11, %11, %c0_12] : memref<1x64x30xbf16, #tpu.memory_space<vmem>>, vector<1x64x30xbf16>
    %13 = vector.shape_cast %12 : vector<1x64x30xbf16> to vector<64x30xbf16>
    %cst_13 = arith.constant dense<0.000000e+00> : vector<64x1024xf32>
    %14 = tpu.matmul %13, %0, %cst_13 {dimension_numbers = #tpu.dot_dimension_numbers<[1], [0], [0], [1], [0, 0, 1, 1], [], []>} : vector<64x30xbf16>, vector<30x1024xbf16>, vector<64x1024xf32> -> vector<64x1024xf32>
    %15 = vector.broadcast %4 : vector<1x1024xf32> to vector<64x1024xf32>
    %16 = arith.addf %14, %15 : vector<64x1024xf32>
    %c0_14 = arith.constant 0 : index
    %c0_15 = arith.constant 0 : index
    %17 = vector.load %arg11[%c0_14, %c0_15] : memref<64x1024xf32, #tpu.memory_space<vmem>>, vector<64x1024xf32>
    tpu.vector_store %arg11[%c0_14, %c0_15], %16 {strides = array<i32>} : memref<64x1024xf32, #tpu.memory_space<vmem>>, vector<64x1024xf32>,
    %c0_i32_16 = arith.constant 0 : i32
    %18 = arith.truncf %8 : vector<8x256xf32> to vector<8x256xbf16>
    %cst_17 = arith.constant dense<0.000000e+00> : vector<8x1024xf32>
    %19 = tpu.matmul %18, %3, %cst_17 {dimension_numbers = #tpu.dot_dimension_numbers<[1], [0], [0], [1], [0, 0, 1, 1], [], []>} : vector<8x256xbf16>, vector<256x1024xbf16>, vector<8x1024xf32> -> vector<8x1024xf32>
    %c8_i32 = arith.constant 8 : i32
    %20 = arith.muli %c0_i32_16, %c8_i32 : i32
    %21 = tpu.assume_multiple %20, 8 : i32
    %22 = arith.index_cast %21 : i32 to index
    %c0_18 = arith.constant 0 : index
    %23 = vector.load %arg11[%22, %c0_18] : memref<64x1024xf32, #tpu.memory_space<vmem>>, vector<8x1024xf32>
    %24 = arith.truncf %8 : vector<8x256xf32> to vector<8x256xbf16>
    %cst_19 = arith.constant dense<0.000000e+00> : vector<8x1024xf32>
    %25 = tpu.matmul %24, %1, %cst_19 {dimension_numbers = #tpu.dot_dimension_numbers<[1], [0], [0], [1], [0, 0, 1, 1], [], []>} : vector<8x256xbf16>, vector<256x1024xbf16>, vector<8x1024xf32> -> vector<8x1024xf32>
    %26 = arith.addf %23, %25 : vector<8x1024xf32>
    %27 = vector.extract_strided_slice %26 {offsets = [0, 0], sizes = [8, 256], strides = [1, 1]} : vector<8x1024xf32> to vector<8x256xf32>
    %28 = arith.negf %27 : vector<8x256xf32>
    %29 = math.exp %28 : vector<8x256xf32>
    %cst_20 = arith.constant 1.000000e+00 : f32
    %30 = vector.broadcast %cst_20 : f32 to vector<8x256xf32>
    %31 = arith.addf %30, %29 : vector<8x256xf32>
    %32 = arith.divf %30, %31 : vector<8x256xf32>
    %33 = vector.extract_strided_slice %26 {offsets = [0, 256], sizes = [8, 256], strides = [1, 1]} : vector<8x1024xf32> to vector<8x256xf32>
    %34 = arith.negf %33 : vector<8x256xf32>
    %35 = math.exp %34 : vector<8x256xf32>
    %cst_21 = arith.constant 1.000000e+00 : f32
    %36 = vector.broadcast %cst_21 : f32 to vector<8x256xf32>
    %37 = arith.addf %36, %35 : vector<8x256xf32>
    %38 = arith.divf %36, %37 : vector<8x256xf32>
    %39 = vector.extract_strided_slice %26 {offsets = [0, 512], sizes = [8, 256], strides = [1, 1]} : vector<8x1024xf32> to vector<8x256xf32>
    %40 = math.tanh %39 : vector<8x256xf32>
    %41 = vector.extract_strided_slice %26 {offsets = [0, 768], sizes = [8, 256], strides = [1, 1]} : vector<8x1024xf32> to vector<8x256xf32>
    %42 = arith.negf %41 : vector<8x256xf32>
    %43 = math.exp %42 : vector<8x256xf32>
    %cst_22 = arith.constant 1.000000e+00 : f32
    %44 = vector.broadcast %cst_22 : f32 to vector<8x256xf32>
    %45 = arith.addf %44, %43 : vector<8x256xf32>
    %46 = arith.divf %44, %45 : vector<8x256xf32>
    %47 = arith.mulf %38, %8 : vector<8x256xf32>
    %48 = arith.mulf %32, %40 : vector<8x256xf32>
    %49 = arith.addf %47, %48 : vector<8x256xf32>
    %50 = math.tanh %49 : vector<8x256xf32>
    %51 = arith.mulf %46, %50 : vector<8x256xf32>
    %52 = arith.truncf %51 : vector<8x256xf32> to vector<8x256xbf16>
    %cst_23 = arith.constant dense<0.000000e+00> : vector<8x1024xf32>
    %53 = tpu.matmul %52, %2, %cst_23 {dimension_numbers = #tpu.dot_dimension_numbers<[1], [0], [0], [1], [0, 0, 1, 1], [], []>} : vector<8x256xbf16>, vector<256x1024xbf16>, vector<8x1024xf32> -> vector<8x1024xf32>
    %54 = arith.addf %19, %53 : vector<8x1024xf32>
    %55 = arith.addf %54, %7 : vector<8x1024xf32>
    %56 = vector.extract_strided_slice %55 {offsets = [0, 0], sizes = [8, 256], strides = [1, 1]} : vector<8x1024xf32> to vector<8x256xf32>
    %57 = arith.negf %56 : vector<8x256xf32>
    %58 = math.exp %57 : vector<8x256xf32>
    %cst_24 = arith.constant 1.000000e+00 : f32
    %59 = vector.broadcast %cst_24 : f32 to vector<8x256xf32>
    %60 = arith.addf %59, %58 : vector<8x256xf32>
    %61 = arith.divf %59, %60 : vector<8x256xf32>
    %62 = vector.extract_strided_slice %55 {offsets = [0, 256], sizes = [8, 256], strides = [1, 1]} : vector<8x1024xf32> to vector<8x256xf32>
    %63 = arith.negf %62 : vector<8x256xf32>
    %64 = math.exp %63 : vector<8x256xf32>
    %cst_25 = arith.constant 1.000000e+00 : f32
    %65 = vector.broadcast %cst_25 : f32 to vector<8x256xf32>
    %66 = arith.addf %65, %64 : vector<8x256xf32>
    %67 = arith.divf %65, %66 : vector<8x256xf32>
    %68 = vector.extract_strided_slice %55 {offsets = [0, 512], sizes = [8, 256], strides = [1, 1]} : vector<8x1024xf32> to vector<8x256xf32>
    %69 = math.tanh %68 : vector<8x256xf32>
    %70 = vector.extract_strided_slice %55 {offsets = [0, 768], sizes = [8, 256], strides = [1, 1]} : vector<8x1024xf32> to vector<8x256xf32>
    %71 = arith.negf %70 : vector<8x256xf32>
    %72 = math.exp %71 : vector<8x256xf32>
    %cst_26 = arith.constant 1.000000e+00 : f32
    %73 = vector.broadcast %cst_26 : f32 to vector<8x256xf32>
    %74 = arith.addf %73, %72 : vector<8x256xf32>
    %75 = arith.divf %73, %74 : vector<8x256xf32>
    %76 = arith.mulf %67, %8 : vector<8x256xf32>
    %77 = arith.mulf %61, %69 : vector<8x256xf32>
    %78 = arith.addf %76, %77 : vector<8x256xf32>
    %79 = math.tanh %78 : vector<8x256xf32>
    %80 = arith.mulf %75, %79 : vector<8x256xf32>
    %c1_i32 = arith.constant 1 : i32
    %81 = arith.truncf %80 : vector<8x256xf32> to vector<8x256xbf16>
    %cst_27 = arith.constant dense<0.000000e+00> : vector<8x1024xf32>
    %82 = tpu.matmul %81, %3, %cst_27 {dimension_numbers = #tpu.dot_dimension_numbers<[1], [0], [0], [1], [0, 0, 1, 1], [], []>} : vector<8x256xbf16>, vector<256x1024xbf16>, vector<8x1024xf32> -> vector<8x1024xf32>
    %c8_i32_28 = arith.constant 8 : i32
    %83 = arith.muli %c1_i32, %c8_i32_28 : i32
    %84 = tpu.assume_multiple %83, 8 : i32
    %85 = arith.index_cast %84 : i32 to index
    %c0_29 = arith.constant 0 : index
    %86 = vector.load %arg11[%85, %c0_29] : memref<64x1024xf32, #tpu.memory_space<vmem>>, vector<8x1024xf32>
    %87 = arith.truncf %51 : vector<8x256xf32> to vector<8x256xbf16>
    %cst_30 = arith.constant dense<0.000000e+00> : vector<8x1024xf32>
    %88 = tpu.matmul %87, %1, %cst_30 {dimension_numbers = #tpu.dot_dimension_numbers<[1], [0], [0], [1], [0, 0, 1, 1], [], []>} : vector<8x256xbf16>, vector<256x1024xbf16>, vector<8x1024xf32> -> vector<8x1024xf32>
    %89 = arith.addf %86, %88 : vector<8x1024xf32>
    %90 = vector.extract_strided_slice %89 {offsets = [0, 0], sizes = [8, 256], strides = [1, 1]} : vector<8x1024xf32> to vector<8x256xf32>
    %91 = arith.negf %90 : vector<8x256xf32>
    %92 = math.exp %91 : vector<8x256xf32>
    %cst_31 = arith.constant 1.000000e+00 : f32
    %93 = vector.broadcast %cst_31 : f32 to vector<8x256xf32>
    %94 = arith.addf %93, %92 : vector<8x256xf32>
    %95 = arith.divf %93, %94 : vector<8x256xf32>
    %96 = vector.extract_strided_slice %89 {offsets = [0, 256], sizes = [8, 256], strides = [1, 1]} : vector<8x1024xf32> to vector<8x256xf32>
    %97 = arith.negf %96 : vector<8x256xf32>
    %98 = math.exp %97 : vector<8x256xf32>
    %cst_32 = arith.constant 1.000000e+00 : f32
    %99 = vector.broadcast %cst_32 : f32 to vector<8x256xf32>
    %100 = arith.addf %99, %98 : vector<8x256xf32>
    %101 = arith.divf %99, %100 : vector<8x256xf32>
    %102 = vector.extract_strided_slice %89 {offsets = [0, 512], sizes = [8, 256], strides = [1, 1]} : vector<8x1024xf32> to vector<8x256xf32>
    %103 = math.tanh %102 : vector<8x256xf32>
    %104 = vector.extract_strided_slice %89 {offsets = [0, 768], sizes = [8, 256], strides = [1, 1]} : vector<8x1024xf32> to vector<8x256xf32>
    %105 = arith.negf %104 : vector<8x256xf32>
    %106 = math.exp %105 : vector<8x256xf32>
    %cst_33 = arith.constant 1.000000e+00 : f32
    %107 = vector.broadcast %cst_33 : f32 to vector<8x256xf32>
    %108 = arith.addf %107, %106 : vector<8x256xf32>
    %109 = arith.divf %107, %108 : vector<8x256xf32>
    %110 = arith.mulf %101, %49 : vector<8x256xf32>
    %111 = arith.mulf %95, %103 : vector<8x256xf32>
    %112 = arith.addf %110, %111 : vector<8x256xf32>
    %113 = math.tanh %112 : vector<8x256xf32>
    %114 = arith.mulf %109, %113 : vector<8x256xf32>
    %115 = arith.truncf %114 : vector<8x256xf32> to vector<8x256xbf16>
    %cst_34 = arith.constant dense<0.000000e+00> : vector<8x1024xf32>
    %116 = tpu.matmul %115, %2, %cst_34 {dimension_numbers = #tpu.dot_dimension_numbers<[1], [0], [0], [1], [0, 0, 1, 1], [], []>} : vector<8x256xbf16>, vector<256x1024xbf16>, vector<8x1024xf32> -> vector<8x1024xf32>
    %117 = arith.addf %82, %116 : vector<8x1024xf32>
    %118 = arith.addf %117, %7 : vector<8x1024xf32>
    %119 = vector.extract_strided_slice %118 {offsets = [0, 0], sizes = [8, 256], strides = [1, 1]} : vector<8x1024xf32> to vector<8x256xf32>
    %120 = arith.negf %119 : vector<8x256xf32>
    %121 = math.exp %120 : vector<8x256xf32>
    %cst_35 = arith.constant 1.000000e+00 : f32
    %122 = vector.broadcast %cst_35 : f32 to vector<8x256xf32>
    %123 = arith.addf %122, %121 : vector<8x256xf32>
    %124 = arith.divf %122, %123 : vector<8x256xf32>
    %125 = vector.extract_strided_slice %118 {offsets = [0, 256], sizes = [8, 256], strides = [1, 1]} : vector<8x1024xf32> to vector<8x256xf32>
    %126 = arith.negf %125 : vector<8x256xf32>
    %127 = math.exp %126 : vector<8x256xf32>
    %cst_36 = arith.constant 1.000000e+00 : f32
    %128 = vector.broadcast %cst_36 : f32 to vector<8x256xf32>
    %129 = arith.addf %128, %127 : vector<8x256xf32>
    %130 = arith.divf %128, %129 : vector<8x256xf32>
    %131 = vector.extract_strided_slice %118 {offsets = [0, 512], sizes = [8, 256], strides = [1, 1]} : vector<8x1024xf32> to vector<8x256xf32>
    %132 = math.tanh %131 : vector<8x256xf32>
    %133 = vector.extract_strided_slice %118 {offsets = [0, 768], sizes = [8, 256], strides = [1, 1]} : vector<8x1024xf32> to vector<8x256xf32>
    %134 = arith.negf %133 : vector<8x256xf32>
    %135 = math.exp %134 : vector<8x256xf32>
    %cst_37 = arith.constant 1.000000e+00 : f32
    %136 = vector.broadcast %cst_37 : f32 to vector<8x256xf32>
    %137 = arith.addf %136, %135 : vector<8x256xf32>
    %138 = arith.divf %136, %137 : vector<8x256xf32>
    %139 = arith.mulf %130, %78 : vector<8x256xf32>
    %140 = arith.mulf %124, %132 : vector<8x256xf32>
    %141 = arith.addf %139, %140 : vector<8x256xf32>
    %142 = math.tanh %141 : vector<8x256xf32>
    %143 = arith.mulf %138, %142 : vector<8x256xf32>
    %c2_i32 = arith.constant 2 : i32
    %144 = arith.truncf %143 : vector<8x256xf32> to vector<8x256xbf16>
    %cst_38 = arith.constant dense<0.000000e+00> : vector<8x1024xf32>
    %145 = tpu.matmul %144, %3, %cst_38 {dimension_numbers = #tpu.dot_dimension_numbers<[1], [0], [0], [1], [0, 0, 1, 1], [], []>} : vector<8x256xbf16>, vector<256x1024xbf16>, vector<8x1024xf32> -> vector<8x1024xf32>
    %c8_i32_39 = arith.constant 8 : i32
    %146 = arith.muli %c2_i32, %c8_i32_39 : i32
    %147 = tpu.assume_multiple %146, 8 : i32
    %148 = arith.index_cast %147 : i32 to index
    %c0_40 = arith.constant 0 : index
    %149 = vector.load %arg11[%148, %c0_40] : memref<64x1024xf32, #tpu.memory_space<vmem>>, vector<8x1024xf32>
    %150 = arith.truncf %114 : vector<8x256xf32> to vector<8x256xbf16>
    %cst_41 = arith.constant dense<0.000000e+00> : vector<8x1024xf32>
    %151 = tpu.matmul %150, %1, %cst_41 {dimension_numbers = #tpu.dot_dimension_numbers<[1], [0], [0], [1], [0, 0, 1, 1], [], []>} : vector<8x256xbf16>, vector<256x1024xbf16>, vector<8x1024xf32> -> vector<8x1024xf32>
    %152 = arith.addf %149, %151 : vector<8x1024xf32>
    %153 = vector.extract_strided_slice %152 {offsets = [0, 0], sizes = [8, 256], strides = [1, 1]} : vector<8x1024xf32> to vector<8x256xf32>
    %154 = arith.negf %153 : vector<8x256xf32>
    %155 = math.exp %154 : vector<8x256xf32>
    %cst_42 = arith.constant 1.000000e+00 : f32
    %156 = vector.broadcast %cst_42 : f32 to vector<8x256xf32>
    %157 = arith.addf %156, %155 : vector<8x256xf32>
    %158 = arith.divf %156, %157 : vector<8x256xf32>
    %159 = vector.extract_strided_slice %152 {offsets = [0, 256], sizes = [8, 256], strides = [1, 1]} : vector<8x1024xf32> to vector<8x256xf32>
    %160 = arith.negf %159 : vector<8x256xf32>
    %161 = math.exp %160 : vector<8x256xf32>
    %cst_43 = arith.constant 1.000000e+00 : f32
    %162 = vector.broadcast %cst_43 : f32 to vector<8x256xf32>
    %163 = arith.addf %162, %161 : vector<8x256xf32>
    %164 = arith.divf %162, %163 : vector<8x256xf32>
    %165 = vector.extract_strided_slice %152 {offsets = [0, 512], sizes = [8, 256], strides = [1, 1]} : vector<8x1024xf32> to vector<8x256xf32>
    %166 = math.tanh %165 : vector<8x256xf32>
    %167 = vector.extract_strided_slice %152 {offsets = [0, 768], sizes = [8, 256], strides = [1, 1]} : vector<8x1024xf32> to vector<8x256xf32>
    %168 = arith.negf %167 : vector<8x256xf32>
    %169 = math.exp %168 : vector<8x256xf32>
    %cst_44 = arith.constant 1.000000e+00 : f32
    %170 = vector.broadcast %cst_44 : f32 to vector<8x256xf32>
    %171 = arith.addf %170, %169 : vector<8x256xf32>
    %172 = arith.divf %170, %171 : vector<8x256xf32>
    %173 = arith.mulf %164, %112 : vector<8x256xf32>
    %174 = arith.mulf %158, %166 : vector<8x256xf32>
    %175 = arith.addf %173, %174 : vector<8x256xf32>
    %176 = math.tanh %175 : vector<8x256xf32>
    %177 = arith.mulf %172, %176 : vector<8x256xf32>
    %178 = arith.truncf %177 : vector<8x256xf32> to vector<8x256xbf16>
    %cst_45 = arith.constant dense<0.000000e+00> : vector<8x1024xf32>
    %179 = tpu.matmul %178, %2, %cst_45 {dimension_numbers = #tpu.dot_dimension_numbers<[1], [0], [0], [1], [0, 0, 1, 1], [], []>} : vector<8x256xbf16>, vector<256x1024xbf16>, vector<8x1024xf32> -> vector<8x1024xf32>
    %180 = arith.addf %145, %179 : vector<8x1024xf32>
    %181 = arith.addf %180, %7 : vector<8x1024xf32>
    %182 = vector.extract_strided_slice %181 {offsets = [0, 0], sizes = [8, 256], strides = [1, 1]} : vector<8x1024xf32> to vector<8x256xf32>
    %183 = arith.negf %182 : vector<8x256xf32>
    %184 = math.exp %183 : vector<8x256xf32>
    %cst_46 = arith.constant 1.000000e+00 : f32
    %185 = vector.broadcast %cst_46 : f32 to vector<8x256xf32>
    %186 = arith.addf %185, %184 : vector<8x256xf32>
    %187 = arith.divf %185, %186 : vector<8x256xf32>
    %188 = vector.extract_strided_slice %181 {offsets = [0, 256], sizes = [8, 256], strides = [1, 1]} : vector<8x1024xf32> to vector<8x256xf32>
    %189 = arith.negf %188 : vector<8x256xf32>
    %190 = math.exp %189 : vector<8x256xf32>
    %cst_47 = arith.constant 1.000000e+00 : f32
    %191 = vector.broadcast %cst_47 : f32 to vector<8x256xf32>
    %192 = arith.addf %191, %190 : vector<8x256xf32>
    %193 = arith.divf %191, %192 : vector<8x256xf32>
    %194 = vector.extract_strided_slice %181 {offsets = [0, 512], sizes = [8, 256], strides = [1, 1]} : vector<8x1024xf32> to vector<8x256xf32>
    %195 = math.tanh %194 : vector<8x256xf32>
    %196 = vector.extract_strided_slice %181 {offsets = [0, 768], sizes = [8, 256], strides = [1, 1]} : vector<8x1024xf32> to vector<8x256xf32>
    %197 = arith.negf %196 : vector<8x256xf32>
    %198 = math.exp %197 : vector<8x256xf32>
    %cst_48 = arith.constant 1.000000e+00 : f32
    %199 = vector.broadcast %cst_48 : f32 to vector<8x256xf32>
    %200 = arith.addf %199, %198 : vector<8x256xf32>
    %201 = arith.divf %199, %200 : vector<8x256xf32>
    %202 = arith.mulf %193, %141 : vector<8x256xf32>
    %203 = arith.mulf %187, %195 : vector<8x256xf32>
    %204 = arith.addf %202, %203 : vector<8x256xf32>
    %205 = math.tanh %204 : vector<8x256xf32>
    %206 = arith.mulf %201, %205 : vector<8x256xf32>
    %c3_i32 = arith.constant 3 : i32
    %207 = arith.truncf %206 : vector<8x256xf32> to vector<8x256xbf16>
    %cst_49 = arith.constant dense<0.000000e+00> : vector<8x1024xf32>
    %208 = tpu.matmul %207, %3, %cst_49 {dimension_numbers = #tpu.dot_dimension_numbers<[1], [0], [0], [1], [0, 0, 1, 1], [], []>} : vector<8x256xbf16>, vector<256x1024xbf16>, vector<8x1024xf32> -> vector<8x1024xf32>
    %c8_i32_50 = arith.constant 8 : i32
    %209 = arith.muli %c3_i32, %c8_i32_50 : i32
    %210 = tpu.assume_multiple %209, 8 : i32
    %211 = arith.index_cast %210 : i32 to index
    %c0_51 = arith.constant 0 : index
    %212 = vector.load %arg11[%211, %c0_51] : memref<64x1024xf32, #tpu.memory_space<vmem>>, vector<8x1024xf32>
    %213 = arith.truncf %177 : vector<8x256xf32> to vector<8x256xbf16>
    %cst_52 = arith.constant dense<0.000000e+00> : vector<8x1024xf32>
    %214 = tpu.matmul %213, %1, %cst_52 {dimension_numbers = #tpu.dot_dimension_numbers<[1], [0], [0], [1], [0, 0, 1, 1], [], []>} : vector<8x256xbf16>, vector<256x1024xbf16>, vector<8x1024xf32> -> vector<8x1024xf32>
    %215 = arith.addf %212, %214 : vector<8x1024xf32>
    %216 = vector.extract_strided_slice %215 {offsets = [0, 0], sizes = [8, 256], strides = [1, 1]} : vector<8x1024xf32> to vector<8x256xf32>
    %217 = arith.negf %216 : vector<8x256xf32>
    %218 = math.exp %217 : vector<8x256xf32>
    %cst_53 = arith.constant 1.000000e+00 : f32
    %219 = vector.broadcast %cst_53 : f32 to vector<8x256xf32>
    %220 = arith.addf %219, %218 : vector<8x256xf32>
    %221 = arith.divf %219, %220 : vector<8x256xf32>
    %222 = vector.extract_strided_slice %215 {offsets = [0, 256], sizes = [8, 256], strides = [1, 1]} : vector<8x1024xf32> to vector<8x256xf32>
    %223 = arith.negf %222 : vector<8x256xf32>
    %224 = math.exp %223 : vector<8x256xf32>
    %cst_54 = arith.constant 1.000000e+00 : f32
    %225 = vector.broadcast %cst_54 : f32 to vector<8x256xf32>
    %226 = arith.addf %225, %224 : vector<8x256xf32>
    %227 = arith.divf %225, %226 : vector<8x256xf32>
    %228 = vector.extract_strided_slice %215 {offsets = [0, 512], sizes = [8, 256], strides = [1, 1]} : vector<8x1024xf32> to vector<8x256xf32>
    %229 = math.tanh %228 : vector<8x256xf32>
    %230 = vector.extract_strided_slice %215 {offsets = [0, 768], sizes = [8, 256], strides = [1, 1]} : vector<8x1024xf32> to vector<8x256xf32>
    %231 = arith.negf %230 : vector<8x256xf32>
    %232 = math.exp %231 : vector<8x256xf32>
    %cst_55 = arith.constant 1.000000e+00 : f32
    %233 = vector.broadcast %cst_55 : f32 to vector<8x256xf32>
    %234 = arith.addf %233, %232 : vector<8x256xf32>
    %235 = arith.divf %233, %234 : vector<8x256xf32>
    %236 = arith.mulf %227, %175 : vector<8x256xf32>
    %237 = arith.mulf %221, %229 : vector<8x256xf32>
    %238 = arith.addf %236, %237 : vector<8x256xf32>
    %239 = math.tanh %238 : vector<8x256xf32>
    %240 = arith.mulf %235, %239 : vector<8x256xf32>
    %241 = arith.truncf %240 : vector<8x256xf32> to vector<8x256xbf16>
    %cst_56 = arith.constant dense<0.000000e+00> : vector<8x1024xf32>
    %242 = tpu.matmul %241, %2, %cst_56 {dimension_numbers = #tpu.dot_dimension_numbers<[1], [0], [0], [1], [0, 0, 1, 1], [], []>} : vector<8x256xbf16>, vector<256x1024xbf16>, vector<8x1024xf32> -> vector<8x1024xf32>
    %243 = arith.addf %208, %242 : vector<8x1024xf32>
    %244 = arith.addf %243, %7 : vector<8x1024xf32>
    %245 = vector.extract_strided_slice %244 {offsets = [0, 0], sizes = [8, 256], strides = [1, 1]} : vector<8x1024xf32> to vector<8x256xf32>
    %246 = arith.negf %245 : vector<8x256xf32>
    %247 = math.exp %246 : vector<8x256xf32>
    %cst_57 = arith.constant 1.000000e+00 : f32
    %248 = vector.broadcast %cst_57 : f32 to vector<8x256xf32>
    %249 = arith.addf %248, %247 : vector<8x256xf32>
    %250 = arith.divf %248, %249 : vector<8x256xf32>
    %251 = vector.extract_strided_slice %244 {offsets = [0, 256], sizes = [8, 256], strides = [1, 1]} : vector<8x1024xf32> to vector<8x256xf32>
    %252 = arith.negf %251 : vector<8x256xf32>
    %253 = math.exp %252 : vector<8x256xf32>
    %cst_58 = arith.constant 1.000000e+00 : f32
    %254 = vector.broadcast %cst_58 : f32 to vector<8x256xf32>
    %255 = arith.addf %254, %253 : vector<8x256xf32>
    %256 = arith.divf %254, %255 : vector<8x256xf32>
    %257 = vector.extract_strided_slice %244 {offsets = [0, 512], sizes = [8, 256], strides = [1, 1]} : vector<8x1024xf32> to vector<8x256xf32>
    %258 = math.tanh %257 : vector<8x256xf32>
    %259 = vector.extract_strided_slice %244 {offsets = [0, 768], sizes = [8, 256], strides = [1, 1]} : vector<8x1024xf32> to vector<8x256xf32>
    %260 = arith.negf %259 : vector<8x256xf32>
    %261 = math.exp %260 : vector<8x256xf32>
    %cst_59 = arith.constant 1.000000e+00 : f32
    %262 = vector.broadcast %cst_59 : f32 to vector<8x256xf32>
    %263 = arith.addf %262, %261 : vector<8x256xf32>
    %264 = arith.divf %262, %263 : vector<8x256xf32>
    %265 = arith.mulf %256, %204 : vector<8x256xf32>
    %266 = arith.mulf %250, %258 : vector<8x256xf32>
    %267 = arith.addf %265, %266 : vector<8x256xf32>
    %268 = math.tanh %267 : vector<8x256xf32>
    %269 = arith.mulf %264, %268 : vector<8x256xf32>
    %c4_i32 = arith.constant 4 : i32
    %270 = arith.truncf %269 : vector<8x256xf32> to vector<8x256xbf16>
    %cst_60 = arith.constant dense<0.000000e+00> : vector<8x1024xf32>
    %271 = tpu.matmul %270, %3, %cst_60 {dimension_numbers = #tpu.dot_dimension_numbers<[1], [0], [0], [1], [0, 0, 1, 1], [], []>} : vector<8x256xbf16>, vector<256x1024xbf16>, vector<8x1024xf32> -> vector<8x1024xf32>
    %c8_i32_61 = arith.constant 8 : i32
    %272 = arith.muli %c4_i32, %c8_i32_61 : i32
    %273 = tpu.assume_multiple %272, 8 : i32
    %274 = arith.index_cast %273 : i32 to index
    %c0_62 = arith.constant 0 : index
    %275 = vector.load %arg11[%274, %c0_62] : memref<64x1024xf32, #tpu.memory_space<vmem>>, vector<8x1024xf32>
    %276 = arith.truncf %240 : vector<8x256xf32> to vector<8x256xbf16>
    %cst_63 = arith.constant dense<0.000000e+00> : vector<8x1024xf32>
    %277 = tpu.matmul %276, %1, %cst_63 {dimension_numbers = #tpu.dot_dimension_numbers<[1], [0], [0], [1], [0, 0, 1, 1], [], []>} : vector<8x256xbf16>, vector<256x1024xbf16>, vector<8x1024xf32> -> vector<8x1024xf32>
    %278 = arith.addf %275, %277 : vector<8x1024xf32>
    %279 = vector.extract_strided_slice %278 {offsets = [0, 0], sizes = [8, 256], strides = [1, 1]} : vector<8x1024xf32> to vector<8x256xf32>
    %280 = arith.negf %279 : vector<8x256xf32>
    %281 = math.exp %280 : vector<8x256xf32>
    %cst_64 = arith.constant 1.000000e+00 : f32
    %282 = vector.broadcast %cst_64 : f32 to vector<8x256xf32>
    %283 = arith.addf %282, %281 : vector<8x256xf32>
    %284 = arith.divf %282, %283 : vector<8x256xf32>
    %285 = vector.extract_strided_slice %278 {offsets = [0, 256], sizes = [8, 256], strides = [1, 1]} : vector<8x1024xf32> to vector<8x256xf32>
    %286 = arith.negf %285 : vector<8x256xf32>
    %287 = math.exp %286 : vector<8x256xf32>
    %cst_65 = arith.constant 1.000000e+00 : f32
    %288 = vector.broadcast %cst_65 : f32 to vector<8x256xf32>
    %289 = arith.addf %288, %287 : vector<8x256xf32>
    %290 = arith.divf %288, %289 : vector<8x256xf32>
    %291 = vector.extract_strided_slice %278 {offsets = [0, 512], sizes = [8, 256], strides = [1, 1]} : vector<8x1024xf32> to vector<8x256xf32>
    %292 = math.tanh %291 : vector<8x256xf32>
    %293 = vector.extract_strided_slice %278 {offsets = [0, 768], sizes = [8, 256], strides = [1, 1]} : vector<8x1024xf32> to vector<8x256xf32>
    %294 = arith.negf %293 : vector<8x256xf32>
    %295 = math.exp %294 : vector<8x256xf32>
    %cst_66 = arith.constant 1.000000e+00 : f32
    %296 = vector.broadcast %cst_66 : f32 to vector<8x256xf32>
    %297 = arith.addf %296, %295 : vector<8x256xf32>
    %298 = arith.divf %296, %297 : vector<8x256xf32>
    %299 = arith.mulf %290, %238 : vector<8x256xf32>
    %300 = arith.mulf %284, %292 : vector<8x256xf32>
    %301 = arith.addf %299, %300 : vector<8x256xf32>
    %302 = math.tanh %301 : vector<8x256xf32>
    %303 = arith.mulf %298, %302 : vector<8x256xf32>
    %304 = arith.truncf %303 : vector<8x256xf32> to vector<8x256xbf16>
    %cst_67 = arith.constant dense<0.000000e+00> : vector<8x1024xf32>
    %305 = tpu.matmul %304, %2, %cst_67 {dimension_numbers = #tpu.dot_dimension_numbers<[1], [0], [0], [1], [0, 0, 1, 1], [], []>} : vector<8x256xbf16>, vector<256x1024xbf16>, vector<8x1024xf32> -> vector<8x1024xf32>
    %306 = arith.addf %271, %305 : vector<8x1024xf32>
    %307 = arith.addf %306, %7 : vector<8x1024xf32>
    %308 = vector.extract_strided_slice %307 {offsets = [0, 0], sizes = [8, 256], strides = [1, 1]} : vector<8x1024xf32> to vector<8x256xf32>
    %309 = arith.negf %308 : vector<8x256xf32>
    %310 = math.exp %309 : vector<8x256xf32>
    %cst_68 = arith.constant 1.000000e+00 : f32
    %311 = vector.broadcast %cst_68 : f32 to vector<8x256xf32>
    %312 = arith.addf %311, %310 : vector<8x256xf32>
    %313 = arith.divf %311, %312 : vector<8x256xf32>
    %314 = vector.extract_strided_slice %307 {offsets = [0, 256], sizes = [8, 256], strides = [1, 1]} : vector<8x1024xf32> to vector<8x256xf32>
    %315 = arith.negf %314 : vector<8x256xf32>
    %316 = math.exp %315 : vector<8x256xf32>
    %cst_69 = arith.constant 1.000000e+00 : f32
    %317 = vector.broadcast %cst_69 : f32 to vector<8x256xf32>
    %318 = arith.addf %317, %316 : vector<8x256xf32>
    %319 = arith.divf %317, %318 : vector<8x256xf32>
    %320 = vector.extract_strided_slice %307 {offsets = [0, 512], sizes = [8, 256], strides = [1, 1]} : vector<8x1024xf32> to vector<8x256xf32>
    %321 = math.tanh %320 : vector<8x256xf32>
    %322 = vector.extract_strided_slice %307 {offsets = [0, 768], sizes = [8, 256], strides = [1, 1]} : vector<8x1024xf32> to vector<8x256xf32>
    %323 = arith.negf %322 : vector<8x256xf32>
    %324 = math.exp %323 : vector<8x256xf32>
    %cst_70 = arith.constant 1.000000e+00 : f32
    %325 = vector.broadcast %cst_70 : f32 to vector<8x256xf32>
    %326 = arith.addf %325, %324 : vector<8x256xf32>
    %327 = arith.divf %325, %326 : vector<8x256xf32>
    %328 = arith.mulf %319, %267 : vector<8x256xf32>
    %329 = arith.mulf %313, %321 : vector<8x256xf32>
    %330 = arith.addf %328, %329 : vector<8x256xf32>
    %331 = math.tanh %330 : vector<8x256xf32>
    %332 = arith.mulf %327, %331 : vector<8x256xf32>
    %c5_i32 = arith.constant 5 : i32
    %333 = arith.truncf %332 : vector<8x256xf32> to vector<8x256xbf16>
    %cst_71 = arith.constant dense<0.000000e+00> : vector<8x1024xf32>
    %334 = tpu.matmul %333, %3, %cst_71 {dimension_numbers = #tpu.dot_dimension_numbers<[1], [0], [0], [1], [0, 0, 1, 1], [], []>} : vector<8x256xbf16>, vector<256x1024xbf16>, vector<8x1024xf32> -> vector<8x1024xf32>
    %c8_i32_72 = arith.constant 8 : i32
    %335 = arith.muli %c5_i32, %c8_i32_72 : i32
    %336 = tpu.assume_multiple %335, 8 : i32
    %337 = arith.index_cast %336 : i32 to index
    %c0_73 = arith.constant 0 : index
    %338 = vector.load %arg11[%337, %c0_73] : memref<64x1024xf32, #tpu.memory_space<vmem>>, vector<8x1024xf32>
    %339 = arith.truncf %303 : vector<8x256xf32> to vector<8x256xbf16>
    %cst_74 = arith.constant dense<0.000000e+00> : vector<8x1024xf32>
    %340 = tpu.matmul %339, %1, %cst_74 {dimension_numbers = #tpu.dot_dimension_numbers<[1], [0], [0], [1], [0, 0, 1, 1], [], []>} : vector<8x256xbf16>, vector<256x1024xbf16>, vector<8x1024xf32> -> vector<8x1024xf32>
    %341 = arith.addf %338, %340 : vector<8x1024xf32>
    %342 = vector.extract_strided_slice %341 {offsets = [0, 0], sizes = [8, 256], strides = [1, 1]} : vector<8x1024xf32> to vector<8x256xf32>
    %343 = arith.negf %342 : vector<8x256xf32>
    %344 = math.exp %343 : vector<8x256xf32>
    %cst_75 = arith.constant 1.000000e+00 : f32
    %345 = vector.broadcast %cst_75 : f32 to vector<8x256xf32>
    %346 = arith.addf %345, %344 : vector<8x256xf32>
    %347 = arith.divf %345, %346 : vector<8x256xf32>
    %348 = vector.extract_strided_slice %341 {offsets = [0, 256], sizes = [8, 256], strides = [1, 1]} : vector<8x1024xf32> to vector<8x256xf32>
    %349 = arith.negf %348 : vector<8x256xf32>
    %350 = math.exp %349 : vector<8x256xf32>
    %cst_76 = arith.constant 1.000000e+00 : f32
    %351 = vector.broadcast %cst_76 : f32 to vector<8x256xf32>
    %352 = arith.addf %351, %350 : vector<8x256xf32>
    %353 = arith.divf %351, %352 : vector<8x256xf32>
    %354 = vector.extract_strided_slice %341 {offsets = [0, 512], sizes = [8, 256], strides = [1, 1]} : vector<8x1024xf32> to vector<8x256xf32>
    %355 = math.tanh %354 : vector<8x256xf32>
    %356 = vector.extract_strided_slice %341 {offsets = [0, 768], sizes = [8, 256], strides = [1, 1]} : vector<8x1024xf32> to vector<8x256xf32>
    %357 = arith.negf %356 : vector<8x256xf32>
    %358 = math.exp %357 : vector<8x256xf32>
    %cst_77 = arith.constant 1.000000e+00 : f32
    %359 = vector.broadcast %cst_77 : f32 to vector<8x256xf32>
    %360 = arith.addf %359, %358 : vector<8x256xf32>
    %361 = arith.divf %359, %360 : vector<8x256xf32>
    %362 = arith.mulf %353, %301 : vector<8x256xf32>
    %363 = arith.mulf %347, %355 : vector<8x256xf32>
    %364 = arith.addf %362, %363 : vector<8x256xf32>
    %365 = math.tanh %364 : vector<8x256xf32>
    %366 = arith.mulf %361, %365 : vector<8x256xf32>
    %367 = arith.truncf %366 : vector<8x256xf32> to vector<8x256xbf16>
    %cst_78 = arith.constant dense<0.000000e+00> : vector<8x1024xf32>
    %368 = tpu.matmul %367, %2, %cst_78 {dimension_numbers = #tpu.dot_dimension_numbers<[1], [0], [0], [1], [0, 0, 1, 1], [], []>} : vector<8x256xbf16>, vector<256x1024xbf16>, vector<8x1024xf32> -> vector<8x1024xf32>
    %369 = arith.addf %334, %368 : vector<8x1024xf32>
    %370 = arith.addf %369, %7 : vector<8x1024xf32>
    %371 = vector.extract_strided_slice %370 {offsets = [0, 0], sizes = [8, 256], strides = [1, 1]} : vector<8x1024xf32> to vector<8x256xf32>
    %372 = arith.negf %371 : vector<8x256xf32>
    %373 = math.exp %372 : vector<8x256xf32>
    %cst_79 = arith.constant 1.000000e+00 : f32
    %374 = vector.broadcast %cst_79 : f32 to vector<8x256xf32>
    %375 = arith.addf %374, %373 : vector<8x256xf32>
    %376 = arith.divf %374, %375 : vector<8x256xf32>
    %377 = vector.extract_strided_slice %370 {offsets = [0, 256], sizes = [8, 256], strides = [1, 1]} : vector<8x1024xf32> to vector<8x256xf32>
    %378 = arith.negf %377 : vector<8x256xf32>
    %379 = math.exp %378 : vector<8x256xf32>
    %cst_80 = arith.constant 1.000000e+00 : f32
    %380 = vector.broadcast %cst_80 : f32 to vector<8x256xf32>
    %381 = arith.addf %380, %379 : vector<8x256xf32>
    %382 = arith.divf %380, %381 : vector<8x256xf32>
    %383 = vector.extract_strided_slice %370 {offsets = [0, 512], sizes = [8, 256], strides = [1, 1]} : vector<8x1024xf32> to vector<8x256xf32>
    %384 = math.tanh %383 : vector<8x256xf32>
    %385 = vector.extract_strided_slice %370 {offsets = [0, 768], sizes = [8, 256], strides = [1, 1]} : vector<8x1024xf32> to vector<8x256xf32>
    %386 = arith.negf %385 : vector<8x256xf32>
    %387 = math.exp %386 : vector<8x256xf32>
    %cst_81 = arith.constant 1.000000e+00 : f32
    %388 = vector.broadcast %cst_81 : f32 to vector<8x256xf32>
    %389 = arith.addf %388, %387 : vector<8x256xf32>
    %390 = arith.divf %388, %389 : vector<8x256xf32>
    %391 = arith.mulf %382, %330 : vector<8x256xf32>
    %392 = arith.mulf %376, %384 : vector<8x256xf32>
    %393 = arith.addf %391, %392 : vector<8x256xf32>
    %394 = math.tanh %393 : vector<8x256xf32>
    %395 = arith.mulf %390, %394 : vector<8x256xf32>
    %c6_i32 = arith.constant 6 : i32
    %396 = arith.truncf %395 : vector<8x256xf32> to vector<8x256xbf16>
    %cst_82 = arith.constant dense<0.000000e+00> : vector<8x1024xf32>
    %397 = tpu.matmul %396, %3, %cst_82 {dimension_numbers = #tpu.dot_dimension_numbers<[1], [0], [0], [1], [0, 0, 1, 1], [], []>} : vector<8x256xbf16>, vector<256x1024xbf16>, vector<8x1024xf32> -> vector<8x1024xf32>
    %c8_i32_83 = arith.constant 8 : i32
    %398 = arith.muli %c6_i32, %c8_i32_83 : i32
    %399 = tpu.assume_multiple %398, 8 : i32
    %400 = arith.index_cast %399 : i32 to index
    %c0_84 = arith.constant 0 : index
    %401 = vector.load %arg11[%400, %c0_84] : memref<64x1024xf32, #tpu.memory_space<vmem>>, vector<8x1024xf32>
    %402 = arith.truncf %366 : vector<8x256xf32> to vector<8x256xbf16>
    %cst_85 = arith.constant dense<0.000000e+00> : vector<8x1024xf32>
    %403 = tpu.matmul %402, %1, %cst_85 {dimension_numbers = #tpu.dot_dimension_numbers<[1], [0], [0], [1], [0, 0, 1, 1], [], []>} : vector<8x256xbf16>, vector<256x1024xbf16>, vector<8x1024xf32> -> vector<8x1024xf32>
    %404 = arith.addf %401, %403 : vector<8x1024xf32>
    %405 = vector.extract_strided_slice %404 {offsets = [0, 0], sizes = [8, 256], strides = [1, 1]} : vector<8x1024xf32> to vector<8x256xf32>
    %406 = arith.negf %405 : vector<8x256xf32>
    %407 = math.exp %406 : vector<8x256xf32>
    %cst_86 = arith.constant 1.000000e+00 : f32
    %408 = vector.broadcast %cst_86 : f32 to vector<8x256xf32>
    %409 = arith.addf %408, %407 : vector<8x256xf32>
    %410 = arith.divf %408, %409 : vector<8x256xf32>
    %411 = vector.extract_strided_slice %404 {offsets = [0, 256], sizes = [8, 256], strides = [1, 1]} : vector<8x1024xf32> to vector<8x256xf32>
    %412 = arith.negf %411 : vector<8x256xf32>
    %413 = math.exp %412 : vector<8x256xf32>
    %cst_87 = arith.constant 1.000000e+00 : f32
    %414 = vector.broadcast %cst_87 : f32 to vector<8x256xf32>
    %415 = arith.addf %414, %413 : vector<8x256xf32>
    %416 = arith.divf %414, %415 : vector<8x256xf32>
    %417 = vector.extract_strided_slice %404 {offsets = [0, 512], sizes = [8, 256], strides = [1, 1]} : vector<8x1024xf32> to vector<8x256xf32>
    %418 = math.tanh %417 : vector<8x256xf32>
    %419 = vector.extract_strided_slice %404 {offsets = [0, 768], sizes = [8, 256], strides = [1, 1]} : vector<8x1024xf32> to vector<8x256xf32>
    %420 = arith.negf %419 : vector<8x256xf32>
    %421 = math.exp %420 : vector<8x256xf32>
    %cst_88 = arith.constant 1.000000e+00 : f32
    %422 = vector.broadcast %cst_88 : f32 to vector<8x256xf32>
    %423 = arith.addf %422, %421 : vector<8x256xf32>
    %424 = arith.divf %422, %423 : vector<8x256xf32>
    %425 = arith.mulf %416, %364 : vector<8x256xf32>
    %426 = arith.mulf %410, %418 : vector<8x256xf32>
    %427 = arith.addf %425, %426 : vector<8x256xf32>
    %428 = math.tanh %427 : vector<8x256xf32>
    %429 = arith.mulf %424, %428 : vector<8x256xf32>
    %430 = arith.truncf %429 : vector<8x256xf32> to vector<8x256xbf16>
    %cst_89 = arith.constant dense<0.000000e+00> : vector<8x1024xf32>
    %431 = tpu.matmul %430, %2, %cst_89 {dimension_numbers = #tpu.dot_dimension_numbers<[1], [0], [0], [1], [0, 0, 1, 1], [], []>} : vector<8x256xbf16>, vector<256x1024xbf16>, vector<8x1024xf32> -> vector<8x1024xf32>
    %432 = arith.addf %397, %431 : vector<8x1024xf32>
    %433 = arith.addf %432, %7 : vector<8x1024xf32>
    %434 = vector.extract_strided_slice %433 {offsets = [0, 0], sizes = [8, 256], strides = [1, 1]} : vector<8x1024xf32> to vector<8x256xf32>
    %435 = arith.negf %434 : vector<8x256xf32>
    %436 = math.exp %435 : vector<8x256xf32>
    %cst_90 = arith.constant 1.000000e+00 : f32
    %437 = vector.broadcast %cst_90 : f32 to vector<8x256xf32>
    %438 = arith.addf %437, %436 : vector<8x256xf32>
    %439 = arith.divf %437, %438 : vector<8x256xf32>
    %440 = vector.extract_strided_slice %433 {offsets = [0, 256], sizes = [8, 256], strides = [1, 1]} : vector<8x1024xf32> to vector<8x256xf32>
    %441 = arith.negf %440 : vector<8x256xf32>
    %442 = math.exp %441 : vector<8x256xf32>
    %cst_91 = arith.constant 1.000000e+00 : f32
    %443 = vector.broadcast %cst_91 : f32 to vector<8x256xf32>
    %444 = arith.addf %443, %442 : vector<8x256xf32>
    %445 = arith.divf %443, %444 : vector<8x256xf32>
    %446 = vector.extract_strided_slice %433 {offsets = [0, 512], sizes = [8, 256], strides = [1, 1]} : vector<8x1024xf32> to vector<8x256xf32>
    %447 = math.tanh %446 : vector<8x256xf32>
    %448 = vector.extract_strided_slice %433 {offsets = [0, 768], sizes = [8, 256], strides = [1, 1]} : vector<8x1024xf32> to vector<8x256xf32>
    %449 = arith.negf %448 : vector<8x256xf32>
    %450 = math.exp %449 : vector<8x256xf32>
    %cst_92 = arith.constant 1.000000e+00 : f32
    %451 = vector.broadcast %cst_92 : f32 to vector<8x256xf32>
    %452 = arith.addf %451, %450 : vector<8x256xf32>
    %453 = arith.divf %451, %452 : vector<8x256xf32>
    %454 = arith.mulf %445, %393 : vector<8x256xf32>
    %455 = arith.mulf %439, %447 : vector<8x256xf32>
    %456 = arith.addf %454, %455 : vector<8x256xf32>
    %457 = math.tanh %456 : vector<8x256xf32>
    %458 = arith.mulf %453, %457 : vector<8x256xf32>
    %c7_i32 = arith.constant 7 : i32
    %459 = arith.truncf %458 : vector<8x256xf32> to vector<8x256xbf16>
    %cst_93 = arith.constant dense<0.000000e+00> : vector<8x1024xf32>
    %460 = tpu.matmul %459, %3, %cst_93 {dimension_numbers = #tpu.dot_dimension_numbers<[1], [0], [0], [1], [0, 0, 1, 1], [], []>} : vector<8x256xbf16>, vector<256x1024xbf16>, vector<8x1024xf32> -> vector<8x1024xf32>
    %c8_i32_94 = arith.constant 8 : i32
    %461 = arith.muli %c7_i32, %c8_i32_94 : i32
    %462 = tpu.assume_multiple %461, 8 : i32
    %463 = arith.index_cast %462 : i32 to index
    %c0_95 = arith.constant 0 : index
    %464 = vector.load %arg11[%463, %c0_95] : memref<64x1024xf32, #tpu.memory_space<vmem>>, vector<8x1024xf32>
    %465 = arith.truncf %429 : vector<8x256xf32> to vector<8x256xbf16>
    %cst_96 = arith.constant dense<0.000000e+00> : vector<8x1024xf32>
    %466 = tpu.matmul %465, %1, %cst_96 {dimension_numbers = #tpu.dot_dimension_numbers<[1], [0], [0], [1], [0, 0, 1, 1], [], []>} : vector<8x256xbf16>, vector<256x1024xbf16>, vector<8x1024xf32> -> vector<8x1024xf32>
    %467 = arith.addf %464, %466 : vector<8x1024xf32>
    %468 = vector.extract_strided_slice %467 {offsets = [0, 0], sizes = [8, 256], strides = [1, 1]} : vector<8x1024xf32> to vector<8x256xf32>
    %469 = arith.negf %468 : vector<8x256xf32>
    %470 = math.exp %469 : vector<8x256xf32>
    %cst_97 = arith.constant 1.000000e+00 : f32
    %471 = vector.broadcast %cst_97 : f32 to vector<8x256xf32>
    %472 = arith.addf %471, %470 : vector<8x256xf32>
    %473 = arith.divf %471, %472 : vector<8x256xf32>
    %474 = vector.extract_strided_slice %467 {offsets = [0, 256], sizes = [8, 256], strides = [1, 1]} : vector<8x1024xf32> to vector<8x256xf32>
    %475 = arith.negf %474 : vector<8x256xf32>
    %476 = math.exp %475 : vector<8x256xf32>
    %cst_98 = arith.constant 1.000000e+00 : f32
    %477 = vector.broadcast %cst_98 : f32 to vector<8x256xf32>
    %478 = arith.addf %477, %476 : vector<8x256xf32>
    %479 = arith.divf %477, %478 : vector<8x256xf32>
    %480 = vector.extract_strided_slice %467 {offsets = [0, 512], sizes = [8, 256], strides = [1, 1]} : vector<8x1024xf32> to vector<8x256xf32>
    %481 = math.tanh %480 : vector<8x256xf32>
    %482 = vector.extract_strided_slice %467 {offsets = [0, 768], sizes = [8, 256], strides = [1, 1]} : vector<8x1024xf32> to vector<8x256xf32>
    %483 = arith.negf %482 : vector<8x256xf32>
    %484 = math.exp %483 : vector<8x256xf32>
    %cst_99 = arith.constant 1.000000e+00 : f32
    %485 = vector.broadcast %cst_99 : f32 to vector<8x256xf32>
    %486 = arith.addf %485, %484 : vector<8x256xf32>
    %487 = arith.divf %485, %486 : vector<8x256xf32>
    %488 = arith.mulf %479, %427 : vector<8x256xf32>
    %489 = arith.mulf %473, %481 : vector<8x256xf32>
    %490 = arith.addf %488, %489 : vector<8x256xf32>
    %491 = math.tanh %490 : vector<8x256xf32>
    %492 = arith.mulf %487, %491 : vector<8x256xf32>
    %493 = arith.truncf %492 : vector<8x256xf32> to vector<8x256xbf16>
    %cst_100 = arith.constant dense<0.000000e+00> : vector<8x1024xf32>
    %494 = tpu.matmul %493, %2, %cst_100 {dimension_numbers = #tpu.dot_dimension_numbers<[1], [0], [0], [1], [0, 0, 1, 1], [], []>} : vector<8x256xbf16>, vector<256x1024xbf16>, vector<8x1024xf32> -> vector<8x1024xf32>
    %495 = arith.addf %460, %494 : vector<8x1024xf32>
    %496 = arith.addf %495, %7 : vector<8x1024xf32>
    %497 = vector.extract_strided_slice %496 {offsets = [0, 0], sizes = [8, 256], strides = [1, 1]} : vector<8x1024xf32> to vector<8x256xf32>
    %498 = arith.negf %497 : vector<8x256xf32>
    %499 = math.exp %498 : vector<8x256xf32>
    %cst_101 = arith.constant 1.000000e+00 : f32
    %500 = vector.broadcast %cst_101 : f32 to vector<8x256xf32>
    %501 = arith.addf %500, %499 : vector<8x256xf32>
    %502 = arith.divf %500, %501 : vector<8x256xf32>
    %503 = vector.extract_strided_slice %496 {offsets = [0, 256], sizes = [8, 256], strides = [1, 1]} : vector<8x1024xf32> to vector<8x256xf32>
    %504 = arith.negf %503 : vector<8x256xf32>
    %505 = math.exp %504 : vector<8x256xf32>
    %cst_102 = arith.constant 1.000000e+00 : f32
    %506 = vector.broadcast %cst_102 : f32 to vector<8x256xf32>
    %507 = arith.addf %506, %505 : vector<8x256xf32>
    %508 = arith.divf %506, %507 : vector<8x256xf32>
    %509 = vector.extract_strided_slice %496 {offsets = [0, 512], sizes = [8, 256], strides = [1, 1]} : vector<8x1024xf32> to vector<8x256xf32>
    %510 = math.tanh %509 : vector<8x256xf32>
    %511 = vector.extract_strided_slice %496 {offsets = [0, 768], sizes = [8, 256], strides = [1, 1]} : vector<8x1024xf32> to vector<8x256xf32>
    %512 = arith.negf %511 : vector<8x256xf32>
    %513 = math.exp %512 : vector<8x256xf32>
    %cst_103 = arith.constant 1.000000e+00 : f32
    %514 = vector.broadcast %cst_103 : f32 to vector<8x256xf32>
    %515 = arith.addf %514, %513 : vector<8x256xf32>
    %516 = arith.divf %514, %515 : vector<8x256xf32>
    %517 = arith.mulf %508, %456 : vector<8x256xf32>
    %518 = arith.mulf %502, %510 : vector<8x256xf32>
    %519 = arith.addf %517, %518 : vector<8x256xf32>
    %520 = math.tanh %519 : vector<8x256xf32>
    %521 = arith.mulf %516, %520 : vector<8x256xf32>
    %c8_i32_104 = arith.constant 8 : i32
    %c1_i32_105 = arith.constant 1 : i32
    %cst_106 = arith.constant 0.000000e+00 : f32
    %522 = vector.broadcast %cst_106 : f32 to vector<8x256xf32>
    %523 = arith.cmpf ogt, %521, %522 : vector<8x256xf32>
    %cst_107 = arith.constant 0.00999999977 : f32
    %524 = vector.broadcast %cst_107 : f32 to vector<8x256xf32>
    %525 = arith.mulf %524, %521 : vector<8x256xf32>
    %526 = arith.select %523, %521, %525 : vector<8x256xi1>, vector<8x256xf32>
    %527 = arith.truncf %526 : vector<8x256xf32> to vector<8x256xbf16>
    %c0_108 = arith.constant 0 : index
    %c0_109 = arith.constant 0 : index
    %528 = vector.load %arg8[%c0_108, %c0_109] : memref<256x128xbf16, #tpu.memory_space<vmem>>, vector<256x128xbf16>
    %cst_110 = arith.constant dense<0.000000e+00> : vector<8x128xf32>
    %529 = tpu.matmul %527, %528, %cst_110 {dimension_numbers = #tpu.dot_dimension_numbers<[1], [0], [0], [1], [0, 0, 1, 1], [], []>} : vector<8x256xbf16>, vector<256x128xbf16>, vector<8x128xf32> -> vector<8x128xf32>
    %c0_111 = arith.constant 0 : index
    %c0_112 = arith.constant 0 : index
    %530 = vector.load %arg9[%c0_111, %c0_112] : memref<1x128xf32, #tpu.memory_space<vmem>>, vector<1x128xf32>
    %531 = vector.broadcast %530 : vector<1x128xf32> to vector<8x128xf32>
    %532 = arith.addf %529, %531 : vector<8x128xf32>
    %533 = arith.mulf %532, %532 : vector<8x128xf32>
    %cst_113 = arith.constant dense<0.000000e+00> : vector<8xf32>
    %534 = vector.multi_reduction <add>, %533, %cst_113 [1] : vector<8x128xf32> to vector<8xf32>
    %535 = vector.shape_cast %534 : vector<8xf32> to vector<8x1xf32>
    %536 = math.sqrt %535 : vector<8x1xf32>
    %cst_114 = arith.constant 9.99999996E-13 : f32
    %537 = vector.broadcast %cst_114 : f32 to vector<8x1xf32>
    %538 = arith.maximumf %536, %537 : vector<8x1xf32>
    %539 = vector.broadcast %538 : vector<8x1xf32> to vector<8x128xf32>
    %540 = arith.divf %532, %539 : vector<8x128xf32>
    %c0_115 = arith.constant 0 : index
    %c0_116 = arith.constant 0 : index
    %541 = vector.load %arg10[%c0_115, %c0_116] : memref<8x128xf32, #tpu.memory_space<vmem>>, vector<8x128xf32>
    tpu.vector_store %arg10[%c0_115, %c0_116], %540 {strides = array<i32>} : memref<8x128xf32, #tpu.memory_space<vmem>>, vector<8x128xf32>,
    return
  }
  func.func @transform_0(%arg0: i32) -> (i32, i32, i32) {
    %c0_i32 = arith.constant 0 : i32
    %c0_i32_0 = arith.constant 0 : i32
    %c0_i32_1 = arith.constant 0 : i32
    return %arg0, %c0_i32, %c0_i32_0 : i32, i32, i32
  }
  func.func @transform_1(%arg0: i32) -> (i32, i32) {
    %c0_i32 = arith.constant 0 : i32
    %c0_i32_0 = arith.constant 0 : i32
    %c0_i32_1 = arith.constant 0 : i32
    return %c0_i32, %c0_i32_0 : i32, i32
  }
  func.func @transform_2(%arg0: i32) -> (i32, i32) {
    %c0_i32 = arith.constant 0 : i32
    %c0_i32_0 = arith.constant 0 : i32
    %c0_i32_1 = arith.constant 0 : i32
    return %c0_i32, %c0_i32_0 : i32, i32
  }
  func.func @transform_3(%arg0: i32) -> (i32, i32) {
    %c0_i32 = arith.constant 0 : i32
    %c0_i32_0 = arith.constant 0 : i32
    %c0_i32_1 = arith.constant 0 : i32
    return %c0_i32, %c0_i32_0 : i32, i32
  }
  func.func @transform_4(%arg0: i32) -> (i32, i32) {
    %c0_i32 = arith.constant 0 : i32
    %c0_i32_0 = arith.constant 0 : i32
    %c0_i32_1 = arith.constant 0 : i32
    return %c0_i32, %c0_i32_0 : i32, i32
  }
  func.func @transform_5(%arg0: i32) -> (i32, i32) {
    %c0_i32 = arith.constant 0 : i32
    %c0_i32_0 = arith.constant 0 : i32
    %c0_i32_1 = arith.constant 0 : i32
    return %c0_i32, %c0_i32_0 : i32, i32
  }
  func.func @transform_6(%arg0: i32) -> (i32, i32) {
    %c0_i32 = arith.constant 0 : i32
    %c0_i32_0 = arith.constant 0 : i32
    %c0_i32_1 = arith.constant 0 : i32
    return %c0_i32, %c0_i32_0 : i32, i32
  }
  func.func @transform_7(%arg0: i32) -> (i32, i32) {
    %c0_i32 = arith.constant 0 : i32
    %c0_i32_0 = arith.constant 0 : i32
    %c0_i32_1 = arith.constant 0 : i32
    return %c0_i32, %c0_i32_0 : i32, i32
  }
  func.func @transform_8(%arg0: i32) -> (i32, i32) {
    %c0_i32 = arith.constant 0 : i32
    %c0_i32_0 = arith.constant 0 : i32
    %c0_i32_1 = arith.constant 0 : i32
    return %c0_i32, %c0_i32_0 : i32, i32
  }
  func.func @transform_9(%arg0: i32) -> (i32, i32) {
    %c0_i32 = arith.constant 0 : i32
    %c0_i32_0 = arith.constant 0 : i32
    return %arg0, %c0_i32 : i32, i32
  }
}

</mosaic_0001>

<llo_original>
// kernel: lstm_forward.1
$region0: #{lstm_forward.1}
  #allocation0 [shape = 'u32[]', space=smem, size = 0x4, offset = 0x4, fixed_abs, tag = 'smem constant byte address 0x4 - core index']
  #allocation1 [shape = 'u32[144,128]{1,0:T(1,128)}', space=vmem, size = 0x12000, scoped, tag = 'internal scratch']
  #allocation2 [shape = 'f32[64,1024]{1,0:T(8,128)}', space=vmem, size = 0x40000, scoped, tag = 'scratch operand']
  %s0 = inlined_call_operand.vmem [shape: bf16[1,64,30], index: 0, kind: input, shape index: {}]
  %s1 = inlined_call_operand.vmem [shape: bf16[30,1024], index: 1, kind: input, shape index: {}]
  %s2 = inlined_call_operand.vmem [shape: bf16[256,1024], index: 2, kind: input, shape index: {}]
  %s3 = inlined_call_operand.vmem [shape: f32[1,1024], index: 3, kind: input, shape index: {}]
  %s4 = inlined_call_operand.vmem [shape: bf16[256,1024], index: 4, kind: input, shape index: {}]
  %s5 = inlined_call_operand.vmem [shape: bf16[256,1024], index: 5, kind: input, shape index: {}]
  %s6 = inlined_call_operand.vmem [shape: f32[1,1024], index: 6, kind: input, shape index: {}]
  %s7 = inlined_call_operand.vmem [shape: bf16[256,128], index: 7, kind: input, shape index: {}]
  %s8 = inlined_call_operand.vmem [shape: f32[1,128], index: 8, kind: input, shape index: {}]
  %s9 = inlined_call_operand.vmem [shape: f32[8,128], index: 9, kind: output, shape index: {}]
  %s10 = sld [smem:[#allocation0]]
  $region46: #{lstm_forward.1} parent=0
    _
  %s12 = ssub.s32 1, %s10
  %s13 = scalar_select 0, %s12, %s10
  // Predicated region
  $region2: #{lstm_forward.1} parent=0 // pred_check
    _
  $region3: #{lstm_forward.1} parent=0 // pred_check_branch
    %15 = sbr.rel (0) target = $region5
  $region4: #{lstm_forward.1} parent=0 // pred_region
    _
  $region5: #{lstm_forward.1} parent=0 // pred_fallthru
    _
  // Predicated region
  $region6: #{lstm_forward.1} parent=0 // pred_check
    _
  $region7: #{lstm_forward.1} parent=0 // pred_check_branch
    %17 = sbr.rel (0) target = $region9
  $region8: #{lstm_forward.1} parent=0 // pred_region
    _
  $region9: #{lstm_forward.1} parent=0 // pred_fallthru
    _
  // Predicated region
  $region10: #{lstm_forward.1} parent=0 // pred_check
    _
  $region11: #{lstm_forward.1} parent=0 // pred_check_branch
    %19 = sbr.rel (0) target = $region13
  $region12: #{lstm_forward.1} parent=0 // pred_region
    _
  $region13: #{lstm_forward.1} parent=0 // pred_fallthru
    _
  // Predicated region
  $region14: #{lstm_forward.1} parent=0 // pred_check
    _
  $region15: #{lstm_forward.1} parent=0 // pred_check_branch
    %21 = sbr.rel (0) target = $region17
  $region16: #{lstm_forward.1} parent=0 // pred_region
    _
  $region17: #{lstm_forward.1} parent=0 // pred_fallthru
    _
  // Predicated region
  $region18: #{lstm_forward.1} parent=0 // pred_check
    _
  $region19: #{lstm_forward.1} parent=0 // pred_check_branch
    %23 = sbr.rel (0) target = $region21
  $region20: #{lstm_forward.1} parent=0 // pred_region
    _
  $region21: #{lstm_forward.1} parent=0 // pred_fallthru
    _
  // Predicated region
  $region22: #{lstm_forward.1} parent=0 // pred_check
    _
  $region23: #{lstm_forward.1} parent=0 // pred_check_branch
    %25 = sbr.rel (0) target = $region25
  $region24: #{lstm_forward.1} parent=0 // pred_region
    _
  $region25: #{lstm_forward.1} parent=0 // pred_fallthru
    _
  // Predicated region
  $region26: #{lstm_forward.1} parent=0 // pred_check
    _
  $region27: #{lstm_forward.1} parent=0 // pred_check_branch
    %27 = sbr.rel (0) target = $region29
  $region28: #{lstm_forward.1} parent=0 // pred_region
    _
  $region29: #{lstm_forward.1} parent=0 // pred_fallthru
    _
  // Predicated region
  $region30: #{lstm_forward.1} parent=0 // pred_check
    _
  $region31: #{lstm_forward.1} parent=0 // pred_check_branch
    %29 = sbr.rel (0) target = $region33
  $region32: #{lstm_forward.1} parent=0 // pred_region
    _
  $region33: #{lstm_forward.1} parent=0 // pred_fallthru
    _
  // Predicated region
  $region34: #{lstm_forward.1} parent=0 // pred_check
    _
  $region35: #{lstm_forward.1} parent=0 // pred_check_branch
    %31 = sbr.rel (0) target = $region37
  $region36: #{lstm_forward.1} parent=0 // pred_region
    _
  $region37: #{lstm_forward.1} parent=0 // pred_fallthru
    _
  %v33 = vld [vmem:[%s1] sm:$0xff]
  %v34 = vld [vmem:[%s1 + $0x8] sm:$0xff]
  %v35 = vld [vmem:[%s1 + $0x10] sm:$0xff]
  %v36 = vld [vmem:[%s1 + $0x18] sm:$0xff]
  %v37 = vld [vmem:[%s1 + $0x20] sm:$0xff]
  %v38 = vld [vmem:[%s1 + $0x28] sm:$0xff]
  %v39 = vld [vmem:[%s1 + $0x30] sm:$0xff]
  %v40 = vld [vmem:[%s1 + $0x38] sm:$0xff]
  %v41 = vld [vmem:[%s1 + $0x40] sm:$0xff]
  %v42 = vld [vmem:[%s1 + $0x48] sm:$0xff]
  %v43 = vld [vmem:[%s1 + $0x50] sm:$0xff]
  %v44 = vld [vmem:[%s1 + $0x58] sm:$0xff]
  %v45 = vld [vmem:[%s1 + $0x60] sm:$0x77]
  %v46 = vld [vmem:[%s1 + $0x68] sm:$0x77]
  %v47 = vld [vmem:[%s1 + $0x70] sm:$0x77]
  %v48 = vld [vmem:[%s1 + $0x78] sm:$0x77]
  %v49 = vld [vmem:[%s2] sm:$0xff]
  %v50 = vld [vmem:[%s2 + $0x8] sm:$0xff]
  %v51 = vld [vmem:[%s2 + $0x10] sm:$0xff]
  %v52 = vld [vmem:[%s2 + $0x18] sm:$0xff]
  %v53 = vld [vmem:[%s2 + $0x20] sm:$0xff]
  %v54 = vld [vmem:[%s2 + $0x28] sm:$0xff]
  %v55 = vld [vmem:[%s2 + $0x30] sm:$0xff]
  %v56 = vld [vmem:[%s2 + $0x38] sm:$0xff]
  %v57 = vld [vmem:[%s2 + $0x40] sm:$0xff]
  %v58 = vld [vmem:[%s2 + $0x48] sm:$0xff]
  %v59 = vld [vmem:[%s2 + $0x50] sm:$0xff]
  %v60 = vld [vmem:[%s2 + $0x58] sm:$0xff]
  %v61 = vld [vmem:[%s2 + $0x60] sm:$0xff]
  %v62 = vld [vmem:[%s2 + $0x68] sm:$0xff]
  %v63 = vld [vmem:[%s2 + $0x70] sm:$0xff]
  %v64 = vld [vmem:[%s2 + $0x78] sm:$0xff]
  %v65 = vld [vmem:[%s2 + $0x80] sm:$0xff]
  %v66 = vld [vmem:[%s2 + $0x88] sm:$0xff]
  %v67 = vld [vmem:[%s2 + $0x90] sm:$0xff]
  %v68 = vld [vmem:[%s2 + $0x98] sm:$0xff]
  %v69 = vld [vmem:[%s2 + $0xa0] sm:$0xff]
  %v70 = vld [vmem:[%s2 + $0xa8] sm:$0xff]
  %v71 = vld [vmem:[%s2 + $0xb0] sm:$0xff]
  %v72 = vld [vmem:[%s2 + $0xb8] sm:$0xff]
  %v73 = vld [vmem:[%s2 + $0xc0] sm:$0xff]
  %v74 = vld [vmem:[%s2 + $0xc8] sm:$0xff]
  %v75 = vld [vmem:[%s2 + $0xd0] sm:$0xff]
  %v76 = vld [vmem:[%s2 + $0xd8] sm:$0xff]
  %v77 = vld [vmem:[%s2 + $0xe0] sm:$0xff]
  %v78 = vld [vmem:[%s2 + $0xe8] sm:$0xff]
  %v79 = vld [vmem:[%s2 + $0xf0] sm:$0xff]
  %v80 = vld [vmem:[%s2 + $0xf8] sm:$0xff]
  %v81 = vld [vmem:[%s2 + $0x100] sm:$0xff]
  %v82 = vld [vmem:[%s2 + $0x108] sm:$0xff]
  %v83 = vld [vmem:[%s2 + $0x110] sm:$0xff]
  %v84 = vld [vmem:[%s2 + $0x118] sm:$0xff]
  %v85 = vld [vmem:[%s2 + $0x120] sm:$0xff]
  %v86 = vld [vmem:[%s2 + $0x128] sm:$0xff]
  %v87 = vld [vmem:[%s2 + $0x130] sm:$0xff]
  %v88 = vld [vmem:[%s2 + $0x138] sm:$0xff]
  %v89 = vld [vmem:[%s2 + $0x140] sm:$0xff]
  %v90 = vld [vmem:[%s2 + $0x148] sm:$0xff]
  %v91 = vld [vmem:[%s2 + $0x150] sm:$0xff]
  %v92 = vld [vmem:[%s2 + $0x158] sm:$0xff]
  %v93 = vld [vmem:[%s2 + $0x160] sm:$0xff]
  %v94 = vld [vmem:[%s2 + $0x168] sm:$0xff]
  %v95 = vld [vmem:[%s2 + $0x170] sm:$0xff]
  %v96 = vld [vmem:[%s2 + $0x178] sm:$0xff]
  %v97 = vld [vmem:[%s2 + $0x180] sm:$0xff]
  %v98 = vld [vmem:[%s2 + $0x188] sm:$0xff]
  %v99 = vld [vmem:[%s2 + $0x190] sm:$0xff]
  %v100 = vld [vmem:[%s2 + $0x198] sm:$0xff]
  %v101 = vld [vmem:[%s2 + $0x1a0] sm:$0xff]
  %v102 = vld [vmem:[%s2 + $0x1a8] sm:$0xff]
  %v103 = vld [vmem:[%s2 + $0x1b0] sm:$0xff]
  %v104 = vld [vmem:[%s2 + $0x1b8] sm:$0xff]
  %v105 = vld [vmem:[%s2 + $0x1c0] sm:$0xff]
  %v106 = vld [vmem:[%s2 + $0x1c8] sm:$0xff]
  %v107 = vld [vmem:[%s2 + $0x1d0] sm:$0xff]
  %v108 = vld [vmem:[%s2 + $0x1d8] sm:$0xff]
  %v109 = vld [vmem:[%s2 + $0x1e0] sm:$0xff]
  %v110 = vld [vmem:[%s2 + $0x1e8] sm:$0xff]
  %v111 = vld [vmem:[%s2 + $0x1f0] sm:$0xff]
  %v112 = vld [vmem:[%s2 + $0x1f8] sm:$0xff]
  %v113 = vld [vmem:[%s2 + $0x200] sm:$0xff]
  %v114 = vld [vmem:[%s2 + $0x208] sm:$0xff]
  %v115 = vld [vmem:[%s2 + $0x210] sm:$0xff]
  %v116 = vld [vmem:[%s2 + $0x218] sm:$0xff]
  %v117 = vld [vmem:[%s2 + $0x220] sm:$0xff]
  %v118 = vld [vmem:[%s2 + $0x228] sm:$0xff]
  %v119 = vld [vmem:[%s2 + $0x230] sm:$0xff]
  %v120 = vld [vmem:[%s2 + $0x238] sm:$0xff]
  %v121 = vld [vmem:[%s2 + $0x240] sm:$0xff]
  %v122 = vld [vmem:[%s2 + $0x248] sm:$0xff]
  %v123 = vld [vmem:[%s2 + $0x250] sm:$0xff]
  %v124 = vld [vmem:[%s2 + $0x258] sm:$0xff]
  %v125 = vld [vmem:[%s2 + $0x260] sm:$0xff]
  %v126 = vld [vmem:[%s2 + $0x268] sm:$0xff]
  %v127 = vld [vmem:[%s2 + $0x270] sm:$0xff]
  %v128 = vld [vmem:[%s2 + $0x278] sm:$0xff]
  %v129 = vld [vmem:[%s2 + $0x280] sm:$0xff]
  %v130 = vld [vmem:[%s2 + $0x288] sm:$0xff]
  %v131 = vld [vmem:[%s2 + $0x290] sm:$0xff]
  %v132 = vld [vmem:[%s2 + $0x298] sm:$0xff]
  %v133 = vld [vmem:[%s2 + $0x2a0] sm:$0xff]
  %v134 = vld [vmem:[%s2 + $0x2a8] sm:$0xff]
  %v135 = vld [vmem:[%s2 + $0x2b0] sm:$0xff]
  %v136 = vld [vmem:[%s2 + $0x2b8] sm:$0xff]
  %v137 = vld [vmem:[%s2 + $0x2c0] sm:$0xff]
  %v138 = vld [vmem:[%s2 + $0x2c8] sm:$0xff]
  %v139 = vld [vmem:[%s2 + $0x2d0] sm:$0xff]
  %v140 = vld [vmem:[%s2 + $0x2d8] sm:$0xff]
  %v141 = vld [vmem:[%s2 + $0x2e0] sm:$0xff]
  %v142 = vld [vmem:[%s2 + $0x2e8] sm:$0xff]
  %v143 = vld [vmem:[%s2 + $0x2f0] sm:$0xff]
  %v144 = vld [vmem:[%s2 + $0x2f8] sm:$0xff]
  %v145 = vld [vmem:[%s2 + $0x300] sm:$0xff]
  %v146 = vld [vmem:[%s2 + $0x308] sm:$0xff]
  %v147 = vld [vmem:[%s2 + $0x310] sm:$0xff]
  %v148 = vld [vmem:[%s2 + $0x318] sm:$0xff]
  %v149 = vld [vmem:[%s2 + $0x320] sm:$0xff]
  %v150 = vld [vmem:[%s2 + $0x328] sm:$0xff]
  %v151 = vld [vmem:[%s2 + $0x330] sm:$0xff]
  %v152 = vld [vmem:[%s2 + $0x338] sm:$0xff]
  %v153 = vld [vmem:[%s2 + $0x340] sm:$0xff]
  %v154 = vld [vmem:[%s2 + $0x348] sm:$0xff]
  %v155 = vld [vmem:[%s2 + $0x350] sm:$0xff]
  %v156 = vld [vmem:[%s2 + $0x358] sm:$0xff]
  %v157 = vld [vmem:[%s2 + $0x360] sm:$0xff]
  %v158 = vld [vmem:[%s2 + $0x368] sm:$0xff]
  %v159 = vld [vmem:[%s2 + $0x370] sm:$0xff]
  %v160 = vld [vmem:[%s2 + $0x378] sm:$0xff]
  %v161 = vld [vmem:[%s2 + $0x380] sm:$0xff]
  %v162 = vld [vmem:[%s2 + $0x388] sm:$0xff]
  %v163 = vld [vmem:[%s2 + $0x390] sm:$0xff]
  %v164 = vld [vmem:[%s2 + $0x398] sm:$0xff]
  %v165 = vld [vmem:[%s2 + $0x3a0] sm:$0xff]
  %v166 = vld [vmem:[%s2 + $0x3a8] sm:$0xff]
  %v167 = vld [vmem:[%s2 + $0x3b0] sm:$0xff]
  %v168 = vld [vmem:[%s2 + $0x3b8] sm:$0xff]
  %v169 = vld [vmem:[%s2 + $0x3c0] sm:$0xff]
  %v170 = vld [vmem:[%s2 + $0x3c8] sm:$0xff]
  %v171 = vld [vmem:[%s2 + $0x3d0] sm:$0xff]
  %v172 = vld [vmem:[%s2 + $0x3d8] sm:$0xff]
  %v173 = vld [vmem:[%s2 + $0x3e0] sm:$0xff]
  %v174 = vld [vmem:[%s2 + $0x3e8] sm:$0xff]
  %v175 = vld [vmem:[%s2 + $0x3f0] sm:$0xff]
  %v176 = vld [vmem:[%s2 + $0x3f8] sm:$0xff]
  %v177 = vld [vmem:[%s4] sm:$0xff]
  %v178 = vld [vmem:[%s4 + $0x8] sm:$0xff]
  %v179 = vld [vmem:[%s4 + $0x10] sm:$0xff]
  %v180 = vld [vmem:[%s4 + $0x18] sm:$0xff]
  %v181 = vld [vmem:[%s4 + $0x20] sm:$0xff]
  %v182 = vld [vmem:[%s4 + $0x28] sm:$0xff]
  %v183 = vld [vmem:[%s4 + $0x30] sm:$0xff]
  %v184 = vld [vmem:[%s4 + $0x38] sm:$0xff]
  %v185 = vld [vmem:[%s4 + $0x40] sm:$0xff]
  %v186 = vld [vmem:[%s4 + $0x48] sm:$0xff]
  %v187 = vld [vmem:[%s4 + $0x50] sm:$0xff]
  %v188 = vld [vmem:[%s4 + $0x58] sm:$0xff]
  %v189 = vld [vmem:[%s4 + $0x60] sm:$0xff]
  %v190 = vld [vmem:[%s4 + $0x68] sm:$0xff]
  %v191 = vld [vmem:[%s4 + $0x70] sm:$0xff]
  %v192 = vld [vmem:[%s4 + $0x78] sm:$0xff]
  %v193 = vld [vmem:[%s4 + $0x80] sm:$0xff]
  %v194 = vld [vmem:[%s4 + $0x88] sm:$0xff]
  %v195 = vld [vmem:[%s4 + $0x90] sm:$0xff]
  %v196 = vld [vmem:[%s4 + $0x98] sm:$0xff]
  %v197 = vld [vmem:[%s4 + $0xa0] sm:$0xff]
  %v198 = vld [vmem:[%s4 + $0xa8] sm:$0xff]
  %v199 = vld [vmem:[%s4 + $0xb0] sm:$0xff]
  %v200 = vld [vmem:[%s4 + $0xb8] sm:$0xff]
  %v201 = vld [vmem:[%s4 + $0xc0] sm:$0xff]
  %v202 = vld [vmem:[%s4 + $0xc8] sm:$0xff]
  %v203 = vld [vmem:[%s4 + $0xd0] sm:$0xff]
  %v204 = vld [vmem:[%s4 + $0xd8] sm:$0xff]
  %v205 = vld [vmem:[%s4 + $0xe0] sm:$0xff]
  %v206 = vld [vmem:[%s4 + $0xe8] sm:$0xff]
  %v207 = vld [vmem:[%s4 + $0xf0] sm:$0xff]
  %v208 = vld [vmem:[%s4 + $0xf8] sm:$0xff]
  %v209 = vld [vmem:[%s4 + $0x100] sm:$0xff]
  %v210 = vld [vmem:[%s4 + $0x108] sm:$0xff]
  %v211 = vld [vmem:[%s4 + $0x110] sm:$0xff]
  %v212 = vld [vmem:[%s4 + $0x118] sm:$0xff]
  %v213 = vld [vmem:[%s4 + $0x120] sm:$0xff]
  %v214 = vld [vmem:[%s4 + $0x128] sm:$0xff]
  %v215 = vld [vmem:[%s4 + $0x130] sm:$0xff]
  %v216 = vld [vmem:[%s4 + $0x138] sm:$0xff]
  %v217 = vld [vmem:[%s4 + $0x140] sm:$0xff]
  %v218 = vld [vmem:[%s4 + $0x148] sm:$0xff]
  %v219 = vld [vmem:[%s4 + $0x150] sm:$0xff]
  %v220 = vld [vmem:[%s4 + $0x158] sm:$0xff]
  %v221 = vld [vmem:[%s4 + $0x160] sm:$0xff]
  %v222 = vld [vmem:[%s4 + $0x168] sm:$0xff]
  %v223 = vld [vmem:[%s4 + $0x170] sm:$0xff]
  %v224 = vld [vmem:[%s4 + $0x178] sm:$0xff]
  %v225 = vld [vmem:[%s4 + $0x180] sm:$0xff]
  %v226 = vld [vmem:[%s4 + $0x188] sm:$0xff]
  %v227 = vld [vmem:[%s4 + $0x190] sm:$0xff]
  %v228 = vld [vmem:[%s4 + $0x198] sm:$0xff]
  %v229 = vld [vmem:[%s4 + $0x1a0] sm:$0xff]
  %v230 = vld [vmem:[%s4 + $0x1a8] sm:$0xff]
  %v231 = vld [vmem:[%s4 + $0x1b0] sm:$0xff]
  %v232 = vld [vmem:[%s4 + $0x1b8] sm:$0xff]
  %v233 = vld [vmem:[%s4 + $0x1c0] sm:$0xff]
  %v234 = vld [vmem:[%s4 + $0x1c8] sm:$0xff]
  %v235 = vld [vmem:[%s4 + $0x1d0] sm:$0xff]
  %v236 = vld [vmem:[%s4 + $0x1d8] sm:$0xff]
  %v237 = vld [vmem:[%s4 + $0x1e0] sm:$0xff]
  %v238 = vld [vmem:[%s4 + $0x1e8] sm:$0xff]
  %v239 = vld [vmem:[%s4 + $0x1f0] sm:$0xff]
  %v240 = vld [vmem:[%s4 + $0x1f8] sm:$0xff]
  %v241 = vld [vmem:[%s4 + $0x200] sm:$0xff]
  %v242 = vld [vmem:[%s4 + $0x208] sm:$0xff]
  %v243 = vld [vmem:[%s4 + $0x210] sm:$0xff]
  %v244 = vld [vmem:[%s4 + $0x218] sm:$0xff]
  %v245 = vld [vmem:[%s4 + $0x220] sm:$0xff]
  %v246 = vld [vmem:[%s4 + $0x228] sm:$0xff]
  %v247 = vld [vmem:[%s4 + $0x230] sm:$0xff]
  %v248 = vld [vmem:[%s4 + $0x238] sm:$0xff]
  %v249 = vld [vmem:[%s4 + $0x240] sm:$0xff]
  %v250 = vld [vmem:[%s4 + $0x248] sm:$0xff]
  %v251 = vld [vmem:[%s4 + $0x250] sm:$0xff]
  %v252 = vld [vmem:[%s4 + $0x258] sm:$0xff]
  %v253 = vld [vmem:[%s4 + $0x260] sm:$0xff]
  %v254 = vld [vmem:[%s4 + $0x268] sm:$0xff]
  %v255 = vld [vmem:[%s4 + $0x270] sm:$0xff]
  %v256 = vld [vmem:[%s4 + $0x278] sm:$0xff]
  %v257 = vld [vmem:[%s4 + $0x280] sm:$0xff]
  %v258 = vld [vmem:[%s4 + $0x288] sm:$0xff]
  %v259 = vld [vmem:[%s4 + $0x290] sm:$0xff]
  %v260 = vld [vmem:[%s4 + $0x298] sm:$0xff]
  %v261 = vld [vmem:[%s4 + $0x2a0] sm:$0xff]
  %v262 = vld [vmem:[%s4 + $0x2a8] sm:$0xff]
  %v263 = vld [vmem:[%s4 + $0x2b0] sm:$0xff]
  %v264 = vld [vmem:[%s4 + $0x2b8] sm:$0xff]
  %v265 = vld [vmem:[%s4 + $0x2c0] sm:$0xff]
  %v266 = vld [vmem:[%s4 + $0x2c8] sm:$0xff]
  %v267 = vld [vmem:[%s4 + $0x2d0] sm:$0xff]
  %v268 = vld [vmem:[%s4 + $0x2d8] sm:$0xff]
  %v269 = vld [vmem:[%s4 + $0x2e0] sm:$0xff]
  %v270 = vld [vmem:[%s4 + $0x2e8] sm:$0xff]
  %v271 = vld [vmem:[%s4 + $0x2f0] sm:$0xff]
  %v272 = vld [vmem:[%s4 + $0x2f8] sm:$0xff]
  %v273 = vld [vmem:[%s4 + $0x300] sm:$0xff]
  %v274 = vld [vmem:[%s4 + $0x308] sm:$0xff]
  %v275 = vld [vmem:[%s4 + $0x310] sm:$0xff]
  %v276 = vld [vmem:[%s4 + $0x318] sm:$0xff]
  %v277 = vld [vmem:[%s4 + $0x320] sm:$0xff]
  %v278 = vld [vmem:[%s4 + $0x328] sm:$0xff]
  %v279 = vld [vmem:[%s4 + $0x330] sm:$0xff]
  %v280 = vld [vmem:[%s4 + $0x338] sm:$0xff]
  %v281 = vld [vmem:[%s4 + $0x340] sm:$0xff]
  %v282 = vld [vmem:[%s4 + $0x348] sm:$0xff]
  %v283 = vld [vmem:[%s4 + $0x350] sm:$0xff]
  %v284 = vld [vmem:[%s4 + $0x358] sm:$0xff]
  %v285 = vld [vmem:[%s4 + $0x360] sm:$0xff]
  %v286 = vld [vmem:[%s4 + $0x368] sm:$0xff]
  %v287 = vld [vmem:[%s4 + $0x370] sm:$0xff]
  %v288 = vld [vmem:[%s4 + $0x378] sm:$0xff]
  %v289 = vld [vmem:[%s4 + $0x380] sm:$0xff]
  %v290 = vld [vmem:[%s4 + $0x388] sm:$0xff]
  %v291 = vld [vmem:[%s4 + $0x390] sm:$0xff]
  %v292 = vld [vmem:[%s4 + $0x398] sm:$0xff]
  %v293 = vld [vmem:[%s4 + $0x3a0] sm:$0xff]
  %v294 = vld [vmem:[%s4 + $0x3a8] sm:$0xff]
  %v295 = vld [vmem:[%s4 + $0x3b0] sm:$0xff]
  %v296 = vld [vmem:[%s4 + $0x3b8] sm:$0xff]
  %v297 = vld [vmem:[%s4 + $0x3c0] sm:$0xff]
  %v298 = vld [vmem:[%s4 + $0x3c8] sm:$0xff]
  %v299 = vld [vmem:[%s4 + $0x3d0] sm:$0xff]
  %v300 = vld [vmem:[%s4 + $0x3d8] sm:$0xff]
  %v301 = vld [vmem:[%s4 + $0x3e0] sm:$0xff]
  %v302 = vld [vmem:[%s4 + $0x3e8] sm:$0xff]
  %v303 = vld [vmem:[%s4 + $0x3f0] sm:$0xff]
  %v304 = vld [vmem:[%s4 + $0x3f8] sm:$0xff]
  %v305 = vld [vmem:[%s5] sm:$0xff]
  %v306 = vld [vmem:[%s5 + $0x8] sm:$0xff]
  %v307 = vld [vmem:[%s5 + $0x10] sm:$0xff]
  %v308 = vld [vmem:[%s5 + $0x18] sm:$0xff]
  %v309 = vld [vmem:[%s5 + $0x20] sm:$0xff]
  %v310 = vld [vmem:[%s5 + $0x28] sm:$0xff]
  %v311 = vld [vmem:[%s5 + $0x30] sm:$0xff]
  %v312 = vld [vmem:[%s5 + $0x38] sm:$0xff]
  %v313 = vld [vmem:[%s5 + $0x40] sm:$0xff]
  %v314 = vld [vmem:[%s5 + $0x48] sm:$0xff]
  %v315 = vld [vmem:[%s5 + $0x50] sm:$0xff]
  %v316 = vld [vmem:[%s5 + $0x58] sm:$0xff]
  %v317 = vld [vmem:[%s5 + $0x60] sm:$0xff]
  %v318 = vld [vmem:[%s5 + $0x68] sm:$0xff]
  %v319 = vld [vmem:[%s5 + $0x70] sm:$0xff]
  %v320 = vld [vmem:[%s5 + $0x78] sm:$0xff]
  %v321 = vld [vmem:[%s5 + $0x80] sm:$0xff]
  %v322 = vld [vmem:[%s5 + $0x88] sm:$0xff]
  %v323 = vld [vmem:[%s5 + $0x90] sm:$0xff]
  %v324 = vld [vmem:[%s5 + $0x98] sm:$0xff]
  %v325 = vld [vmem:[%s5 + $0xa0] sm:$0xff]
  %v326 = vld [vmem:[%s5 + $0xa8] sm:$0xff]
  %v327 = vld [vmem:[%s5 + $0xb0] sm:$0xff]
  %v328 = vld [vmem:[%s5 + $0xb8] sm:$0xff]
  %v329 = vld [vmem:[%s5 + $0xc0] sm:$0xff]
  %v330 = vld [vmem:[%s5 + $0xc8] sm:$0xff]
  %v331 = vld [vmem:[%s5 + $0xd0] sm:$0xff]
  %v332 = vld [vmem:[%s5 + $0xd8] sm:$0xff]
  %v333 = vld [vmem:[%s5 + $0xe0] sm:$0xff]
  %v334 = vld [vmem:[%s5 + $0xe8] sm:$0xff]
  %v335 = vld [vmem:[%s5 + $0xf0] sm:$0xff]
  %v336 = vld [vmem:[%s5 + $0xf8] sm:$0xff]
  %v337 = vld [vmem:[%s5 + $0x100] sm:$0xff]
  %v338 = vld [vmem:[%s5 + $0x108] sm:$0xff]
  %v339 = vld [vmem:[%s5 + $0x110] sm:$0xff]
  %v340 = vld [vmem:[%s5 + $0x118] sm:$0xff]
  %v341 = vld [vmem:[%s5 + $0x120] sm:$0xff]
  %v342 = vld [vmem:[%s5 + $0x128] sm:$0xff]
  %v343 = vld [vmem:[%s5 + $0x130] sm:$0xff]
  %v344 = vld [vmem:[%s5 + $0x138] sm:$0xff]
  %v345 = vld [vmem:[%s5 + $0x140] sm:$0xff]
  %v346 = vld [vmem:[%s5 + $0x148] sm:$0xff]
  %v347 = vld [vmem:[%s5 + $0x150] sm:$0xff]
  %v348 = vld [vmem:[%s5 + $0x158] sm:$0xff]
  %v349 = vld [vmem:[%s5 + $0x160] sm:$0xff]
  %v350 = vld [vmem:[%s5 + $0x168] sm:$0xff]
  %v351 = vld [vmem:[%s5 + $0x170] sm:$0xff]
  %v352 = vld [vmem:[%s5 + $0x178] sm:$0xff]
  %v353 = vld [vmem:[%s5 + $0x180] sm:$0xff]
  %v354 = vld [vmem:[%s5 + $0x188] sm:$0xff]
  %v355 = vld [vmem:[%s5 + $0x190] sm:$0xff]
  %v356 = vld [vmem:[%s5 + $0x198] sm:$0xff]
  %v357 = vld [vmem:[%s5 + $0x1a0] sm:$0xff]
  %v358 = vld [vmem:[%s5 + $0x1a8] sm:$0xff]
  %v359 = vld [vmem:[%s5 + $0x1b0] sm:$0xff]
  %v360 = vld [vmem:[%s5 + $0x1b8] sm:$0xff]
  %v361 = vld [vmem:[%s5 + $0x1c0] sm:$0xff]
  %v362 = vld [vmem:[%s5 + $0x1c8] sm:$0xff]
  %v363 = vld [vmem:[%s5 + $0x1d0] sm:$0xff]
  %v364 = vld [vmem:[%s5 + $0x1d8] sm:$0xff]
  %v365 = vld [vmem:[%s5 + $0x1e0] sm:$0xff]
  %v366 = vld [vmem:[%s5 + $0x1e8] sm:$0xff]
  %v367 = vld [vmem:[%s5 + $0x1f0] sm:$0xff]
  %v368 = vld [vmem:[%s5 + $0x1f8] sm:$0xff]
  %v369 = vld [vmem:[%s5 + $0x200] sm:$0xff]
  %v370 = vld [vmem:[%s5 + $0x208] sm:$0xff]
  %v371 = vld [vmem:[%s5 + $0x210] sm:$0xff]
  %v372 = vld [vmem:[%s5 + $0x218] sm:$0xff]
  %v373 = vld [vmem:[%s5 + $0x220] sm:$0xff]
  %v374 = vld [vmem:[%s5 + $0x228] sm:$0xff]
  %v375 = vld [vmem:[%s5 + $0x230] sm:$0xff]
  %v376 = vld [vmem:[%s5 + $0x238] sm:$0xff]
  %v377 = vld [vmem:[%s5 + $0x240] sm:$0xff]
  %v378 = vld [vmem:[%s5 + $0x248] sm:$0xff]
  %v379 = vld [vmem:[%s5 + $0x250] sm:$0xff]
  %v380 = vld [vmem:[%s5 + $0x258] sm:$0xff]
  %v381 = vld [vmem:[%s5 + $0x260] sm:$0xff]
  %v382 = vld [vmem:[%s5 + $0x268] sm:$0xff]
  %v383 = vld [vmem:[%s5 + $0x270] sm:$0xff]
  %v384 = vld [vmem:[%s5 + $0x278] sm:$0xff]
  %v385 = vld [vmem:[%s5 + $0x280] sm:$0xff]
  %v386 = vld [vmem:[%s5 + $0x288] sm:$0xff]
  %v387 = vld [vmem:[%s5 + $0x290] sm:$0xff]
  %v388 = vld [vmem:[%s5 + $0x298] sm:$0xff]
  %v389 = vld [vmem:[%s5 + $0x2a0] sm:$0xff]
  %v390 = vld [vmem:[%s5 + $0x2a8] sm:$0xff]
  %v391 = vld [vmem:[%s5 + $0x2b0] sm:$0xff]
  %v392 = vld [vmem:[%s5 + $0x2b8] sm:$0xff]
  %v393 = vld [vmem:[%s5 + $0x2c0] sm:$0xff]
  %v394 = vld [vmem:[%s5 + $0x2c8] sm:$0xff]
  %v395 = vld [vmem:[%s5 + $0x2d0] sm:$0xff]
  %v396 = vld [vmem:[%s5 + $0x2d8] sm:$0xff]
  %v397 = vld [vmem:[%s5 + $0x2e0] sm:$0xff]
  %v398 = vld [vmem:[%s5 + $0x2e8] sm:$0xff]
  %v399 = vld [vmem:[%s5 + $0x2f0] sm:$0xff]
  %v400 = vld [vmem:[%s5 + $0x2f8] sm:$0xff]
  %v401 = vld [vmem:[%s5 + $0x300] sm:$0xff]
  %v402 = vld [vmem:[%s5 + $0x308] sm:$0xff]
  %v403 = vld [vmem:[%s5 + $0x310] sm:$0xff]
  %v404 = vld [vmem:[%s5 + $0x318] sm:$0xff]
  %v405 = vld [vmem:[%s5 + $0x320] sm:$0xff]
  %v406 = vld [vmem:[%s5 + $0x328] sm:$0xff]
  %v407 = vld [vmem:[%s5 + $0x330] sm:$0xff]
  %v408 = vld [vmem:[%s5 + $0x338] sm:$0xff]
  %v409 = vld [vmem:[%s5 + $0x340] sm:$0xff]
  %v410 = vld [vmem:[%s5 + $0x348] sm:$0xff]
  %v411 = vld [vmem:[%s5 + $0x350] sm:$0xff]
  %v412 = vld [vmem:[%s5 + $0x358] sm:$0xff]
  %v413 = vld [vmem:[%s5 + $0x360] sm:$0xff]
  %v414 = vld [vmem:[%s5 + $0x368] sm:$0xff]
  %v415 = vld [vmem:[%s5 + $0x370] sm:$0xff]
  %v416 = vld [vmem:[%s5 + $0x378] sm:$0xff]
  %v417 = vld [vmem:[%s5 + $0x380] sm:$0xff]
  %v418 = vld [vmem:[%s5 + $0x388] sm:$0xff]
  %v419 = vld [vmem:[%s5 + $0x390] sm:$0xff]
  %v420 = vld [vmem:[%s5 + $0x398] sm:$0xff]
  %v421 = vld [vmem:[%s5 + $0x3a0] sm:$0xff]
  %v422 = vld [vmem:[%s5 + $0x3a8] sm:$0xff]
  %v423 = vld [vmem:[%s5 + $0x3b0] sm:$0xff]
  %v424 = vld [vmem:[%s5 + $0x3b8] sm:$0xff]
  %v425 = vld [vmem:[%s5 + $0x3c0] sm:$0xff]
  %v426 = vld [vmem:[%s5 + $0x3c8] sm:$0xff]
  %v427 = vld [vmem:[%s5 + $0x3d0] sm:$0xff]
  %v428 = vld [vmem:[%s5 + $0x3d8] sm:$0xff]
  %v429 = vld [vmem:[%s5 + $0x3e0] sm:$0xff]
  %v430 = vld [vmem:[%s5 + $0x3e8] sm:$0xff]
  %v431 = vld [vmem:[%s5 + $0x3f0] sm:$0xff]
  %v432 = vld [vmem:[%s5 + $0x3f8] sm:$0xff]
  %v433 = vld [vmem:[%s3] sm:$0xff]
  %v434 = vld [vmem:[%s6] sm:$0xff]
  %v436 = vlaneseq
  %v437 = vshrl.u32 %v436, 7
  %v438 = vsub.s32 0, %v437
  %v439 = vrot.slane %v434, %v438
  %v440 = vlaneseq
  %v441 = vshrl.u32 %v440, 7
  %v442 = vsub.s32 1, %v441
  %v443 = vrot.slane %v434, %v442
  %v444 = vlaneseq
  %v445 = vshrl.u32 %v444, 7
  %v446 = vsub.s32 2, %v445
  %v447 = vrot.slane %v434, %v446
  %v448 = vlaneseq
  %v449 = vshrl.u32 %v448, 7
  %v450 = vsub.s32 3, %v449
  %v451 = vrot.slane %v434, %v450
  %v452 = vlaneseq
  %v453 = vshrl.u32 %v452, 7
  %v454 = vsub.s32 4, %v453
  %v455 = vrot.slane %v434, %v454
  %v456 = vlaneseq
  %v457 = vshrl.u32 %v456, 7
  %v458 = vsub.s32 5, %v457
  %v459 = vrot.slane %v434, %v458
  %v460 = vlaneseq
  %v461 = vshrl.u32 %v460, 7
  %v462 = vsub.s32 6, %v461
  %v463 = vrot.slane %v434, %v462
  %v464 = vlaneseq
  %v465 = vshrl.u32 %v464, 7
  %v466 = vsub.s32 7, %v465
  %v467 = vrot.slane %v434, %v466
  %v476 = vld [vmem:[%s0] sm:$0xf]
  %v477 = vld [vmem:[%s0 + $0x4] sm:$0xf]
  %v478 = vld [vmem:[%s0 + $0x8] sm:$0xf]
  %v479 = vld [vmem:[%s0 + $0xc] sm:$0xf]
  %v480 = vld [vmem:[%s0 + $0x10] sm:$0xf]
  %v481 = vld [vmem:[%s0 + $0x14] sm:$0xf]
  %v482 = vld [vmem:[%s0 + $0x18] sm:$0xf]
  %v483 = vld [vmem:[%s0 + $0x1c] sm:$0xf]
  %v485 = vlaneseq
  %v486 = vshrl.u32 %v485, 7
  %v487 = vsub.s32 0, %v486
  %v488 = vrot.slane %v433, %v487
  %v489 = vlaneseq
  %v490 = vshrl.u32 %v489, 7
  %v491 = vsub.s32 1, %v490
  %v492 = vrot.slane %v433, %v491
  %v493 = vlaneseq
  %v494 = vshrl.u32 %v493, 7
  %v495 = vsub.s32 2, %v494
  %v496 = vrot.slane %v433, %v495
  %v497 = vlaneseq
  %v498 = vshrl.u32 %v497, 7
  %v499 = vsub.s32 3, %v498
  %v500 = vrot.slane %v433, %v499
  %v501 = vlaneseq
  %v502 = vshrl.u32 %v501, 7
  %v503 = vsub.s32 4, %v502
  %v504 = vrot.slane %v433, %v503
  %v505 = vlaneseq
  %v506 = vshrl.u32 %v505, 7
  %v507 = vsub.s32 5, %v506
  %v508 = vrot.slane %v433, %v507
  %v509 = vlaneseq
  %v510 = vshrl.u32 %v509, 7
  %v511 = vsub.s32 6, %v510
  %v512 = vrot.slane %v433, %v511
  %v513 = vlaneseq
  %v514 = vshrl.u32 %v513, 7
  %v515 = vsub.s32 7, %v514
  %v516 = vrot.slane %v433, %v515
  %v533 = vunpack.c.l.b16 %v476
  %v534 = vunpack.c.l.b16 %v477
  %v535 = vunpack.c.l.b16 %v478
  %v536 = vunpack.c.l.b16 %v479
  %v537 = vunpack.c.l.b16 %v480
  %v538 = vunpack.c.l.b16 %v481
  %v539 = vunpack.c.l.b16 %v482
  %v540 = vunpack.c.l.b16 %v483
  %v541 = vpack.c.b16 %v534, %v533
  %v542 = vpack.c.b16 %v536, %v535
  %v543 = vpack.c.b16 %v538, %v537
  %v544 = vpack.c.b16 %v540, %v539
  %v561 = vunpack.c.l.b16 %v33
  %v562 = vunpack.c.h.b16 %v33
  %v563 = vunpack.c.l.b16 %v34
  %v564 = vunpack.c.h.b16 %v34
  %v565 = vunpack.c.l.b16 %v35
  %v566 = vunpack.c.h.b16 %v35
  %v567 = vunpack.c.l.b16 %v36
  %v568 = vunpack.c.h.b16 %v36
  %v569 = vunpack.c.l.b16 %v37
  %v570 = vunpack.c.h.b16 %v37
  %v571 = vunpack.c.l.b16 %v38
  %v572 = vunpack.c.h.b16 %v38
  %v573 = vunpack.c.l.b16 %v39
  %v574 = vunpack.c.h.b16 %v39
  %v575 = vunpack.c.l.b16 %v40
  %v576 = vunpack.c.h.b16 %v40
  %v577 = vunpack.c.l.b16 %v41
  %v578 = vunpack.c.h.b16 %v41
  %v579 = vunpack.c.l.b16 %v42
  %v580 = vunpack.c.h.b16 %v42
  %v581 = vunpack.c.l.b16 %v43
  %v582 = vunpack.c.h.b16 %v43
  %v583 = vunpack.c.l.b16 %v44
  %v584 = vunpack.c.h.b16 %v44
  %v585 = vunpack.c.l.b16 %v45
  %v586 = vunpack.c.h.b16 %v45
  %v587 = vunpack.c.l.b16 %v46
  %v588 = vunpack.c.h.b16 %v46
  %v589 = vunpack.c.l.b16 %v47
  %v590 = vunpack.c.h.b16 %v47
  %v591 = vunpack.c.l.b16 %v48
  %v592 = vunpack.c.h.b16 %v48
  %v593 = vpack.c.b16 %v569, %v561
  %v594 = vpack.c.b16 %v570, %v562
  %v595 = vpack.c.b16 %v571, %v563
  %v596 = vpack.c.b16 %v572, %v564
  %v597 = vpack.c.b16 %v573, %v565
  %v598 = vpack.c.b16 %v574, %v566
  %v599 = vpack.c.b16 %v575, %v567
  %v600 = vpack.c.b16 %v576, %v568
  %v601 = vpack.c.b16 %v585, %v577
  %v602 = vpack.c.b16 %v586, %v578
  %v603 = vpack.c.b16 %v587, %v579
  %v604 = vpack.c.b16 %v588, %v580
  %v605 = vpack.c.b16 %v589, %v581
  %v606 = vpack.c.b16 %v590, %v582
  %v607 = vpack.c.b16 %v591, %v583
  %v608 = vpack.c.b16 %v592, %v584
  %vm617 = vcmask 244736
  %v619 = vsel %vm617, %v541, 0
  %v622 = vsel %vm617, %v542, 0
  %v625 = vsel %vm617, %v543, 0
  %v628 = vsel %vm617, %v544, 0
  %vm630 = vcmask 1046528
  %v632 = vsel %vm630, %v601, 0
  %v635 = vsel %vm630, %v602, 0
  %v638 = vsel %vm630, %v603, 0
  %v641 = vsel %vm630, %v604, 0
  %v644 = vsel %vm630, %v605, 0
  %v647 = vsel %vm630, %v606, 0
  %v650 = vsel %vm630, %v607, 0
  %v653 = vsel %vm630, %v608, 0
  %655 = vmatprep.subr.bf16.mxu0 %v594
  %656 = vmatpush1.bf16.msra.mxu0 %v593
  %657 = vmatprep.subr.bf16.mxu0 %v635
  %658 = vmatpush1.bf16.msra.mxu0 %v632
  %659 = vmatprep.subr.bf16.mxu0 0
  %660 = vmatpush1.bf16.msra.mxu0 0
  %661 = vmatprep.subr.bf16.mxu0 0
  %662 = vmatpush1.bf16.msra.mxu0 0
  %663 = vmatprep.subr.bf16.mxu0 0
  %664 = vmatpush1.bf16.msra.mxu0 0
  %665 = vmatprep.subr.bf16.mxu0 0
  %666 = vmatpush1.bf16.msra.mxu0 0
  %667 = vmatprep.subr.bf16.mxu0 0
  %668 = vmatpush1.bf16.msra.mxu0 0
  %669 = vmatprep.subr.bf16.mxu0 0
  %670 = vmatpush1.bf16.msra.mxu0 0
  %671 = vmatprep.subr.bf16.mxu0 0
  %672 = vmatpush1.bf16.msra.mxu0 0
  %673 = vmatprep.subr.bf16.mxu0 0
  %674 = vmatpush1.bf16.msra.mxu0 0
  %675 = vmatprep.subr.bf16.mxu0 0
  %676 = vmatpush1.bf16.msra.mxu0 0
  %677 = vmatprep.subr.bf16.mxu0 0
  %678 = vmatpush1.bf16.msra.mxu0 0
  %679 = vmatprep.subr.bf16.mxu0 0
  %680 = vmatpush1.bf16.msra.mxu0 0
  %681 = vmatprep.subr.bf16.mxu0 0
  %682 = vmatpush1.bf16.msra.mxu0 0
  %683 = vmatprep.subr.bf16.mxu0 0
  %684 = vmatpush1.bf16.msra.mxu0 0
  %685 = vmatprep.subr.bf16.mxu0 0
  %686 = vmatpush1.bf16.msra.mxu0 0
  %687 = vmatprep.mubr.bf16.mxu0 0
  %688 = vmatmul.mubr.bf16.gmra.mrb[0].mxu0 %v619
  %v689 = vpop.f32.mrb[0].mxu0
  %v690 = vadd.f32 %v488, %v689
  %v691 = vpop.f32.mrb[0].mxu0
  %v692 = vadd.f32 %v492, %v691
  %v693 = vpop.f32.mrb[0].mxu0
  %v694 = vadd.f32 %v488, %v693
  %v695 = vpop.f32.mrb[0].mxu0
  %v696 = vadd.f32 %v492, %v695
  %697 = vmatprep.mubr.bf16.mxu0 0
  %698 = vmatmul.mubr.bf16.gmra.mrb[0].mxu0 %v622
  %v699 = vpop.f32.mrb[0].mxu0
  %v700 = vadd.f32 %v488, %v699
  %v701 = vpop.f32.mrb[0].mxu0
  %v702 = vadd.f32 %v492, %v701
  %v703 = vpop.f32.mrb[0].mxu0
  %v704 = vadd.f32 %v488, %v703
  %v705 = vpop.f32.mrb[0].mxu0
  %v706 = vadd.f32 %v492, %v705
  %707 = vmatprep.mubr.bf16.mxu0 0
  %708 = vmatmul.mubr.bf16.gmra.mrb[0].mxu0 %v625
  %v709 = vpop.f32.mrb[0].mxu0
  %v710 = vadd.f32 %v488, %v709
  %v711 = vpop.f32.mrb[0].mxu0
  %v712 = vadd.f32 %v492, %v711
  %v713 = vpop.f32.mrb[0].mxu0
  %v714 = vadd.f32 %v488, %v713
  %v715 = vpop.f32.mrb[0].mxu0
  %v716 = vadd.f32 %v492, %v715
  %717 = vmatprep.mubr.bf16.mxu0 0
  %718 = vmatmul.mubr.bf16.gmra.mrb[0].mxu0 %v628
  %v719 = vpop.f32.mrb[0].mxu0
  %v720 = vadd.f32 %v488, %v719
  %v721 = vpop.f32.mrb[0].mxu0
  %v722 = vadd.f32 %v492, %v721
  %v723 = vpop.f32.mrb[0].mxu0
  %v724 = vadd.f32 %v488, %v723
  %v725 = vpop.f32.mrb[0].mxu0
  %v726 = vadd.f32 %v492, %v725
  %727 = vdwg.mxu0
  %728 = vmatprep.subr.bf16.mxu0 %v596
  %729 = vmatpush1.bf16.msra.mxu0 %v595
  %730 = vmatprep.subr.bf16.mxu0 %v641
  %731 = vmatpush1.bf16.msra.mxu0 %v638
  %732 = vmatprep.subr.bf16.mxu0 0
  %733 = vmatpush1.bf16.msra.mxu0 0
  %734 = vmatprep.subr.bf16.mxu0 0
  %735 = vmatpush1.bf16.msra.mxu0 0
  %736 = vmatprep.subr.bf16.mxu0 0
  %737 = vmatpush1.bf16.msra.mxu0 0
  %738 = vmatprep.subr.bf16.mxu0 0
  %739 = vmatpush1.bf16.msra.mxu0 0
  %740 = vmatprep.subr.bf16.mxu0 0
  %741 = vmatpush1.bf16.msra.mxu0 0
  %742 = vmatprep.subr.bf16.mxu0 0
  %743 = vmatpush1.bf16.msra.mxu0 0
  %744 = vmatprep.subr.bf16.mxu0 0
  %745 = vmatpush1.bf16.msra.mxu0 0
  %746 = vmatprep.subr.bf16.mxu0 0
  %747 = vmatpush1.bf16.msra.mxu0 0
  %748 = vmatprep.subr.bf16.mxu0 0
  %749 = vmatpush1.bf16.msra.mxu0 0
  %750 = vmatprep.subr.bf16.mxu0 0
  %751 = vmatpush1.bf16.msra.mxu0 0
  %752 = vmatprep.subr.bf16.mxu0 0
  %753 = vmatpush1.bf16.msra.mxu0 0
  %754 = vmatprep.subr.bf16.mxu0 0
  %755 = vmatpush1.bf16.msra.mxu0 0
  %756 = vmatprep.subr.bf16.mxu0 0
  %757 = vmatpush1.bf16.msra.mxu0 0
  %758 = vmatprep.subr.bf16.mxu0 0
  %759 = vmatpush1.bf16.msra.mxu0 0
  %760 = vmatprep.mubr.bf16.mxu0 0
  %761 = vmatmul.mubr.bf16.gmra.mrb[0].mxu0 %v619
  %v762 = vpop.f32.mrb[0].mxu0
  %v763 = vadd.f32 %v496, %v762
  %v764 = vpop.f32.mrb[0].mxu0
  %v765 = vadd.f32 %v500, %v764
  %v766 = vpop.f32.mrb[0].mxu0
  %v767 = vadd.f32 %v496, %v766
  %v768 = vpop.f32.mrb[0].mxu0
  %v769 = vadd.f32 %v500, %v768
  %770 = vmatprep.mubr.bf16.mxu0 0
  %771 = vmatmul.mubr.bf16.gmra.mrb[0].mxu0 %v622
  %v772 = vpop.f32.mrb[0].mxu0
  %v773 = vadd.f32 %v496, %v772
  %v774 = vpop.f32.mrb[0].mxu0
  %v775 = vadd.f32 %v500, %v774
  %v776 = vpop.f32.mrb[0].mxu0
  %v777 = vadd.f32 %v496, %v776
  %v778 = vpop.f32.mrb[0].mxu0
  %v779 = vadd.f32 %v500, %v778
  %780 = vmatprep.mubr.bf16.mxu0 0
  %781 = vmatmul.mubr.bf16.gmra.mrb[0].mxu0 %v625
  %v782 = vpop.f32.mrb[0].mxu0
  %v783 = vadd.f32 %v496, %v782
  %v784 = vpop.f32.mrb[0].mxu0
  %v785 = vadd.f32 %v500, %v784
  %v786 = vpop.f32.mrb[0].mxu0
  %v787 = vadd.f32 %v496, %v786
  %v788 = vpop.f32.mrb[0].mxu0
  %v789 = vadd.f32 %v500, %v788
  %790 = vmatprep.mubr.bf16.mxu0 0
  %791 = vmatmul.mubr.bf16.gmra.mrb[0].mxu0 %v628
  %v792 = vpop.f32.mrb[0].mxu0
  %v793 = vadd.f32 %v496, %v792
  %v794 = vpop.f32.mrb[0].mxu0
  %v795 = vadd.f32 %v500, %v794
  %v796 = vpop.f32.mrb[0].mxu0
  %v797 = vadd.f32 %v496, %v796
  %v798 = vpop.f32.mrb[0].mxu0
  %v799 = vadd.f32 %v500, %v798
  %800 = vdwg.mxu0
  %801 = vmatprep.subr.bf16.mxu0 %v598
  %802 = vmatpush1.bf16.msra.mxu0 %v597
  %803 = vmatprep.subr.bf16.mxu0 %v647
  %804 = vmatpush1.bf16.msra.mxu0 %v644
  %805 = vmatprep.subr.bf16.mxu0 0
  %806 = vmatpush1.bf16.msra.mxu0 0
  %807 = vmatprep.subr.bf16.mxu0 0
  %808 = vmatpush1.bf16.msra.mxu0 0
  %809 = vmatprep.subr.bf16.mxu0 0
  %810 = vmatpush1.bf16.msra.mxu0 0
  %811 = vmatprep.subr.bf16.mxu0 0
  %812 = vmatpush1.bf16.msra.mxu0 0
  %813 = vmatprep.subr.bf16.mxu0 0
  %814 = vmatpush1.bf16.msra.mxu0 0
  %815 = vmatprep.subr.bf16.mxu0 0
  %816 = vmatpush1.bf16.msra.mxu0 0
  %817 = vmatprep.subr.bf16.mxu0 0
  %818 = vmatpush1.bf16.msra.mxu0 0
  %819 = vmatprep.subr.bf16.mxu0 0
  %820 = vmatpush1.bf16.msra.mxu0 0
  %821 = vmatprep.subr.bf16.mxu0 0
  %822 = vmatpush1.bf16.msra.mxu0 0
  %823 = vmatprep.subr.bf16.mxu0 0
  %824 = vmatpush1.bf16.msra.mxu0 0
  %825 = vmatprep.subr.bf16.mxu0 0
  %826 = vmatpush1.bf16.msra.mxu0 0
  %827 = vmatprep.subr.bf16.mxu0 0
  %828 = vmatpush1.bf16.msra.mxu0 0
  %829 = vmatprep.subr.bf16.mxu0 0
  %830 = vmatpush1.bf16.msra.mxu0 0
  %831 = vmatprep.subr.bf16.mxu0 0
  %832 = vmatpush1.bf16.msra.mxu0 0
  %833 = vmatprep.mubr.bf16.mxu0 0
  %834 = vmatmul.mubr.bf16.gmra.mrb[0].mxu0 %v619
  %v835 = vpop.f32.mrb[0].mxu0
  %v836 = vadd.f32 %v504, %v835
  %v837 = vpop.f32.mrb[0].mxu0
  %v838 = vadd.f32 %v508, %v837
  %v839 = vpop.f32.mrb[0].mxu0
  %v840 = vadd.f32 %v504, %v839
  %v841 = vpop.f32.mrb[0].mxu0
  %v842 = vadd.f32 %v508, %v841
  %843 = vmatprep.mubr.bf16.mxu0 0
  %844 = vmatmul.mubr.bf16.gmra.mrb[0].mxu0 %v622
  %v845 = vpop.f32.mrb[0].mxu0
  %v846 = vadd.f32 %v504, %v845
  %v847 = vpop.f32.mrb[0].mxu0
  %v848 = vadd.f32 %v508, %v847
  %v849 = vpop.f32.mrb[0].mxu0
  %v850 = vadd.f32 %v504, %v849
  %v851 = vpop.f32.mrb[0].mxu0
  %v852 = vadd.f32 %v508, %v851
  %853 = vmatprep.mubr.bf16.mxu0 0
  %854 = vmatmul.mubr.bf16.gmra.mrb[0].mxu0 %v625
  %v855 = vpop.f32.mrb[0].mxu0
  %v856 = vadd.f32 %v504, %v855
  %v857 = vpop.f32.mrb[0].mxu0
  %v858 = vadd.f32 %v508, %v857
  %v859 = vpop.f32.mrb[0].mxu0
  %v860 = vadd.f32 %v504, %v859
  %v861 = vpop.f32.mrb[0].mxu0
  %v862 = vadd.f32 %v508, %v861
  %863 = vmatprep.mubr.bf16.mxu0 0
  %864 = vmatmul.mubr.bf16.gmra.mrb[0].mxu0 %v628
  %v865 = vpop.f32.mrb[0].mxu0
  %v866 = vadd.f32 %v504, %v865
  %v867 = vpop.f32.mrb[0].mxu0
  %v868 = vadd.f32 %v508, %v867
  %v869 = vpop.f32.mrb[0].mxu0
  %v870 = vadd.f32 %v504, %v869
  %v871 = vpop.f32.mrb[0].mxu0
  %v872 = vadd.f32 %v508, %v871
  %873 = vdwg.mxu0
  %874 = vmatprep.subr.bf16.mxu0 %v600
  %875 = vmatpush1.bf16.msra.mxu0 %v599
  %876 = vmatprep.subr.bf16.mxu0 %v653
  %877 = vmatpush1.bf16.msra.mxu0 %v650
  %878 = vmatprep.subr.bf16.mxu0 0
  %879 = vmatpush1.bf16.msra.mxu0 0
  %880 = vmatprep.subr.bf16.mxu0 0
  %881 = vmatpush1.bf16.msra.mxu0 0
  %882 = vmatprep.subr.bf16.mxu0 0
  %883 = vmatpush1.bf16.msra.mxu0 0
  %884 = vmatprep.subr.bf16.mxu0 0
  %885 = vmatpush1.bf16.msra.mxu0 0
  %886 = vmatprep.subr.bf16.mxu0 0
  %887 = vmatpush1.bf16.msra.mxu0 0
  %888 = vmatprep.subr.bf16.mxu0 0
  %889 = vmatpush1.bf16.msra.mxu0 0
  %890 = vmatprep.subr.bf16.mxu0 0
  %891 = vmatpush1.bf16.msra.mxu0 0
  %892 = vmatprep.subr.bf16.mxu0 0
  %893 = vmatpush1.bf16.msra.mxu0 0
  %894 = vmatprep.subr.bf16.mxu0 0
  %895 = vmatpush1.bf16.msra.mxu0 0
  %896 = vmatprep.subr.bf16.mxu0 0
  %897 = vmatpush1.bf16.msra.mxu0 0
  %898 = vmatprep.subr.bf16.mxu0 0
  %899 = vmatpush1.bf16.msra.mxu0 0
  %900 = vmatprep.subr.bf16.mxu0 0
  %901 = vmatpush1.bf16.msra.mxu0 0
  %902 = vmatprep.subr.bf16.mxu0 0
  %903 = vmatpush1.bf16.msra.mxu0 0
  %904 = vmatprep.subr.bf16.mxu0 0
  %905 = vmatpush1.bf16.msra.mxu0 0
  %906 = vmatprep.mubr.bf16.mxu0 0
  %907 = vmatmul.mubr.bf16.gmra.mrb[0].mxu0 %v619
  %v908 = vpop.f32.mrb[0].mxu0
  %v909 = vadd.f32 %v512, %v908
  %v910 = vpop.f32.mrb[0].mxu0
  %v911 = vadd.f32 %v516, %v910
  %v912 = vpop.f32.mrb[0].mxu0
  %v913 = vadd.f32 %v512, %v912
  %v914 = vpop.f32.mrb[0].mxu0
  %v915 = vadd.f32 %v516, %v914
  %916 = vmatprep.mubr.bf16.mxu0 0
  %917 = vmatmul.mubr.bf16.gmra.mrb[0].mxu0 %v622
  %v918 = vpop.f32.mrb[0].mxu0
  %v919 = vadd.f32 %v512, %v918
  %v920 = vpop.f32.mrb[0].mxu0
  %v921 = vadd.f32 %v516, %v920
  %v922 = vpop.f32.mrb[0].mxu0
  %v923 = vadd.f32 %v512, %v922
  %v924 = vpop.f32.mrb[0].mxu0
  %v925 = vadd.f32 %v516, %v924
  %926 = vmatprep.mubr.bf16.mxu0 0
  %927 = vmatmul.mubr.bf16.gmra.mrb[0].mxu0 %v625
  %v928 = vpop.f32.mrb[0].mxu0
  %v929 = vadd.f32 %v512, %v928
  %v930 = vpop.f32.mrb[0].mxu0
  %v931 = vadd.f32 %v516, %v930
  %v932 = vpop.f32.mrb[0].mxu0
  %v933 = vadd.f32 %v512, %v932
  %v934 = vpop.f32.mrb[0].mxu0
  %v935 = vadd.f32 %v516, %v934
  %936 = vmatprep.mubr.bf16.mxu0 0
  %937 = vmatmul.mubr.bf16.gmra.mrb[0].mxu0 %v628
  %v938 = vpop.f32.mrb[0].mxu0
  %v939 = vadd.f32 %v512, %v938
  %v940 = vpop.f32.mrb[0].mxu0
  %v941 = vadd.f32 %v516, %v940
  %v942 = vpop.f32.mrb[0].mxu0
  %v943 = vadd.f32 %v512, %v942
  %v944 = vpop.f32.mrb[0].mxu0
  %v945 = vadd.f32 %v516, %v944
  %946 = vdwg.mxu0
  %947 = vst [vmem:[#allocation2] sm:$0xff] %v690
  %948 = vst [vmem:[#allocation2 + $0x8] sm:$0xff] %v692
  %949 = vst [vmem:[#allocation2 + $0x10] sm:$0xff] %v763
  %950 = vst [vmem:[#allocation2 + $0x18] sm:$0xff] %v765
  %951 = vst [vmem:[#allocation2 + $0x20] sm:$0xff] %v836
  %952 = vst [vmem:[#allocation2 + $0x28] sm:$0xff] %v838
  %953 = vst [vmem:[#allocation2 + $0x30] sm:$0xff] %v909
  %954 = vst [vmem:[#allocation2 + $0x38] sm:$0xff] %v911
  %955 = vst [vmem:[#allocation2 + $0x40] sm:$0xff] %v694
  %956 = vst [vmem:[#allocation2 + $0x48] sm:$0xff] %v696
  %957 = vst [vmem:[#allocation2 + $0x50] sm:$0xff] %v767
  %958 = vst [vmem:[#allocation2 + $0x58] sm:$0xff] %v769
  %959 = vst [vmem:[#allocation2 + $0x60] sm:$0xff] %v840
  %960 = vst [vmem:[#allocation2 + $0x68] sm:$0xff] %v842
  %961 = vst [vmem:[#allocation2 + $0x70] sm:$0xff] %v913
  %962 = vst [vmem:[#allocation2 + $0x78] sm:$0xff] %v915
  %963 = vst [vmem:[#allocation2 + $0x80] sm:$0xff] %v700
  %964 = vst [vmem:[#allocation2 + $0x88] sm:$0xff] %v702
  %965 = vst [vmem:[#allocation2 + $0x90] sm:$0xff] %v773
  %966 = vst [vmem:[#allocation2 + $0x98] sm:$0xff] %v775
  %967 = vst [vmem:[#allocation2 + $0xa0] sm:$0xff] %v846
  %968 = vst [vmem:[#allocation2 + $0xa8] sm:$0xff] %v848
  %969 = vst [vmem:[#allocation2 + $0xb0] sm:$0xff] %v919
  %970 = vst [vmem:[#allocation2 + $0xb8] sm:$0xff] %v921
  %971 = vst [vmem:[#allocation2 + $0xc0] sm:$0xff] %v704
  %972 = vst [vmem:[#allocation2 + $0xc8] sm:$0xff] %v706
  %973 = vst [vmem:[#allocation2 + $0xd0] sm:$0xff] %v777
  %974 = vst [vmem:[#allocation2 + $0xd8] sm:$0xff] %v779
  %975 = vst [vmem:[#allocation2 + $0xe0] sm:$0xff] %v850
  %976 = vst [vmem:[#allocation2 + $0xe8] sm:$0xff] %v852
  %977 = vst [vmem:[#allocation2 + $0xf0] sm:$0xff] %v923
  %978 = vst [vmem:[#allocation2 + $0xf8] sm:$0xff] %v925
  %979 = vst [vmem:[#allocation2 + $0x100] sm:$0xff] %v710
  %980 = vst [vmem:[#allocation2 + $0x108] sm:$0xff] %v712
  %981 = vst [vmem:[#allocation2 + $0x110] sm:$0xff] %v783
  %982 = vst [vmem:[#allocation2 + $0x118] sm:$0xff] %v785
  %983 = vst [vmem:[#allocation2 + $0x120] sm:$0xff] %v856
  %984 = vst [vmem:[#allocation2 + $0x128] sm:$0xff] %v858
  %985 = vst [vmem:[#allocation2 + $0x130] sm:$0xff] %v929
  %986 = vst [vmem:[#allocation2 + $0x138] sm:$0xff] %v931
  %987 = vst [vmem:[#allocation2 + $0x140] sm:$0xff] %v714
  %988 = vst [vmem:[#allocation2 + $0x148] sm:$0xff] %v716
  %989 = vst [vmem:[#allocation2 + $0x150] sm:$0xff] %v787
  %990 = vst [vmem:[#allocation2 + $0x158] sm:$0xff] %v789
  %991 = vst [vmem:[#allocation2 + $0x160] sm:$0xff] %v860
  %992 = vst [vmem:[#allocation2 + $0x168] sm:$0xff] %v862
  %993 = vst [vmem:[#allocation2 + $0x170] sm:$0xff] %v933
  %994 = vst [vmem:[#allocation2 + $0x178] sm:$0xff] %v935
  %995 = vst [vmem:[#allocation2 + $0x180] sm:$0xff] %v720
  %996 = vst [vmem:[#allocation2 + $0x188] sm:$0xff] %v722
  %997 = vst [vmem:[#allocation2 + $0x190] sm:$0xff] %v793
  %998 = vst [vmem:[#allocation2 + $0x198] sm:$0xff] %v795
  %999 = vst [vmem:[#allocation2 + $0x1a0] sm:$0xff] %v866
  %1000 = vst [vmem:[#allocation2 + $0x1a8] sm:$0xff] %v868
  %1001 = vst [vmem:[#allocation2 + $0x1b0] sm:$0xff] %v939
  %1002 = vst [vmem:[#allocation2 + $0x1b8] sm:$0xff] %v941
  %1003 = vst [vmem:[#allocation2 + $0x1c0] sm:$0xff] %v724
  %1004 = vst [vmem:[#allocation2 + $0x1c8] sm:$0xff] %v726
  %1005 = vst [vmem:[#allocation2 + $0x1d0] sm:$0xff] %v797
  %1006 = vst [vmem:[#allocation2 + $0x1d8] sm:$0xff] %v799
  %1007 = vst [vmem:[#allocation2 + $0x1e0] sm:$0xff] %v870
  %1008 = vst [vmem:[#allocation2 + $0x1e8] sm:$0xff] %v872
  %1009 = vst [vmem:[#allocation2 + $0x1f0] sm:$0xff] %v943
  %1010 = vst [vmem:[#allocation2 + $0x1f8] sm:$0xff] %v945
  %s1011 = smul.u32 0, 8
  %s1012 = smul.addr %s1011, 8
  %s1013 = scalar_lea.vmem [#allocation2], %s1012
  %v1014 = vld [vmem:[%s1013] sm:$0xff]
  %v1015 = vld [vmem:[%s1013 + $0x8] sm:$0xff]
  %v1016 = vld [vmem:[%s1013 + $0x10] sm:$0xff]
  %v1017 = vld [vmem:[%s1013 + $0x18] sm:$0xff]
  %v1018 = vld [vmem:[%s1013 + $0x20] sm:$0xff]
  %v1019 = vld [vmem:[%s1013 + $0x28] sm:$0xff]
  %v1020 = vld [vmem:[%s1013 + $0x30] sm:$0xff]
  %v1021 = vld [vmem:[%s1013 + $0x38] sm:$0xff]
  %v1150 = vunpack.c.l.b16 %v49
  %v1151 = vunpack.c.h.b16 %v49
  %v1152 = vunpack.c.l.b16 %v50
  %v1153 = vunpack.c.h.b16 %v50
  %v1154 = vunpack.c.l.b16 %v51
  %v1155 = vunpack.c.h.b16 %v51
  %v1156 = vunpack.c.l.b16 %v52
  %v1157 = vunpack.c.h.b16 %v52
  %v1158 = vunpack.c.l.b16 %v53
  %v1159 = vunpack.c.h.b16 %v53
  %v1160 = vunpack.c.l.b16 %v54
  %v1161 = vunpack.c.h.b16 %v54
  %v1162 = vunpack.c.l.b16 %v55
  %v1163 = vunpack.c.h.b16 %v55
  %v1164 = vunpack.c.l.b16 %v56
  %v1165 = vunpack.c.h.b16 %v56
  %v1166 = vunpack.c.l.b16 %v57
  %v1167 = vunpack.c.h.b16 %v57
  %v1168 = vunpack.c.l.b16 %v58
  %v1169 = vunpack.c.h.b16 %v58
  %v1170 = vunpack.c.l.b16 %v59
  %v1171 = vunpack.c.h.b16 %v59
  %v1172 = vunpack.c.l.b16 %v60
  %v1173 = vunpack.c.h.b16 %v60
  %v1174 = vunpack.c.l.b16 %v61
  %v1175 = vunpack.c.h.b16 %v61
  %v1176 = vunpack.c.l.b16 %v62
  %v1177 = vunpack.c.h.b16 %v62
  %v1178 = vunpack.c.l.b16 %v63
  %v1179 = vunpack.c.h.b16 %v63
  %v1180 = vunpack.c.l.b16 %v64
  %v1181 = vunpack.c.h.b16 %v64
  %v1182 = vunpack.c.l.b16 %v65
  %v1183 = vunpack.c.h.b16 %v65
  %v1184 = vunpack.c.l.b16 %v66
  %v1185 = vunpack.c.h.b16 %v66
  %v1186 = vunpack.c.l.b16 %v67
  %v1187 = vunpack.c.h.b16 %v67
  %v1188 = vunpack.c.l.b16 %v68
  %v1189 = vunpack.c.h.b16 %v68
  %v1190 = vunpack.c.l.b16 %v69
  %v1191 = vunpack.c.h.b16 %v69
  %v1192 = vunpack.c.l.b16 %v70
  %v1193 = vunpack.c.h.b16 %v70
  %v1194 = vunpack.c.l.b16 %v71
  %v1195 = vunpack.c.h.b16 %v71
  %v1196 = vunpack.c.l.b16 %v72
  %v1197 = vunpack.c.h.b16 %v72
  %v1198 = vunpack.c.l.b16 %v73
  %v1199 = vunpack.c.h.b16 %v73
  %v1200 = vunpack.c.l.b16 %v74
  %v1201 = vunpack.c.h.b16 %v74
  %v1202 = vunpack.c.l.b16 %v75
  %v1203 = vunpack.c.h.b16 %v75
  %v1204 = vunpack.c.l.b16 %v76
  %v1205 = vunpack.c.h.b16 %v76
  %v1206 = vunpack.c.l.b16 %v77
  %v1207 = vunpack.c.h.b16 %v77
  %v1208 = vunpack.c.l.b16 %v78
  %v1209 = vunpack.c.h.b16 %v78
  %v1210 = vunpack.c.l.b16 %v79
  %v1211 = vunpack.c.h.b16 %v79
  %v1212 = vunpack.c.l.b16 %v80
  %v1213 = vunpack.c.h.b16 %v80
  %v1214 = vunpack.c.l.b16 %v81
  %v1215 = vunpack.c.h.b16 %v81
  %v1216 = vunpack.c.l.b16 %v82
  %v1217 = vunpack.c.h.b16 %v82
  %v1218 = vunpack.c.l.b16 %v83
  %v1219 = vunpack.c.h.b16 %v83
  %v1220 = vunpack.c.l.b16 %v84
  %v1221 = vunpack.c.h.b16 %v84
  %v1222 = vunpack.c.l.b16 %v85
  %v1223 = vunpack.c.h.b16 %v85
  %v1224 = vunpack.c.l.b16 %v86
  %v1225 = vunpack.c.h.b16 %v86
  %v1226 = vunpack.c.l.b16 %v87
  %v1227 = vunpack.c.h.b16 %v87
  %v1228 = vunpack.c.l.b16 %v88
  %v1229 = vunpack.c.h.b16 %v88
  %v1230 = vunpack.c.l.b16 %v89
  %v1231 = vunpack.c.h.b16 %v89
  %v1232 = vunpack.c.l.b16 %v90
  %v1233 = vunpack.c.h.b16 %v90
  %v1234 = vunpack.c.l.b16 %v91
  %v1235 = vunpack.c.h.b16 %v91
  %v1236 = vunpack.c.l.b16 %v92
  %v1237 = vunpack.c.h.b16 %v92
  %v1238 = vunpack.c.l.b16 %v93
  %v1239 = vunpack.c.h.b16 %v93
  %v1240 = vunpack.c.l.b16 %v94
  %v1241 = vunpack.c.h.b16 %v94
  %v1242 = vunpack.c.l.b16 %v95
  %v1243 = vunpack.c.h.b16 %v95
  %v1244 = vunpack.c.l.b16 %v96
  %v1245 = vunpack.c.h.b16 %v96
  %v1246 = vunpack.c.l.b16 %v97
  %v1247 = vunpack.c.h.b16 %v97
  %v1248 = vunpack.c.l.b16 %v98
  %v1249 = vunpack.c.h.b16 %v98
  %v1250 = vunpack.c.l.b16 %v99
  %v1251 = vunpack.c.h.b16 %v99
  %v1252 = vunpack.c.l.b16 %v100
  %v1253 = vunpack.c.h.b16 %v100
  %v1254 = vunpack.c.l.b16 %v101
  %v1255 = vunpack.c.h.b16 %v101
  %v1256 = vunpack.c.l.b16 %v102
  %v1257 = vunpack.c.h.b16 %v102
  %v1258 = vunpack.c.l.b16 %v103
  %v1259 = vunpack.c.h.b16 %v103
  %v1260 = vunpack.c.l.b16 %v104
  %v1261 = vunpack.c.h.b16 %v104
  %v1262 = vunpack.c.l.b16 %v105
  %v1263 = vunpack.c.h.b16 %v105
  %v1264 = vunpack.c.l.b16 %v106
  %v1265 = vunpack.c.h.b16 %v106
  %v1266 = vunpack.c.l.b16 %v107
  %v1267 = vunpack.c.h.b16 %v107
  %v1268 = vunpack.c.l.b16 %v108
  %v1269 = vunpack.c.h.b16 %v108
  %v1270 = vunpack.c.l.b16 %v109
  %v1271 = vunpack.c.h.b16 %v109
  %v1272 = vunpack.c.l.b16 %v110
  %v1273 = vunpack.c.h.b16 %v110
  %v1274 = vunpack.c.l.b16 %v111
  %v1275 = vunpack.c.h.b16 %v111
  %v1276 = vunpack.c.l.b16 %v112
  %v1277 = vunpack.c.h.b16 %v112
  %v1278 = vunpack.c.l.b16 %v113
  %v1279 = vunpack.c.h.b16 %v113
  %v1280 = vunpack.c.l.b16 %v114
  %v1281 = vunpack.c.h.b16 %v114
  %v1282 = vunpack.c.l.b16 %v115
  %v1283 = vunpack.c.h.b16 %v115
  %v1284 = vunpack.c.l.b16 %v116
  %v1285 = vunpack.c.h.b16 %v116
  %v1286 = vunpack.c.l.b16 %v117
  %v1287 = vunpack.c.h.b16 %v117
  %v1288 = vunpack.c.l.b16 %v118
  %v1289 = vunpack.c.h.b16 %v118
  %v1290 = vunpack.c.l.b16 %v119
  %v1291 = vunpack.c.h.b16 %v119
  %v1292 = vunpack.c.l.b16 %v120
  %v1293 = vunpack.c.h.b16 %v120
  %v1294 = vunpack.c.l.b16 %v121
  %v1295 = vunpack.c.h.b16 %v121
  %v1296 = vunpack.c.l.b16 %v122
  %v1297 = vunpack.c.h.b16 %v122
  %v1298 = vunpack.c.l.b16 %v123
  %v1299 = vunpack.c.h.b16 %v123
  %v1300 = vunpack.c.l.b16 %v124
  %v1301 = vunpack.c.h.b16 %v124
  %v1302 = vunpack.c.l.b16 %v125
  %v1303 = vunpack.c.h.b16 %v125
  %v1304 = vunpack.c.l.b16 %v126
  %v1305 = vunpack.c.h.b16 %v126
  %v1306 = vunpack.c.l.b16 %v127
  %v1307 = vunpack.c.h.b16 %v127
  %v1308 = vunpack.c.l.b16 %v128
  %v1309 = vunpack.c.h.b16 %v128
  %v1310 = vunpack.c.l.b16 %v129
  %v1311 = vunpack.c.h.b16 %v129
  %v1312 = vunpack.c.l.b16 %v130
  %v1313 = vunpack.c.h.b16 %v130
  %v1314 = vunpack.c.l.b16 %v131
  %v1315 = vunpack.c.h.b16 %v131
  %v1316 = vunpack.c.l.b16 %v132
  %v1317 = vunpack.c.h.b16 %v132
  %v1318 = vunpack.c.l.b16 %v133
  %v1319 = vunpack.c.h.b16 %v133
  %v1320 = vunpack.c.l.b16 %v134
  %v1321 = vunpack.c.h.b16 %v134
  %v1322 = vunpack.c.l.b16 %v135
  %v1323 = vunpack.c.h.b16 %v135
  %v1324 = vunpack.c.l.b16 %v136
  %v1325 = vunpack.c.h.b16 %v136
  %v1326 = vunpack.c.l.b16 %v137
  %v1327 = vunpack.c.h.b16 %v137
  %v1328 = vunpack.c.l.b16 %v138
  %v1329 = vunpack.c.h.b16 %v138
  %v1330 = vunpack.c.l.b16 %v139
  %v1331 = vunpack.c.h.b16 %v139
  %v1332 = vunpack.c.l.b16 %v140
  %v1333 = vunpack.c.h.b16 %v140
  %v1334 = vunpack.c.l.b16 %v141
  %v1335 = vunpack.c.h.b16 %v141
  %v1336 = vunpack.c.l.b16 %v142
  %v1337 = vunpack.c.h.b16 %v142
  %v1338 = vunpack.c.l.b16 %v143
  %v1339 = vunpack.c.h.b16 %v143
  %v1340 = vunpack.c.l.b16 %v144
  %v1341 = vunpack.c.h.b16 %v144
  %v1342 = vunpack.c.l.b16 %v145
  %v1343 = vunpack.c.h.b16 %v145
  %v1344 = vunpack.c.l.b16 %v146
  %v1345 = vunpack.c.h.b16 %v146
  %v1346 = vunpack.c.l.b16 %v147
  %v1347 = vunpack.c.h.b16 %v147
  %v1348 = vunpack.c.l.b16 %v148
  %v1349 = vunpack.c.h.b16 %v148
  %v1350 = vunpack.c.l.b16 %v149
  %v1351 = vunpack.c.h.b16 %v149
  %v1352 = vunpack.c.l.b16 %v150
  %v1353 = vunpack.c.h.b16 %v150
  %v1354 = vunpack.c.l.b16 %v151
  %v1355 = vunpack.c.h.b16 %v151
  %v1356 = vunpack.c.l.b16 %v152
  %v1357 = vunpack.c.h.b16 %v152
  %v1358 = vunpack.c.l.b16 %v153
  %v1359 = vunpack.c.h.b16 %v153
  %v1360 = vunpack.c.l.b16 %v154
  %v1361 = vunpack.c.h.b16 %v154
  %v1362 = vunpack.c.l.b16 %v155
  %v1363 = vunpack.c.h.b16 %v155
  %v1364 = vunpack.c.l.b16 %v156
  %v1365 = vunpack.c.h.b16 %v156
  %v1366 = vunpack.c.l.b16 %v157
  %v1367 = vunpack.c.h.b16 %v157
  %v1368 = vunpack.c.l.b16 %v158
  %v1369 = vunpack.c.h.b16 %v158
  %v1370 = vunpack.c.l.b16 %v159
  %v1371 = vunpack.c.h.b16 %v159
  %v1372 = vunpack.c.l.b16 %v160
  %v1373 = vunpack.c.h.b16 %v160
  %v1374 = vunpack.c.l.b16 %v161
  %v1375 = vunpack.c.h.b16 %v161
  %v1376 = vunpack.c.l.b16 %v162
  %v1377 = vunpack.c.h.b16 %v162
  %v1378 = vunpack.c.l.b16 %v163
  %v1379 = vunpack.c.h.b16 %v163
  %v1380 = vunpack.c.l.b16 %v164
  %v1381 = vunpack.c.h.b16 %v164
  %v1382 = vunpack.c.l.b16 %v165
  %v1383 = vunpack.c.h.b16 %v165
  %v1384 = vunpack.c.l.b16 %v166
  %v1385 = vunpack.c.h.b16 %v166
  %v1386 = vunpack.c.l.b16 %v167
  %v1387 = vunpack.c.h.b16 %v167
  %v1388 = vunpack.c.l.b16 %v168
  %v1389 = vunpack.c.h.b16 %v168
  %v1390 = vunpack.c.l.b16 %v169
  %v1391 = vunpack.c.h.b16 %v169
  %v1392 = vunpack.c.l.b16 %v170
  %v1393 = vunpack.c.h.b16 %v170
  %v1394 = vunpack.c.l.b16 %v171
  %v1395 = vunpack.c.h.b16 %v171
  %v1396 = vunpack.c.l.b16 %v172
  %v1397 = vunpack.c.h.b16 %v172
  %v1398 = vunpack.c.l.b16 %v173
  %v1399 = vunpack.c.h.b16 %v173
  %v1400 = vunpack.c.l.b16 %v174
  %v1401 = vunpack.c.h.b16 %v174
  %v1402 = vunpack.c.l.b16 %v175
  %v1403 = vunpack.c.h.b16 %v175
  %v1404 = vunpack.c.l.b16 %v176
  %v1405 = vunpack.c.h.b16 %v176
  %v1406 = vpack.c.b16 %v1158, %v1150
  %v1407 = vpack.c.b16 %v1159, %v1151
  %v1408 = vpack.c.b16 %v1160, %v1152
  %v1409 = vpack.c.b16 %v1161, %v1153
  %v1410 = vpack.c.b16 %v1162, %v1154
  %v1411 = vpack.c.b16 %v1163, %v1155
  %v1412 = vpack.c.b16 %v1164, %v1156
  %v1413 = vpack.c.b16 %v1165, %v1157
  %v1414 = vpack.c.b16 %v1174, %v1166
  %v1415 = vpack.c.b16 %v1175, %v1167
  %v1416 = vpack.c.b16 %v1176, %v1168
  %v1417 = vpack.c.b16 %v1177, %v1169
  %v1418 = vpack.c.b16 %v1178, %v1170
  %v1419 = vpack.c.b16 %v1179, %v1171
  %v1420 = vpack.c.b16 %v1180, %v1172
  %v1421 = vpack.c.b16 %v1181, %v1173
  %v1422 = vpack.c.b16 %v1190, %v1182
  %v1423 = vpack.c.b16 %v1191, %v1183
  %v1424 = vpack.c.b16 %v1192, %v1184
  %v1425 = vpack.c.b16 %v1193, %v1185
  %v1426 = vpack.c.b16 %v1194, %v1186
  %v1427 = vpack.c.b16 %v1195, %v1187
  %v1428 = vpack.c.b16 %v1196, %v1188
  %v1429 = vpack.c.b16 %v1197, %v1189
  %v1430 = vpack.c.b16 %v1206, %v1198
  %v1431 = vpack.c.b16 %v1207, %v1199
  %v1432 = vpack.c.b16 %v1208, %v1200
  %v1433 = vpack.c.b16 %v1209, %v1201
  %v1434 = vpack.c.b16 %v1210, %v1202
  %v1435 = vpack.c.b16 %v1211, %v1203
  %v1436 = vpack.c.b16 %v1212, %v1204
  %v1437 = vpack.c.b16 %v1213, %v1205
  %v1438 = vpack.c.b16 %v1222, %v1214
  %v1439 = vpack.c.b16 %v1223, %v1215
  %v1440 = vpack.c.b16 %v1224, %v1216
  %v1441 = vpack.c.b16 %v1225, %v1217
  %v1442 = vpack.c.b16 %v1226, %v1218
  %v1443 = vpack.c.b16 %v1227, %v1219
  %v1444 = vpack.c.b16 %v1228, %v1220
  %v1445 = vpack.c.b16 %v1229, %v1221
  %v1446 = vpack.c.b16 %v1238, %v1230
  %v1447 = vpack.c.b16 %v1239, %v1231
  %v1448 = vpack.c.b16 %v1240, %v1232
  %v1449 = vpack.c.b16 %v1241, %v1233
  %v1450 = vpack.c.b16 %v1242, %v1234
  %v1451 = vpack.c.b16 %v1243, %v1235
  %v1452 = vpack.c.b16 %v1244, %v1236
  %v1453 = vpack.c.b16 %v1245, %v1237
  %v1454 = vpack.c.b16 %v1254, %v1246
  %v1455 = vpack.c.b16 %v1255, %v1247
  %v1456 = vpack.c.b16 %v1256, %v1248
  %v1457 = vpack.c.b16 %v1257, %v1249
  %v1458 = vpack.c.b16 %v1258, %v1250
  %v1459 = vpack.c.b16 %v1259, %v1251
  %v1460 = vpack.c.b16 %v1260, %v1252
  %v1461 = vpack.c.b16 %v1261, %v1253
  %v1462 = vpack.c.b16 %v1270, %v1262
  %v1463 = vpack.c.b16 %v1271, %v1263
  %v1464 = vpack.c.b16 %v1272, %v1264
  %v1465 = vpack.c.b16 %v1273, %v1265
  %v1466 = vpack.c.b16 %v1274, %v1266
  %v1467 = vpack.c.b16 %v1275, %v1267
  %v1468 = vpack.c.b16 %v1276, %v1268
  %v1469 = vpack.c.b16 %v1277, %v1269
  %v1470 = vpack.c.b16 %v1286, %v1278
  %v1471 = vpack.c.b16 %v1287, %v1279
  %v1472 = vpack.c.b16 %v1288, %v1280
  %v1473 = vpack.c.b16 %v1289, %v1281
  %v1474 = vpack.c.b16 %v1290, %v1282
  %v1475 = vpack.c.b16 %v1291, %v1283
  %v1476 = vpack.c.b16 %v1292, %v1284
  %v1477 = vpack.c.b16 %v1293, %v1285
  %v1478 = vpack.c.b16 %v1302, %v1294
  %v1479 = vpack.c.b16 %v1303, %v1295
  %v1480 = vpack.c.b16 %v1304, %v1296
  %v1481 = vpack.c.b16 %v1305, %v1297
  %v1482 = vpack.c.b16 %v1306, %v1298
  %v1483 = vpack.c.b16 %v1307, %v1299
  %v1484 = vpack.c.b16 %v1308, %v1300
  %v1485 = vpack.c.b16 %v1309, %v1301
  %v1486 = vpack.c.b16 %v1318, %v1310
  %v1487 = vpack.c.b16 %v1319, %v1311
  %v1488 = vpack.c.b16 %v1320, %v1312
  %v1489 = vpack.c.b16 %v1321, %v1313
  %v1490 = vpack.c.b16 %v1322, %v1314
  %v1491 = vpack.c.b16 %v1323, %v1315
  %v1492 = vpack.c.b16 %v1324, %v1316
  %v1493 = vpack.c.b16 %v1325, %v1317
  %v1494 = vpack.c.b16 %v1334, %v1326
  %v1495 = vpack.c.b16 %v1335, %v1327
  %v1496 = vpack.c.b16 %v1336, %v1328
  %v1497 = vpack.c.b16 %v1337, %v1329
  %v1498 = vpack.c.b16 %v1338, %v1330
  %v1499 = vpack.c.b16 %v1339, %v1331
  %v1500 = vpack.c.b16 %v1340, %v1332
  %v1501 = vpack.c.b16 %v1341, %v1333
  %v1502 = vpack.c.b16 %v1350, %v1342
  %v1503 = vpack.c.b16 %v1351, %v1343
  %v1504 = vpack.c.b16 %v1352, %v1344
  %v1505 = vpack.c.b16 %v1353, %v1345
  %v1506 = vpack.c.b16 %v1354, %v1346
  %v1507 = vpack.c.b16 %v1355, %v1347
  %v1508 = vpack.c.b16 %v1356, %v1348
  %v1509 = vpack.c.b16 %v1357, %v1349
  %v1510 = vpack.c.b16 %v1366, %v1358
  %v1511 = vpack.c.b16 %v1367, %v1359
  %v1512 = vpack.c.b16 %v1368, %v1360
  %v1513 = vpack.c.b16 %v1369, %v1361
  %v1514 = vpack.c.b16 %v1370, %v1362
  %v1515 = vpack.c.b16 %v1371, %v1363
  %v1516 = vpack.c.b16 %v1372, %v1364
  %v1517 = vpack.c.b16 %v1373, %v1365
  %v1518 = vpack.c.b16 %v1382, %v1374
  %v1519 = vpack.c.b16 %v1383, %v1375
  %v1520 = vpack.c.b16 %v1384, %v1376
  %v1521 = vpack.c.b16 %v1385, %v1377
  %v1522 = vpack.c.b16 %v1386, %v1378
  %v1523 = vpack.c.b16 %v1387, %v1379
  %v1524 = vpack.c.b16 %v1388, %v1380
  %v1525 = vpack.c.b16 %v1389, %v1381
  %v1526 = vpack.c.b16 %v1398, %v1390
  %v1527 = vpack.c.b16 %v1399, %v1391
  %v1528 = vpack.c.b16 %v1400, %v1392
  %v1529 = vpack.c.b16 %v1401, %v1393
  %v1530 = vpack.c.b16 %v1402, %v1394
  %v1531 = vpack.c.b16 %v1403, %v1395
  %v1532 = vpack.c.b16 %v1404, %v1396
  %v1533 = vpack.c.b16 %v1405, %v1397
  %1662 = vmatprep.subr.bf16.mxu0 %v1407
  %1663 = vmatpush1.bf16.msra.mxu0 %v1406
  %1664 = vmatprep.subr.bf16.mxu0 %v1415
  %1665 = vmatpush1.bf16.msra.mxu0 %v1414
  %1666 = vmatprep.subr.bf16.mxu0 %v1423
  %1667 = vmatpush1.bf16.msra.mxu0 %v1422
  %1668 = vmatprep.subr.bf16.mxu0 %v1431
  %1669 = vmatpush1.bf16.msra.mxu0 %v1430
  %1670 = vmatprep.subr.bf16.mxu0 %v1439
  %1671 = vmatpush1.bf16.msra.mxu0 %v1438
  %1672 = vmatprep.subr.bf16.mxu0 %v1447
  %1673 = vmatpush1.bf16.msra.mxu0 %v1446
  %1674 = vmatprep.subr.bf16.mxu0 %v1455
  %1675 = vmatpush1.bf16.msra.mxu0 %v1454
  %1676 = vmatprep.subr.bf16.mxu0 %v1463
  %1677 = vmatpush1.bf16.msra.mxu0 %v1462
  %1678 = vmatprep.subr.bf16.mxu0 %v1471
  %1679 = vmatpush1.bf16.msra.mxu0 %v1470
  %1680 = vmatprep.subr.bf16.mxu0 %v1479
  %1681 = vmatpush1.bf16.msra.mxu0 %v1478
  %1682 = vmatprep.subr.bf16.mxu0 %v1487
  %1683 = vmatpush1.bf16.msra.mxu0 %v1486
  %1684 = vmatprep.subr.bf16.mxu0 %v1495
  %1685 = vmatpush1.bf16.msra.mxu0 %v1494
  %1686 = vmatprep.subr.bf16.mxu0 %v1503
  %1687 = vmatpush1.bf16.msra.mxu0 %v1502
  %1688 = vmatprep.subr.bf16.mxu0 %v1511
  %1689 = vmatpush1.bf16.msra.mxu0 %v1510
  %1690 = vmatprep.subr.bf16.mxu0 %v1519
  %1691 = vmatpush1.bf16.msra.mxu0 %v1518
  %1692 = vmatprep.subr.bf16.mxu0 %v1527
  %1693 = vmatpush1.bf16.msra.mxu0 %v1526
  %1694 = vmatprep.mubr.bf16.mxu0 0
  %1695 = vmatmul.mubr.bf16.gmra.mrb[0].mxu0 0
  %v1696 = vpop.f32.mrb[0].mxu0
  %v1697 = vadd.f32 0.0, %v1696
  %v1698 = vpop.f32.mrb[0].mxu0
  %v1699 = vadd.f32 0.0, %v1698
  %v1700 = vpop.f32.mrb[0].mxu0
  %v1701 = vpop.f32.mrb[0].mxu0
  %1702 = vdwg.mxu0
  %1703 = vmatprep.subr.bf16.mxu0 %v1409
  %1704 = vmatpush1.bf16.msra.mxu0 %v1408
  %1705 = vmatprep.subr.bf16.mxu0 %v1417
  %1706 = vmatpush1.bf16.msra.mxu0 %v1416
  %1707 = vmatprep.subr.bf16.mxu0 %v1425
  %1708 = vmatpush1.bf16.msra.mxu0 %v1424
  %1709 = vmatprep.subr.bf16.mxu0 %v1433
  %1710 = vmatpush1.bf16.msra.mxu0 %v1432
  %1711 = vmatprep.subr.bf16.mxu0 %v1441
  %1712 = vmatpush1.bf16.msra.mxu0 %v1440
  %1713 = vmatprep.subr.bf16.mxu0 %v1449
  %1714 = vmatpush1.bf16.msra.mxu0 %v1448
  %1715 = vmatprep.subr.bf16.mxu0 %v1457
  %1716 = vmatpush1.bf16.msra.mxu0 %v1456
  %1717 = vmatprep.subr.bf16.mxu0 %v1465
  %1718 = vmatpush1.bf16.msra.mxu0 %v1464
  %1719 = vmatprep.subr.bf16.mxu0 %v1473
  %1720 = vmatpush1.bf16.msra.mxu0 %v1472
  %1721 = vmatprep.subr.bf16.mxu0 %v1481
  %1722 = vmatpush1.bf16.msra.mxu0 %v1480
  %1723 = vmatprep.subr.bf16.mxu0 %v1489
  %1724 = vmatpush1.bf16.msra.mxu0 %v1488
  %1725 = vmatprep.subr.bf16.mxu0 %v1497
  %1726 = vmatpush1.bf16.msra.mxu0 %v1496
  %1727 = vmatprep.subr.bf16.mxu0 %v1505
  %1728 = vmatpush1.bf16.msra.mxu0 %v1504
  %1729 = vmatprep.subr.bf16.mxu0 %v1513
  %1730 = vmatpush1.bf16.msra.mxu0 %v1512
  %1731 = vmatprep.subr.bf16.mxu0 %v1521
  %1732 = vmatpush1.bf16.msra.mxu0 %v1520
  %1733 = vmatprep.subr.bf16.mxu0 %v1529
  %1734 = vmatpush1.bf16.msra.mxu0 %v1528
  %1735 = vmatprep.mubr.bf16.mxu0 0
  %1736 = vmatmul.mubr.bf16.gmra.mrb[0].mxu0 0
  %v1737 = vpop.f32.mrb[0].mxu0
  %v1738 = vadd.f32 0.0, %v1737
  %v1739 = vpop.f32.mrb[0].mxu0
  %v1740 = vadd.f32 0.0, %v1739
  %v1741 = vpop.f32.mrb[0].mxu0
  %v1742 = vpop.f32.mrb[0].mxu0
  %1743 = vdwg.mxu0
  %1744 = vmatprep.subr.bf16.mxu0 %v1411
  %1745 = vmatpush1.bf16.msra.mxu0 %v1410
  %1746 = vmatprep.subr.bf16.mxu0 %v1419
  %1747 = vmatpush1.bf16.msra.mxu0 %v1418
  %1748 = vmatprep.subr.bf16.mxu0 %v1427
  %1749 = vmatpush1.bf16.msra.mxu0 %v1426
  %1750 = vmatprep.subr.bf16.mxu0 %v1435
  %1751 = vmatpush1.bf16.msra.mxu0 %v1434
  %1752 = vmatprep.subr.bf16.mxu0 %v1443
  %1753 = vmatpush1.bf16.msra.mxu0 %v1442
  %1754 = vmatprep.subr.bf16.mxu0 %v1451
  %1755 = vmatpush1.bf16.msra.mxu0 %v1450
  %1756 = vmatprep.subr.bf16.mxu0 %v1459
  %1757 = vmatpush1.bf16.msra.mxu0 %v1458
  %1758 = vmatprep.subr.bf16.mxu0 %v1467
  %1759 = vmatpush1.bf16.msra.mxu0 %v1466
  %1760 = vmatprep.subr.bf16.mxu0 %v1475
  %1761 = vmatpush1.bf16.msra.mxu0 %v1474
  %1762 = vmatprep.subr.bf16.mxu0 %v1483
  %1763 = vmatpush1.bf16.msra.mxu0 %v1482
  %1764 = vmatprep.subr.bf16.mxu0 %v1491
  %1765 = vmatpush1.bf16.msra.mxu0 %v1490
  %1766 = vmatprep.subr.bf16.mxu0 %v1499
  %1767 = vmatpush1.bf16.msra.mxu0 %v1498
  %1768 = vmatprep.subr.bf16.mxu0 %v1507
  %1769 = vmatpush1.bf16.msra.mxu0 %v1506
  %1770 = vmatprep.subr.bf16.mxu0 %v1515
  %1771 = vmatpush1.bf16.msra.mxu0 %v1514
  %1772 = vmatprep.subr.bf16.mxu0 %v1523
  %1773 = vmatpush1.bf16.msra.mxu0 %v1522
  %1774 = vmatprep.subr.bf16.mxu0 %v1531
  %1775 = vmatpush1.bf16.msra.mxu0 %v1530
  %1776 = vmatprep.mubr.bf16.mxu0 0
  %1777 = vmatmul.mubr.bf16.gmra.mrb[0].mxu0 0
  %v1778 = vpop.f32.mrb[0].mxu0
  %v1779 = vadd.f32 0.0, %v1778
  %v1780 = vpop.f32.mrb[0].mxu0
  %v1781 = vadd.f32 0.0, %v1780
  %v1782 = vpop.f32.mrb[0].mxu0
  %v1783 = vpop.f32.mrb[0].mxu0
  %1784 = vdwg.mxu0
  %1785 = vmatprep.subr.bf16.mxu0 %v1413
  %1786 = vmatpush1.bf16.msra.mxu0 %v1412
  %1787 = vmatprep.subr.bf16.mxu0 %v1421
  %1788 = vmatpush1.bf16.msra.mxu0 %v1420
  %1789 = vmatprep.subr.bf16.mxu0 %v1429
  %1790 = vmatpush1.bf16.msra.mxu0 %v1428
  %1791 = vmatprep.subr.bf16.mxu0 %v1437
  %1792 = vmatpush1.bf16.msra.mxu0 %v1436
  %1793 = vmatprep.subr.bf16.mxu0 %v1445
  %1794 = vmatpush1.bf16.msra.mxu0 %v1444
  %1795 = vmatprep.subr.bf16.mxu0 %v1453
  %1796 = vmatpush1.bf16.msra.mxu0 %v1452
  %1797 = vmatprep.subr.bf16.mxu0 %v1461
  %1798 = vmatpush1.bf16.msra.mxu0 %v1460
  %1799 = vmatprep.subr.bf16.mxu0 %v1469
  %1800 = vmatpush1.bf16.msra.mxu0 %v1468
  %1801 = vmatprep.subr.bf16.mxu0 %v1477
  %1802 = vmatpush1.bf16.msra.mxu0 %v1476
  %1803 = vmatprep.subr.bf16.mxu0 %v1485
  %1804 = vmatpush1.bf16.msra.mxu0 %v1484
  %1805 = vmatprep.subr.bf16.mxu0 %v1493
  %1806 = vmatpush1.bf16.msra.mxu0 %v1492
  %1807 = vmatprep.subr.bf16.mxu0 %v1501
  %1808 = vmatpush1.bf16.msra.mxu0 %v1500
  %1809 = vmatprep.subr.bf16.mxu0 %v1509
  %1810 = vmatpush1.bf16.msra.mxu0 %v1508
  %1811 = vmatprep.subr.bf16.mxu0 %v1517
  %1812 = vmatpush1.bf16.msra.mxu0 %v1516
  %1813 = vmatprep.subr.bf16.mxu0 %v1525
  %1814 = vmatpush1.bf16.msra.mxu0 %v1524
  %1815 = vmatprep.subr.bf16.mxu0 %v1533
  %1816 = vmatpush1.bf16.msra.mxu0 %v1532
  %1817 = vmatprep.mubr.bf16.mxu0 0
  %1818 = vmatmul.mubr.bf16.gmra.mrb[0].mxu0 0
  %v1819 = vpop.f32.mrb[0].mxu0
  %v1820 = vadd.f32 0.0, %v1819
  %v1821 = vpop.f32.mrb[0].mxu0
  %v1822 = vadd.f32 0.0, %v1821
  %v1823 = vpop.f32.mrb[0].mxu0
  %v1824 = vpop.f32.mrb[0].mxu0
  %1825 = vdwg.mxu0
  %v1826 = vadd.f32 %v1014, %v1697
  %v1827 = vadd.f32 %v1015, %v1699
  %v1828 = vadd.f32 %v1016, %v1738
  %v1829 = vadd.f32 %v1017, %v1740
  %v1830 = vadd.f32 %v1018, %v1779
  %v1831 = vadd.f32 %v1019, %v1781
  %v1832 = vadd.f32 %v1020, %v1820
  %v1833 = vadd.f32 %v1021, %v1822
  %v1834 = vxor.u32 %v1826, 2147483648
  %v1835 = vxor.u32 %v1827, 2147483648
  %v1836 = vmul.f32 %v1834, 1.442695
  %v1837 = vpow.pop %v1836
  %v1838 = vmul.f32 %v1835, 1.442695
  %v1839 = vpow.pop %v1838
  %v1840 = vadd.f32 %v1837, 1.0
  %v1841 = vadd.f32 %v1839, 1.0
  %v1842 = vrcp.pop %v1840
  %v1843 = vmul.f32 1.0, %v1842
  %v1844 = vrcp.pop %v1841
  %v1845 = vmul.f32 1.0, %v1844
  %v1846 = vxor.u32 %v1828, 2147483648
  %v1847 = vxor.u32 %v1829, 2147483648
  %v1848 = vmul.f32 %v1846, 1.442695
  %v1849 = vpow.pop %v1848
  %v1850 = vmul.f32 %v1847, 1.442695
  %v1851 = vpow.pop %v1850
  %v1852 = vadd.f32 %v1849, 1.0
  %v1853 = vadd.f32 %v1851, 1.0
  %v1854 = vrcp.pop %v1852
  %v1855 = vmul.f32 1.0, %v1854
  %v1856 = vrcp.pop %v1853
  %v1857 = vmul.f32 1.0, %v1856
  %v1858 = vtanh.pop %v1830
  %v1859 = vtanh.pop %v1831
  %v1860 = vxor.u32 %v1832, 2147483648
  %v1861 = vxor.u32 %v1833, 2147483648
  %v1862 = vmul.f32 %v1860, 1.442695
  %v1863 = vpow.pop %v1862
  %v1864 = vmul.f32 %v1861, 1.442695
  %v1865 = vpow.pop %v1864
  %v1866 = vadd.f32 %v1863, 1.0
  %v1867 = vadd.f32 %v1865, 1.0
  %v1868 = vrcp.pop %v1866
  %v1869 = vmul.f32 1.0, %v1868
  %v1870 = vrcp.pop %v1867
  %v1871 = vmul.f32 1.0, %v1870
  %v1872 = vmul.f32 %v1855, 0.0
  %v1873 = vmul.f32 %v1857, 0.0
  %v1874 = vmul.f32 %v1843, %v1858
  %v1875 = vmul.f32 %v1845, %v1859
  %v1876 = vadd.f32 %v1872, %v1874
  %v1877 = vadd.f32 %v1873, %v1875
  %v1878 = vtanh.pop %v1876
  %v1879 = vtanh.pop %v1877
  %v1880 = vmul.f32 %v1869, %v1878
  %v1881 = vmul.f32 %v1871, %v1879
  %v1882 = vpack.c.bf16 %v1880, %v1880
  %v1883 = vpack.c.bf16 %v1881, %v1881
  %v2012 = vunpack.c.l.b16 %v177
  %v2013 = vunpack.c.h.b16 %v177
  %v2014 = vunpack.c.l.b16 %v178
  %v2015 = vunpack.c.h.b16 %v178
  %v2016 = vunpack.c.l.b16 %v179
  %v2017 = vunpack.c.h.b16 %v179
  %v2018 = vunpack.c.l.b16 %v180
  %v2019 = vunpack.c.h.b16 %v180
  %v2020 = vunpack.c.l.b16 %v181
  %v2021 = vunpack.c.h.b16 %v181
  %v2022 = vunpack.c.l.b16 %v182
  %v2023 = vunpack.c.h.b16 %v182
  %v2024 = vunpack.c.l.b16 %v183
  %v2025 = vunpack.c.h.b16 %v183
  %v2026 = vunpack.c.l.b16 %v184
  %v2027 = vunpack.c.h.b16 %v184
  %v2028 = vunpack.c.l.b16 %v185
  %v2029 = vunpack.c.h.b16 %v185
  %v2030 = vunpack.c.l.b16 %v186
  %v2031 = vunpack.c.h.b16 %v186
  %v2032 = vunpack.c.l.b16 %v187
  %v2033 = vunpack.c.h.b16 %v187
  %v2034 = vunpack.c.l.b16 %v188
  %v2035 = vunpack.c.h.b16 %v188
  %v2036 = vunpack.c.l.b16 %v189
  %v2037 = vunpack.c.h.b16 %v189
  %v2038 = vunpack.c.l.b16 %v190
  %v2039 = vunpack.c.h.b16 %v190
  %v2040 = vunpack.c.l.b16 %v191
  %v2041 = vunpack.c.h.b16 %v191
  %v2042 = vunpack.c.l.b16 %v192
  %v2043 = vunpack.c.h.b16 %v192
  %v2044 = vunpack.c.l.b16 %v193
  %v2045 = vunpack.c.h.b16 %v193
  %v2046 = vunpack.c.l.b16 %v194
  %v2047 = vunpack.c.h.b16 %v194
  %v2048 = vunpack.c.l.b16 %v195
  %v2049 = vunpack.c.h.b16 %v195
  %v2050 = vunpack.c.l.b16 %v196
  %v2051 = vunpack.c.h.b16 %v196
  %v2052 = vunpack.c.l.b16 %v197
  %v2053 = vunpack.c.h.b16 %v197
  %v2054 = vunpack.c.l.b16 %v198
  %v2055 = vunpack.c.h.b16 %v198
  %v2056 = vunpack.c.l.b16 %v199
  %v2057 = vunpack.c.h.b16 %v199
  %v2058 = vunpack.c.l.b16 %v200
  %v2059 = vunpack.c.h.b16 %v200
  %v2060 = vunpack.c.l.b16 %v201
  %v2061 = vunpack.c.h.b16 %v201
  %v2062 = vunpack.c.l.b16 %v202
  %v2063 = vunpack.c.h.b16 %v202
  %v2064 = vunpack.c.l.b16 %v203
  %v2065 = vunpack.c.h.b16 %v203
  %v2066 = vunpack.c.l.b16 %v204
  %v2067 = vunpack.c.h.b16 %v204
  %v2068 = vunpack.c.l.b16 %v205
  %v2069 = vunpack.c.h.b16 %v205
  %v2070 = vunpack.c.l.b16 %v206
  %v2071 = vunpack.c.h.b16 %v206
  %v2072 = vunpack.c.l.b16 %v207
  %v2073 = vunpack.c.h.b16 %v207
  %v2074 = vunpack.c.l.b16 %v208
  %v2075 = vunpack.c.h.b16 %v208
  %v2076 = vunpack.c.l.b16 %v209
  %v2077 = vunpack.c.h.b16 %v209
  %v2078 = vunpack.c.l.b16 %v210
  %v2079 = vunpack.c.h.b16 %v210
  %v2080 = vunpack.c.l.b16 %v211
  %v2081 = vunpack.c.h.b16 %v211
  %v2082 = vunpack.c.l.b16 %v212
  %v2083 = vunpack.c.h.b16 %v212
  %v2084 = vunpack.c.l.b16 %v213
  %v2085 = vunpack.c.h.b16 %v213
  %v2086 = vunpack.c.l.b16 %v214
  %v2087 = vunpack.c.h.b16 %v214
  %v2088 = vunpack.c.l.b16 %v215
  %v2089 = vunpack.c.h.b16 %v215
  %v2090 = vunpack.c.l.b16 %v216
  %v2091 = vunpack.c.h.b16 %v216
  %v2092 = vunpack.c.l.b16 %v217
  %v2093 = vunpack.c.h.b16 %v217
  %v2094 = vunpack.c.l.b16 %v218
  %v2095 = vunpack.c.h.b16 %v218
  %v2096 = vunpack.c.l.b16 %v219
  %v2097 = vunpack.c.h.b16 %v219
  %v2098 = vunpack.c.l.b16 %v220
  %v2099 = vunpack.c.h.b16 %v220
  %v2100 = vunpack.c.l.b16 %v221
  %v2101 = vunpack.c.h.b16 %v221
  %v2102 = vunpack.c.l.b16 %v222
  %v2103 = vunpack.c.h.b16 %v222
  %v2104 = vunpack.c.l.b16 %v223
  %v2105 = vunpack.c.h.b16 %v223
  %v2106 = vunpack.c.l.b16 %v224
  %v2107 = vunpack.c.h.b16 %v224
  %v2108 = vunpack.c.l.b16 %v225
  %v2109 = vunpack.c.h.b16 %v225
  %v2110 = vunpack.c.l.b16 %v226
  %v2111 = vunpack.c.h.b16 %v226
  %v2112 = vunpack.c.l.b16 %v227
  %v2113 = vunpack.c.h.b16 %v227
  %v2114 = vunpack.c.l.b16 %v228
  %v2115 = vunpack.c.h.b16 %v228
  %v2116 = vunpack.c.l.b16 %v229
  %v2117 = vunpack.c.h.b16 %v229
  %v2118 = vunpack.c.l.b16 %v230
  %v2119 = vunpack.c.h.b16 %v230
  %v2120 = vunpack.c.l.b16 %v231
  %v2121 = vunpack.c.h.b16 %v231
  %v2122 = vunpack.c.l.b16 %v232
  %v2123 = vunpack.c.h.b16 %v232
  %v2124 = vunpack.c.l.b16 %v233
  %v2125 = vunpack.c.h.b16 %v233
  %v2126 = vunpack.c.l.b16 %v234
  %v2127 = vunpack.c.h.b16 %v234
  %v2128 = vunpack.c.l.b16 %v235
  %v2129 = vunpack.c.h.b16 %v235
  %v2130 = vunpack.c.l.b16 %v236
  %v2131 = vunpack.c.h.b16 %v236
  %v2132 = vunpack.c.l.b16 %v237
  %v2133 = vunpack.c.h.b16 %v237
  %v2134 = vunpack.c.l.b16 %v238
  %v2135 = vunpack.c.h.b16 %v238
  %v2136 = vunpack.c.l.b16 %v239
  %v2137 = vunpack.c.h.b16 %v239
  %v2138 = vunpack.c.l.b16 %v240
  %v2139 = vunpack.c.h.b16 %v240
  %v2140 = vunpack.c.l.b16 %v241
  %v2141 = vunpack.c.h.b16 %v241
  %v2142 = vunpack.c.l.b16 %v242
  %v2143 = vunpack.c.h.b16 %v242
  %v2144 = vunpack.c.l.b16 %v243
  %v2145 = vunpack.c.h.b16 %v243
  %v2146 = vunpack.c.l.b16 %v244
  %v2147 = vunpack.c.h.b16 %v244
  %v2148 = vunpack.c.l.b16 %v245
  %v2149 = vunpack.c.h.b16 %v245
  %v2150 = vunpack.c.l.b16 %v246
  %v2151 = vunpack.c.h.b16 %v246
  %v2152 = vunpack.c.l.b16 %v247
  %v2153 = vunpack.c.h.b16 %v247
  %v2154 = vunpack.c.l.b16 %v248
  %v2155 = vunpack.c.h.b16 %v248
  %v2156 = vunpack.c.l.b16 %v249
  %v2157 = vunpack.c.h.b16 %v249
  %v2158 = vunpack.c.l.b16 %v250
  %v2159 = vunpack.c.h.b16 %v250
  %v2160 = vunpack.c.l.b16 %v251
  %v2161 = vunpack.c.h.b16 %v251
  %v2162 = vunpack.c.l.b16 %v252
  %v2163 = vunpack.c.h.b16 %v252
  %v2164 = vunpack.c.l.b16 %v253
  %v2165 = vunpack.c.h.b16 %v253
  %v2166 = vunpack.c.l.b16 %v254
  %v2167 = vunpack.c.h.b16 %v254
  %v2168 = vunpack.c.l.b16 %v255
  %v2169 = vunpack.c.h.b16 %v255
  %v2170 = vunpack.c.l.b16 %v256
  %v2171 = vunpack.c.h.b16 %v256
  %v2172 = vunpack.c.l.b16 %v257
  %v2173 = vunpack.c.h.b16 %v257
  %v2174 = vunpack.c.l.b16 %v258
  %v2175 = vunpack.c.h.b16 %v258
  %v2176 = vunpack.c.l.b16 %v259
  %v2177 = vunpack.c.h.b16 %v259
  %v2178 = vunpack.c.l.b16 %v260
  %v2179 = vunpack.c.h.b16 %v260
  %v2180 = vunpack.c.l.b16 %v261
  %v2181 = vunpack.c.h.b16 %v261
  %v2182 = vunpack.c.l.b16 %v262
  %v2183 = vunpack.c.h.b16 %v262
  %v2184 = vunpack.c.l.b16 %v263
  %v2185 = vunpack.c.h.b16 %v263
  %v2186 = vunpack.c.l.b16 %v264
  %v2187 = vunpack.c.h.b16 %v264
  %v2188 = vunpack.c.l.b16 %v265
  %v2189 = vunpack.c.h.b16 %v265
  %v2190 = vunpack.c.l.b16 %v266
  %v2191 = vunpack.c.h.b16 %v266
  %v2192 = vunpack.c.l.b16 %v267
  %v2193 = vunpack.c.h.b16 %v267
  %v2194 = vunpack.c.l.b16 %v268
  %v2195 = vunpack.c.h.b16 %v268
  %v2196 = vunpack.c.l.b16 %v269
  %v2197 = vunpack.c.h.b16 %v269
  %v2198 = vunpack.c.l.b16 %v270
  %v2199 = vunpack.c.h.b16 %v270
  %v2200 = vunpack.c.l.b16 %v271
  %v2201 = vunpack.c.h.b16 %v271
  %v2202 = vunpack.c.l.b16 %v272
  %v2203 = vunpack.c.h.b16 %v272
  %v2204 = vunpack.c.l.b16 %v273
  %v2205 = vunpack.c.h.b16 %v273
  %v2206 = vunpack.c.l.b16 %v274
  %v2207 = vunpack.c.h.b16 %v274
  %v2208 = vunpack.c.l.b16 %v275
  %v2209 = vunpack.c.h.b16 %v275
  %v2210 = vunpack.c.l.b16 %v276
  %v2211 = vunpack.c.h.b16 %v276
  %v2212 = vunpack.c.l.b16 %v277
  %v2213 = vunpack.c.h.b16 %v277
  %v2214 = vunpack.c.l.b16 %v278
  %v2215 = vunpack.c.h.b16 %v278
  %v2216 = vunpack.c.l.b16 %v279
  %v2217 = vunpack.c.h.b16 %v279
  %v2218 = vunpack.c.l.b16 %v280
  %v2219 = vunpack.c.h.b16 %v280
  %v2220 = vunpack.c.l.b16 %v281
  %v2221 = vunpack.c.h.b16 %v281
  %v2222 = vunpack.c.l.b16 %v282
  %v2223 = vunpack.c.h.b16 %v282
  %v2224 = vunpack.c.l.b16 %v283
  %v2225 = vunpack.c.h.b16 %v283
  %v2226 = vunpack.c.l.b16 %v284
  %v2227 = vunpack.c.h.b16 %v284
  %v2228 = vunpack.c.l.b16 %v285
  %v2229 = vunpack.c.h.b16 %v285
  %v2230 = vunpack.c.l.b16 %v286
  %v2231 = vunpack.c.h.b16 %v286
  %v2232 = vunpack.c.l.b16 %v287
  %v2233 = vunpack.c.h.b16 %v287
  %v2234 = vunpack.c.l.b16 %v288
  %v2235 = vunpack.c.h.b16 %v288
  %v2236 = vunpack.c.l.b16 %v289
  %v2237 = vunpack.c.h.b16 %v289
  %v2238 = vunpack.c.l.b16 %v290
  %v2239 = vunpack.c.h.b16 %v290
  %v2240 = vunpack.c.l.b16 %v291
  %v2241 = vunpack.c.h.b16 %v291
  %v2242 = vunpack.c.l.b16 %v292
  %v2243 = vunpack.c.h.b16 %v292
  %v2244 = vunpack.c.l.b16 %v293
  %v2245 = vunpack.c.h.b16 %v293
  %v2246 = vunpack.c.l.b16 %v294
  %v2247 = vunpack.c.h.b16 %v294
  %v2248 = vunpack.c.l.b16 %v295
  %v2249 = vunpack.c.h.b16 %v295
  %v2250 = vunpack.c.l.b16 %v296
  %v2251 = vunpack.c.h.b16 %v296
  %v2252 = vunpack.c.l.b16 %v297
  %v2253 = vunpack.c.h.b16 %v297
  %v2254 = vunpack.c.l.b16 %v298
  %v2255 = vunpack.c.h.b16 %v298
  %v2256 = vunpack.c.l.b16 %v299
  %v2257 = vunpack.c.h.b16 %v299
  %v2258 = vunpack.c.l.b16 %v300
  %v2259 = vunpack.c.h.b16 %v300
  %v2260 = vunpack.c.l.b16 %v301
  %v2261 = vunpack.c.h.b16 %v301
  %v2262 = vunpack.c.l.b16 %v302
  %v2263 = vunpack.c.h.b16 %v302
  %v2264 = vunpack.c.l.b16 %v303
  %v2265 = vunpack.c.h.b16 %v303
  %v2266 = vunpack.c.l.b16 %v304
  %v2267 = vunpack.c.h.b16 %v304
  %v2268 = vpack.c.b16 %v2020, %v2012
  %v2269 = vpack.c.b16 %v2021, %v2013
  %v2270 = vpack.c.b16 %v2022, %v2014
  %v2271 = vpack.c.b16 %v2023, %v2015
  %v2272 = vpack.c.b16 %v2024, %v2016
  %v2273 = vpack.c.b16 %v2025, %v2017
  %v2274 = vpack.c.b16 %v2026, %v2018
  %v2275 = vpack.c.b16 %v2027, %v2019
  %v2276 = vpack.c.b16 %v2036, %v2028
  %v2277 = vpack.c.b16 %v2037, %v2029
  %v2278 = vpack.c.b16 %v2038, %v2030
  %v2279 = vpack.c.b16 %v2039, %v2031
  %v2280 = vpack.c.b16 %v2040, %v2032
  %v2281 = vpack.c.b16 %v2041, %v2033
  %v2282 = vpack.c.b16 %v2042, %v2034
  %v2283 = vpack.c.b16 %v2043, %v2035
  %v2284 = vpack.c.b16 %v2052, %v2044
  %v2285 = vpack.c.b16 %v2053, %v2045
  %v2286 = vpack.c.b16 %v2054, %v2046
  %v2287 = vpack.c.b16 %v2055, %v2047
  %v2288 = vpack.c.b16 %v2056, %v2048
  %v2289 = vpack.c.b16 %v2057, %v2049
  %v2290 = vpack.c.b16 %v2058, %v2050
  %v2291 = vpack.c.b16 %v2059, %v2051
  %v2292 = vpack.c.b16 %v2068, %v2060
  %v2293 = vpack.c.b16 %v2069, %v2061
  %v2294 = vpack.c.b16 %v2070, %v2062
  %v2295 = vpack.c.b16 %v2071, %v2063
  %v2296 = vpack.c.b16 %v2072, %v2064
  %v2297 = vpack.c.b16 %v2073, %v2065
  %v2298 = vpack.c.b16 %v2074, %v2066
  %v2299 = vpack.c.b16 %v2075, %v2067
  %v2300 = vpack.c.b16 %v2084, %v2076
  %v2301 = vpack.c.b16 %v2085, %v2077
  %v2302 = vpack.c.b16 %v2086, %v2078
  %v2303 = vpack.c.b16 %v2087, %v2079
  %v2304 = vpack.c.b16 %v2088, %v2080
  %v2305 = vpack.c.b16 %v2089, %v2081
  %v2306 = vpack.c.b16 %v2090, %v2082
  %v2307 = vpack.c.b16 %v2091, %v2083
  %v2308 = vpack.c.b16 %v2100, %v2092
  %v2309 = vpack.c.b16 %v2101, %v2093
  %v2310 = vpack.c.b16 %v2102, %v2094
  %v2311 = vpack.c.b16 %v2103, %v2095
  %v2312 = vpack.c.b16 %v2104, %v2096
  %v2313 = vpack.c.b16 %v2105, %v2097
  %v2314 = vpack.c.b16 %v2106, %v2098
  %v2315 = vpack.c.b16 %v2107, %v2099
  %v2316 = vpack.c.b16 %v2116, %v2108
  %v2317 = vpack.c.b16 %v2117, %v2109
  %v2318 = vpack.c.b16 %v2118, %v2110
  %v2319 = vpack.c.b16 %v2119, %v2111
  %v2320 = vpack.c.b16 %v2120, %v2112
  %v2321 = vpack.c.b16 %v2121, %v2113
  %v2322 = vpack.c.b16 %v2122, %v2114
  %v2323 = vpack.c.b16 %v2123, %v2115
  %v2324 = vpack.c.b16 %v2132, %v2124
  %v2325 = vpack.c.b16 %v2133, %v2125
  %v2326 = vpack.c.b16 %v2134, %v2126
  %v2327 = vpack.c.b16 %v2135, %v2127
  %v2328 = vpack.c.b16 %v2136, %v2128
  %v2329 = vpack.c.b16 %v2137, %v2129
  %v2330 = vpack.c.b16 %v2138, %v2130
  %v2331 = vpack.c.b16 %v2139, %v2131
  %v2332 = vpack.c.b16 %v2148, %v2140
  %v2333 = vpack.c.b16 %v2149, %v2141
  %v2334 = vpack.c.b16 %v2150, %v2142
  %v2335 = vpack.c.b16 %v2151, %v2143
  %v2336 = vpack.c.b16 %v2152, %v2144
  %v2337 = vpack.c.b16 %v2153, %v2145
  %v2338 = vpack.c.b16 %v2154, %v2146
  %v2339 = vpack.c.b16 %v2155, %v2147
  %v2340 = vpack.c.b16 %v2164, %v2156
  %v2341 = vpack.c.b16 %v2165, %v2157
  %v2342 = vpack.c.b16 %v2166, %v2158
  %v2343 = vpack.c.b16 %v2167, %v2159
  %v2344 = vpack.c.b16 %v2168, %v2160
  %v2345 = vpack.c.b16 %v2169, %v2161
  %v2346 = vpack.c.b16 %v2170, %v2162
  %v2347 = vpack.c.b16 %v2171, %v2163
  %v2348 = vpack.c.b16 %v2180, %v2172
  %v2349 = vpack.c.b16 %v2181, %v2173
  %v2350 = vpack.c.b16 %v2182, %v2174
  %v2351 = vpack.c.b16 %v2183, %v2175
  %v2352 = vpack.c.b16 %v2184, %v2176
  %v2353 = vpack.c.b16 %v2185, %v2177
  %v2354 = vpack.c.b16 %v2186, %v2178
  %v2355 = vpack.c.b16 %v2187, %v2179
  %v2356 = vpack.c.b16 %v2196, %v2188
  %v2357 = vpack.c.b16 %v2197, %v2189
  %v2358 = vpack.c.b16 %v2198, %v2190
  %v2359 = vpack.c.b16 %v2199, %v2191
  %v2360 = vpack.c.b16 %v2200, %v2192
  %v2361 = vpack.c.b16 %v2201, %v2193
  %v2362 = vpack.c.b16 %v2202, %v2194
  %v2363 = vpack.c.b16 %v2203, %v2195
  %v2364 = vpack.c.b16 %v2212, %v2204
  %v2365 = vpack.c.b16 %v2213, %v2205
  %v2366 = vpack.c.b16 %v2214, %v2206
  %v2367 = vpack.c.b16 %v2215, %v2207
  %v2368 = vpack.c.b16 %v2216, %v2208
  %v2369 = vpack.c.b16 %v2217, %v2209
  %v2370 = vpack.c.b16 %v2218, %v2210
  %v2371 = vpack.c.b16 %v2219, %v2211
  %v2372 = vpack.c.b16 %v2228, %v2220
  %v2373 = vpack.c.b16 %v2229, %v2221
  %v2374 = vpack.c.b16 %v2230, %v2222
  %v2375 = vpack.c.b16 %v2231, %v2223
  %v2376 = vpack.c.b16 %v2232, %v2224
  %v2377 = vpack.c.b16 %v2233, %v2225
  %v2378 = vpack.c.b16 %v2234, %v2226
  %v2379 = vpack.c.b16 %v2235, %v2227
  %v2380 = vpack.c.b16 %v2244, %v2236
  %v2381 = vpack.c.b16 %v2245, %v2237
  %v2382 = vpack.c.b16 %v2246, %v2238
  %v2383 = vpack.c.b16 %v2247, %v2239
  %v2384 = vpack.c.b16 %v2248, %v2240
  %v2385 = vpack.c.b16 %v2249, %v2241
  %v2386 = vpack.c.b16 %v2250, %v2242
  %v2387 = vpack.c.b16 %v2251, %v2243
  %v2388 = vpack.c.b16 %v2260, %v2252
  %v2389 = vpack.c.b16 %v2261, %v2253
  %v2390 = vpack.c.b16 %v2262, %v2254
  %v2391 = vpack.c.b16 %v2263, %v2255
  %v2392 = vpack.c.b16 %v2264, %v2256
  %v2393 = vpack.c.b16 %v2265, %v2257
  %v2394 = vpack.c.b16 %v2266, %v2258
  %v2395 = vpack.c.b16 %v2267, %v2259
  %2524 = vmatprep.subr.bf16.mxu0 %v2269
  %2525 = vmatpush1.bf16.msra.mxu0 %v2268
  %2526 = vmatprep.subr.bf16.mxu0 %v2277
  %2527 = vmatpush1.bf16.msra.mxu0 %v2276
  %2528 = vmatprep.subr.bf16.mxu0 %v2285
  %2529 = vmatpush1.bf16.msra.mxu0 %v2284
  %2530 = vmatprep.subr.bf16.mxu0 %v2293
  %2531 = vmatpush1.bf16.msra.mxu0 %v2292
  %2532 = vmatprep.subr.bf16.mxu0 %v2301
  %2533 = vmatpush1.bf16.msra.mxu0 %v2300
  %2534 = vmatprep.subr.bf16.mxu0 %v2309
  %2535 = vmatpush1.bf16.msra.mxu0 %v2308
  %2536 = vmatprep.subr.bf16.mxu0 %v2317
  %2537 = vmatpush1.bf16.msra.mxu0 %v2316
  %2538 = vmatprep.subr.bf16.mxu0 %v2325
  %2539 = vmatpush1.bf16.msra.mxu0 %v2324
  %2540 = vmatprep.subr.bf16.mxu0 %v2333
  %2541 = vmatpush1.bf16.msra.mxu0 %v2332
  %2542 = vmatprep.subr.bf16.mxu0 %v2341
  %2543 = vmatpush1.bf16.msra.mxu0 %v2340
  %2544 = vmatprep.subr.bf16.mxu0 %v2349
  %2545 = vmatpush1.bf16.msra.mxu0 %v2348
  %2546 = vmatprep.subr.bf16.mxu0 %v2357
  %2547 = vmatpush1.bf16.msra.mxu0 %v2356
  %2548 = vmatprep.subr.bf16.mxu0 %v2365
  %2549 = vmatpush1.bf16.msra.mxu0 %v2364
  %2550 = vmatprep.subr.bf16.mxu0 %v2373
  %2551 = vmatpush1.bf16.msra.mxu0 %v2372
  %2552 = vmatprep.subr.bf16.mxu0 %v2381
  %2553 = vmatpush1.bf16.msra.mxu0 %v2380
  %2554 = vmatprep.subr.bf16.mxu0 %v2389
  %2555 = vmatpush1.bf16.msra.mxu0 %v2388
  %2556 = vmatprep.mubr.bf16.mxu0 %v1883
  %2557 = vmatmul.mubr.bf16.gmra.mrb[0].mxu0 %v1882
  %v2558 = vpop.f32.mrb[0].mxu0
  %v2559 = vadd.f32 0.0, %v2558
  %v2560 = vpop.f32.mrb[0].mxu0
  %v2561 = vadd.f32 0.0, %v2560
  %v2562 = vpop.f32.mrb[0].mxu0
  %v2563 = vpop.f32.mrb[0].mxu0
  %2564 = vdwg.mxu0
  %2565 = vmatprep.subr.bf16.mxu0 %v2271
  %2566 = vmatpush1.bf16.msra.mxu0 %v2270
  %2567 = vmatprep.subr.bf16.mxu0 %v2279
  %2568 = vmatpush1.bf16.msra.mxu0 %v2278
  %2569 = vmatprep.subr.bf16.mxu0 %v2287
  %2570 = vmatpush1.bf16.msra.mxu0 %v2286
  %2571 = vmatprep.subr.bf16.mxu0 %v2295
  %2572 = vmatpush1.bf16.msra.mxu0 %v2294
  %2573 = vmatprep.subr.bf16.mxu0 %v2303
  %2574 = vmatpush1.bf16.msra.mxu0 %v2302
  %2575 = vmatprep.subr.bf16.mxu0 %v2311
  %2576 = vmatpush1.bf16.msra.mxu0 %v2310
  %2577 = vmatprep.subr.bf16.mxu0 %v2319
  %2578 = vmatpush1.bf16.msra.mxu0 %v2318
  %2579 = vmatprep.subr.bf16.mxu0 %v2327
  %2580 = vmatpush1.bf16.msra.mxu0 %v2326
  %2581 = vmatprep.subr.bf16.mxu0 %v2335
  %2582 = vmatpush1.bf16.msra.mxu0 %v2334
  %2583 = vmatprep.subr.bf16.mxu0 %v2343
  %2584 = vmatpush1.bf16.msra.mxu0 %v2342
  %2585 = vmatprep.subr.bf16.mxu0 %v2351
  %2586 = vmatpush1.bf16.msra.mxu0 %v2350
  %2587 = vmatprep.subr.bf16.mxu0 %v2359
  %2588 = vmatpush1.bf16.msra.mxu0 %v2358
  %2589 = vmatprep.subr.bf16.mxu0 %v2367
  %2590 = vmatpush1.bf16.msra.mxu0 %v2366
  %2591 = vmatprep.subr.bf16.mxu0 %v2375
  %2592 = vmatpush1.bf16.msra.mxu0 %v2374
  %2593 = vmatprep.subr.bf16.mxu0 %v2383
  %2594 = vmatpush1.bf16.msra.mxu0 %v2382
  %2595 = vmatprep.subr.bf16.mxu0 %v2391
  %2596 = vmatpush1.bf16.msra.mxu0 %v2390
  %2597 = vmatprep.mubr.bf16.mxu0 %v1883
  %2598 = vmatmul.mubr.bf16.gmra.mrb[0].mxu0 %v1882
  %v2599 = vpop.f32.mrb[0].mxu0
  %v2600 = vadd.f32 0.0, %v2599
  %v2601 = vpop.f32.mrb[0].mxu0
  %v2602 = vadd.f32 0.0, %v2601
  %v2603 = vpop.f32.mrb[0].mxu0
  %v2604 = vpop.f32.mrb[0].mxu0
  %2605 = vdwg.mxu0
  %2606 = vmatprep.subr.bf16.mxu0 %v2273
  %2607 = vmatpush1.bf16.msra.mxu0 %v2272
  %2608 = vmatprep.subr.bf16.mxu0 %v2281
  %2609 = vmatpush1.bf16.msra.mxu0 %v2280
  %2610 = vmatprep.subr.bf16.mxu0 %v2289
  %2611 = vmatpush1.bf16.msra.mxu0 %v2288
  %2612 = vmatprep.subr.bf16.mxu0 %v2297
  %2613 = vmatpush1.bf16.msra.mxu0 %v2296
  %2614 = vmatprep.subr.bf16.mxu0 %v2305
  %2615 = vmatpush1.bf16.msra.mxu0 %v2304
  %2616 = vmatprep.subr.bf16.mxu0 %v2313
  %2617 = vmatpush1.bf16.msra.mxu0 %v2312
  %2618 = vmatprep.subr.bf16.mxu0 %v2321
  %2619 = vmatpush1.bf16.msra.mxu0 %v2320
  %2620 = vmatprep.subr.bf16.mxu0 %v2329
  %2621 = vmatpush1.bf16.msra.mxu0 %v2328
  %2622 = vmatprep.subr.bf16.mxu0 %v2337
  %2623 = vmatpush1.bf16.msra.mxu0 %v2336
  %2624 = vmatprep.subr.bf16.mxu0 %v2345
  %2625 = vmatpush1.bf16.msra.mxu0 %v2344
  %2626 = vmatprep.subr.bf16.mxu0 %v2353
  %2627 = vmatpush1.bf16.msra.mxu0 %v2352
  %2628 = vmatprep.subr.bf16.mxu0 %v2361
  %2629 = vmatpush1.bf16.msra.mxu0 %v2360
  %2630 = vmatprep.subr.bf16.mxu0 %v2369
  %2631 = vmatpush1.bf16.msra.mxu0 %v2368
  %2632 = vmatprep.subr.bf16.mxu0 %v2377
  %2633 = vmatpush1.bf16.msra.mxu0 %v2376
  %2634 = vmatprep.subr.bf16.mxu0 %v2385
  %2635 = vmatpush1.bf16.msra.mxu0 %v2384
  %2636 = vmatprep.subr.bf16.mxu0 %v2393
  %2637 = vmatpush1.bf16.msra.mxu0 %v2392
  %2638 = vmatprep.mubr.bf16.mxu0 %v1883
  %2639 = vmatmul.mubr.bf16.gmra.mrb[0].mxu0 %v1882
  %v2640 = vpop.f32.mrb[0].mxu0
  %v2641 = vadd.f32 0.0, %v2640
  %v2642 = vpop.f32.mrb[0].mxu0
  %v2643 = vadd.f32 0.0, %v2642
  %v2644 = vpop.f32.mrb[0].mxu0
  %v2645 = vpop.f32.mrb[0].mxu0
  %2646 = vdwg.mxu0
  %2647 = vmatprep.subr.bf16.mxu0 %v2275
  %2648 = vmatpush1.bf16.msra.mxu0 %v2274
  %2649 = vmatprep.subr.bf16.mxu0 %v2283
  %2650 = vmatpush1.bf16.msra.mxu0 %v2282
  %2651 = vmatprep.subr.bf16.mxu0 %v2291
  %2652 = vmatpush1.bf16.msra.mxu0 %v2290
  %2653 = vmatprep.subr.bf16.mxu0 %v2299
  %2654 = vmatpush1.bf16.msra.mxu0 %v2298
  %2655 = vmatprep.subr.bf16.mxu0 %v2307
  %2656 = vmatpush1.bf16.msra.mxu0 %v2306
  %2657 = vmatprep.subr.bf16.mxu0 %v2315
  %2658 = vmatpush1.bf16.msra.mxu0 %v2314
  %2659 = vmatprep.subr.bf16.mxu0 %v2323
  %2660 = vmatpush1.bf16.msra.mxu0 %v2322
  %2661 = vmatprep.subr.bf16.mxu0 %v2331
  %2662 = vmatpush1.bf16.msra.mxu0 %v2330
  %2663 = vmatprep.subr.bf16.mxu0 %v2339
  %2664 = vmatpush1.bf16.msra.mxu0 %v2338
  %2665 = vmatprep.subr.bf16.mxu0 %v2347
  %2666 = vmatpush1.bf16.msra.mxu0 %v2346
  %2667 = vmatprep.subr.bf16.mxu0 %v2355
  %2668 = vmatpush1.bf16.msra.mxu0 %v2354
  %2669 = vmatprep.subr.bf16.mxu0 %v2363
  %2670 = vmatpush1.bf16.msra.mxu0 %v2362
  %2671 = vmatprep.subr.bf16.mxu0 %v2371
  %2672 = vmatpush1.bf16.msra.mxu0 %v2370
  %2673 = vmatprep.subr.bf16.mxu0 %v2379
  %2674 = vmatpush1.bf16.msra.mxu0 %v2378
  %2675 = vmatprep.subr.bf16.mxu0 %v2387
  %2676 = vmatpush1.bf16.msra.mxu0 %v2386
  %2677 = vmatprep.subr.bf16.mxu0 %v2395
  %2678 = vmatpush1.bf16.msra.mxu0 %v2394
  %2679 = vmatprep.mubr.bf16.mxu0 %v1883
  %2680 = vmatmul.mubr.bf16.gmra.mrb[0].mxu0 %v1882
  %v2681 = vpop.f32.mrb[0].mxu0
  %v2682 = vadd.f32 0.0, %v2681
  %v2683 = vpop.f32.mrb[0].mxu0
  %v2684 = vadd.f32 0.0, %v2683
  %v2685 = vpop.f32.mrb[0].mxu0
  %v2686 = vpop.f32.mrb[0].mxu0
  %2687 = vdwg.mxu0
  %v2816 = vunpack.c.l.b16 %v305
  %v2817 = vunpack.c.h.b16 %v305
  %v2818 = vunpack.c.l.b16 %v306
  %v2819 = vunpack.c.h.b16 %v306
  %v2820 = vunpack.c.l.b16 %v307
  %v2821 = vunpack.c.h.b16 %v307
  %v2822 = vunpack.c.l.b16 %v308
  %v2823 = vunpack.c.h.b16 %v308
  %v2824 = vunpack.c.l.b16 %v309
  %v2825 = vunpack.c.h.b16 %v309
  %v2826 = vunpack.c.l.b16 %v310
  %v2827 = vunpack.c.h.b16 %v310
  %v2828 = vunpack.c.l.b16 %v311
  %v2829 = vunpack.c.h.b16 %v311
  %v2830 = vunpack.c.l.b16 %v312
  %v2831 = vunpack.c.h.b16 %v312
  %v2832 = vunpack.c.l.b16 %v313
  %v2833 = vunpack.c.h.b16 %v313
  %v2834 = vunpack.c.l.b16 %v314
  %v2835 = vunpack.c.h.b16 %v314
  %v2836 = vunpack.c.l.b16 %v315
  %v2837 = vunpack.c.h.b16 %v315
  %v2838 = vunpack.c.l.b16 %v316
  %v2839 = vunpack.c.h.b16 %v316
  %v2840 = vunpack.c.l.b16 %v317
  %v2841 = vunpack.c.h.b16 %v317
  %v2842 = vunpack.c.l.b16 %v318
  %v2843 = vunpack.c.h.b16 %v318
  %v2844 = vunpack.c.l.b16 %v319
  %v2845 = vunpack.c.h.b16 %v319
  %v2846 = vunpack.c.l.b16 %v320
  %v2847 = vunpack.c.h.b16 %v320
  %v2848 = vunpack.c.l.b16 %v321
  %v2849 = vunpack.c.h.b16 %v321
  %v2850 = vunpack.c.l.b16 %v322
  %v2851 = vunpack.c.h.b16 %v322
  %v2852 = vunpack.c.l.b16 %v323
  %v2853 = vunpack.c.h.b16 %v323
  %v2854 = vunpack.c.l.b16 %v324
  %v2855 = vunpack.c.h.b16 %v324
  %v2856 = vunpack.c.l.b16 %v325
  %v2857 = vunpack.c.h.b16 %v325
  %v2858 = vunpack.c.l.b16 %v326
  %v2859 = vunpack.c.h.b16 %v326
  %v2860 = vunpack.c.l.b16 %v327
  %v2861 = vunpack.c.h.b16 %v327
  %v2862 = vunpack.c.l.b16 %v328
  %v2863 = vunpack.c.h.b16 %v328
  %v2864 = vunpack.c.l.b16 %v329
  %v2865 = vunpack.c.h.b16 %v329
  %v2866 = vunpack.c.l.b16 %v330
  %v2867 = vunpack.c.h.b16 %v330
  %v2868 = vunpack.c.l.b16 %v331
  %v2869 = vunpack.c.h.b16 %v331
  %v2870 = vunpack.c.l.b16 %v332
  %v2871 = vunpack.c.h.b16 %v332
  %v2872 = vunpack.c.l.b16 %v333
  %v2873 = vunpack.c.h.b16 %v333
  %v2874 = vunpack.c.l.b16 %v334
  %v2875 = vunpack.c.h.b16 %v334
  %v2876 = vunpack.c.l.b16 %v335
  %v2877 = vunpack.c.h.b16 %v335
  %v2878 = vunpack.c.l.b16 %v336
  %v2879 = vunpack.c.h.b16 %v336
  %v2880 = vunpack.c.l.b16 %v337
  %v2881 = vunpack.c.h.b16 %v337
  %v2882 = vunpack.c.l.b16 %v338
  %v2883 = vunpack.c.h.b16 %v338
  %v2884 = vunpack.c.l.b16 %v339
  %v2885 = vunpack.c.h.b16 %v339
  %v2886 = vunpack.c.l.b16 %v340
  %v2887 = vunpack.c.h.b16 %v340
  %v2888 = vunpack.c.l.b16 %v341
  %v2889 = vunpack.c.h.b16 %v341
  %v2890 = vunpack.c.l.b16 %v342
  %v2891 = vunpack.c.h.b16 %v342
  %v2892 = vunpack.c.l.b16 %v343
  %v2893 = vunpack.c.h.b16 %v343
  %v2894 = vunpack.c.l.b16 %v344
  %v2895 = vunpack.c.h.b16 %v344
  %v2896 = vunpack.c.l.b16 %v345
  %v2897 = vunpack.c.h.b16 %v345
  %v2898 = vunpack.c.l.b16 %v346
  %v2899 = vunpack.c.h.b16 %v346
  %v2900 = vunpack.c.l.b16 %v347
  %v2901 = vunpack.c.h.b16 %v347
  %v2902 = vunpack.c.l.b16 %v348
  %v2903 = vunpack.c.h.b16 %v348
  %v2904 = vunpack.c.l.b16 %v349
  %v2905 = vunpack.c.h.b16 %v349
  %v2906 = vunpack.c.l.b16 %v350
  %v2907 = vunpack.c.h.b16 %v350
  %v2908 = vunpack.c.l.b16 %v351
  %v2909 = vunpack.c.h.b16 %v351
  %v2910 = vunpack.c.l.b16 %v352
  %v2911 = vunpack.c.h.b16 %v352
  %v2912 = vunpack.c.l.b16 %v353
  %v2913 = vunpack.c.h.b16 %v353
  %v2914 = vunpack.c.l.b16 %v354
  %v2915 = vunpack.c.h.b16 %v354
  %v2916 = vunpack.c.l.b16 %v355
  %v2917 = vunpack.c.h.b16 %v355
  %v2918 = vunpack.c.l.b16 %v356
  %v2919 = vunpack.c.h.b16 %v356
  %v2920 = vunpack.c.l.b16 %v357
  %v2921 = vunpack.c.h.b16 %v357
  %v2922 = vunpack.c.l.b16 %v358
  %v2923 = vunpack.c.h.b16 %v358
  %v2924 = vunpack.c.l.b16 %v359
  %v2925 = vunpack.c.h.b16 %v359
  %v2926 = vunpack.c.l.b16 %v360
  %v2927 = vunpack.c.h.b16 %v360
  %v2928 = vunpack.c.l.b16 %v361
  %v2929 = vunpack.c.h.b16 %v361
  %v2930 = vunpack.c.l.b16 %v362
  %v2931 = vunpack.c.h.b16 %v362
  %v2932 = vunpack.c.l.b16 %v363
  %v2933 = vunpack.c.h.b16 %v363
  %v2934 = vunpack.c.l.b16 %v364
  %v2935 = vunpack.c.h.b16 %v364
  %v2936 = vunpack.c.l.b16 %v365
  %v2937 = vunpack.c.h.b16 %v365
  %v2938 = vunpack.c.l.b16 %v366
  %v2939 = vunpack.c.h.b16 %v366
  %v2940 = vunpack.c.l.b16 %v367
  %v2941 = vunpack.c.h.b16 %v367
  %v2942 = vunpack.c.l.b16 %v368
  %v2943 = vunpack.c.h.b16 %v368
  %v2944 = vunpack.c.l.b16 %v369
  %v2945 = vunpack.c.h.b16 %v369
  %v2946 = vunpack.c.l.b16 %v370
  %v2947 = vunpack.c.h.b16 %v370
  %v2948 = vunpack.c.l.b16 %v371
  %v2949 = vunpack.c.h.b16 %v371
  %v2950 = vunpack.c.l.b16 %v372
  %v2951 = vunpack.c.h.b16 %v372
  %v2952 = vunpack.c.l.b16 %v373
  %v2953 = vunpack.c.h.b16 %v373
  %v2954 = vunpack.c.l.b16 %v374
  %v2955 = vunpack.c.h.b16 %v374
  %v2956 = vunpack.c.l.b16 %v375
  %v2957 = vunpack.c.h.b16 %v375
  %v2958 = vunpack.c.l.b16 %v376
  %v2959 = vunpack.c.h.b16 %v376
  %v2960 = vunpack.c.l.b16 %v377
  %v2961 = vunpack.c.h.b16 %v377
  %v2962 = vunpack.c.l.b16 %v378
  %v2963 = vunpack.c.h.b16 %v378
  %v2964 = vunpack.c.l.b16 %v379
  %v2965 = vunpack.c.h.b16 %v379
  %v2966 = vunpack.c.l.b16 %v380
  %v2967 = vunpack.c.h.b16 %v380
  %v2968 = vunpack.c.l.b16 %v381
  %v2969 = vunpack.c.h.b16 %v381
  %v2970 = vunpack.c.l.b16 %v382
  %v2971 = vunpack.c.h.b16 %v382
  %v2972 = vunpack.c.l.b16 %v383
  %v2973 = vunpack.c.h.b16 %v383
  %v2974 = vunpack.c.l.b16 %v384
  %v2975 = vunpack.c.h.b16 %v384
  %v2976 = vunpack.c.l.b16 %v385
  %v2977 = vunpack.c.h.b16 %v385
  %v2978 = vunpack.c.l.b16 %v386
  %v2979 = vunpack.c.h.b16 %v386
  %v2980 = vunpack.c.l.b16 %v387
  %v2981 = vunpack.c.h.b16 %v387
  %v2982 = vunpack.c.l.b16 %v388
  %v2983 = vunpack.c.h.b16 %v388
  %v2984 = vunpack.c.l.b16 %v389
  %v2985 = vunpack.c.h.b16 %v389
  %v2986 = vunpack.c.l.b16 %v390
  %v2987 = vunpack.c.h.b16 %v390
  %v2988 = vunpack.c.l.b16 %v391
  %v2989 = vunpack.c.h.b16 %v391
  %v2990 = vunpack.c.l.b16 %v392
  %v2991 = vunpack.c.h.b16 %v392
  %v2992 = vunpack.c.l.b16 %v393
  %v2993 = vunpack.c.h.b16 %v393
  %v2994 = vunpack.c.l.b16 %v394
  %v2995 = vunpack.c.h.b16 %v394
  %v2996 = vunpack.c.l.b16 %v395
  %v2997 = vunpack.c.h.b16 %v395
  %v2998 = vunpack.c.l.b16 %v396
  %v2999 = vunpack.c.h.b16 %v396
  %v3000 = vunpack.c.l.b16 %v397
  %v3001 = vunpack.c.h.b16 %v397
  %v3002 = vunpack.c.l.b16 %v398
  %v3003 = vunpack.c.h.b16 %v398
  %v3004 = vunpack.c.l.b16 %v399
  %v3005 = vunpack.c.h.b16 %v399
  %v3006 = vunpack.c.l.b16 %v400
  %v3007 = vunpack.c.h.b16 %v400
  %v3008 = vunpack.c.l.b16 %v401
  %v3009 = vunpack.c.h.b16 %v401
  %v3010 = vunpack.c.l.b16 %v402
  %v3011 = vunpack.c.h.b16 %v402
  %v3012 = vunpack.c.l.b16 %v403
  %v3013 = vunpack.c.h.b16 %v403
  %v3014 = vunpack.c.l.b16 %v404
  %v3015 = vunpack.c.h.b16 %v404
  %v3016 = vunpack.c.l.b16 %v405
  %v3017 = vunpack.c.h.b16 %v405
  %v3018 = vunpack.c.l.b16 %v406
  %v3019 = vunpack.c.h.b16 %v406
  %v3020 = vunpack.c.l.b16 %v407
  %v3021 = vunpack.c.h.b16 %v407
  %v3022 = vunpack.c.l.b16 %v408
  %v3023 = vunpack.c.h.b16 %v408
  %v3024 = vunpack.c.l.b16 %v409
  %v3025 = vunpack.c.h.b16 %v409
  %v3026 = vunpack.c.l.b16 %v410
  %v3027 = vunpack.c.h.b16 %v410
  %v3028 = vunpack.c.l.b16 %v411
  %v3029 = vunpack.c.h.b16 %v411
  %v3030 = vunpack.c.l.b16 %v412
  %v3031 = vunpack.c.h.b16 %v412
  %v3032 = vunpack.c.l.b16 %v413
  %v3033 = vunpack.c.h.b16 %v413
  %v3034 = vunpack.c.l.b16 %v414
  %v3035 = vunpack.c.h.b16 %v414
  %v3036 = vunpack.c.l.b16 %v415
  %v3037 = vunpack.c.h.b16 %v415
  %v3038 = vunpack.c.l.b16 %v416
  %v3039 = vunpack.c.h.b16 %v416
  %v3040 = vunpack.c.l.b16 %v417
  %v3041 = vunpack.c.h.b16 %v417
  %v3042 = vunpack.c.l.b16 %v418
  %v3043 = vunpack.c.h.b16 %v418
  %v3044 = vunpack.c.l.b16 %v419
  %v3045 = vunpack.c.h.b16 %v419
  %v3046 = vunpack.c.l.b16 %v420
  %v3047 = vunpack.c.h.b16 %v420
  %v3048 = vunpack.c.l.b16 %v421
  %v3049 = vunpack.c.h.b16 %v421
  %v3050 = vunpack.c.l.b16 %v422
  %v3051 = vunpack.c.h.b16 %v422
  %v3052 = vunpack.c.l.b16 %v423
  %v3053 = vunpack.c.h.b16 %v423
  %v3054 = vunpack.c.l.b16 %v424
  %v3055 = vunpack.c.h.b16 %v424
  %v3056 = vunpack.c.l.b16 %v425
  %v3057 = vunpack.c.h.b16 %v425
  %v3058 = vunpack.c.l.b16 %v426
  %v3059 = vunpack.c.h.b16 %v426
  %v3060 = vunpack.c.l.b16 %v427
  %v3061 = vunpack.c.h.b16 %v427
  %v3062 = vunpack.c.l.b16 %v428
  %v3063 = vunpack.c.h.b16 %v428
  %v3064 = vunpack.c.l.b16 %v429
  %v3065 = vunpack.c.h.b16 %v429
  %v3066 = vunpack.c.l.b16 %v430
  %v3067 = vunpack.c.h.b16 %v430
  %v3068 = vunpack.c.l.b16 %v431
  %v3069 = vunpack.c.h.b16 %v431
  %v3070 = vunpack.c.l.b16 %v432
  %v3071 = vunpack.c.h.b16 %v432
  %v3072 = vpack.c.b16 %v2824, %v2816
  %v3073 = vpack.c.b16 %v2825, %v2817
  %v3074 = vpack.c.b16 %v2826, %v2818
  %v3075 = vpack.c.b16 %v2827, %v2819
  %v3076 = vpack.c.b16 %v2828, %v2820
  %v3077 = vpack.c.b16 %v2829, %v2821
  %v3078 = vpack.c.b16 %v2830, %v2822
  %v3079 = vpack.c.b16 %v2831, %v2823
  %v3080 = vpack.c.b16 %v2840, %v2832
  %v3081 = vpack.c.b16 %v2841, %v2833
  %v3082 = vpack.c.b16 %v2842, %v2834
  %v3083 = vpack.c.b16 %v2843, %v2835
  %v3084 = vpack.c.b16 %v2844, %v2836
  %v3085 = vpack.c.b16 %v2845, %v2837
  %v3086 = vpack.c.b16 %v2846, %v2838
  %v3087 = vpack.c.b16 %v2847, %v2839
  %v3088 = vpack.c.b16 %v2856, %v2848
  %v3089 = vpack.c.b16 %v2857, %v2849
  %v3090 = vpack.c.b16 %v2858, %v2850
  %v3091 = vpack.c.b16 %v2859, %v2851
  %v3092 = vpack.c.b16 %v2860, %v2852
  %v3093 = vpack.c.b16 %v2861, %v2853
  %v3094 = vpack.c.b16 %v2862, %v2854
  %v3095 = vpack.c.b16 %v2863, %v2855
  %v3096 = vpack.c.b16 %v2872, %v2864
  %v3097 = vpack.c.b16 %v2873, %v2865
  %v3098 = vpack.c.b16 %v2874, %v2866
  %v3099 = vpack.c.b16 %v2875, %v2867
  %v3100 = vpack.c.b16 %v2876, %v2868
  %v3101 = vpack.c.b16 %v2877, %v2869
  %v3102 = vpack.c.b16 %v2878, %v2870
  %v3103 = vpack.c.b16 %v2879, %v2871
  %v3104 = vpack.c.b16 %v2888, %v2880
  %v3105 = vpack.c.b16 %v2889, %v2881
  %v3106 = vpack.c.b16 %v2890, %v2882
  %v3107 = vpack.c.b16 %v2891, %v2883
  %v3108 = vpack.c.b16 %v2892, %v2884
  %v3109 = vpack.c.b16 %v2893, %v2885
  %v3110 = vpack.c.b16 %v2894, %v2886
  %v3111 = vpack.c.b16 %v2895, %v2887
  %v3112 = vpack.c.b16 %v2904, %v2896
  %v3113 = vpack.c.b16 %v2905, %v2897
  %v3114 = vpack.c.b16 %v2906, %v2898
  %v3115 = vpack.c.b16 %v2907, %v2899
  %v3116 = vpack.c.b16 %v2908, %v2900
  %v3117 = vpack.c.b16 %v2909, %v2901
  %v3118 = vpack.c.b16 %v2910, %v2902
  %v3119 = vpack.c.b16 %v2911, %v2903
  %v3120 = vpack.c.b16 %v2920, %v2912
  %v3121 = vpack.c.b16 %v2921, %v2913
  %v3122 = vpack.c.b16 %v2922, %v2914
  %v3123 = vpack.c.b16 %v2923, %v2915
  %v3124 = vpack.c.b16 %v2924, %v2916
  %v3125 = vpack.c.b16 %v2925, %v2917
  %v3126 = vpack.c.b16 %v2926, %v2918
  %v3127 = vpack.c.b16 %v2927, %v2919
  %v3128 = vpack.c.b16 %v2936, %v2928
  %v3129 = vpack.c.b16 %v2937, %v2929
  %v3130 = vpack.c.b16 %v2938, %v2930
  %v3131 = vpack.c.b16 %v2939, %v2931
  %v3132 = vpack.c.b16 %v2940, %v2932
  %v3133 = vpack.c.b16 %v2941, %v2933
  %v3134 = vpack.c.b16 %v2942, %v2934
  %v3135 = vpack.c.b16 %v2943, %v2935
  %v3136 = vpack.c.b16 %v2952, %v2944
  %v3137 = vpack.c.b16 %v2953, %v2945
  %v3138 = vpack.c.b16 %v2954, %v2946
  %v3139 = vpack.c.b16 %v2955, %v2947
  %v3140 = vpack.c.b16 %v2956, %v2948
  %v3141 = vpack.c.b16 %v2957, %v2949
  %v3142 = vpack.c.b16 %v2958, %v2950
  %v3143 = vpack.c.b16 %v2959, %v2951
  %v3144 = vpack.c.b16 %v2968, %v2960
  %v3145 = vpack.c.b16 %v2969, %v2961
  %v3146 = vpack.c.b16 %v2970, %v2962
  %v3147 = vpack.c.b16 %v2971, %v2963
  %v3148 = vpack.c.b16 %v2972, %v2964
  %v3149 = vpack.c.b16 %v2973, %v2965
  %v3150 = vpack.c.b16 %v2974, %v2966
  %v3151 = vpack.c.b16 %v2975, %v2967
  %v3152 = vpack.c.b16 %v2984, %v2976
  %v3153 = vpack.c.b16 %v2985, %v2977
  %v3154 = vpack.c.b16 %v2986, %v2978
  %v3155 = vpack.c.b16 %v2987, %v2979
  %v3156 = vpack.c.b16 %v2988, %v2980
  %v3157 = vpack.c.b16 %v2989, %v2981
  %v3158 = vpack.c.b16 %v2990, %v2982
  %v3159 = vpack.c.b16 %v2991, %v2983
  %v3160 = vpack.c.b16 %v3000, %v2992
  %v3161 = vpack.c.b16 %v3001, %v2993
  %v3162 = vpack.c.b16 %v3002, %v2994
  %v3163 = vpack.c.b16 %v3003, %v2995
  %v3164 = vpack.c.b16 %v3004, %v2996
  %v3165 = vpack.c.b16 %v3005, %v2997
  %v3166 = vpack.c.b16 %v3006, %v2998
  %v3167 = vpack.c.b16 %v3007, %v2999
  %v3168 = vpack.c.b16 %v3016, %v3008
  %v3169 = vpack.c.b16 %v3017, %v3009
  %v3170 = vpack.c.b16 %v3018, %v3010
  %v3171 = vpack.c.b16 %v3019, %v3011
  %v3172 = vpack.c.b16 %v3020, %v3012
  %v3173 = vpack.c.b16 %v3021, %v3013
  %v3174 = vpack.c.b16 %v3022, %v3014
  %v3175 = vpack.c.b16 %v3023, %v3015
  %v3176 = vpack.c.b16 %v3032, %v3024
  %v3177 = vpack.c.b16 %v3033, %v3025
  %v3178 = vpack.c.b16 %v3034, %v3026
  %v3179 = vpack.c.b16 %v3035, %v3027
  %v3180 = vpack.c.b16 %v3036, %v3028
  %v3181 = vpack.c.b16 %v3037, %v3029
  %v3182 = vpack.c.b16 %v3038, %v3030
  %v3183 = vpack.c.b16 %v3039, %v3031
  %v3184 = vpack.c.b16 %v3048, %v3040
  %v3185 = vpack.c.b16 %v3049, %v3041
  %v3186 = vpack.c.b16 %v3050, %v3042
  %v3187 = vpack.c.b16 %v3051, %v3043
  %v3188 = vpack.c.b16 %v3052, %v3044
  %v3189 = vpack.c.b16 %v3053, %v3045
  %v3190 = vpack.c.b16 %v3054, %v3046
  %v3191 = vpack.c.b16 %v3055, %v3047
  %v3192 = vpack.c.b16 %v3064, %v3056
  %v3193 = vpack.c.b16 %v3065, %v3057
  %v3194 = vpack.c.b16 %v3066, %v3058
  %v3195 = vpack.c.b16 %v3067, %v3059
  %v3196 = vpack.c.b16 %v3068, %v3060
  %v3197 = vpack.c.b16 %v3069, %v3061
  %v3198 = vpack.c.b16 %v3070, %v3062
  %v3199 = vpack.c.b16 %v3071, %v3063
  %3328 = vmatprep.subr.bf16.mxu0 %v3073
  %3329 = vmatpush1.bf16.msra.mxu0 %v3072
  %3330 = vmatprep.subr.bf16.mxu0 %v3081
  %3331 = vmatpush1.bf16.msra.mxu0 %v3080
  %3332 = vmatprep.subr.bf16.mxu0 %v3089
  %3333 = vmatpush1.bf16.msra.mxu0 %v3088
  %3334 = vmatprep.subr.bf16.mxu0 %v3097
  %3335 = vmatpush1.bf16.msra.mxu0 %v3096
  %3336 = vmatprep.subr.bf16.mxu0 %v3105
  %3337 = vmatpush1.bf16.msra.mxu0 %v3104
  %3338 = vmatprep.subr.bf16.mxu0 %v3113
  %3339 = vmatpush1.bf16.msra.mxu0 %v3112
  %3340 = vmatprep.subr.bf16.mxu0 %v3121
  %3341 = vmatpush1.bf16.msra.mxu0 %v3120
  %3342 = vmatprep.subr.bf16.mxu0 %v3129
  %3343 = vmatpush1.bf16.msra.mxu0 %v3128
  %3344 = vmatprep.subr.bf16.mxu0 %v3137
  %3345 = vmatpush1.bf16.msra.mxu0 %v3136
  %3346 = vmatprep.subr.bf16.mxu0 %v3145
  %3347 = vmatpush1.bf16.msra.mxu0 %v3144
  %3348 = vmatprep.subr.bf16.mxu0 %v3153
  %3349 = vmatpush1.bf16.msra.mxu0 %v3152
  %3350 = vmatprep.subr.bf16.mxu0 %v3161
  %3351 = vmatpush1.bf16.msra.mxu0 %v3160
  %3352 = vmatprep.subr.bf16.mxu0 %v3169
  %3353 = vmatpush1.bf16.msra.mxu0 %v3168
  %3354 = vmatprep.subr.bf16.mxu0 %v3177
  %3355 = vmatpush1.bf16.msra.mxu0 %v3176
  %3356 = vmatprep.subr.bf16.mxu0 %v3185
  %3357 = vmatpush1.bf16.msra.mxu0 %v3184
  %3358 = vmatprep.subr.bf16.mxu0 %v3193
  %3359 = vmatpush1.bf16.msra.mxu0 %v3192
  %3360 = vmatprep.mubr.bf16.mxu0 0
  %3361 = vmatmul.mubr.bf16.gmra.mrb[0].mxu0 0
  %v3362 = vpop.f32.mrb[0].mxu0
  %v3363 = vadd.f32 %v2559, %v3362
  %v3364 = vpop.f32.mrb[0].mxu0
  %v3365 = vadd.f32 %v2561, %v3364
  %v3366 = vpop.f32.mrb[0].mxu0
  %v3367 = vpop.f32.mrb[0].mxu0
  %3368 = vdwg.mxu0
  %3369 = vmatprep.subr.bf16.mxu0 %v3075
  %3370 = vmatpush1.bf16.msra.mxu0 %v3074
  %3371 = vmatprep.subr.bf16.mxu0 %v3083
  %3372 = vmatpush1.bf16.msra.mxu0 %v3082
  %3373 = vmatprep.subr.bf16.mxu0 %v3091
  %3374 = vmatpush1.bf16.msra.mxu0 %v3090
  %3375 = vmatprep.subr.bf16.mxu0 %v3099
  %3376 = vmatpush1.bf16.msra.mxu0 %v3098
  %3377 = vmatprep.subr.bf16.mxu0 %v3107
  %3378 = vmatpush1.bf16.msra.mxu0 %v3106
  %3379 = vmatprep.subr.bf16.mxu0 %v3115
  %3380 = vmatpush1.bf16.msra.mxu0 %v3114
  %3381 = vmatprep.subr.bf16.mxu0 %v3123
  %3382 = vmatpush1.bf16.msra.mxu0 %v3122
  %3383 = vmatprep.subr.bf16.mxu0 %v3131
  %3384 = vmatpush1.bf16.msra.mxu0 %v3130
  %3385 = vmatprep.subr.bf16.mxu0 %v3139
  %3386 = vmatpush1.bf16.msra.mxu0 %v3138
  %3387 = vmatprep.subr.bf16.mxu0 %v3147
  %3388 = vmatpush1.bf16.msra.mxu0 %v3146
  %3389 = vmatprep.subr.bf16.mxu0 %v3155
  %3390 = vmatpush1.bf16.msra.mxu0 %v3154
  %3391 = vmatprep.subr.bf16.mxu0 %v3163
  %3392 = vmatpush1.bf16.msra.mxu0 %v3162
  %3393 = vmatprep.subr.bf16.mxu0 %v3171
  %3394 = vmatpush1.bf16.msra.mxu0 %v3170
  %3395 = vmatprep.subr.bf16.mxu0 %v3179
  %3396 = vmatpush1.bf16.msra.mxu0 %v3178
  %3397 = vmatprep.subr.bf16.mxu0 %v3187
  %3398 = vmatpush1.bf16.msra.mxu0 %v3186
  %3399 = vmatprep.subr.bf16.mxu0 %v3195
  %3400 = vmatpush1.bf16.msra.mxu0 %v3194
  %3401 = vmatprep.mubr.bf16.mxu0 0
  %3402 = vmatmul.mubr.bf16.gmra.mrb[0].mxu0 0
  %v3403 = vpop.f32.mrb[0].mxu0
  %v3404 = vadd.f32 %v2600, %v3403
  %v3405 = vpop.f32.mrb[0].mxu0
  %v3406 = vadd.f32 %v2602, %v3405
  %v3407 = vpop.f32.mrb[0].mxu0
  %v3408 = vpop.f32.mrb[0].mxu0
  %3409 = vdwg.mxu0
  %3410 = vmatprep.subr.bf16.mxu0 %v3077
  %3411 = vmatpush1.bf16.msra.mxu0 %v3076
  %3412 = vmatprep.subr.bf16.mxu0 %v3085
  %3413 = vmatpush1.bf16.msra.mxu0 %v3084
  %3414 = vmatprep.subr.bf16.mxu0 %v3093
  %3415 = vmatpush1.bf16.msra.mxu0 %v3092
  %3416 = vmatprep.subr.bf16.mxu0 %v3101
  %3417 = vmatpush1.bf16.msra.mxu0 %v3100
  %3418 = vmatprep.subr.bf16.mxu0 %v3109
  %3419 = vmatpush1.bf16.msra.mxu0 %v3108
  %3420 = vmatprep.subr.bf16.mxu0 %v3117
  %3421 = vmatpush1.bf16.msra.mxu0 %v3116
  %3422 = vmatprep.subr.bf16.mxu0 %v3125
  %3423 = vmatpush1.bf16.msra.mxu0 %v3124
  %3424 = vmatprep.subr.bf16.mxu0 %v3133
  %3425 = vmatpush1.bf16.msra.mxu0 %v3132
  %3426 = vmatprep.subr.bf16.mxu0 %v3141
  %3427 = vmatpush1.bf16.msra.mxu0 %v3140
  %3428 = vmatprep.subr.bf16.mxu0 %v3149
  %3429 = vmatpush1.bf16.msra.mxu0 %v3148
  %3430 = vmatprep.subr.bf16.mxu0 %v3157
  %3431 = vmatpush1.bf16.msra.mxu0 %v3156
  %3432 = vmatprep.subr.bf16.mxu0 %v3165
  %3433 = vmatpush1.bf16.msra.mxu0 %v3164
  %3434 = vmatprep.subr.bf16.mxu0 %v3173
  %3435 = vmatpush1.bf16.msra.mxu0 %v3172
  %3436 = vmatprep.subr.bf16.mxu0 %v3181
  %3437 = vmatpush1.bf16.msra.mxu0 %v3180
  %3438 = vmatprep.subr.bf16.mxu0 %v3189
  %3439 = vmatpush1.bf16.msra.mxu0 %v3188
  %3440 = vmatprep.subr.bf16.mxu0 %v3197
  %3441 = vmatpush1.bf16.msra.mxu0 %v3196
  %3442 = vmatprep.mubr.bf16.mxu0 0
  %3443 = vmatmul.mubr.bf16.gmra.mrb[0].mxu0 0
  %v3444 = vpop.f32.mrb[0].mxu0
  %v3445 = vadd.f32 %v2641, %v3444
  %v3446 = vpop.f32.mrb[0].mxu0
  %v3447 = vadd.f32 %v2643, %v3446
  %v3448 = vpop.f32.mrb[0].mxu0
  %v3449 = vpop.f32.mrb[0].mxu0
  %3450 = vdwg.mxu0
  %3451 = vmatprep.subr.bf16.mxu0 %v3079
  %3452 = vmatpush1.bf16.msra.mxu0 %v3078
  %3453 = vmatprep.subr.bf16.mxu0 %v3087
  %3454 = vmatpush1.bf16.msra.mxu0 %v3086
  %3455 = vmatprep.subr.bf16.mxu0 %v3095
  %3456 = vmatpush1.bf16.msra.mxu0 %v3094
  %3457 = vmatprep.subr.bf16.mxu0 %v3103
  %3458 = vmatpush1.bf16.msra.mxu0 %v3102
  %3459 = vmatprep.subr.bf16.mxu0 %v3111
  %3460 = vmatpush1.bf16.msra.mxu0 %v3110
  %3461 = vmatprep.subr.bf16.mxu0 %v3119
  %3462 = vmatpush1.bf16.msra.mxu0 %v3118
  %3463 = vmatprep.subr.bf16.mxu0 %v3127
  %3464 = vmatpush1.bf16.msra.mxu0 %v3126
  %3465 = vmatprep.subr.bf16.mxu0 %v3135
  %3466 = vmatpush1.bf16.msra.mxu0 %v3134
  %3467 = vmatprep.subr.bf16.mxu0 %v3143
  %3468 = vmatpush1.bf16.msra.mxu0 %v3142
  %3469 = vmatprep.subr.bf16.mxu0 %v3151
  %3470 = vmatpush1.bf16.msra.mxu0 %v3150
  %3471 = vmatprep.subr.bf16.mxu0 %v3159
  %3472 = vmatpush1.bf16.msra.mxu0 %v3158
  %3473 = vmatprep.subr.bf16.mxu0 %v3167
  %3474 = vmatpush1.bf16.msra.mxu0 %v3166
  %3475 = vmatprep.subr.bf16.mxu0 %v3175
  %3476 = vmatpush1.bf16.msra.mxu0 %v3174
  %3477 = vmatprep.subr.bf16.mxu0 %v3183
  %3478 = vmatpush1.bf16.msra.mxu0 %v3182
  %3479 = vmatprep.subr.bf16.mxu0 %v3191
  %3480 = vmatpush1.bf16.msra.mxu0 %v3190
  %3481 = vmatprep.subr.bf16.mxu0 %v3199
  %3482 = vmatpush1.bf16.msra.mxu0 %v3198
  %3483 = vmatprep.mubr.bf16.mxu0 0
  %3484 = vmatmul.mubr.bf16.gmra.mrb[0].mxu0 0
  %v3485 = vpop.f32.mrb[0].mxu0
  %v3486 = vadd.f32 %v2682, %v3485
  %v3487 = vpop.f32.mrb[0].mxu0
  %v3488 = vadd.f32 %v2684, %v3487
  %v3489 = vpop.f32.mrb[0].mxu0
  %v3490 = vpop.f32.mrb[0].mxu0
  %3491 = vdwg.mxu0
  %v3492 = vadd.f32 %v3363, %v439
  %v3493 = vadd.f32 %v3365, %v443
  %v3494 = vadd.f32 %v3404, %v447
  %v3495 = vadd.f32 %v3406, %v451
  %v3496 = vadd.f32 %v3445, %v455
  %v3497 = vadd.f32 %v3447, %v459
  %v3498 = vadd.f32 %v3486, %v463
  %v3499 = vadd.f32 %v3488, %v467
  %v3500 = vxor.u32 %v3492, 2147483648
  %v3501 = vxor.u32 %v3493, 2147483648
  %v3502 = vmul.f32 %v3500, 1.442695
  %v3503 = vpow.pop %v3502
  %v3504 = vmul.f32 %v3501, 1.442695
  %v3505 = vpow.pop %v3504
  %v3506 = vadd.f32 %v3503, 1.0
  %v3507 = vadd.f32 %v3505, 1.0
  %v3508 = vrcp.pop %v3506
  %v3509 = vmul.f32 1.0, %v3508
  %v3510 = vrcp.pop %v3507
  %v3511 = vmul.f32 1.0, %v3510
  %v3512 = vxor.u32 %v3494, 2147483648
  %v3513 = vxor.u32 %v3495, 2147483648
  %v3514 = vmul.f32 %v3512, 1.442695
  %v3515 = vpow.pop %v3514
  %v3516 = vmul.f32 %v3513, 1.442695
  %v3517 = vpow.pop %v3516
  %v3518 = vadd.f32 %v3515, 1.0
  %v3519 = vadd.f32 %v3517, 1.0
  %v3520 = vrcp.pop %v3518
  %v3521 = vmul.f32 1.0, %v3520
  %v3522 = vrcp.pop %v3519
  %v3523 = vmul.f32 1.0, %v3522
  %v3524 = vtanh.pop %v3496
  %v3525 = vtanh.pop %v3497
  %v3526 = vxor.u32 %v3498, 2147483648
  %v3527 = vxor.u32 %v3499, 2147483648
  %v3528 = vmul.f32 %v3526, 1.442695
  %v3529 = vpow.pop %v3528
  %v3530 = vmul.f32 %v3527, 1.442695
  %v3531 = vpow.pop %v3530
  %v3532 = vadd.f32 %v3529, 1.0
  %v3533 = vadd.f32 %v3531, 1.0
  %v3534 = vrcp.pop %v3532
  %v3535 = vmul.f32 1.0, %v3534
  %v3536 = vrcp.pop %v3533
  %v3537 = vmul.f32 1.0, %v3536
  %v3538 = vmul.f32 %v3521, 0.0
  %v3539 = vmul.f32 %v3523, 0.0
  %v3540 = vmul.f32 %v3509, %v3524
  %v3541 = vmul.f32 %v3511, %v3525
  %v3542 = vadd.f32 %v3538, %v3540
  %v3543 = vadd.f32 %v3539, %v3541
  %v3544 = vtanh.pop %v3542
  %v3545 = vtanh.pop %v3543
  %v3546 = vmul.f32 %v3535, %v3544
  %v3547 = vmul.f32 %v3537, %v3545
  %v3548 = vpack.c.bf16 %v3546, %v3546
  %v3549 = vpack.c.bf16 %v3547, %v3547
  %s3550 = smul.u32 1, 8
  %s3551 = smul.addr %s3550, 8
  %s3552 = scalar_lea.vmem [#allocation2], %s3551
  %v3553 = vld [vmem:[%s3552] sm:$0xff]
  %v3554 = vld [vmem:[%s3552 + $0x8] sm:$0xff]
  %v3555 = vld [vmem:[%s3552 + $0x10] sm:$0xff]
  %v3556 = vld [vmem:[%s3552 + $0x18] sm:$0xff]
  %v3557 = vld [vmem:[%s3552 + $0x20] sm:$0xff]
  %v3558 = vld [vmem:[%s3552 + $0x28] sm:$0xff]
  %v3559 = vld [vmem:[%s3552 + $0x30] sm:$0xff]
  %v3560 = vld [vmem:[%s3552 + $0x38] sm:$0xff]
  %3561 = vmatprep.subr.bf16.mxu0 %v1407
  %3562 = vmatpush1.bf16.msra.mxu0 %v1406
  %3563 = vmatprep.subr.bf16.mxu0 %v1415
  %3564 = vmatpush1.bf16.msra.mxu0 %v1414
  %3565 = vmatprep.subr.bf16.mxu0 %v1423
  %3566 = vmatpush1.bf16.msra.mxu0 %v1422
  %3567 = vmatprep.subr.bf16.mxu0 %v1431
  %3568 = vmatpush1.bf16.msra.mxu0 %v1430
  %3569 = vmatprep.subr.bf16.mxu0 %v1439
  %3570 = vmatpush1.bf16.msra.mxu0 %v1438
  %3571 = vmatprep.subr.bf16.mxu0 %v1447
  %3572 = vmatpush1.bf16.msra.mxu0 %v1446
  %3573 = vmatprep.subr.bf16.mxu0 %v1455
  %3574 = vmatpush1.bf16.msra.mxu0 %v1454
  %3575 = vmatprep.subr.bf16.mxu0 %v1463
  %3576 = vmatpush1.bf16.msra.mxu0 %v1462
  %3577 = vmatprep.subr.bf16.mxu0 %v1471
  %3578 = vmatpush1.bf16.msra.mxu0 %v1470
  %3579 = vmatprep.subr.bf16.mxu0 %v1479
  %3580 = vmatpush1.bf16.msra.mxu0 %v1478
  %3581 = vmatprep.subr.bf16.mxu0 %v1487
  %3582 = vmatpush1.bf16.msra.mxu0 %v1486
  %3583 = vmatprep.subr.bf16.mxu0 %v1495
  %3584 = vmatpush1.bf16.msra.mxu0 %v1494
  %3585 = vmatprep.subr.bf16.mxu0 %v1503
  %3586 = vmatpush1.bf16.msra.mxu0 %v1502
  %3587 = vmatprep.subr.bf16.mxu0 %v1511
  %3588 = vmatpush1.bf16.msra.mxu0 %v1510
  %3589 = vmatprep.subr.bf16.mxu0 %v1519
  %3590 = vmatpush1.bf16.msra.mxu0 %v1518
  %3591 = vmatprep.subr.bf16.mxu0 %v1527
  %3592 = vmatpush1.bf16.msra.mxu0 %v1526
  %3593 = vmatprep.mubr.bf16.mxu0 %v1883
  %3594 = vmatmul.mubr.bf16.gmra.mrb[0].mxu0 %v1882
  %v3595 = vpop.f32.mrb[0].mxu0
  %v3596 = vadd.f32 0.0, %v3595
  %v3597 = vpop.f32.mrb[0].mxu0
  %v3598 = vadd.f32 0.0, %v3597
  %v3599 = vpop.f32.mrb[0].mxu0
  %v3600 = vpop.f32.mrb[0].mxu0
  %3601 = vdwg.mxu0
  %3602 = vmatprep.subr.bf16.mxu0 %v1409
  %3603 = vmatpush1.bf16.msra.mxu0 %v1408
  %3604 = vmatprep.subr.bf16.mxu0 %v1417
  %3605 = vmatpush1.bf16.msra.mxu0 %v1416
  %3606 = vmatprep.subr.bf16.mxu0 %v1425
  %3607 = vmatpush1.bf16.msra.mxu0 %v1424
  %3608 = vmatprep.subr.bf16.mxu0 %v1433
  %3609 = vmatpush1.bf16.msra.mxu0 %v1432
  %3610 = vmatprep.subr.bf16.mxu0 %v1441
  %3611 = vmatpush1.bf16.msra.mxu0 %v1440
  %3612 = vmatprep.subr.bf16.mxu0 %v1449
  %3613 = vmatpush1.bf16.msra.mxu0 %v1448
  %3614 = vmatprep.subr.bf16.mxu0 %v1457
  %3615 = vmatpush1.bf16.msra.mxu0 %v1456
  %3616 = vmatprep.subr.bf16.mxu0 %v1465
  %3617 = vmatpush1.bf16.msra.mxu0 %v1464
  %3618 = vmatprep.subr.bf16.mxu0 %v1473
  %3619 = vmatpush1.bf16.msra.mxu0 %v1472
  %3620 = vmatprep.subr.bf16.mxu0 %v1481
  %3621 = vmatpush1.bf16.msra.mxu0 %v1480
  %3622 = vmatprep.subr.bf16.mxu0 %v1489
  %3623 = vmatpush1.bf16.msra.mxu0 %v1488
  %3624 = vmatprep.subr.bf16.mxu0 %v1497
  %3625 = vmatpush1.bf16.msra.mxu0 %v1496
  %3626 = vmatprep.subr.bf16.mxu0 %v1505
  %3627 = vmatpush1.bf16.msra.mxu0 %v1504
  %3628 = vmatprep.subr.bf16.mxu0 %v1513
  %3629 = vmatpush1.bf16.msra.mxu0 %v1512
  %3630 = vmatprep.subr.bf16.mxu0 %v1521
  %3631 = vmatpush1.bf16.msra.mxu0 %v1520
  %3632 = vmatprep.subr.bf16.mxu0 %v1529
  %3633 = vmatpush1.bf16.msra.mxu0 %v1528
  %3634 = vmatprep.mubr.bf16.mxu0 %v1883
  %3635 = vmatmul.mubr.bf16.gmra.mrb[0].mxu0 %v1882
  %v3636 = vpop.f32.mrb[0].mxu0
  %v3637 = vadd.f32 0.0, %v3636
  %v3638 = vpop.f32.mrb[0].mxu0
  %v3639 = vadd.f32 0.0, %v3638
  %v3640 = vpop.f32.mrb[0].mxu0
  %v3641 = vpop.f32.mrb[0].mxu0
  %3642 = vdwg.mxu0
  %3643 = vmatprep.subr.bf16.mxu0 %v1411
  %3644 = vmatpush1.bf16.msra.mxu0 %v1410
  %3645 = vmatprep.subr.bf16.mxu0 %v1419
  %3646 = vmatpush1.bf16.msra.mxu0 %v1418
  %3647 = vmatprep.subr.bf16.mxu0 %v1427
  %3648 = vmatpush1.bf16.msra.mxu0 %v1426
  %3649 = vmatprep.subr.bf16.mxu0 %v1435
  %3650 = vmatpush1.bf16.msra.mxu0 %v1434
  %3651 = vmatprep.subr.bf16.mxu0 %v1443
  %3652 = vmatpush1.bf16.msra.mxu0 %v1442
  %3653 = vmatprep.subr.bf16.mxu0 %v1451
  %3654 = vmatpush1.bf16.msra.mxu0 %v1450
  %3655 = vmatprep.subr.bf16.mxu0 %v1459
  %3656 = vmatpush1.bf16.msra.mxu0 %v1458
  %3657 = vmatprep.subr.bf16.mxu0 %v1467
  %3658 = vmatpush1.bf16.msra.mxu0 %v1466
  %3659 = vmatprep.subr.bf16.mxu0 %v1475
  %3660 = vmatpush1.bf16.msra.mxu0 %v1474
  %3661 = vmatprep.subr.bf16.mxu0 %v1483
  %3662 = vmatpush1.bf16.msra.mxu0 %v1482
  %3663 = vmatprep.subr.bf16.mxu0 %v1491
  %3664 = vmatpush1.bf16.msra.mxu0 %v1490
  %3665 = vmatprep.subr.bf16.mxu0 %v1499
  %3666 = vmatpush1.bf16.msra.mxu0 %v1498
  %3667 = vmatprep.subr.bf16.mxu0 %v1507
  %3668 = vmatpush1.bf16.msra.mxu0 %v1506
  %3669 = vmatprep.subr.bf16.mxu0 %v1515
  %3670 = vmatpush1.bf16.msra.mxu0 %v1514
  %3671 = vmatprep.subr.bf16.mxu0 %v1523
  %3672 = vmatpush1.bf16.msra.mxu0 %v1522
  %3673 = vmatprep.subr.bf16.mxu0 %v1531
  %3674 = vmatpush1.bf16.msra.mxu0 %v1530
  %3675 = vmatprep.mubr.bf16.mxu0 %v1883
  %3676 = vmatmul.mubr.bf16.gmra.mrb[0].mxu0 %v1882
  %v3677 = vpop.f32.mrb[0].mxu0
  %v3678 = vadd.f32 0.0, %v3677
  %v3679 = vpop.f32.mrb[0].mxu0
  %v3680 = vadd.f32 0.0, %v3679
  %v3681 = vpop.f32.mrb[0].mxu0
  %v3682 = vpop.f32.mrb[0].mxu0
  %3683 = vdwg.mxu0
  %3684 = vmatprep.subr.bf16.mxu0 %v1413
  %3685 = vmatpush1.bf16.msra.mxu0 %v1412
  %3686 = vmatprep.subr.bf16.mxu0 %v1421
  %3687 = vmatpush1.bf16.msra.mxu0 %v1420
  %3688 = vmatprep.subr.bf16.mxu0 %v1429
  %3689 = vmatpush1.bf16.msra.mxu0 %v1428
  %3690 = vmatprep.subr.bf16.mxu0 %v1437
  %3691 = vmatpush1.bf16.msra.mxu0 %v1436
  %3692 = vmatprep.subr.bf16.mxu0 %v1445
  %3693 = vmatpush1.bf16.msra.mxu0 %v1444
  %3694 = vmatprep.subr.bf16.mxu0 %v1453
  %3695 = vmatpush1.bf16.msra.mxu0 %v1452
  %3696 = vmatprep.subr.bf16.mxu0 %v1461
  %3697 = vmatpush1.bf16.msra.mxu0 %v1460
  %3698 = vmatprep.subr.bf16.mxu0 %v1469
  %3699 = vmatpush1.bf16.msra.mxu0 %v1468
  %3700 = vmatprep.subr.bf16.mxu0 %v1477
  %3701 = vmatpush1.bf16.msra.mxu0 %v1476
  %3702 = vmatprep.subr.bf16.mxu0 %v1485
  %3703 = vmatpush1.bf16.msra.mxu0 %v1484
  %3704 = vmatprep.subr.bf16.mxu0 %v1493
  %3705 = vmatpush1.bf16.msra.mxu0 %v1492
  %3706 = vmatprep.subr.bf16.mxu0 %v1501
  %3707 = vmatpush1.bf16.msra.mxu0 %v1500
  %3708 = vmatprep.subr.bf16.mxu0 %v1509
  %3709 = vmatpush1.bf16.msra.mxu0 %v1508
  %3710 = vmatprep.subr.bf16.mxu0 %v1517
  %3711 = vmatpush1.bf16.msra.mxu0 %v1516
  %3712 = vmatprep.subr.bf16.mxu0 %v1525
  %3713 = vmatpush1.bf16.msra.mxu0 %v1524
  %3714 = vmatprep.subr.bf16.mxu0 %v1533
  %3715 = vmatpush1.bf16.msra.mxu0 %v1532
  %3716 = vmatprep.mubr.bf16.mxu0 %v1883
  %3717 = vmatmul.mubr.bf16.gmra.mrb[0].mxu0 %v1882
  %v3718 = vpop.f32.mrb[0].mxu0
  %v3719 = vadd.f32 0.0, %v3718
  %v3720 = vpop.f32.mrb[0].mxu0
  %v3721 = vadd.f32 0.0, %v3720
  %v3722 = vpop.f32.mrb[0].mxu0
  %v3723 = vpop.f32.mrb[0].mxu0
  %3724 = vdwg.mxu0
  %v3725 = vadd.f32 %v3553, %v3596
  %v3726 = vadd.f32 %v3554, %v3598
  %v3727 = vadd.f32 %v3555, %v3637
  %v3728 = vadd.f32 %v3556, %v3639
  %v3729 = vadd.f32 %v3557, %v3678
  %v3730 = vadd.f32 %v3558, %v3680
  %v3731 = vadd.f32 %v3559, %v3719
  %v3732 = vadd.f32 %v3560, %v3721
  %v3733 = vxor.u32 %v3725, 2147483648
  %v3734 = vxor.u32 %v3726, 2147483648
  %v3735 = vmul.f32 %v3733, 1.442695
  %v3736 = vpow.pop %v3735
  %v3737 = vmul.f32 %v3734, 1.442695
  %v3738 = vpow.pop %v3737
  %v3739 = vadd.f32 %v3736, 1.0
  %v3740 = vadd.f32 %v3738, 1.0
  %v3741 = vrcp.pop %v3739
  %v3742 = vmul.f32 1.0, %v3741
  %v3743 = vrcp.pop %v3740
  %v3744 = vmul.f32 1.0, %v3743
  %v3745 = vxor.u32 %v3727, 2147483648
  %v3746 = vxor.u32 %v3728, 2147483648
  %v3747 = vmul.f32 %v3745, 1.442695
  %v3748 = vpow.pop %v3747
  %v3749 = vmul.f32 %v3746, 1.442695
  %v3750 = vpow.pop %v3749
  %v3751 = vadd.f32 %v3748, 1.0
  %v3752 = vadd.f32 %v3750, 1.0
  %v3753 = vrcp.pop %v3751
  %v3754 = vmul.f32 1.0, %v3753
  %v3755 = vrcp.pop %v3752
  %v3756 = vmul.f32 1.0, %v3755
  %v3757 = vtanh.pop %v3729
  %v3758 = vtanh.pop %v3730
  %v3759 = vxor.u32 %v3731, 2147483648
  %v3760 = vxor.u32 %v3732, 2147483648
  %v3761 = vmul.f32 %v3759, 1.442695
  %v3762 = vpow.pop %v3761
  %v3763 = vmul.f32 %v3760, 1.442695
  %v3764 = vpow.pop %v3763
  %v3765 = vadd.f32 %v3762, 1.0
  %v3766 = vadd.f32 %v3764, 1.0
  %v3767 = vrcp.pop %v3765
  %v3768 = vmul.f32 1.0, %v3767
  %v3769 = vrcp.pop %v3766
  %v3770 = vmul.f32 1.0, %v3769
  %v3771 = vmul.f32 %v3754, %v1876
  %v3772 = vmul.f32 %v3756, %v1877
  %v3773 = vmul.f32 %v3742, %v3757
  %v3774 = vmul.f32 %v3744, %v3758
  %v3775 = vadd.f32 %v3771, %v3773
  %v3776 = vadd.f32 %v3772, %v3774
  %v3777 = vtanh.pop %v3775
  %v3778 = vtanh.pop %v3776
  %v3779 = vmul.f32 %v3768, %v3777
  %v3780 = vmul.f32 %v3770, %v3778
  %v3781 = vpack.c.bf16 %v3779, %v3779
  %v3782 = vpack.c.bf16 %v3780, %v3780
  %3783 = vmatprep.subr.bf16.mxu0 %v2269
  %3784 = vmatpush1.bf16.msra.mxu0 %v2268
  %3785 = vmatprep.subr.bf16.mxu0 %v2277
  %3786 = vmatpush1.bf16.msra.mxu0 %v2276
  %3787 = vmatprep.subr.bf16.mxu0 %v2285
  %3788 = vmatpush1.bf16.msra.mxu0 %v2284
  %3789 = vmatprep.subr.bf16.mxu0 %v2293
  %3790 = vmatpush1.bf16.msra.mxu0 %v2292
  %3791 = vmatprep.subr.bf16.mxu0 %v2301
  %3792 = vmatpush1.bf16.msra.mxu0 %v2300
  %3793 = vmatprep.subr.bf16.mxu0 %v2309
  %3794 = vmatpush1.bf16.msra.mxu0 %v2308
  %3795 = vmatprep.subr.bf16.mxu0 %v2317
  %3796 = vmatpush1.bf16.msra.mxu0 %v2316
  %3797 = vmatprep.subr.bf16.mxu0 %v2325
  %3798 = vmatpush1.bf16.msra.mxu0 %v2324
  %3799 = vmatprep.subr.bf16.mxu0 %v2333
  %3800 = vmatpush1.bf16.msra.mxu0 %v2332
  %3801 = vmatprep.subr.bf16.mxu0 %v2341
  %3802 = vmatpush1.bf16.msra.mxu0 %v2340
  %3803 = vmatprep.subr.bf16.mxu0 %v2349
  %3804 = vmatpush1.bf16.msra.mxu0 %v2348
  %3805 = vmatprep.subr.bf16.mxu0 %v2357
  %3806 = vmatpush1.bf16.msra.mxu0 %v2356
  %3807 = vmatprep.subr.bf16.mxu0 %v2365
  %3808 = vmatpush1.bf16.msra.mxu0 %v2364
  %3809 = vmatprep.subr.bf16.mxu0 %v2373
  %3810 = vmatpush1.bf16.msra.mxu0 %v2372
  %3811 = vmatprep.subr.bf16.mxu0 %v2381
  %3812 = vmatpush1.bf16.msra.mxu0 %v2380
  %3813 = vmatprep.subr.bf16.mxu0 %v2389
  %3814 = vmatpush1.bf16.msra.mxu0 %v2388
  %3815 = vmatprep.mubr.bf16.mxu0 %v3782
  %3816 = vmatmul.mubr.bf16.gmra.mrb[0].mxu0 %v3781
  %v3817 = vpop.f32.mrb[0].mxu0
  %v3818 = vadd.f32 0.0, %v3817
  %v3819 = vpop.f32.mrb[0].mxu0
  %v3820 = vadd.f32 0.0, %v3819
  %v3821 = vpop.f32.mrb[0].mxu0
  %v3822 = vpop.f32.mrb[0].mxu0
  %3823 = vdwg.mxu0
  %3824 = vmatprep.subr.bf16.mxu0 %v2271
  %3825 = vmatpush1.bf16.msra.mxu0 %v2270
  %3826 = vmatprep.subr.bf16.mxu0 %v2279
  %3827 = vmatpush1.bf16.msra.mxu0 %v2278
  %3828 = vmatprep.subr.bf16.mxu0 %v2287
  %3829 = vmatpush1.bf16.msra.mxu0 %v2286
  %3830 = vmatprep.subr.bf16.mxu0 %v2295
  %3831 = vmatpush1.bf16.msra.mxu0 %v2294
  %3832 = vmatprep.subr.bf16.mxu0 %v2303
  %3833 = vmatpush1.bf16.msra.mxu0 %v2302
  %3834 = vmatprep.subr.bf16.mxu0 %v2311
  %3835 = vmatpush1.bf16.msra.mxu0 %v2310
  %3836 = vmatprep.subr.bf16.mxu0 %v2319
  %3837 = vmatpush1.bf16.msra.mxu0 %v2318
  %3838 = vmatprep.subr.bf16.mxu0 %v2327
  %3839 = vmatpush1.bf16.msra.mxu0 %v2326
  %3840 = vmatprep.subr.bf16.mxu0 %v2335
  %3841 = vmatpush1.bf16.msra.mxu0 %v2334
  %3842 = vmatprep.subr.bf16.mxu0 %v2343
  %3843 = vmatpush1.bf16.msra.mxu0 %v2342
  %3844 = vmatprep.subr.bf16.mxu0 %v2351
  %3845 = vmatpush1.bf16.msra.mxu0 %v2350
  %3846 = vmatprep.subr.bf16.mxu0 %v2359
  %3847 = vmatpush1.bf16.msra.mxu0 %v2358
  %3848 = vmatprep.subr.bf16.mxu0 %v2367
  %3849 = vmatpush1.bf16.msra.mxu0 %v2366
  %3850 = vmatprep.subr.bf16.mxu0 %v2375
  %3851 = vmatpush1.bf16.msra.mxu0 %v2374
  %3852 = vmatprep.subr.bf16.mxu0 %v2383
  %3853 = vmatpush1.bf16.msra.mxu0 %v2382
  %3854 = vmatprep.subr.bf16.mxu0 %v2391
  %3855 = vmatpush1.bf16.msra.mxu0 %v2390
  %3856 = vmatprep.mubr.bf16.mxu0 %v3782
  %3857 = vmatmul.mubr.bf16.gmra.mrb[0].mxu0 %v3781
  %v3858 = vpop.f32.mrb[0].mxu0
  %v3859 = vadd.f32 0.0, %v3858
  %v3860 = vpop.f32.mrb[0].mxu0
  %v3861 = vadd.f32 0.0, %v3860
  %v3862 = vpop.f32.mrb[0].mxu0
  %v3863 = vpop.f32.mrb[0].mxu0
  %3864 = vdwg.mxu0
  %3865 = vmatprep.subr.bf16.mxu0 %v2273
  %3866 = vmatpush1.bf16.msra.mxu0 %v2272
  %3867 = vmatprep.subr.bf16.mxu0 %v2281
  %3868 = vmatpush1.bf16.msra.mxu0 %v2280
  %3869 = vmatprep.subr.bf16.mxu0 %v2289
  %3870 = vmatpush1.bf16.msra.mxu0 %v2288
  %3871 = vmatprep.subr.bf16.mxu0 %v2297
  %3872 = vmatpush1.bf16.msra.mxu0 %v2296
  %3873 = vmatprep.subr.bf16.mxu0 %v2305
  %3874 = vmatpush1.bf16.msra.mxu0 %v2304
  %3875 = vmatprep.subr.bf16.mxu0 %v2313
  %3876 = vmatpush1.bf16.msra.mxu0 %v2312
  %3877 = vmatprep.subr.bf16.mxu0 %v2321
  %3878 = vmatpush1.bf16.msra.mxu0 %v2320
  %3879 = vmatprep.subr.bf16.mxu0 %v2329
  %3880 = vmatpush1.bf16.msra.mxu0 %v2328
  %3881 = vmatprep.subr.bf16.mxu0 %v2337
  %3882 = vmatpush1.bf16.msra.mxu0 %v2336
  %3883 = vmatprep.subr.bf16.mxu0 %v2345
  %3884 = vmatpush1.bf16.msra.mxu0 %v2344
  %3885 = vmatprep.subr.bf16.mxu0 %v2353
  %3886 = vmatpush1.bf16.msra.mxu0 %v2352
  %3887 = vmatprep.subr.bf16.mxu0 %v2361
  %3888 = vmatpush1.bf16.msra.mxu0 %v2360
  %3889 = vmatprep.subr.bf16.mxu0 %v2369
  %3890 = vmatpush1.bf16.msra.mxu0 %v2368
  %3891 = vmatprep.subr.bf16.mxu0 %v2377
  %3892 = vmatpush1.bf16.msra.mxu0 %v2376
  %3893 = vmatprep.subr.bf16.mxu0 %v2385
  %3894 = vmatpush1.bf16.msra.mxu0 %v2384
  %3895 = vmatprep.subr.bf16.mxu0 %v2393
  %3896 = vmatpush1.bf16.msra.mxu0 %v2392
  %3897 = vmatprep.mubr.bf16.mxu0 %v3782
  %3898 = vmatmul.mubr.bf16.gmra.mrb[0].mxu0 %v3781
  %v3899 = vpop.f32.mrb[0].mxu0
  %v3900 = vadd.f32 0.0, %v3899
  %v3901 = vpop.f32.mrb[0].mxu0
  %v3902 = vadd.f32 0.0, %v3901
  %v3903 = vpop.f32.mrb[0].mxu0
  %v3904 = vpop.f32.mrb[0].mxu0
  %3905 = vdwg.mxu0
  %3906 = vmatprep.subr.bf16.mxu0 %v2275
  %3907 = vmatpush1.bf16.msra.mxu0 %v2274
  %3908 = vmatprep.subr.bf16.mxu0 %v2283
  %3909 = vmatpush1.bf16.msra.mxu0 %v2282
  %3910 = vmatprep.subr.bf16.mxu0 %v2291
  %3911 = vmatpush1.bf16.msra.mxu0 %v2290
  %3912 = vmatprep.subr.bf16.mxu0 %v2299
  %3913 = vmatpush1.bf16.msra.mxu0 %v2298
  %3914 = vmatprep.subr.bf16.mxu0 %v2307
  %3915 = vmatpush1.bf16.msra.mxu0 %v2306
  %3916 = vmatprep.subr.bf16.mxu0 %v2315
  %3917 = vmatpush1.bf16.msra.mxu0 %v2314
  %3918 = vmatprep.subr.bf16.mxu0 %v2323
  %3919 = vmatpush1.bf16.msra.mxu0 %v2322
  %3920 = vmatprep.subr.bf16.mxu0 %v2331
  %3921 = vmatpush1.bf16.msra.mxu0 %v2330
  %3922 = vmatprep.subr.bf16.mxu0 %v2339
  %3923 = vmatpush1.bf16.msra.mxu0 %v2338
  %3924 = vmatprep.subr.bf16.mxu0 %v2347
  %3925 = vmatpush1.bf16.msra.mxu0 %v2346
  %3926 = vmatprep.subr.bf16.mxu0 %v2355
  %3927 = vmatpush1.bf16.msra.mxu0 %v2354
  %3928 = vmatprep.subr.bf16.mxu0 %v2363
  %3929 = vmatpush1.bf16.msra.mxu0 %v2362
  %3930 = vmatprep.subr.bf16.mxu0 %v2371
  %3931 = vmatpush1.bf16.msra.mxu0 %v2370
  %3932 = vmatprep.subr.bf16.mxu0 %v2379
  %3933 = vmatpush1.bf16.msra.mxu0 %v2378
  %3934 = vmatprep.subr.bf16.mxu0 %v2387
  %3935 = vmatpush1.bf16.msra.mxu0 %v2386
  %3936 = vmatprep.subr.bf16.mxu0 %v2395
  %3937 = vmatpush1.bf16.msra.mxu0 %v2394
  %3938 = vmatprep.mubr.bf16.mxu0 %v3782
  %3939 = vmatmul.mubr.bf16.gmra.mrb[0].mxu0 %v3781
  %v3940 = vpop.f32.mrb[0].mxu0
  %v3941 = vadd.f32 0.0, %v3940
  %v3942 = vpop.f32.mrb[0].mxu0
  %v3943 = vadd.f32 0.0, %v3942
  %v3944 = vpop.f32.mrb[0].mxu0
  %v3945 = vpop.f32.mrb[0].mxu0
  %3946 = vdwg.mxu0
  %3947 = vmatprep.subr.bf16.mxu0 %v3073
  %3948 = vmatpush1.bf16.msra.mxu0 %v3072
  %3949 = vmatprep.subr.bf16.mxu0 %v3081
  %3950 = vmatpush1.bf16.msra.mxu0 %v3080
  %3951 = vmatprep.subr.bf16.mxu0 %v3089
  %3952 = vmatpush1.bf16.msra.mxu0 %v3088
  %3953 = vmatprep.subr.bf16.mxu0 %v3097
  %3954 = vmatpush1.bf16.msra.mxu0 %v3096
  %3955 = vmatprep.subr.bf16.mxu0 %v3105
  %3956 = vmatpush1.bf16.msra.mxu0 %v3104
  %3957 = vmatprep.subr.bf16.mxu0 %v3113
  %3958 = vmatpush1.bf16.msra.mxu0 %v3112
  %3959 = vmatprep.subr.bf16.mxu0 %v3121
  %3960 = vmatpush1.bf16.msra.mxu0 %v3120
  %3961 = vmatprep.subr.bf16.mxu0 %v3129
  %3962 = vmatpush1.bf16.msra.mxu0 %v3128
  %3963 = vmatprep.subr.bf16.mxu0 %v3137
  %3964 = vmatpush1.bf16.msra.mxu0 %v3136
  %3965 = vmatprep.subr.bf16.mxu0 %v3145
  %3966 = vmatpush1.bf16.msra.mxu0 %v3144
  %3967 = vmatprep.subr.bf16.mxu0 %v3153
  %3968 = vmatpush1.bf16.msra.mxu0 %v3152
  %3969 = vmatprep.subr.bf16.mxu0 %v3161
  %3970 = vmatpush1.bf16.msra.mxu0 %v3160
  %3971 = vmatprep.subr.bf16.mxu0 %v3169
  %3972 = vmatpush1.bf16.msra.mxu0 %v3168
  %3973 = vmatprep.subr.bf16.mxu0 %v3177
  %3974 = vmatpush1.bf16.msra.mxu0 %v3176
  %3975 = vmatprep.subr.bf16.mxu0 %v3185
  %3976 = vmatpush1.bf16.msra.mxu0 %v3184
  %3977 = vmatprep.subr.bf16.mxu0 %v3193
  %3978 = vmatpush1.bf16.msra.mxu0 %v3192
  %3979 = vmatprep.mubr.bf16.mxu0 %v3549
  %3980 = vmatmul.mubr.bf16.gmra.mrb[0].mxu0 %v3548
  %v3981 = vpop.f32.mrb[0].mxu0
  %v3982 = vadd.f32 %v3818, %v3981
  %v3983 = vpop.f32.mrb[0].mxu0
  %v3984 = vadd.f32 %v3820, %v3983
  %v3985 = vpop.f32.mrb[0].mxu0
  %v3986 = vpop.f32.mrb[0].mxu0
  %3987 = vdwg.mxu0
  %3988 = vmatprep.subr.bf16.mxu0 %v3075
  %3989 = vmatpush1.bf16.msra.mxu0 %v3074
  %3990 = vmatprep.subr.bf16.mxu0 %v3083
  %3991 = vmatpush1.bf16.msra.mxu0 %v3082
  %3992 = vmatprep.subr.bf16.mxu0 %v3091
  %3993 = vmatpush1.bf16.msra.mxu0 %v3090
  %3994 = vmatprep.subr.bf16.mxu0 %v3099
  %3995 = vmatpush1.bf16.msra.mxu0 %v3098
  %3996 = vmatprep.subr.bf16.mxu0 %v3107
  %3997 = vmatpush1.bf16.msra.mxu0 %v3106
  %3998 = vmatprep.subr.bf16.mxu0 %v3115
  %3999 = vmatpush1.bf16.msra.mxu0 %v3114
  %4000 = vmatprep.subr.bf16.mxu0 %v3123
  %4001 = vmatpush1.bf16.msra.mxu0 %v3122
  %4002 = vmatprep.subr.bf16.mxu0 %v3131
  %4003 = vmatpush1.bf16.msra.mxu0 %v3130
  %4004 = vmatprep.subr.bf16.mxu0 %v3139
  %4005 = vmatpush1.bf16.msra.mxu0 %v3138
  %4006 = vmatprep.subr.bf16.mxu0 %v3147
  %4007 = vmatpush1.bf16.msra.mxu0 %v3146
  %4008 = vmatprep.subr.bf16.mxu0 %v3155
  %4009 = vmatpush1.bf16.msra.mxu0 %v3154
  %4010 = vmatprep.subr.bf16.mxu0 %v3163
  %4011 = vmatpush1.bf16.msra.mxu0 %v3162
  %4012 = vmatprep.subr.bf16.mxu0 %v3171
  %4013 = vmatpush1.bf16.msra.mxu0 %v3170
  %4014 = vmatprep.subr.bf16.mxu0 %v3179
  %4015 = vmatpush1.bf16.msra.mxu0 %v3178
  %4016 = vmatprep.subr.bf16.mxu0 %v3187
  %4017 = vmatpush1.bf16.msra.mxu0 %v3186
  %4018 = vmatprep.subr.bf16.mxu0 %v3195
  %4019 = vmatpush1.bf16.msra.mxu0 %v3194
  %4020 = vmatprep.mubr.bf16.mxu0 %v3549
  %4021 = vmatmul.mubr.bf16.gmra.mrb[0].mxu0 %v3548
  %v4022 = vpop.f32.mrb[0].mxu0
  %v4023 = vadd.f32 %v3859, %v4022
  %v4024 = vpop.f32.mrb[0].mxu0
  %v4025 = vadd.f32 %v3861, %v4024
  %v4026 = vpop.f32.mrb[0].mxu0
  %v4027 = vpop.f32.mrb[0].mxu0
  %4028 = vdwg.mxu0
  %4029 = vmatprep.subr.bf16.mxu0 %v3077
  %4030 = vmatpush1.bf16.msra.mxu0 %v3076
  %4031 = vmatprep.subr.bf16.mxu0 %v3085
  %4032 = vmatpush1.bf16.msra.mxu0 %v3084
  %4033 = vmatprep.subr.bf16.mxu0 %v3093
  %4034 = vmatpush1.bf16.msra.mxu0 %v3092
  %4035 = vmatprep.subr.bf16.mxu0 %v3101
  %4036 = vmatpush1.bf16.msra.mxu0 %v3100
  %4037 = vmatprep.subr.bf16.mxu0 %v3109
  %4038 = vmatpush1.bf16.msra.mxu0 %v3108
  %4039 = vmatprep.subr.bf16.mxu0 %v3117
  %4040 = vmatpush1.bf16.msra.mxu0 %v3116
  %4041 = vmatprep.subr.bf16.mxu0 %v3125
  %4042 = vmatpush1.bf16.msra.mxu0 %v3124
  %4043 = vmatprep.subr.bf16.mxu0 %v3133
  %4044 = vmatpush1.bf16.msra.mxu0 %v3132
  %4045 = vmatprep.subr.bf16.mxu0 %v3141
  %4046 = vmatpush1.bf16.msra.mxu0 %v3140
  %4047 = vmatprep.subr.bf16.mxu0 %v3149
  %4048 = vmatpush1.bf16.msra.mxu0 %v3148
  %4049 = vmatprep.subr.bf16.mxu0 %v3157
  %4050 = vmatpush1.bf16.msra.mxu0 %v3156
  %4051 = vmatprep.subr.bf16.mxu0 %v3165
  %4052 = vmatpush1.bf16.msra.mxu0 %v3164
  %4053 = vmatprep.subr.bf16.mxu0 %v3173
  %4054 = vmatpush1.bf16.msra.mxu0 %v3172
  %4055 = vmatprep.subr.bf16.mxu0 %v3181
  %4056 = vmatpush1.bf16.msra.mxu0 %v3180
  %4057 = vmatprep.subr.bf16.mxu0 %v3189
  %4058 = vmatpush1.bf16.msra.mxu0 %v3188
  %4059 = vmatprep.subr.bf16.mxu0 %v3197
  %4060 = vmatpush1.bf16.msra.mxu0 %v3196
  %4061 = vmatprep.mubr.bf16.mxu0 %v3549
  %4062 = vmatmul.mubr.bf16.gmra.mrb[0].mxu0 %v3548
  %v4063 = vpop.f32.mrb[0].mxu0
  %v4064 = vadd.f32 %v3900, %v4063
  %v4065 = vpop.f32.mrb[0].mxu0
  %v4066 = vadd.f32 %v3902, %v4065
  %v4067 = vpop.f32.mrb[0].mxu0
  %v4068 = vpop.f32.mrb[0].mxu0
  %4069 = vdwg.mxu0
  %4070 = vmatprep.subr.bf16.mxu0 %v3079
  %4071 = vmatpush1.bf16.msra.mxu0 %v3078
  %4072 = vmatprep.subr.bf16.mxu0 %v3087
  %4073 = vmatpush1.bf16.msra.mxu0 %v3086
  %4074 = vmatprep.subr.bf16.mxu0 %v3095
  %4075 = vmatpush1.bf16.msra.mxu0 %v3094
  %4076 = vmatprep.subr.bf16.mxu0 %v3103
  %4077 = vmatpush1.bf16.msra.mxu0 %v3102
  %4078 = vmatprep.subr.bf16.mxu0 %v3111
  %4079 = vmatpush1.bf16.msra.mxu0 %v3110
  %4080 = vmatprep.subr.bf16.mxu0 %v3119
  %4081 = vmatpush1.bf16.msra.mxu0 %v3118
  %4082 = vmatprep.subr.bf16.mxu0 %v3127
  %4083 = vmatpush1.bf16.msra.mxu0 %v3126
  %4084 = vmatprep.subr.bf16.mxu0 %v3135
  %4085 = vmatpush1.bf16.msra.mxu0 %v3134
  %4086 = vmatprep.subr.bf16.mxu0 %v3143
  %4087 = vmatpush1.bf16.msra.mxu0 %v3142
  %4088 = vmatprep.subr.bf16.mxu0 %v3151
  %4089 = vmatpush1.bf16.msra.mxu0 %v3150
  %4090 = vmatprep.subr.bf16.mxu0 %v3159
  %4091 = vmatpush1.bf16.msra.mxu0 %v3158
  %4092 = vmatprep.subr.bf16.mxu0 %v3167
  %4093 = vmatpush1.bf16.msra.mxu0 %v3166
  %4094 = vmatprep.subr.bf16.mxu0 %v3175
  %4095 = vmatpush1.bf16.msra.mxu0 %v3174
  %4096 = vmatprep.subr.bf16.mxu0 %v3183
  %4097 = vmatpush1.bf16.msra.mxu0 %v3182
  %4098 = vmatprep.subr.bf16.mxu0 %v3191
  %4099 = vmatpush1.bf16.msra.mxu0 %v3190
  %4100 = vmatprep.subr.bf16.mxu0 %v3199
  %4101 = vmatpush1.bf16.msra.mxu0 %v3198
  %4102 = vmatprep.mubr.bf16.mxu0 %v3549
  %4103 = vmatmul.mubr.bf16.gmra.mrb[0].mxu0 %v3548
  %v4104 = vpop.f32.mrb[0].mxu0
  %v4105 = vadd.f32 %v3941, %v4104
  %v4106 = vpop.f32.mrb[0].mxu0
  %v4107 = vadd.f32 %v3943, %v4106
  %v4108 = vpop.f32.mrb[0].mxu0
  %v4109 = vpop.f32.mrb[0].mxu0
  %4110 = vdwg.mxu0
  %v4111 = vadd.f32 %v3982, %v439
  %v4112 = vadd.f32 %v3984, %v443
  %v4113 = vadd.f32 %v4023, %v447
  %v4114 = vadd.f32 %v4025, %v451
  %v4115 = vadd.f32 %v4064, %v455
  %v4116 = vadd.f32 %v4066, %v459
  %v4117 = vadd.f32 %v4105, %v463
  %v4118 = vadd.f32 %v4107, %v467
  %v4119 = vxor.u32 %v4111, 2147483648
  %v4120 = vxor.u32 %v4112, 2147483648
  %v4121 = vmul.f32 %v4119, 1.442695
  %v4122 = vpow.pop %v4121
  %v4123 = vmul.f32 %v4120, 1.442695
  %v4124 = vpow.pop %v4123
  %v4125 = vadd.f32 %v4122, 1.0
  %v4126 = vadd.f32 %v4124, 1.0
  %v4127 = vrcp.pop %v4125
  %v4128 = vmul.f32 1.0, %v4127
  %v4129 = vrcp.pop %v4126
  %v4130 = vmul.f32 1.0, %v4129
  %v4131 = vxor.u32 %v4113, 2147483648
  %v4132 = vxor.u32 %v4114, 2147483648
  %v4133 = vmul.f32 %v4131, 1.442695
  %v4134 = vpow.pop %v4133
  %v4135 = vmul.f32 %v4132, 1.442695
  %v4136 = vpow.pop %v4135
  %v4137 = vadd.f32 %v4134, 1.0
  %v4138 = vadd.f32 %v4136, 1.0
  %v4139 = vrcp.pop %v4137
  %v4140 = vmul.f32 1.0, %v4139
  %v4141 = vrcp.pop %v4138
  %v4142 = vmul.f32 1.0, %v4141
  %v4143 = vtanh.pop %v4115
  %v4144 = vtanh.pop %v4116
  %v4145 = vxor.u32 %v4117, 2147483648
  %v4146 = vxor.u32 %v4118, 2147483648
  %v4147 = vmul.f32 %v4145, 1.442695
  %v4148 = vpow.pop %v4147
  %v4149 = vmul.f32 %v4146, 1.442695
  %v4150 = vpow.pop %v4149
  %v4151 = vadd.f32 %v4148, 1.0
  %v4152 = vadd.f32 %v4150, 1.0
  %v4153 = vrcp.pop %v4151
  %v4154 = vmul.f32 1.0, %v4153
  %v4155 = vrcp.pop %v4152
  %v4156 = vmul.f32 1.0, %v4155
  %v4157 = vmul.f32 %v4140, %v3542
  %v4158 = vmul.f32 %v4142, %v3543
  %v4159 = vmul.f32 %v4128, %v4143
  %v4160 = vmul.f32 %v4130, %v4144
  %v4161 = vadd.f32 %v4157, %v4159
  %v4162 = vadd.f32 %v4158, %v4160
  %v4163 = vtanh.pop %v4161
  %v4164 = vtanh.pop %v4162
  %v4165 = vmul.f32 %v4154, %v4163
  %v4166 = vmul.f32 %v4156, %v4164
  %v4167 = vpack.c.bf16 %v4165, %v4165
  %v4168 = vpack.c.bf16 %v4166, %v4166
  %s4169 = smul.u32 2, 8
  %s4170 = smul.addr %s4169, 8
  %s4171 = scalar_lea.vmem [#allocation2], %s4170
  %v4172 = vld [vmem:[%s4171] sm:$0xff]
  %v4173 = vld [vmem:[%s4171 + $0x8] sm:$0xff]
  %v4174 = vld [vmem:[%s4171 + $0x10] sm:$0xff]
  %v4175 = vld [vmem:[%s4171 + $0x18] sm:$0xff]
  %v4176 = vld [vmem:[%s4171 + $0x20] sm:$0xff]
  %v4177 = vld [vmem:[%s4171 + $0x28] sm:$0xff]
  %v4178 = vld [vmem:[%s4171 + $0x30] sm:$0xff]
  %v4179 = vld [vmem:[%s4171 + $0x38] sm:$0xff]
  %4180 = vmatprep.subr.bf16.mxu0 %v1407
  %4181 = vmatpush1.bf16.msra.mxu0 %v1406
  %4182 = vmatprep.subr.bf16.mxu0 %v1415
  %4183 = vmatpush1.bf16.msra.mxu0 %v1414
  %4184 = vmatprep.subr.bf16.mxu0 %v1423
  %4185 = vmatpush1.bf16.msra.mxu0 %v1422
  %4186 = vmatprep.subr.bf16.mxu0 %v1431
  %4187 = vmatpush1.bf16.msra.mxu0 %v1430
  %4188 = vmatprep.subr.bf16.mxu0 %v1439
  %4189 = vmatpush1.bf16.msra.mxu0 %v1438
  %4190 = vmatprep.subr.bf16.mxu0 %v1447
  %4191 = vmatpush1.bf16.msra.mxu0 %v1446
  %4192 = vmatprep.subr.bf16.mxu0 %v1455
  %4193 = vmatpush1.bf16.msra.mxu0 %v1454
  %4194 = vmatprep.subr.bf16.mxu0 %v1463
  %4195 = vmatpush1.bf16.msra.mxu0 %v1462
  %4196 = vmatprep.subr.bf16.mxu0 %v1471
  %4197 = vmatpush1.bf16.msra.mxu0 %v1470
  %4198 = vmatprep.subr.bf16.mxu0 %v1479
  %4199 = vmatpush1.bf16.msra.mxu0 %v1478
  %4200 = vmatprep.subr.bf16.mxu0 %v1487
  %4201 = vmatpush1.bf16.msra.mxu0 %v1486
  %4202 = vmatprep.subr.bf16.mxu0 %v1495
  %4203 = vmatpush1.bf16.msra.mxu0 %v1494
  %4204 = vmatprep.subr.bf16.mxu0 %v1503
  %4205 = vmatpush1.bf16.msra.mxu0 %v1502
  %4206 = vmatprep.subr.bf16.mxu0 %v1511
  %4207 = vmatpush1.bf16.msra.mxu0 %v1510
  %4208 = vmatprep.subr.bf16.mxu0 %v1519
  %4209 = vmatpush1.bf16.msra.mxu0 %v1518
  %4210 = vmatprep.subr.bf16.mxu0 %v1527
  %4211 = vmatpush1.bf16.msra.mxu0 %v1526
  %4212 = vmatprep.mubr.bf16.mxu0 %v3782
  %4213 = vmatmul.mubr.bf16.gmra.mrb[0].mxu0 %v3781
  %v4214 = vpop.f32.mrb[0].mxu0
  %v4215 = vadd.f32 0.0, %v4214
  %v4216 = vpop.f32.mrb[0].mxu0
  %v4217 = vadd.f32 0.0, %v4216
  %v4218 = vpop.f32.mrb[0].mxu0
  %v4219 = vpop.f32.mrb[0].mxu0
  %4220 = vdwg.mxu0
  %4221 = vmatprep.subr.bf16.mxu0 %v1409
  %4222 = vmatpush1.bf16.msra.mxu0 %v1408
  %4223 = vmatprep.subr.bf16.mxu0 %v1417
  %4224 = vmatpush1.bf16.msra.mxu0 %v1416
  %4225 = vmatprep.subr.bf16.mxu0 %v1425
  %4226 = vmatpush1.bf16.msra.mxu0 %v1424
  %4227 = vmatprep.subr.bf16.mxu0 %v1433
  %4228 = vmatpush1.bf16.msra.mxu0 %v1432
  %4229 = vmatprep.subr.bf16.mxu0 %v1441
  %4230 = vmatpush1.bf16.msra.mxu0 %v1440
  %4231 = vmatprep.subr.bf16.mxu0 %v1449
  %4232 = vmatpush1.bf16.msra.mxu0 %v1448
  %4233 = vmatprep.subr.bf16.mxu0 %v1457
  %4234 = vmatpush1.bf16.msra.mxu0 %v1456
  %4235 = vmatprep.subr.bf16.mxu0 %v1465
  %4236 = vmatpush1.bf16.msra.mxu0 %v1464
  %4237 = vmatprep.subr.bf16.mxu0 %v1473
  %4238 = vmatpush1.bf16.msra.mxu0 %v1472
  %4239 = vmatprep.subr.bf16.mxu0 %v1481
  %4240 = vmatpush1.bf16.msra.mxu0 %v1480
  %4241 = vmatprep.subr.bf16.mxu0 %v1489
  %4242 = vmatpush1.bf16.msra.mxu0 %v1488
  %4243 = vmatprep.subr.bf16.mxu0 %v1497
  %4244 = vmatpush1.bf16.msra.mxu0 %v1496
  %4245 = vmatprep.subr.bf16.mxu0 %v1505
  %4246 = vmatpush1.bf16.msra.mxu0 %v1504
  %4247 = vmatprep.subr.bf16.mxu0 %v1513
  %4248 = vmatpush1.bf16.msra.mxu0 %v1512
  %4249 = vmatprep.subr.bf16.mxu0 %v1521
  %4250 = vmatpush1.bf16.msra.mxu0 %v1520
  %4251 = vmatprep.subr.bf16.mxu0 %v1529
  %4252 = vmatpush1.bf16.msra.mxu0 %v1528
  %4253 = vmatprep.mubr.bf16.mxu0 %v3782
  %4254 = vmatmul.mubr.bf16.gmra.mrb[0].mxu0 %v3781
  %v4255 = vpop.f32.mrb[0].mxu0
  %v4256 = vadd.f32 0.0, %v4255
  %v4257 = vpop.f32.mrb[0].mxu0
  %v4258 = vadd.f32 0.0, %v4257
  %v4259 = vpop.f32.mrb[0].mxu0
  %v4260 = vpop.f32.mrb[0].mxu0
  %4261 = vdwg.mxu0
  %4262 = vmatprep.subr.bf16.mxu0 %v1411
  %4263 = vmatpush1.bf16.msra.mxu0 %v1410
  %4264 = vmatprep.subr.bf16.mxu0 %v1419
  %4265 = vmatpush1.bf16.msra.mxu0 %v1418
  %4266 = vmatprep.subr.bf16.mxu0 %v1427
  %4267 = vmatpush1.bf16.msra.mxu0 %v1426
  %4268 = vmatprep.subr.bf16.mxu0 %v1435
  %4269 = vmatpush1.bf16.msra.mxu0 %v1434
  %4270 = vmatprep.subr.bf16.mxu0 %v1443
  %4271 = vmatpush1.bf16.msra.mxu0 %v1442
  %4272 = vmatprep.subr.bf16.mxu0 %v1451
  %4273 = vmatpush1.bf16.msra.mxu0 %v1450
  %4274 = vmatprep.subr.bf16.mxu0 %v1459
  %4275 = vmatpush1.bf16.msra.mxu0 %v1458
  %4276 = vmatprep.subr.bf16.mxu0 %v1467
  %4277 = vmatpush1.bf16.msra.mxu0 %v1466
  %4278 = vmatprep.subr.bf16.mxu0 %v1475
  %4279 = vmatpush1.bf16.msra.mxu0 %v1474
  %4280 = vmatprep.subr.bf16.mxu0 %v1483
  %4281 = vmatpush1.bf16.msra.mxu0 %v1482
  %4282 = vmatprep.subr.bf16.mxu0 %v1491
  %4283 = vmatpush1.bf16.msra.mxu0 %v1490
  %4284 = vmatprep.subr.bf16.mxu0 %v1499
  %4285 = vmatpush1.bf16.msra.mxu0 %v1498
  %4286 = vmatprep.subr.bf16.mxu0 %v1507
  %4287 = vmatpush1.bf16.msra.mxu0 %v1506
  %4288 = vmatprep.subr.bf16.mxu0 %v1515
  %4289 = vmatpush1.bf16.msra.mxu0 %v1514
  %4290 = vmatprep.subr.bf16.mxu0 %v1523
  %4291 = vmatpush1.bf16.msra.mxu0 %v1522
  %4292 = vmatprep.subr.bf16.mxu0 %v1531
  %4293 = vmatpush1.bf16.msra.mxu0 %v1530
  %4294 = vmatprep.mubr.bf16.mxu0 %v3782
  %4295 = vmatmul.mubr.bf16.gmra.mrb[0].mxu0 %v3781
  %v4296 = vpop.f32.mrb[0].mxu0
  %v4297 = vadd.f32 0.0, %v4296
  %v4298 = vpop.f32.mrb[0].mxu0
  %v4299 = vadd.f32 0.0, %v4298
  %v4300 = vpop.f32.mrb[0].mxu0
  %v4301 = vpop.f32.mrb[0].mxu0
  %4302 = vdwg.mxu0
  %4303 = vmatprep.subr.bf16.mxu0 %v1413
  %4304 = vmatpush1.bf16.msra.mxu0 %v1412
  %4305 = vmatprep.subr.bf16.mxu0 %v1421
  %4306 = vmatpush1.bf16.msra.mxu0 %v1420
  %4307 = vmatprep.subr.bf16.mxu0 %v1429
  %4308 = vmatpush1.bf16.msra.mxu0 %v1428
  %4309 = vmatprep.subr.bf16.mxu0 %v1437
  %4310 = vmatpush1.bf16.msra.mxu0 %v1436
  %4311 = vmatprep.subr.bf16.mxu0 %v1445
  %4312 = vmatpush1.bf16.msra.mxu0 %v1444
  %4313 = vmatprep.subr.bf16.mxu0 %v1453
  %4314 = vmatpush1.bf16.msra.mxu0 %v1452
  %4315 = vmatprep.subr.bf16.mxu0 %v1461
  %4316 = vmatpush1.bf16.msra.mxu0 %v1460
  %4317 = vmatprep.subr.bf16.mxu0 %v1469
  %4318 = vmatpush1.bf16.msra.mxu0 %v1468
  %4319 = vmatprep.subr.bf16.mxu0 %v1477
  %4320 = vmatpush1.bf16.msra.mxu0 %v1476
  %4321 = vmatprep.subr.bf16.mxu0 %v1485
  %4322 = vmatpush1.bf16.msra.mxu0 %v1484
  %4323 = vmatprep.subr.bf16.mxu0 %v1493
  %4324 = vmatpush1.bf16.msra.mxu0 %v1492
  %4325 = vmatprep.subr.bf16.mxu0 %v1501
  %4326 = vmatpush1.bf16.msra.mxu0 %v1500
  %4327 = vmatprep.subr.bf16.mxu0 %v1509
  %4328 = vmatpush1.bf16.msra.mxu0 %v1508
  %4329 = vmatprep.subr.bf16.mxu0 %v1517
  %4330 = vmatpush1.bf16.msra.mxu0 %v1516
  %4331 = vmatprep.subr.bf16.mxu0 %v1525
  %4332 = vmatpush1.bf16.msra.mxu0 %v1524
  %4333 = vmatprep.subr.bf16.mxu0 %v1533
  %4334 = vmatpush1.bf16.msra.mxu0 %v1532
  %4335 = vmatprep.mubr.bf16.mxu0 %v3782
  %4336 = vmatmul.mubr.bf16.gmra.mrb[0].mxu0 %v3781
  %v4337 = vpop.f32.mrb[0].mxu0
  %v4338 = vadd.f32 0.0, %v4337
  %v4339 = vpop.f32.mrb[0].mxu0
  %v4340 = vadd.f32 0.0, %v4339
  %v4341 = vpop.f32.mrb[0].mxu0
  %v4342 = vpop.f32.mrb[0].mxu0
  %4343 = vdwg.mxu0
  %v4344 = vadd.f32 %v4172, %v4215
  %v4345 = vadd.f32 %v4173, %v4217
  %v4346 = vadd.f32 %v4174, %v4256
  %v4347 = vadd.f32 %v4175, %v4258
  %v4348 = vadd.f32 %v4176, %v4297
  %v4349 = vadd.f32 %v4177, %v4299
  %v4350 = vadd.f32 %v4178, %v4338
  %v4351 = vadd.f32 %v4179, %v4340
  %v4352 = vxor.u32 %v4344, 2147483648
  %v4353 = vxor.u32 %v4345, 2147483648
  %v4354 = vmul.f32 %v4352, 1.442695
  %v4355 = vpow.pop %v4354
  %v4356 = vmul.f32 %v4353, 1.442695
  %v4357 = vpow.pop %v4356
  %v4358 = vadd.f32 %v4355, 1.0
  %v4359 = vadd.f32 %v4357, 1.0
  %v4360 = vrcp.pop %v4358
  %v4361 = vmul.f32 1.0, %v4360
  %v4362 = vrcp.pop %v4359
  %v4363 = vmul.f32 1.0, %v4362
  %v4364 = vxor.u32 %v4346, 2147483648
  %v4365 = vxor.u32 %v4347, 2147483648
  %v4366 = vmul.f32 %v4364, 1.442695
  %v4367 = vpow.pop %v4366
  %v4368 = vmul.f32 %v4365, 1.442695
  %v4369 = vpow.pop %v4368
  %v4370 = vadd.f32 %v4367, 1.0
  %v4371 = vadd.f32 %v4369, 1.0
  %v4372 = vrcp.pop %v4370
  %v4373 = vmul.f32 1.0, %v4372
  %v4374 = vrcp.pop %v4371
  %v4375 = vmul.f32 1.0, %v4374
  %v4376 = vtanh.pop %v4348
  %v4377 = vtanh.pop %v4349
  %v4378 = vxor.u32 %v4350, 2147483648
  %v4379 = vxor.u32 %v4351, 2147483648
  %v4380 = vmul.f32 %v4378, 1.442695
  %v4381 = vpow.pop %v4380
  %v4382 = vmul.f32 %v4379, 1.442695
  %v4383 = vpow.pop %v4382
  %v4384 = vadd.f32 %v4381, 1.0
  %v4385 = vadd.f32 %v4383, 1.0
  %v4386 = vrcp.pop %v4384
  %v4387 = vmul.f32 1.0, %v4386
  %v4388 = vrcp.pop %v4385
  %v4389 = vmul.f32 1.0, %v4388
  %v4390 = vmul.f32 %v4373, %v3775
  %v4391 = vmul.f32 %v4375, %v3776
  %v4392 = vmul.f32 %v4361, %v4376
  %v4393 = vmul.f32 %v4363, %v4377
  %v4394 = vadd.f32 %v4390, %v4392
  %v4395 = vadd.f32 %v4391, %v4393
  %v4396 = vtanh.pop %v4394
  %v4397 = vtanh.pop %v4395
  %v4398 = vmul.f32 %v4387, %v4396
  %v4399 = vmul.f32 %v4389, %v4397
  %v4400 = vpack.c.bf16 %v4398, %v4398
  %v4401 = vpack.c.bf16 %v4399, %v4399
  %4402 = vmatprep.subr.bf16.mxu0 %v2269
  %4403 = vmatpush1.bf16.msra.mxu0 %v2268
  %4404 = vmatprep.subr.bf16.mxu0 %v2277
  %4405 = vmatpush1.bf16.msra.mxu0 %v2276
  %4406 = vmatprep.subr.bf16.mxu0 %v2285
  %4407 = vmatpush1.bf16.msra.mxu0 %v2284
  %4408 = vmatprep.subr.bf16.mxu0 %v2293
  %4409 = vmatpush1.bf16.msra.mxu0 %v2292
  %4410 = vmatprep.subr.bf16.mxu0 %v2301
  %4411 = vmatpush1.bf16.msra.mxu0 %v2300
  %4412 = vmatprep.subr.bf16.mxu0 %v2309
  %4413 = vmatpush1.bf16.msra.mxu0 %v2308
  %4414 = vmatprep.subr.bf16.mxu0 %v2317
  %4415 = vmatpush1.bf16.msra.mxu0 %v2316
  %4416 = vmatprep.subr.bf16.mxu0 %v2325
  %4417 = vmatpush1.bf16.msra.mxu0 %v2324
  %4418 = vmatprep.subr.bf16.mxu0 %v2333
  %4419 = vmatpush1.bf16.msra.mxu0 %v2332
  %4420 = vmatprep.subr.bf16.mxu0 %v2341
  %4421 = vmatpush1.bf16.msra.mxu0 %v2340
  %4422 = vmatprep.subr.bf16.mxu0 %v2349
  %4423 = vmatpush1.bf16.msra.mxu0 %v2348
  %4424 = vmatprep.subr.bf16.mxu0 %v2357
  %4425 = vmatpush1.bf16.msra.mxu0 %v2356
  %4426 = vmatprep.subr.bf16.mxu0 %v2365
  %4427 = vmatpush1.bf16.msra.mxu0 %v2364
  %4428 = vmatprep.subr.bf16.mxu0 %v2373
  %4429 = vmatpush1.bf16.msra.mxu0 %v2372
  %4430 = vmatprep.subr.bf16.mxu0 %v2381
  %4431 = vmatpush1.bf16.msra.mxu0 %v2380
  %4432 = vmatprep.subr.bf16.mxu0 %v2389
  %4433 = vmatpush1.bf16.msra.mxu0 %v2388
  %4434 = vmatprep.mubr.bf16.mxu0 %v4401
  %4435 = vmatmul.mubr.bf16.gmra.mrb[0].mxu0 %v4400
  %v4436 = vpop.f32.mrb[0].mxu0
  %v4437 = vadd.f32 0.0, %v4436
  %v4438 = vpop.f32.mrb[0].mxu0
  %v4439 = vadd.f32 0.0, %v4438
  %v4440 = vpop.f32.mrb[0].mxu0
  %v4441 = vpop.f32.mrb[0].mxu0
  %4442 = vdwg.mxu0
  %4443 = vmatprep.subr.bf16.mxu0 %v2271
  %4444 = vmatpush1.bf16.msra.mxu0 %v2270
  %4445 = vmatprep.subr.bf16.mxu0 %v2279
  %4446 = vmatpush1.bf16.msra.mxu0 %v2278
  %4447 = vmatprep.subr.bf16.mxu0 %v2287
  %4448 = vmatpush1.bf16.msra.mxu0 %v2286
  %4449 = vmatprep.subr.bf16.mxu0 %v2295
  %4450 = vmatpush1.bf16.msra.mxu0 %v2294
  %4451 = vmatprep.subr.bf16.mxu0 %v2303
  %4452 = vmatpush1.bf16.msra.mxu0 %v2302
  %4453 = vmatprep.subr.bf16.mxu0 %v2311
  %4454 = vmatpush1.bf16.msra.mxu0 %v2310
  %4455 = vmatprep.subr.bf16.mxu0 %v2319
  %4456 = vmatpush1.bf16.msra.mxu0 %v2318
  %4457 = vmatprep.subr.bf16.mxu0 %v2327
  %4458 = vmatpush1.bf16.msra.mxu0 %v2326
  %4459 = vmatprep.subr.bf16.mxu0 %v2335
  %4460 = vmatpush1.bf16.msra.mxu0 %v2334
  %4461 = vmatprep.subr.bf16.mxu0 %v2343
  %4462 = vmatpush1.bf16.msra.mxu0 %v2342
  %4463 = vmatprep.subr.bf16.mxu0 %v2351
  %4464 = vmatpush1.bf16.msra.mxu0 %v2350
  %4465 = vmatprep.subr.bf16.mxu0 %v2359
  %4466 = vmatpush1.bf16.msra.mxu0 %v2358
  %4467 = vmatprep.subr.bf16.mxu0 %v2367
  %4468 = vmatpush1.bf16.msra.mxu0 %v2366
  %4469 = vmatprep.subr.bf16.mxu0 %v2375
  %4470 = vmatpush1.bf16.msra.mxu0 %v2374
  %4471 = vmatprep.subr.bf16.mxu0 %v2383
  %4472 = vmatpush1.bf16.msra.mxu0 %v2382
  %4473 = vmatprep.subr.bf16.mxu0 %v2391
  %4474 = vmatpush1.bf16.msra.mxu0 %v2390
  %4475 = vmatprep.mubr.bf16.mxu0 %v4401
  %4476 = vmatmul.mubr.bf16.gmra.mrb[0].mxu0 %v4400
  %v4477 = vpop.f32.mrb[0].mxu0
  %v4478 = vadd.f32 0.0, %v4477
  %v4479 = vpop.f32.mrb[0].mxu0
  %v4480 = vadd.f32 0.0, %v4479
  %v4481 = vpop.f32.mrb[0].mxu0
  %v4482 = vpop.f32.mrb[0].mxu0
  %4483 = vdwg.mxu0
  %4484 = vmatprep.subr.bf16.mxu0 %v2273
  %4485 = vmatpush1.bf16.msra.mxu0 %v2272
  %4486 = vmatprep.subr.bf16.mxu0 %v2281
  %4487 = vmatpush1.bf16.msra.mxu0 %v2280
  %4488 = vmatprep.subr.bf16.mxu0 %v2289
  %4489 = vmatpush1.bf16.msra.mxu0 %v2288
  %4490 = vmatprep.subr.bf16.mxu0 %v2297
  %4491 = vmatpush1.bf16.msra.mxu0 %v2296
  %4492 = vmatprep.subr.bf16.mxu0 %v2305
  %4493 = vmatpush1.bf16.msra.mxu0 %v2304
  %4494 = vmatprep.subr.bf16.mxu0 %v2313
  %4495 = vmatpush1.bf16.msra.mxu0 %v2312
  %4496 = vmatprep.subr.bf16.mxu0 %v2321
  %4497 = vmatpush1.bf16.msra.mxu0 %v2320
  %4498 = vmatprep.subr.bf16.mxu0 %v2329
  %4499 = vmatpush1.bf16.msra.mxu0 %v2328
  %4500 = vmatprep.subr.bf16.mxu0 %v2337
  %4501 = vmatpush1.bf16.msra.mxu0 %v2336
  %4502 = vmatprep.subr.bf16.mxu0 %v2345
  %4503 = vmatpush1.bf16.msra.mxu0 %v2344
  %4504 = vmatprep.subr.bf16.mxu0 %v2353
  %4505 = vmatpush1.bf16.msra.mxu0 %v2352
  %4506 = vmatprep.subr.bf16.mxu0 %v2361
  %4507 = vmatpush1.bf16.msra.mxu0 %v2360
  %4508 = vmatprep.subr.bf16.mxu0 %v2369
  %4509 = vmatpush1.bf16.msra.mxu0 %v2368
  %4510 = vmatprep.subr.bf16.mxu0 %v2377
  %4511 = vmatpush1.bf16.msra.mxu0 %v2376
  %4512 = vmatprep.subr.bf16.mxu0 %v2385
  %4513 = vmatpush1.bf16.msra.mxu0 %v2384
  %4514 = vmatprep.subr.bf16.mxu0 %v2393
  %4515 = vmatpush1.bf16.msra.mxu0 %v2392
  %4516 = vmatprep.mubr.bf16.mxu0 %v4401
  %4517 = vmatmul.mubr.bf16.gmra.mrb[0].mxu0 %v4400
  %v4518 = vpop.f32.mrb[0].mxu0
  %v4519 = vadd.f32 0.0, %v4518
  %v4520 = vpop.f32.mrb[0].mxu0
  %v4521 = vadd.f32 0.0, %v4520
  %v4522 = vpop.f32.mrb[0].mxu0
  %v4523 = vpop.f32.mrb[0].mxu0
  %4524 = vdwg.mxu0
  %4525 = vmatprep.subr.bf16.mxu0 %v2275
  %4526 = vmatpush1.bf16.msra.mxu0 %v2274
  %4527 = vmatprep.subr.bf16.mxu0 %v2283
  %4528 = vmatpush1.bf16.msra.mxu0 %v2282
  %4529 = vmatprep.subr.bf16.mxu0 %v2291
  %4530 = vmatpush1.bf16.msra.mxu0 %v2290
  %4531 = vmatprep.subr.bf16.mxu0 %v2299
  %4532 = vmatpush1.bf16.msra.mxu0 %v2298
  %4533 = vmatprep.subr.bf16.mxu0 %v2307
  %4534 = vmatpush1.bf16.msra.mxu0 %v2306
  %4535 = vmatprep.subr.bf16.mxu0 %v2315
  %4536 = vmatpush1.bf16.msra.mxu0 %v2314
  %4537 = vmatprep.subr.bf16.mxu0 %v2323
  %4538 = vmatpush1.bf16.msra.mxu0 %v2322
  %4539 = vmatprep.subr.bf16.mxu0 %v2331
  %4540 = vmatpush1.bf16.msra.mxu0 %v2330
  %4541 = vmatprep.subr.bf16.mxu0 %v2339
  %4542 = vmatpush1.bf16.msra.mxu0 %v2338
  %4543 = vmatprep.subr.bf16.mxu0 %v2347
  %4544 = vmatpush1.bf16.msra.mxu0 %v2346
  %4545 = vmatprep.subr.bf16.mxu0 %v2355
  %4546 = vmatpush1.bf16.msra.mxu0 %v2354
  %4547 = vmatprep.subr.bf16.mxu0 %v2363
  %4548 = vmatpush1.bf16.msra.mxu0 %v2362
  %4549 = vmatprep.subr.bf16.mxu0 %v2371
  %4550 = vmatpush1.bf16.msra.mxu0 %v2370
  %4551 = vmatprep.subr.bf16.mxu0 %v2379
  %4552 = vmatpush1.bf16.msra.mxu0 %v2378
  %4553 = vmatprep.subr.bf16.mxu0 %v2387
  %4554 = vmatpush1.bf16.msra.mxu0 %v2386
  %4555 = vmatprep.subr.bf16.mxu0 %v2395
  %4556 = vmatpush1.bf16.msra.mxu0 %v2394
  %4557 = vmatprep.mubr.bf16.mxu0 %v4401
  %4558 = vmatmul.mubr.bf16.gmra.mrb[0].mxu0 %v4400
  %v4559 = vpop.f32.mrb[0].mxu0
  %v4560 = vadd.f32 0.0, %v4559
  %v4561 = vpop.f32.mrb[0].mxu0
  %v4562 = vadd.f32 0.0, %v4561
  %v4563 = vpop.f32.mrb[0].mxu0
  %v4564 = vpop.f32.mrb[0].mxu0
  %4565 = vdwg.mxu0
  %4566 = vmatprep.subr.bf16.mxu0 %v3073
  %4567 = vmatpush1.bf16.msra.mxu0 %v3072
  %4568 = vmatprep.subr.bf16.mxu0 %v3081
  %4569 = vmatpush1.bf16.msra.mxu0 %v3080
  %4570 = vmatprep.subr.bf16.mxu0 %v3089
  %4571 = vmatpush1.bf16.msra.mxu0 %v3088
  %4572 = vmatprep.subr.bf16.mxu0 %v3097
  %4573 = vmatpush1.bf16.msra.mxu0 %v3096
  %4574 = vmatprep.subr.bf16.mxu0 %v3105
  %4575 = vmatpush1.bf16.msra.mxu0 %v3104
  %4576 = vmatprep.subr.bf16.mxu0 %v3113
  %4577 = vmatpush1.bf16.msra.mxu0 %v3112
  %4578 = vmatprep.subr.bf16.mxu0 %v3121
  %4579 = vmatpush1.bf16.msra.mxu0 %v3120
  %4580 = vmatprep.subr.bf16.mxu0 %v3129
  %4581 = vmatpush1.bf16.msra.mxu0 %v3128
  %4582 = vmatprep.subr.bf16.mxu0 %v3137
  %4583 = vmatpush1.bf16.msra.mxu0 %v3136
  %4584 = vmatprep.subr.bf16.mxu0 %v3145
  %4585 = vmatpush1.bf16.msra.mxu0 %v3144
  %4586 = vmatprep.subr.bf16.mxu0 %v3153
  %4587 = vmatpush1.bf16.msra.mxu0 %v3152
  %4588 = vmatprep.subr.bf16.mxu0 %v3161
  %4589 = vmatpush1.bf16.msra.mxu0 %v3160
  %4590 = vmatprep.subr.bf16.mxu0 %v3169
  %4591 = vmatpush1.bf16.msra.mxu0 %v3168
  %4592 = vmatprep.subr.bf16.mxu0 %v3177
  %4593 = vmatpush1.bf16.msra.mxu0 %v3176
  %4594 = vmatprep.subr.bf16.mxu0 %v3185
  %4595 = vmatpush1.bf16.msra.mxu0 %v3184
  %4596 = vmatprep.subr.bf16.mxu0 %v3193
  %4597 = vmatpush1.bf16.msra.mxu0 %v3192
  %4598 = vmatprep.mubr.bf16.mxu0 %v4168
  %4599 = vmatmul.mubr.bf16.gmra.mrb[0].mxu0 %v4167
  %v4600 = vpop.f32.mrb[0].mxu0
  %v4601 = vadd.f32 %v4437, %v4600
  %v4602 = vpop.f32.mrb[0].mxu0
  %v4603 = vadd.f32 %v4439, %v4602
  %v4604 = vpop.f32.mrb[0].mxu0
  %v4605 = vpop.f32.mrb[0].mxu0
  %4606 = vdwg.mxu0
  %4607 = vmatprep.subr.bf16.mxu0 %v3075
  %4608 = vmatpush1.bf16.msra.mxu0 %v3074
  %4609 = vmatprep.subr.bf16.mxu0 %v3083
  %4610 = vmatpush1.bf16.msra.mxu0 %v3082
  %4611 = vmatprep.subr.bf16.mxu0 %v3091
  %4612 = vmatpush1.bf16.msra.mxu0 %v3090
  %4613 = vmatprep.subr.bf16.mxu0 %v3099
  %4614 = vmatpush1.bf16.msra.mxu0 %v3098
  %4615 = vmatprep.subr.bf16.mxu0 %v3107
  %4616 = vmatpush1.bf16.msra.mxu0 %v3106
  %4617 = vmatprep.subr.bf16.mxu0 %v3115
  %4618 = vmatpush1.bf16.msra.mxu0 %v3114
  %4619 = vmatprep.subr.bf16.mxu0 %v3123
  %4620 = vmatpush1.bf16.msra.mxu0 %v3122
  %4621 = vmatprep.subr.bf16.mxu0 %v3131
  %4622 = vmatpush1.bf16.msra.mxu0 %v3130
  %4623 = vmatprep.subr.bf16.mxu0 %v3139
  %4624 = vmatpush1.bf16.msra.mxu0 %v3138
  %4625 = vmatprep.subr.bf16.mxu0 %v3147
  %4626 = vmatpush1.bf16.msra.mxu0 %v3146
  %4627 = vmatprep.subr.bf16.mxu0 %v3155
  %4628 = vmatpush1.bf16.msra.mxu0 %v3154
  %4629 = vmatprep.subr.bf16.mxu0 %v3163
  %4630 = vmatpush1.bf16.msra.mxu0 %v3162
  %4631 = vmatprep.subr.bf16.mxu0 %v3171
  %4632 = vmatpush1.bf16.msra.mxu0 %v3170
  %4633 = vmatprep.subr.bf16.mxu0 %v3179
  %4634 = vmatpush1.bf16.msra.mxu0 %v3178
  %4635 = vmatprep.subr.bf16.mxu0 %v3187
  %4636 = vmatpush1.bf16.msra.mxu0 %v3186
  %4637 = vmatprep.subr.bf16.mxu0 %v3195
  %4638 = vmatpush1.bf16.msra.mxu0 %v3194
  %4639 = vmatprep.mubr.bf16.mxu0 %v4168
  %4640 = vmatmul.mubr.bf16.gmra.mrb[0].mxu0 %v4167
  %v4641 = vpop.f32.mrb[0].mxu0
  %v4642 = vadd.f32 %v4478, %v4641
  %v4643 = vpop.f32.mrb[0].mxu0
  %v4644 = vadd.f32 %v4480, %v4643
  %v4645 = vpop.f32.mrb[0].mxu0
  %v4646 = vpop.f32.mrb[0].mxu0
  %4647 = vdwg.mxu0
  %4648 = vmatprep.subr.bf16.mxu0 %v3077
  %4649 = vmatpush1.bf16.msra.mxu0 %v3076
  %4650 = vmatprep.subr.bf16.mxu0 %v3085
  %4651 = vmatpush1.bf16.msra.mxu0 %v3084
  %4652 = vmatprep.subr.bf16.mxu0 %v3093
  %4653 = vmatpush1.bf16.msra.mxu0 %v3092
  %4654 = vmatprep.subr.bf16.mxu0 %v3101
  %4655 = vmatpush1.bf16.msra.mxu0 %v3100
  %4656 = vmatprep.subr.bf16.mxu0 %v3109
  %4657 = vmatpush1.bf16.msra.mxu0 %v3108
  %4658 = vmatprep.subr.bf16.mxu0 %v3117
  %4659 = vmatpush1.bf16.msra.mxu0 %v3116
  %4660 = vmatprep.subr.bf16.mxu0 %v3125
  %4661 = vmatpush1.bf16.msra.mxu0 %v3124
  %4662 = vmatprep.subr.bf16.mxu0 %v3133
  %4663 = vmatpush1.bf16.msra.mxu0 %v3132
  %4664 = vmatprep.subr.bf16.mxu0 %v3141
  %4665 = vmatpush1.bf16.msra.mxu0 %v3140
  %4666 = vmatprep.subr.bf16.mxu0 %v3149
  %4667 = vmatpush1.bf16.msra.mxu0 %v3148
  %4668 = vmatprep.subr.bf16.mxu0 %v3157
  %4669 = vmatpush1.bf16.msra.mxu0 %v3156
  %4670 = vmatprep.subr.bf16.mxu0 %v3165
  %4671 = vmatpush1.bf16.msra.mxu0 %v3164
  %4672 = vmatprep.subr.bf16.mxu0 %v3173
  %4673 = vmatpush1.bf16.msra.mxu0 %v3172
  %4674 = vmatprep.subr.bf16.mxu0 %v3181
  %4675 = vmatpush1.bf16.msra.mxu0 %v3180
  %4676 = vmatprep.subr.bf16.mxu0 %v3189
  %4677 = vmatpush1.bf16.msra.mxu0 %v3188
  %4678 = vmatprep.subr.bf16.mxu0 %v3197
  %4679 = vmatpush1.bf16.msra.mxu0 %v3196
  %4680 = vmatprep.mubr.bf16.mxu0 %v4168
  %4681 = vmatmul.mubr.bf16.gmra.mrb[0].mxu0 %v4167
  %v4682 = vpop.f32.mrb[0].mxu0
  %v4683 = vadd.f32 %v4519, %v4682
  %v4684 = vpop.f32.mrb[0].mxu0
  %v4685 = vadd.f32 %v4521, %v4684
  %v4686 = vpop.f32.mrb[0].mxu0
  %v4687 = vpop.f32.mrb[0].mxu0
  %4688 = vdwg.mxu0
  %4689 = vmatprep.subr.bf16.mxu0 %v3079
  %4690 = vmatpush1.bf16.msra.mxu0 %v3078
  %4691 = vmatprep.subr.bf16.mxu0 %v3087
  %4692 = vmatpush1.bf16.msra.mxu0 %v3086
  %4693 = vmatprep.subr.bf16.mxu0 %v3095
  %4694 = vmatpush1.bf16.msra.mxu0 %v3094
  %4695 = vmatprep.subr.bf16.mxu0 %v3103
  %4696 = vmatpush1.bf16.msra.mxu0 %v3102
  %4697 = vmatprep.subr.bf16.mxu0 %v3111
  %4698 = vmatpush1.bf16.msra.mxu0 %v3110
  %4699 = vmatprep.subr.bf16.mxu0 %v3119
  %4700 = vmatpush1.bf16.msra.mxu0 %v3118
  %4701 = vmatprep.subr.bf16.mxu0 %v3127
  %4702 = vmatpush1.bf16.msra.mxu0 %v3126
  %4703 = vmatprep.subr.bf16.mxu0 %v3135
  %4704 = vmatpush1.bf16.msra.mxu0 %v3134
  %4705 = vmatprep.subr.bf16.mxu0 %v3143
  %4706 = vmatpush1.bf16.msra.mxu0 %v3142
  %4707 = vmatprep.subr.bf16.mxu0 %v3151
  %4708 = vmatpush1.bf16.msra.mxu0 %v3150
  %4709 = vmatprep.subr.bf16.mxu0 %v3159
  %4710 = vmatpush1.bf16.msra.mxu0 %v3158
  %4711 = vmatprep.subr.bf16.mxu0 %v3167
  %4712 = vmatpush1.bf16.msra.mxu0 %v3166
  %4713 = vmatprep.subr.bf16.mxu0 %v3175
  %4714 = vmatpush1.bf16.msra.mxu0 %v3174
  %4715 = vmatprep.subr.bf16.mxu0 %v3183
  %4716 = vmatpush1.bf16.msra.mxu0 %v3182
  %4717 = vmatprep.subr.bf16.mxu0 %v3191
  %4718 = vmatpush1.bf16.msra.mxu0 %v3190
  %4719 = vmatprep.subr.bf16.mxu0 %v3199
  %4720 = vmatpush1.bf16.msra.mxu0 %v3198
  %4721 = vmatprep.mubr.bf16.mxu0 %v4168
  %4722 = vmatmul.mubr.bf16.gmra.mrb[0].mxu0 %v4167
  %v4723 = vpop.f32.mrb[0].mxu0
  %v4724 = vadd.f32 %v4560, %v4723
  %v4725 = vpop.f32.mrb[0].mxu0
  %v4726 = vadd.f32 %v4562, %v4725
  %v4727 = vpop.f32.mrb[0].mxu0
  %v4728 = vpop.f32.mrb[0].mxu0
  %4729 = vdwg.mxu0
  %v4730 = vadd.f32 %v4601, %v439
  %v4731 = vadd.f32 %v4603, %v443
  %v4732 = vadd.f32 %v4642, %v447
  %v4733 = vadd.f32 %v4644, %v451
  %v4734 = vadd.f32 %v4683, %v455
  %v4735 = vadd.f32 %v4685, %v459
  %v4736 = vadd.f32 %v4724, %v463
  %v4737 = vadd.f32 %v4726, %v467
  %v4738 = vxor.u32 %v4730, 2147483648
  %v4739 = vxor.u32 %v4731, 2147483648
  %v4740 = vmul.f32 %v4738, 1.442695
  %v4741 = vpow.pop %v4740
  %v4742 = vmul.f32 %v4739, 1.442695
  %v4743 = vpow.pop %v4742
  %v4744 = vadd.f32 %v4741, 1.0
  %v4745 = vadd.f32 %v4743, 1.0
  %v4746 = vrcp.pop %v4744
  %v4747 = vmul.f32 1.0, %v4746
  %v4748 = vrcp.pop %v4745
  %v4749 = vmul.f32 1.0, %v4748
  %v4750 = vxor.u32 %v4732, 2147483648
  %v4751 = vxor.u32 %v4733, 2147483648
  %v4752 = vmul.f32 %v4750, 1.442695
  %v4753 = vpow.pop %v4752
  %v4754 = vmul.f32 %v4751, 1.442695
  %v4755 = vpow.pop %v4754
  %v4756 = vadd.f32 %v4753, 1.0
  %v4757 = vadd.f32 %v4755, 1.0
  %v4758 = vrcp.pop %v4756
  %v4759 = vmul.f32 1.0, %v4758
  %v4760 = vrcp.pop %v4757
  %v4761 = vmul.f32 1.0, %v4760
  %v4762 = vtanh.pop %v4734
  %v4763 = vtanh.pop %v4735
  %v4764 = vxor.u32 %v4736, 2147483648
  %v4765 = vxor.u32 %v4737, 2147483648
  %v4766 = vmul.f32 %v4764, 1.442695
  %v4767 = vpow.pop %v4766
  %v4768 = vmul.f32 %v4765, 1.442695
  %v4769 = vpow.pop %v4768
  %v4770 = vadd.f32 %v4767, 1.0
  %v4771 = vadd.f32 %v4769, 1.0
  %v4772 = vrcp.pop %v4770
  %v4773 = vmul.f32 1.0, %v4772
  %v4774 = vrcp.pop %v4771
  %v4775 = vmul.f32 1.0, %v4774
  %v4776 = vmul.f32 %v4759, %v4161
  %v4777 = vmul.f32 %v4761, %v4162
  %v4778 = vmul.f32 %v4747, %v4762
  %v4779 = vmul.f32 %v4749, %v4763
  %v4780 = vadd.f32 %v4776, %v4778
  %v4781 = vadd.f32 %v4777, %v4779
  %v4782 = vtanh.pop %v4780
  %v4783 = vtanh.pop %v4781
  %v4784 = vmul.f32 %v4773, %v4782
  %v4785 = vmul.f32 %v4775, %v4783
  %v4786 = vpack.c.bf16 %v4784, %v4784
  %v4787 = vpack.c.bf16 %v4785, %v4785
  %s4788 = smul.u32 3, 8
  %s4789 = smul.addr %s4788, 8
  %s4790 = scalar_lea.vmem [#allocation2], %s4789
  %v4791 = vld [vmem:[%s4790] sm:$0xff]
  %v4792 = vld [vmem:[%s4790 + $0x8] sm:$0xff]
  %v4793 = vld [vmem:[%s4790 + $0x10] sm:$0xff]
  %v4794 = vld [vmem:[%s4790 + $0x18] sm:$0xff]
  %v4795 = vld [vmem:[%s4790 + $0x20] sm:$0xff]
  %v4796 = vld [vmem:[%s4790 + $0x28] sm:$0xff]
  %v4797 = vld [vmem:[%s4790 + $0x30] sm:$0xff]
  %v4798 = vld [vmem:[%s4790 + $0x38] sm:$0xff]
  %4799 = vmatprep.subr.bf16.mxu0 %v1407
  %4800 = vmatpush1.bf16.msra.mxu0 %v1406
  %4801 = vmatprep.subr.bf16.mxu0 %v1415
  %4802 = vmatpush1.bf16.msra.mxu0 %v1414
  %4803 = vmatprep.subr.bf16.mxu0 %v1423
  %4804 = vmatpush1.bf16.msra.mxu0 %v1422
  %4805 = vmatprep.subr.bf16.mxu0 %v1431
  %4806 = vmatpush1.bf16.msra.mxu0 %v1430
  %4807 = vmatprep.subr.bf16.mxu0 %v1439
  %4808 = vmatpush1.bf16.msra.mxu0 %v1438
  %4809 = vmatprep.subr.bf16.mxu0 %v1447
  %4810 = vmatpush1.bf16.msra.mxu0 %v1446
  %4811 = vmatprep.subr.bf16.mxu0 %v1455
  %4812 = vmatpush1.bf16.msra.mxu0 %v1454
  %4813 = vmatprep.subr.bf16.mxu0 %v1463
  %4814 = vmatpush1.bf16.msra.mxu0 %v1462
  %4815 = vmatprep.subr.bf16.mxu0 %v1471
  %4816 = vmatpush1.bf16.msra.mxu0 %v1470
  %4817 = vmatprep.subr.bf16.mxu0 %v1479
  %4818 = vmatpush1.bf16.msra.mxu0 %v1478
  %4819 = vmatprep.subr.bf16.mxu0 %v1487
  %4820 = vmatpush1.bf16.msra.mxu0 %v1486
  %4821 = vmatprep.subr.bf16.mxu0 %v1495
  %4822 = vmatpush1.bf16.msra.mxu0 %v1494
  %4823 = vmatprep.subr.bf16.mxu0 %v1503
  %4824 = vmatpush1.bf16.msra.mxu0 %v1502
  %4825 = vmatprep.subr.bf16.mxu0 %v1511
  %4826 = vmatpush1.bf16.msra.mxu0 %v1510
  %4827 = vmatprep.subr.bf16.mxu0 %v1519
  %4828 = vmatpush1.bf16.msra.mxu0 %v1518
  %4829 = vmatprep.subr.bf16.mxu0 %v1527
  %4830 = vmatpush1.bf16.msra.mxu0 %v1526
  %4831 = vmatprep.mubr.bf16.mxu0 %v4401
  %4832 = vmatmul.mubr.bf16.gmra.mrb[0].mxu0 %v4400
  %v4833 = vpop.f32.mrb[0].mxu0
  %v4834 = vadd.f32 0.0, %v4833
  %v4835 = vpop.f32.mrb[0].mxu0
  %v4836 = vadd.f32 0.0, %v4835
  %v4837 = vpop.f32.mrb[0].mxu0
  %v4838 = vpop.f32.mrb[0].mxu0
  %4839 = vdwg.mxu0
  %4840 = vmatprep.subr.bf16.mxu0 %v1409
  %4841 = vmatpush1.bf16.msra.mxu0 %v1408
  %4842 = vmatprep.subr.bf16.mxu0 %v1417
  %4843 = vmatpush1.bf16.msra.mxu0 %v1416
  %4844 = vmatprep.subr.bf16.mxu0 %v1425
  %4845 = vmatpush1.bf16.msra.mxu0 %v1424
  %4846 = vmatprep.subr.bf16.mxu0 %v1433
  %4847 = vmatpush1.bf16.msra.mxu0 %v1432
  %4848 = vmatprep.subr.bf16.mxu0 %v1441
  %4849 = vmatpush1.bf16.msra.mxu0 %v1440
  %4850 = vmatprep.subr.bf16.mxu0 %v1449
  %4851 = vmatpush1.bf16.msra.mxu0 %v1448
  %4852 = vmatprep.subr.bf16.mxu0 %v1457
  %4853 = vmatpush1.bf16.msra.mxu0 %v1456
  %4854 = vmatprep.subr.bf16.mxu0 %v1465
  %4855 = vmatpush1.bf16.msra.mxu0 %v1464
  %4856 = vmatprep.subr.bf16.mxu0 %v1473
  %4857 = vmatpush1.bf16.msra.mxu0 %v1472
  %4858 = vmatprep.subr.bf16.mxu0 %v1481
  %4859 = vmatpush1.bf16.msra.mxu0 %v1480
  %4860 = vmatprep.subr.bf16.mxu0 %v1489
  %4861 = vmatpush1.bf16.msra.mxu0 %v1488
  %4862 = vmatprep.subr.bf16.mxu0 %v1497
  %4863 = vmatpush1.bf16.msra.mxu0 %v1496
  %4864 = vmatprep.subr.bf16.mxu0 %v1505
  %4865 = vmatpush1.bf16.msra.mxu0 %v1504
  %4866 = vmatprep.subr.bf16.mxu0 %v1513
  %4867 = vmatpush1.bf16.msra.mxu0 %v1512
  %4868 = vmatprep.subr.bf16.mxu0 %v1521
  %4869 = vmatpush1.bf16.msra.mxu0 %v1520
  %4870 = vmatprep.subr.bf16.mxu0 %v1529
  %4871 = vmatpush1.bf16.msra.mxu0 %v1528
  %4872 = vmatprep.mubr.bf16.mxu0 %v4401
  %4873 = vmatmul.mubr.bf16.gmra.mrb[0].mxu0 %v4400
  %v4874 = vpop.f32.mrb[0].mxu0
  %v4875 = vadd.f32 0.0, %v4874
  %v4876 = vpop.f32.mrb[0].mxu0
  %v4877 = vadd.f32 0.0, %v4876
  %v4878 = vpop.f32.mrb[0].mxu0
  %v4879 = vpop.f32.mrb[0].mxu0
  %4880 = vdwg.mxu0
  %4881 = vmatprep.subr.bf16.mxu0 %v1411
  %4882 = vmatpush1.bf16.msra.mxu0 %v1410
  %4883 = vmatprep.subr.bf16.mxu0 %v1419
  %4884 = vmatpush1.bf16.msra.mxu0 %v1418
  %4885 = vmatprep.subr.bf16.mxu0 %v1427
  %4886 = vmatpush1.bf16.msra.mxu0 %v1426
  %4887 = vmatprep.subr.bf16.mxu0 %v1435
  %4888 = vmatpush1.bf16.msra.mxu0 %v1434
  %4889 = vmatprep.subr.bf16.mxu0 %v1443
  %4890 = vmatpush1.bf16.msra.mxu0 %v1442
  %4891 = vmatprep.subr.bf16.mxu0 %v1451
  %4892 = vmatpush1.bf16.msra.mxu0 %v1450
  %4893 = vmatprep.subr.bf16.mxu0 %v1459
  %4894 = vmatpush1.bf16.msra.mxu0 %v1458
  %4895 = vmatprep.subr.bf16.mxu0 %v1467
  %4896 = vmatpush1.bf16.msra.mxu0 %v1466
  %4897 = vmatprep.subr.bf16.mxu0 %v1475
  %4898 = vmatpush1.bf16.msra.mxu0 %v1474
  %4899 = vmatprep.subr.bf16.mxu0 %v1483
  %4900 = vmatpush1.bf16.msra.mxu0 %v1482
  %4901 = vmatprep.subr.bf16.mxu0 %v1491
  %4902 = vmatpush1.bf16.msra.mxu0 %v1490
  %4903 = vmatprep.subr.bf16.mxu0 %v1499
  %4904 = vmatpush1.bf16.msra.mxu0 %v1498
  %4905 = vmatprep.subr.bf16.mxu0 %v1507
  %4906 = vmatpush1.bf16.msra.mxu0 %v1506
  %4907 = vmatprep.subr.bf16.mxu0 %v1515
  %4908 = vmatpush1.bf16.msra.mxu0 %v1514
  %4909 = vmatprep.subr.bf16.mxu0 %v1523
  %4910 = vmatpush1.bf16.msra.mxu0 %v1522
  %4911 = vmatprep.subr.bf16.mxu0 %v1531
  %4912 = vmatpush1.bf16.msra.mxu0 %v1530
  %4913 = vmatprep.mubr.bf16.mxu0 %v4401
  %4914 = vmatmul.mubr.bf16.gmra.mrb[0].mxu0 %v4400
  %v4915 = vpop.f32.mrb[0].mxu0
  %v4916 = vadd.f32 0.0, %v4915
  %v4917 = vpop.f32.mrb[0].mxu0
  %v4918 = vadd.f32 0.0, %v4917
  %v4919 = vpop.f32.mrb[0].mxu0
  %v4920 = vpop.f32.mrb[0].mxu0
  %4921 = vdwg.mxu0
  %4922 = vmatprep.subr.bf16.mxu0 %v1413
  %4923 = vmatpush1.bf16.msra.mxu0 %v1412
  %4924 = vmatprep.subr.bf16.mxu0 %v1421
  %4925 = vmatpush1.bf16.msra.mxu0 %v1420
  %4926 = vmatprep.subr.bf16.mxu0 %v1429
  %4927 = vmatpush1.bf16.msra.mxu0 %v1428
  %4928 = vmatprep.subr.bf16.mxu0 %v1437
  %4929 = vmatpush1.bf16.msra.mxu0 %v1436
  %4930 = vmatprep.subr.bf16.mxu0 %v1445
  %4931 = vmatpush1.bf16.msra.mxu0 %v1444
  %4932 = vmatprep.subr.bf16.mxu0 %v1453
  %4933 = vmatpush1.bf16.msra.mxu0 %v1452
  %4934 = vmatprep.subr.bf16.mxu0 %v1461
  %4935 = vmatpush1.bf16.msra.mxu0 %v1460
  %4936 = vmatprep.subr.bf16.mxu0 %v1469
  %4937 = vmatpush1.bf16.msra.mxu0 %v1468
  %4938 = vmatprep.subr.bf16.mxu0 %v1477
  %4939 = vmatpush1.bf16.msra.mxu0 %v1476
  %4940 = vmatprep.subr.bf16.mxu0 %v1485
  %4941 = vmatpush1.bf16.msra.mxu0 %v1484
  %4942 = vmatprep.subr.bf16.mxu0 %v1493
  %4943 = vmatpush1.bf16.msra.mxu0 %v1492
  %4944 = vmatprep.subr.bf16.mxu0 %v1501
  %4945 = vmatpush1.bf16.msra.mxu0 %v1500
  %4946 = vmatprep.subr.bf16.mxu0 %v1509
  %4947 = vmatpush1.bf16.msra.mxu0 %v1508
  %4948 = vmatprep.subr.bf16.mxu0 %v1517
  %4949 = vmatpush1.bf16.msra.mxu0 %v1516
  %4950 = vmatprep.subr.bf16.mxu0 %v1525
  %4951 = vmatpush1.bf16.msra.mxu0 %v1524
  %4952 = vmatprep.subr.bf16.mxu0 %v1533
  %4953 = vmatpush1.bf16.msra.mxu0 %v1532
  %4954 = vmatprep.mubr.bf16.mxu0 %v4401
  %4955 = vmatmul.mubr.bf16.gmra.mrb[0].mxu0 %v4400
  %v4956 = vpop.f32.mrb[0].mxu0
  %v4957 = vadd.f32 0.0, %v4956
  %v4958 = vpop.f32.mrb[0].mxu0
  %v4959 = vadd.f32 0.0, %v4958
  %v4960 = vpop.f32.mrb[0].mxu0
  %v4961 = vpop.f32.mrb[0].mxu0
  %4962 = vdwg.mxu0
  %v4963 = vadd.f32 %v4791, %v4834
  %v4964 = vadd.f32 %v4792, %v4836
  %v4965 = vadd.f32 %v4793, %v4875
  %v4966 = vadd.f32 %v4794, %v4877
  %v4967 = vadd.f32 %v4795, %v4916
  %v4968 = vadd.f32 %v4796, %v4918
  %v4969 = vadd.f32 %v4797, %v4957
  %v4970 = vadd.f32 %v4798, %v4959
  %v4971 = vxor.u32 %v4963, 2147483648
  %v4972 = vxor.u32 %v4964, 2147483648
  %v4973 = vmul.f32 %v4971, 1.442695
  %v4974 = vpow.pop %v4973
  %v4975 = vmul.f32 %v4972, 1.442695
  %v4976 = vpow.pop %v4975
  %v4977 = vadd.f32 %v4974, 1.0
  %v4978 = vadd.f32 %v4976, 1.0
  %v4979 = vrcp.pop %v4977
  %v4980 = vmul.f32 1.0, %v4979
  %v4981 = vrcp.pop %v4978
  %v4982 = vmul.f32 1.0, %v4981
  %v4983 = vxor.u32 %v4965, 2147483648
  %v4984 = vxor.u32 %v4966, 2147483648
  %v4985 = vmul.f32 %v4983, 1.442695
  %v4986 = vpow.pop %v4985
  %v4987 = vmul.f32 %v4984, 1.442695
  %v4988 = vpow.pop %v4987
  %v4989 = vadd.f32 %v4986, 1.0
  %v4990 = vadd.f32 %v4988, 1.0
  %v4991 = vrcp.pop %v4989
  %v4992 = vmul.f32 1.0, %v4991
  %v4993 = vrcp.pop %v4990
  %v4994 = vmul.f32 1.0, %v4993
  %v4995 = vtanh.pop %v4967
  %v4996 = vtanh.pop %v4968
  %v4997 = vxor.u32 %v4969, 2147483648
  %v4998 = vxor.u32 %v4970, 2147483648
  %v4999 = vmul.f32 %v4997, 1.442695
  %v5000 = vpow.pop %v4999
  %v5001 = vmul.f32 %v4998, 1.442695
  %v5002 = vpow.pop %v5001
  %v5003 = vadd.f32 %v5000, 1.0
  %v5004 = vadd.f32 %v5002, 1.0
  %v5005 = vrcp.pop %v5003
  %v5006 = vmul.f32 1.0, %v5005
  %v5007 = vrcp.pop %v5004
  %v5008 = vmul.f32 1.0, %v5007
  %v5009 = vmul.f32 %v4992, %v4394
  %v5010 = vmul.f32 %v4994, %v4395
  %v5011 = vmul.f32 %v4980, %v4995
  %v5012 = vmul.f32 %v4982, %v4996
  %v5013 = vadd.f32 %v5009, %v5011
  %v5014 = vadd.f32 %v5010, %v5012
  %v5015 = vtanh.pop %v5013
  %v5016 = vtanh.pop %v5014
  %v5017 = vmul.f32 %v5006, %v5015
  %v5018 = vmul.f32 %v5008, %v5016
  %v5019 = vpack.c.bf16 %v5017, %v5017
  %v5020 = vpack.c.bf16 %v5018, %v5018
  %5021 = vmatprep.subr.bf16.mxu0 %v2269
  %5022 = vmatpush1.bf16.msra.mxu0 %v2268
  %5023 = vmatprep.subr.bf16.mxu0 %v2277
  %5024 = vmatpush1.bf16.msra.mxu0 %v2276
  %5025 = vmatprep.subr.bf16.mxu0 %v2285
  %5026 = vmatpush1.bf16.msra.mxu0 %v2284
  %5027 = vmatprep.subr.bf16.mxu0 %v2293
  %5028 = vmatpush1.bf16.msra.mxu0 %v2292
  %5029 = vmatprep.subr.bf16.mxu0 %v2301
  %5030 = vmatpush1.bf16.msra.mxu0 %v2300
  %5031 = vmatprep.subr.bf16.mxu0 %v2309
  %5032 = vmatpush1.bf16.msra.mxu0 %v2308
  %5033 = vmatprep.subr.bf16.mxu0 %v2317
  %5034 = vmatpush1.bf16.msra.mxu0 %v2316
  %5035 = vmatprep.subr.bf16.mxu0 %v2325
  %5036 = vmatpush1.bf16.msra.mxu0 %v2324
  %5037 = vmatprep.subr.bf16.mxu0 %v2333
  %5038 = vmatpush1.bf16.msra.mxu0 %v2332
  %5039 = vmatprep.subr.bf16.mxu0 %v2341
  %5040 = vmatpush1.bf16.msra.mxu0 %v2340
  %5041 = vmatprep.subr.bf16.mxu0 %v2349
  %5042 = vmatpush1.bf16.msra.mxu0 %v2348
  %5043 = vmatprep.subr.bf16.mxu0 %v2357
  %5044 = vmatpush1.bf16.msra.mxu0 %v2356
  %5045 = vmatprep.subr.bf16.mxu0 %v2365
  %5046 = vmatpush1.bf16.msra.mxu0 %v2364
  %5047 = vmatprep.subr.bf16.mxu0 %v2373
  %5048 = vmatpush1.bf16.msra.mxu0 %v2372
  %5049 = vmatprep.subr.bf16.mxu0 %v2381
  %5050 = vmatpush1.bf16.msra.mxu0 %v2380
  %5051 = vmatprep.subr.bf16.mxu0 %v2389
  %5052 = vmatpush1.bf16.msra.mxu0 %v2388
  %5053 = vmatprep.mubr.bf16.mxu0 %v5020
  %5054 = vmatmul.mubr.bf16.gmra.mrb[0].mxu0 %v5019
  %v5055 = vpop.f32.mrb[0].mxu0
  %v5056 = vadd.f32 0.0, %v5055
  %v5057 = vpop.f32.mrb[0].mxu0
  %v5058 = vadd.f32 0.0, %v5057
  %v5059 = vpop.f32.mrb[0].mxu0
  %v5060 = vpop.f32.mrb[0].mxu0
  %5061 = vdwg.mxu0
  %5062 = vmatprep.subr.bf16.mxu0 %v2271
  %5063 = vmatpush1.bf16.msra.mxu0 %v2270
  %5064 = vmatprep.subr.bf16.mxu0 %v2279
  %5065 = vmatpush1.bf16.msra.mxu0 %v2278
  %5066 = vmatprep.subr.bf16.mxu0 %v2287
  %5067 = vmatpush1.bf16.msra.mxu0 %v2286
  %5068 = vmatprep.subr.bf16.mxu0 %v2295
  %5069 = vmatpush1.bf16.msra.mxu0 %v2294
  %5070 = vmatprep.subr.bf16.mxu0 %v2303
  %5071 = vmatpush1.bf16.msra.mxu0 %v2302
  %5072 = vmatprep.subr.bf16.mxu0 %v2311
  %5073 = vmatpush1.bf16.msra.mxu0 %v2310
  %5074 = vmatprep.subr.bf16.mxu0 %v2319
  %5075 = vmatpush1.bf16.msra.mxu0 %v2318
  %5076 = vmatprep.subr.bf16.mxu0 %v2327
  %5077 = vmatpush1.bf16.msra.mxu0 %v2326
  %5078 = vmatprep.subr.bf16.mxu0 %v2335
  %5079 = vmatpush1.bf16.msra.mxu0 %v2334
  %5080 = vmatprep.subr.bf16.mxu0 %v2343
  %5081 = vmatpush1.bf16.msra.mxu0 %v2342
  %5082 = vmatprep.subr.bf16.mxu0 %v2351
  %5083 = vmatpush1.bf16.msra.mxu0 %v2350
  %5084 = vmatprep.subr.bf16.mxu0 %v2359
  %5085 = vmatpush1.bf16.msra.mxu0 %v2358
  %5086 = vmatprep.subr.bf16.mxu0 %v2367
  %5087 = vmatpush1.bf16.msra.mxu0 %v2366
  %5088 = vmatprep.subr.bf16.mxu0 %v2375
  %5089 = vmatpush1.bf16.msra.mxu0 %v2374
  %5090 = vmatprep.subr.bf16.mxu0 %v2383
  %5091 = vmatpush1.bf16.msra.mxu0 %v2382
  %5092 = vmatprep.subr.bf16.mxu0 %v2391
  %5093 = vmatpush1.bf16.msra.mxu0 %v2390
  %5094 = vmatprep.mubr.bf16.mxu0 %v5020
  %5095 = vmatmul.mubr.bf16.gmra.mrb[0].mxu0 %v5019
  %v5096 = vpop.f32.mrb[0].mxu0
  %v5097 = vadd.f32 0.0, %v5096
  %v5098 = vpop.f32.mrb[0].mxu0
  %v5099 = vadd.f32 0.0, %v5098
  %v5100 = vpop.f32.mrb[0].mxu0
  %v5101 = vpop.f32.mrb[0].mxu0
  %5102 = vdwg.mxu0
  %5103 = vmatprep.subr.bf16.mxu0 %v2273
  %5104 = vmatpush1.bf16.msra.mxu0 %v2272
  %5105 = vmatprep.subr.bf16.mxu0 %v2281
  %5106 = vmatpush1.bf16.msra.mxu0 %v2280
  %5107 = vmatprep.subr.bf16.mxu0 %v2289
  %5108 = vmatpush1.bf16.msra.mxu0 %v2288
  %5109 = vmatprep.subr.bf16.mxu0 %v2297
  %5110 = vmatpush1.bf16.msra.mxu0 %v2296
  %5111 = vmatprep.subr.bf16.mxu0 %v2305
  %5112 = vmatpush1.bf16.msra.mxu0 %v2304
  %5113 = vmatprep.subr.bf16.mxu0 %v2313
  %5114 = vmatpush1.bf16.msra.mxu0 %v2312
  %5115 = vmatprep.subr.bf16.mxu0 %v2321
  %5116 = vmatpush1.bf16.msra.mxu0 %v2320
  %5117 = vmatprep.subr.bf16.mxu0 %v2329
  %5118 = vmatpush1.bf16.msra.mxu0 %v2328
  %5119 = vmatprep.subr.bf16.mxu0 %v2337
  %5120 = vmatpush1.bf16.msra.mxu0 %v2336
  %5121 = vmatprep.subr.bf16.mxu0 %v2345
  %5122 = vmatpush1.bf16.msra.mxu0 %v2344
  %5123 = vmatprep.subr.bf16.mxu0 %v2353
  %5124 = vmatpush1.bf16.msra.mxu0 %v2352
  %5125 = vmatprep.subr.bf16.mxu0 %v2361
  %5126 = vmatpush1.bf16.msra.mxu0 %v2360
  %5127 = vmatprep.subr.bf16.mxu0 %v2369
  %5128 = vmatpush1.bf16.msra.mxu0 %v2368
  %5129 = vmatprep.subr.bf16.mxu0 %v2377
  %5130 = vmatpush1.bf16.msra.mxu0 %v2376
  %5131 = vmatprep.subr.bf16.mxu0 %v2385
  %5132 = vmatpush1.bf16.msra.mxu0 %v2384
  %5133 = vmatprep.subr.bf16.mxu0 %v2393
  %5134 = vmatpush1.bf16.msra.mxu0 %v2392
  %5135 = vmatprep.mubr.bf16.mxu0 %v5020
  %5136 = vmatmul.mubr.bf16.gmra.mrb[0].mxu0 %v5019
  %v5137 = vpop.f32.mrb[0].mxu0
  %v5138 = vadd.f32 0.0, %v5137
  %v5139 = vpop.f32.mrb[0].mxu0
  %v5140 = vadd.f32 0.0, %v5139
  %v5141 = vpop.f32.mrb[0].mxu0
  %v5142 = vpop.f32.mrb[0].mxu0
  %5143 = vdwg.mxu0
  %5144 = vmatprep.subr.bf16.mxu0 %v2275
  %5145 = vmatpush1.bf16.msra.mxu0 %v2274
  %5146 = vmatprep.subr.bf16.mxu0 %v2283
  %5147 = vmatpush1.bf16.msra.mxu0 %v2282
  %5148 = vmatprep.subr.bf16.mxu0 %v2291
  %5149 = vmatpush1.bf16.msra.mxu0 %v2290
  %5150 = vmatprep.subr.bf16.mxu0 %v2299
  %5151 = vmatpush1.bf16.msra.mxu0 %v2298
  %5152 = vmatprep.subr.bf16.mxu0 %v2307
  %5153 = vmatpush1.bf16.msra.mxu0 %v2306
  %5154 = vmatprep.subr.bf16.mxu0 %v2315
  %5155 = vmatpush1.bf16.msra.mxu0 %v2314
  %5156 = vmatprep.subr.bf16.mxu0 %v2323
  %5157 = vmatpush1.bf16.msra.mxu0 %v2322
  %5158 = vmatprep.subr.bf16.mxu0 %v2331
  %5159 = vmatpush1.bf16.msra.mxu0 %v2330
  %5160 = vmatprep.subr.bf16.mxu0 %v2339
  %5161 = vmatpush1.bf16.msra.mxu0 %v2338
  %5162 = vmatprep.subr.bf16.mxu0 %v2347
  %5163 = vmatpush1.bf16.msra.mxu0 %v2346
  %5164 = vmatprep.subr.bf16.mxu0 %v2355
  %5165 = vmatpush1.bf16.msra.mxu0 %v2354
  %5166 = vmatprep.subr.bf16.mxu0 %v2363
  %5167 = vmatpush1.bf16.msra.mxu0 %v2362
  %5168 = vmatprep.subr.bf16.mxu0 %v2371
  %5169 = vmatpush1.bf16.msra.mxu0 %v2370
  %5170 = vmatprep.subr.bf16.mxu0 %v2379
  %5171 = vmatpush1.bf16.msra.mxu0 %v2378
  %5172 = vmatprep.subr.bf16.mxu0 %v2387
  %5173 = vmatpush1.bf16.msra.mxu0 %v2386
  %5174 = vmatprep.subr.bf16.mxu0 %v2395
  %5175 = vmatpush1.bf16.msra.mxu0 %v2394
  %5176 = vmatprep.mubr.bf16.mxu0 %v5020
  %5177 = vmatmul.mubr.bf16.gmra.mrb[0].mxu0 %v5019
  %v5178 = vpop.f32.mrb[0].mxu0
  %v5179 = vadd.f32 0.0, %v5178
  %v5180 = vpop.f32.mrb[0].mxu0
  %v5181 = vadd.f32 0.0, %v5180
  %v5182 = vpop.f32.mrb[0].mxu0
  %v5183 = vpop.f32.mrb[0].mxu0
  %5184 = vdwg.mxu0
  %5185 = vmatprep.subr.bf16.mxu0 %v3073
  %5186 = vmatpush1.bf16.msra.mxu0 %v3072
  %5187 = vmatprep.subr.bf16.mxu0 %v3081
  %5188 = vmatpush1.bf16.msra.mxu0 %v3080
  %5189 = vmatprep.subr.bf16.mxu0 %v3089
  %5190 = vmatpush1.bf16.msra.mxu0 %v3088
  %5191 = vmatprep.subr.bf16.mxu0 %v3097
  %5192 = vmatpush1.bf16.msra.mxu0 %v3096
  %5193 = vmatprep.subr.bf16.mxu0 %v3105
  %5194 = vmatpush1.bf16.msra.mxu0 %v3104
  %5195 = vmatprep.subr.bf16.mxu0 %v3113
  %5196 = vmatpush1.bf16.msra.mxu0 %v3112
  %5197 = vmatprep.subr.bf16.mxu0 %v3121
  %5198 = vmatpush1.bf16.msra.mxu0 %v3120
  %5199 = vmatprep.subr.bf16.mxu0 %v3129
  %5200 = vmatpush1.bf16.msra.mxu0 %v3128
  %5201 = vmatprep.subr.bf16.mxu0 %v3137
  %5202 = vmatpush1.bf16.msra.mxu0 %v3136
  %5203 = vmatprep.subr.bf16.mxu0 %v3145
  %5204 = vmatpush1.bf16.msra.mxu0 %v3144
  %5205 = vmatprep.subr.bf16.mxu0 %v3153
  %5206 = vmatpush1.bf16.msra.mxu0 %v3152
  %5207 = vmatprep.subr.bf16.mxu0 %v3161
  %5208 = vmatpush1.bf16.msra.mxu0 %v3160
  %5209 = vmatprep.subr.bf16.mxu0 %v3169
  %5210 = vmatpush1.bf16.msra.mxu0 %v3168
  %5211 = vmatprep.subr.bf16.mxu0 %v3177
  %5212 = vmatpush1.bf16.msra.mxu0 %v3176
  %5213 = vmatprep.subr.bf16.mxu0 %v3185
  %5214 = vmatpush1.bf16.msra.mxu0 %v3184
  %5215 = vmatprep.subr.bf16.mxu0 %v3193
  %5216 = vmatpush1.bf16.msra.mxu0 %v3192
  %5217 = vmatprep.mubr.bf16.mxu0 %v4787
  %5218 = vmatmul.mubr.bf16.gmra.mrb[0].mxu0 %v4786
  %v5219 = vpop.f32.mrb[0].mxu0
  %v5220 = vadd.f32 %v5056, %v5219
  %v5221 = vpop.f32.mrb[0].mxu0
  %v5222 = vadd.f32 %v5058, %v5221
  %v5223 = vpop.f32.mrb[0].mxu0
  %v5224 = vpop.f32.mrb[0].mxu0
  %5225 = vdwg.mxu0
  %5226 = vmatprep.subr.bf16.mxu0 %v3075
  %5227 = vmatpush1.bf16.msra.mxu0 %v3074
  %5228 = vmatprep.subr.bf16.mxu0 %v3083
  %5229 = vmatpush1.bf16.msra.mxu0 %v3082
  %5230 = vmatprep.subr.bf16.mxu0 %v3091
  %5231 = vmatpush1.bf16.msra.mxu0 %v3090
  %5232 = vmatprep.subr.bf16.mxu0 %v3099
  %5233 = vmatpush1.bf16.msra.mxu0 %v3098
  %5234 = vmatprep.subr.bf16.mxu0 %v3107
  %5235 = vmatpush1.bf16.msra.mxu0 %v3106
  %5236 = vmatprep.subr.bf16.mxu0 %v3115
  %5237 = vmatpush1.bf16.msra.mxu0 %v3114
  %5238 = vmatprep.subr.bf16.mxu0 %v3123
  %5239 = vmatpush1.bf16.msra.mxu0 %v3122
  %5240 = vmatprep.subr.bf16.mxu0 %v3131
  %5241 = vmatpush1.bf16.msra.mxu0 %v3130
  %5242 = vmatprep.subr.bf16.mxu0 %v3139
  %5243 = vmatpush1.bf16.msra.mxu0 %v3138
  %5244 = vmatprep.subr.bf16.mxu0 %v3147
  %5245 = vmatpush1.bf16.msra.mxu0 %v3146
  %5246 = vmatprep.subr.bf16.mxu0 %v3155
  %5247 = vmatpush1.bf16.msra.mxu0 %v3154
  %5248 = vmatprep.subr.bf16.mxu0 %v3163
  %5249 = vmatpush1.bf16.msra.mxu0 %v3162
  %5250 = vmatprep.subr.bf16.mxu0 %v3171
  %5251 = vmatpush1.bf16.msra.mxu0 %v3170
  %5252 = vmatprep.subr.bf16.mxu0 %v3179
  %5253 = vmatpush1.bf16.msra.mxu0 %v3178
  %5254 = vmatprep.subr.bf16.mxu0 %v3187
  %5255 = vmatpush1.bf16.msra.mxu0 %v3186
  %5256 = vmatprep.subr.bf16.mxu0 %v3195
  %5257 = vmatpush1.bf16.msra.mxu0 %v3194
  %5258 = vmatprep.mubr.bf16.mxu0 %v4787
  %5259 = vmatmul.mubr.bf16.gmra.mrb[0].mxu0 %v4786
  %v5260 = vpop.f32.mrb[0].mxu0
  %v5261 = vadd.f32 %v5097, %v5260
  %v5262 = vpop.f32.mrb[0].mxu0
  %v5263 = vadd.f32 %v5099, %v5262
  %v5264 = vpop.f32.mrb[0].mxu0
  %v5265 = vpop.f32.mrb[0].mxu0
  %5266 = vdwg.mxu0
  %5267 = vmatprep.subr.bf16.mxu0 %v3077
  %5268 = vmatpush1.bf16.msra.mxu0 %v3076
  %5269 = vmatprep.subr.bf16.mxu0 %v3085
  %5270 = vmatpush1.bf16.msra.mxu0 %v3084
  %5271 = vmatprep.subr.bf16.mxu0 %v3093
  %5272 = vmatpush1.bf16.msra.mxu0 %v3092
  %5273 = vmatprep.subr.bf16.mxu0 %v3101
  %5274 = vmatpush1.bf16.msra.mxu0 %v3100
  %5275 = vmatprep.subr.bf16.mxu0 %v3109
  %5276 = vmatpush1.bf16.msra.mxu0 %v3108
  %5277 = vmatprep.subr.bf16.mxu0 %v3117
  %5278 = vmatpush1.bf16.msra.mxu0 %v3116
  %5279 = vmatprep.subr.bf16.mxu0 %v3125
  %5280 = vmatpush1.bf16.msra.mxu0 %v3124
  %5281 = vmatprep.subr.bf16.mxu0 %v3133
  %5282 = vmatpush1.bf16.msra.mxu0 %v3132
  %5283 = vmatprep.subr.bf16.mxu0 %v3141
  %5284 = vmatpush1.bf16.msra.mxu0 %v3140
  %5285 = vmatprep.subr.bf16.mxu0 %v3149
  %5286 = vmatpush1.bf16.msra.mxu0 %v3148
  %5287 = vmatprep.subr.bf16.mxu0 %v3157
  %5288 = vmatpush1.bf16.msra.mxu0 %v3156
  %5289 = vmatprep.subr.bf16.mxu0 %v3165
  %5290 = vmatpush1.bf16.msra.mxu0 %v3164
  %5291 = vmatprep.subr.bf16.mxu0 %v3173
  %5292 = vmatpush1.bf16.msra.mxu0 %v3172
  %5293 = vmatprep.subr.bf16.mxu0 %v3181
  %5294 = vmatpush1.bf16.msra.mxu0 %v3180
  %5295 = vmatprep.subr.bf16.mxu0 %v3189
  %5296 = vmatpush1.bf16.msra.mxu0 %v3188
  %5297 = vmatprep.subr.bf16.mxu0 %v3197
  %5298 = vmatpush1.bf16.msra.mxu0 %v3196
  %5299 = vmatprep.mubr.bf16.mxu0 %v4787
  %5300 = vmatmul.mubr.bf16.gmra.mrb[0].mxu0 %v4786
  %v5301 = vpop.f32.mrb[0].mxu0
  %v5302 = vadd.f32 %v5138, %v5301
  %v5303 = vpop.f32.mrb[0].mxu0
  %v5304 = vadd.f32 %v5140, %v5303
  %v5305 = vpop.f32.mrb[0].mxu0
  %v5306 = vpop.f32.mrb[0].mxu0
  %5307 = vdwg.mxu0
  %5308 = vmatprep.subr.bf16.mxu0 %v3079
  %5309 = vmatpush1.bf16.msra.mxu0 %v3078
  %5310 = vmatprep.subr.bf16.mxu0 %v3087
  %5311 = vmatpush1.bf16.msra.mxu0 %v3086
  %5312 = vmatprep.subr.bf16.mxu0 %v3095
  %5313 = vmatpush1.bf16.msra.mxu0 %v3094
  %5314 = vmatprep.subr.bf16.mxu0 %v3103
  %5315 = vmatpush1.bf16.msra.mxu0 %v3102
  %5316 = vmatprep.subr.bf16.mxu0 %v3111
  %5317 = vmatpush1.bf16.msra.mxu0 %v3110
  %5318 = vmatprep.subr.bf16.mxu0 %v3119
  %5319 = vmatpush1.bf16.msra.mxu0 %v3118
  %5320 = vmatprep.subr.bf16.mxu0 %v3127
  %5321 = vmatpush1.bf16.msra.mxu0 %v3126
  %5322 = vmatprep.subr.bf16.mxu0 %v3135
  %5323 = vmatpush1.bf16.msra.mxu0 %v3134
  %5324 = vmatprep.subr.bf16.mxu0 %v3143
  %5325 = vmatpush1.bf16.msra.mxu0 %v3142
  %5326 = vmatprep.subr.bf16.mxu0 %v3151
  %5327 = vmatpush1.bf16.msra.mxu0 %v3150
  %5328 = vmatprep.subr.bf16.mxu0 %v3159
  %5329 = vmatpush1.bf16.msra.mxu0 %v3158
  %5330 = vmatprep.subr.bf16.mxu0 %v3167
  %5331 = vmatpush1.bf16.msra.mxu0 %v3166
  %5332 = vmatprep.subr.bf16.mxu0 %v3175
  %5333 = vmatpush1.bf16.msra.mxu0 %v3174
  %5334 = vmatprep.subr.bf16.mxu0 %v3183
  %5335 = vmatpush1.bf16.msra.mxu0 %v3182
  %5336 = vmatprep.subr.bf16.mxu0 %v3191
  %5337 = vmatpush1.bf16.msra.mxu0 %v3190
  %5338 = vmatprep.subr.bf16.mxu0 %v3199
  %5339 = vmatpush1.bf16.msra.mxu0 %v3198
  %5340 = vmatprep.mubr.bf16.mxu0 %v4787
  %5341 = vmatmul.mubr.bf16.gmra.mrb[0].mxu0 %v4786
  %v5342 = vpop.f32.mrb[0].mxu0
  %v5343 = vadd.f32 %v5179, %v5342
  %v5344 = vpop.f32.mrb[0].mxu0
  %v5345 = vadd.f32 %v5181, %v5344
  %v5346 = vpop.f32.mrb[0].mxu0
  %v5347 = vpop.f32.mrb[0].mxu0
  %5348 = vdwg.mxu0
  %v5349 = vadd.f32 %v5220, %v439
  %v5350 = vadd.f32 %v5222, %v443
  %v5351 = vadd.f32 %v5261, %v447
  %v5352 = vadd.f32 %v5263, %v451
  %v5353 = vadd.f32 %v5302, %v455
  %v5354 = vadd.f32 %v5304, %v459
  %v5355 = vadd.f32 %v5343, %v463
  %v5356 = vadd.f32 %v5345, %v467
  %v5357 = vxor.u32 %v5349, 2147483648
  %v5358 = vxor.u32 %v5350, 2147483648
  %v5359 = vmul.f32 %v5357, 1.442695
  %v5360 = vpow.pop %v5359
  %v5361 = vmul.f32 %v5358, 1.442695
  %v5362 = vpow.pop %v5361
  %v5363 = vadd.f32 %v5360, 1.0
  %v5364 = vadd.f32 %v5362, 1.0
  %v5365 = vrcp.pop %v5363
  %v5366 = vmul.f32 1.0, %v5365
  %v5367 = vrcp.pop %v5364
  %v5368 = vmul.f32 1.0, %v5367
  %v5369 = vxor.u32 %v5351, 2147483648
  %v5370 = vxor.u32 %v5352, 2147483648
  %v5371 = vmul.f32 %v5369, 1.442695
  %v5372 = vpow.pop %v5371
  %v5373 = vmul.f32 %v5370, 1.442695
  %v5374 = vpow.pop %v5373
  %v5375 = vadd.f32 %v5372, 1.0
  %v5376 = vadd.f32 %v5374, 1.0
  %v5377 = vrcp.pop %v5375
  %v5378 = vmul.f32 1.0, %v5377
  %v5379 = vrcp.pop %v5376
  %v5380 = vmul.f32 1.0, %v5379
  %v5381 = vtanh.pop %v5353
  %v5382 = vtanh.pop %v5354
  %v5383 = vxor.u32 %v5355, 2147483648
  %v5384 = vxor.u32 %v5356, 2147483648
  %v5385 = vmul.f32 %v5383, 1.442695
  %v5386 = vpow.pop %v5385
  %v5387 = vmul.f32 %v5384, 1.442695
  %v5388 = vpow.pop %v5387
  %v5389 = vadd.f32 %v5386, 1.0
  %v5390 = vadd.f32 %v5388, 1.0
  %v5391 = vrcp.pop %v5389
  %v5392 = vmul.f32 1.0, %v5391
  %v5393 = vrcp.pop %v5390
  %v5394 = vmul.f32 1.0, %v5393
  %v5395 = vmul.f32 %v5378, %v4780
  %v5396 = vmul.f32 %v5380, %v4781
  %v5397 = vmul.f32 %v5366, %v5381
  %v5398 = vmul.f32 %v5368, %v5382
  %v5399 = vadd.f32 %v5395, %v5397
  %v5400 = vadd.f32 %v5396, %v5398
  %v5401 = vtanh.pop %v5399
  %v5402 = vtanh.pop %v5400
  %v5403 = vmul.f32 %v5392, %v5401
  %v5404 = vmul.f32 %v5394, %v5402
  %v5405 = vpack.c.bf16 %v5403, %v5403
  %v5406 = vpack.c.bf16 %v5404, %v5404
  %s5407 = smul.u32 4, 8
  %s5408 = smul.addr %s5407, 8
  %s5409 = scalar_lea.vmem [#allocation2], %s5408
  %v5410 = vld [vmem:[%s5409] sm:$0xff]
  %v5411 = vld [vmem:[%s5409 + $0x8] sm:$0xff]
  %v5412 = vld [vmem:[%s5409 + $0x10] sm:$0xff]
  %v5413 = vld [vmem:[%s5409 + $0x18] sm:$0xff]
  %v5414 = vld [vmem:[%s5409 + $0x20] sm:$0xff]
  %v5415 = vld [vmem:[%s5409 + $0x28] sm:$0xff]
  %v5416 = vld [vmem:[%s5409 + $0x30] sm:$0xff]
  %v5417 = vld [vmem:[%s5409 + $0x38] sm:$0xff]
  %5418 = vmatprep.subr.bf16.mxu0 %v1407
  %5419 = vmatpush1.bf16.msra.mxu0 %v1406
  %5420 = vmatprep.subr.bf16.mxu0 %v1415
  %5421 = vmatpush1.bf16.msra.mxu0 %v1414
  %5422 = vmatprep.subr.bf16.mxu0 %v1423
  %5423 = vmatpush1.bf16.msra.mxu0 %v1422
  %5424 = vmatprep.subr.bf16.mxu0 %v1431
  %5425 = vmatpush1.bf16.msra.mxu0 %v1430
  %5426 = vmatprep.subr.bf16.mxu0 %v1439
  %5427 = vmatpush1.bf16.msra.mxu0 %v1438
  %5428 = vmatprep.subr.bf16.mxu0 %v1447
  %5429 = vmatpush1.bf16.msra.mxu0 %v1446
  %5430 = vmatprep.subr.bf16.mxu0 %v1455
  %5431 = vmatpush1.bf16.msra.mxu0 %v1454
  %5432 = vmatprep.subr.bf16.mxu0 %v1463
  %5433 = vmatpush1.bf16.msra.mxu0 %v1462
  %5434 = vmatprep.subr.bf16.mxu0 %v1471
  %5435 = vmatpush1.bf16.msra.mxu0 %v1470
  %5436 = vmatprep.subr.bf16.mxu0 %v1479
  %5437 = vmatpush1.bf16.msra.mxu0 %v1478
  %5438 = vmatprep.subr.bf16.mxu0 %v1487
  %5439 = vmatpush1.bf16.msra.mxu0 %v1486
  %5440 = vmatprep.subr.bf16.mxu0 %v1495
  %5441 = vmatpush1.bf16.msra.mxu0 %v1494
  %5442 = vmatprep.subr.bf16.mxu0 %v1503
  %5443 = vmatpush1.bf16.msra.mxu0 %v1502
  %5444 = vmatprep.subr.bf16.mxu0 %v1511
  %5445 = vmatpush1.bf16.msra.mxu0 %v1510
  %5446 = vmatprep.subr.bf16.mxu0 %v1519
  %5447 = vmatpush1.bf16.msra.mxu0 %v1518
  %5448 = vmatprep.subr.bf16.mxu0 %v1527
  %5449 = vmatpush1.bf16.msra.mxu0 %v1526
  %5450 = vmatprep.mubr.bf16.mxu0 %v5020
  %5451 = vmatmul.mubr.bf16.gmra.mrb[0].mxu0 %v5019
  %v5452 = vpop.f32.mrb[0].mxu0
  %v5453 = vadd.f32 0.0, %v5452
  %v5454 = vpop.f32.mrb[0].mxu0
  %v5455 = vadd.f32 0.0, %v5454
  %v5456 = vpop.f32.mrb[0].mxu0
  %v5457 = vpop.f32.mrb[0].mxu0
  %5458 = vdwg.mxu0
  %5459 = vmatprep.subr.bf16.mxu0 %v1409
  %5460 = vmatpush1.bf16.msra.mxu0 %v1408
  %5461 = vmatprep.subr.bf16.mxu0 %v1417
  %5462 = vmatpush1.bf16.msra.mxu0 %v1416
  %5463 = vmatprep.subr.bf16.mxu0 %v1425
  %5464 = vmatpush1.bf16.msra.mxu0 %v1424
  %5465 = vmatprep.subr.bf16.mxu0 %v1433
  %5466 = vmatpush1.bf16.msra.mxu0 %v1432
  %5467 = vmatprep.subr.bf16.mxu0 %v1441
  %5468 = vmatpush1.bf16.msra.mxu0 %v1440
  %5469 = vmatprep.subr.bf16.mxu0 %v1449
  %5470 = vmatpush1.bf16.msra.mxu0 %v1448
  %5471 = vmatprep.subr.bf16.mxu0 %v1457
  %5472 = vmatpush1.bf16.msra.mxu0 %v1456
  %5473 = vmatprep.subr.bf16.mxu0 %v1465
  %5474 = vmatpush1.bf16.msra.mxu0 %v1464
  %5475 = vmatprep.subr.bf16.mxu0 %v1473
  %5476 = vmatpush1.bf16.msra.mxu0 %v1472
  %5477 = vmatprep.subr.bf16.mxu0 %v1481
  %5478 = vmatpush1.bf16.msra.mxu0 %v1480
  %5479 = vmatprep.subr.bf16.mxu0 %v1489
  %5480 = vmatpush1.bf16.msra.mxu0 %v1488
  %5481 = vmatprep.subr.bf16.mxu0 %v1497
  %5482 = vmatpush1.bf16.msra.mxu0 %v1496
  %5483 = vmatprep.subr.bf16.mxu0 %v1505
  %5484 = vmatpush1.bf16.msra.mxu0 %v1504
  %5485 = vmatprep.subr.bf16.mxu0 %v1513
  %5486 = vmatpush1.bf16.msra.mxu0 %v1512
  %5487 = vmatprep.subr.bf16.mxu0 %v1521
  %5488 = vmatpush1.bf16.msra.mxu0 %v1520
  %5489 = vmatprep.subr.bf16.mxu0 %v1529
  %5490 = vmatpush1.bf16.msra.mxu0 %v1528
  %5491 = vmatprep.mubr.bf16.mxu0 %v5020
  %5492 = vmatmul.mubr.bf16.gmra.mrb[0].mxu0 %v5019
  %v5493 = vpop.f32.mrb[0].mxu0
  %v5494 = vadd.f32 0.0, %v5493
  %v5495 = vpop.f32.mrb[0].mxu0
  %v5496 = vadd.f32 0.0, %v5495
  %v5497 = vpop.f32.mrb[0].mxu0
  %v5498 = vpop.f32.mrb[0].mxu0
  %5499 = vdwg.mxu0
  %5500 = vmatprep.subr.bf16.mxu0 %v1411
  %5501 = vmatpush1.bf16.msra.mxu0 %v1410
  %5502 = vmatprep.subr.bf16.mxu0 %v1419
  %5503 = vmatpush1.bf16.msra.mxu0 %v1418
  %5504 = vmatprep.subr.bf16.mxu0 %v1427
  %5505 = vmatpush1.bf16.msra.mxu0 %v1426
  %5506 = vmatprep.subr.bf16.mxu0 %v1435
  %5507 = vmatpush1.bf16.msra.mxu0 %v1434
  %5508 = vmatprep.subr.bf16.mxu0 %v1443
  %5509 = vmatpush1.bf16.msra.mxu0 %v1442
  %5510 = vmatprep.subr.bf16.mxu0 %v1451
  %5511 = vmatpush1.bf16.msra.mxu0 %v1450
  %5512 = vmatprep.subr.bf16.mxu0 %v1459
  %5513 = vmatpush1.bf16.msra.mxu0 %v1458
  %5514 = vmatprep.subr.bf16.mxu0 %v1467
  %5515 = vmatpush1.bf16.msra.mxu0 %v1466
  %5516 = vmatprep.subr.bf16.mxu0 %v1475
  %5517 = vmatpush1.bf16.msra.mxu0 %v1474
  %5518 = vmatprep.subr.bf16.mxu0 %v1483
  %5519 = vmatpush1.bf16.msra.mxu0 %v1482
  %5520 = vmatprep.subr.bf16.mxu0 %v1491
  %5521 = vmatpush1.bf16.msra.mxu0 %v1490
  %5522 = vmatprep.subr.bf16.mxu0 %v1499
  %5523 = vmatpush1.bf16.msra.mxu0 %v1498
  %5524 = vmatprep.subr.bf16.mxu0 %v1507
  %5525 = vmatpush1.bf16.msra.mxu0 %v1506
  %5526 = vmatprep.subr.bf16.mxu0 %v1515
  %5527 = vmatpush1.bf16.msra.mxu0 %v1514
  %5528 = vmatprep.subr.bf16.mxu0 %v1523
  %5529 = vmatpush1.bf16.msra.mxu0 %v1522
  %5530 = vmatprep.subr.bf16.mxu0 %v1531
  %5531 = vmatpush1.bf16.msra.mxu0 %v1530
  %5532 = vmatprep.mubr.bf16.mxu0 %v5020
  %5533 = vmatmul.mubr.bf16.gmra.mrb[0].mxu0 %v5019
  %v5534 = vpop.f32.mrb[0].mxu0
  %v5535 = vadd.f32 0.0, %v5534
  %v5536 = vpop.f32.mrb[0].mxu0
  %v5537 = vadd.f32 0.0, %v5536
  %v5538 = vpop.f32.mrb[0].mxu0
  %v5539 = vpop.f32.mrb[0].mxu0
  %5540 = vdwg.mxu0
  %5541 = vmatprep.subr.bf16.mxu0 %v1413
  %5542 = vmatpush1.bf16.msra.mxu0 %v1412
  %5543 = vmatprep.subr.bf16.mxu0 %v1421
  %5544 = vmatpush1.bf16.msra.mxu0 %v1420
  %5545 = vmatprep.subr.bf16.mxu0 %v1429
  %5546 = vmatpush1.bf16.msra.mxu0 %v1428
  %5547 = vmatprep.subr.bf16.mxu0 %v1437
  %5548 = vmatpush1.bf16.msra.mxu0 %v1436
  %5549 = vmatprep.subr.bf16.mxu0 %v1445
  %5550 = vmatpush1.bf16.msra.mxu0 %v1444
  %5551 = vmatprep.subr.bf16.mxu0 %v1453
  %5552 = vmatpush1.bf16.msra.mxu0 %v1452
  %5553 = vmatprep.subr.bf16.mxu0 %v1461
  %5554 = vmatpush1.bf16.msra.mxu0 %v1460
  %5555 = vmatprep.subr.bf16.mxu0 %v1469
  %5556 = vmatpush1.bf16.msra.mxu0 %v1468
  %5557 = vmatprep.subr.bf16.mxu0 %v1477
  %5558 = vmatpush1.bf16.msra.mxu0 %v1476
  %5559 = vmatprep.subr.bf16.mxu0 %v1485
  %5560 = vmatpush1.bf16.msra.mxu0 %v1484
  %5561 = vmatprep.subr.bf16.mxu0 %v1493
  %5562 = vmatpush1.bf16.msra.mxu0 %v1492
  %5563 = vmatprep.subr.bf16.mxu0 %v1501
  %5564 = vmatpush1.bf16.msra.mxu0 %v1500
  %5565 = vmatprep.subr.bf16.mxu0 %v1509
  %5566 = vmatpush1.bf16.msra.mxu0 %v1508
  %5567 = vmatprep.subr.bf16.mxu0 %v1517
  %5568 = vmatpush1.bf16.msra.mxu0 %v1516
  %5569 = vmatprep.subr.bf16.mxu0 %v1525
  %5570 = vmatpush1.bf16.msra.mxu0 %v1524
  %5571 = vmatprep.subr.bf16.mxu0 %v1533
  %5572 = vmatpush1.bf16.msra.mxu0 %v1532
  %5573 = vmatprep.mubr.bf16.mxu0 %v5020
  %5574 = vmatmul.mubr.bf16.gmra.mrb[0].mxu0 %v5019
  %v5575 = vpop.f32.mrb[0].mxu0
  %v5576 = vadd.f32 0.0, %v5575
  %v5577 = vpop.f32.mrb[0].mxu0
  %v5578 = vadd.f32 0.0, %v5577
  %v5579 = vpop.f32.mrb[0].mxu0
  %v5580 = vpop.f32.mrb[0].mxu0
  %5581 = vdwg.mxu0
  %v5582 = vadd.f32 %v5410, %v5453
  %v5583 = vadd.f32 %v5411, %v5455
  %v5584 = vadd.f32 %v5412, %v5494
  %v5585 = vadd.f32 %v5413, %v5496
  %v5586 = vadd.f32 %v5414, %v5535
  %v5587 = vadd.f32 %v5415, %v5537
  %v5588 = vadd.f32 %v5416, %v5576
  %v5589 = vadd.f32 %v5417, %v5578
  %v5590 = vxor.u32 %v5582, 2147483648
  %v5591 = vxor.u32 %v5583, 2147483648
  %v5592 = vmul.f32 %v5590, 1.442695
  %v5593 = vpow.pop %v5592
  %v5594 = vmul.f32 %v5591, 1.442695
  %v5595 = vpow.pop %v5594
  %v5596 = vadd.f32 %v5593, 1.0
  %v5597 = vadd.f32 %v5595, 1.0
  %v5598 = vrcp.pop %v5596
  %v5599 = vmul.f32 1.0, %v5598
  %v5600 = vrcp.pop %v5597
  %v5601 = vmul.f32 1.0, %v5600
  %v5602 = vxor.u32 %v5584, 2147483648
  %v5603 = vxor.u32 %v5585, 2147483648
  %v5604 = vmul.f32 %v5602, 1.442695
  %v5605 = vpow.pop %v5604
  %v5606 = vmul.f32 %v5603, 1.442695
  %v5607 = vpow.pop %v5606
  %v5608 = vadd.f32 %v5605, 1.0
  %v5609 = vadd.f32 %v5607, 1.0
  %v5610 = vrcp.pop %v5608
  %v5611 = vmul.f32 1.0, %v5610
  %v5612 = vrcp.pop %v5609
  %v5613 = vmul.f32 1.0, %v5612
  %v5614 = vtanh.pop %v5586
  %v5615 = vtanh.pop %v5587
  %v5616 = vxor.u32 %v5588, 2147483648
  %v5617 = vxor.u32 %v5589, 2147483648
  %v5618 = vmul.f32 %v5616, 1.442695
  %v5619 = vpow.pop %v5618
  %v5620 = vmul.f32 %v5617, 1.442695
  %v5621 = vpow.pop %v5620
  %v5622 = vadd.f32 %v5619, 1.0
  %v5623 = vadd.f32 %v5621, 1.0
  %v5624 = vrcp.pop %v5622
  %v5625 = vmul.f32 1.0, %v5624
  %v5626 = vrcp.pop %v5623
  %v5627 = vmul.f32 1.0, %v5626
  %v5628 = vmul.f32 %v5611, %v5013
  %v5629 = vmul.f32 %v5613, %v5014
  %v5630 = vmul.f32 %v5599, %v5614
  %v5631 = vmul.f32 %v5601, %v5615
  %v5632 = vadd.f32 %v5628, %v5630
  %v5633 = vadd.f32 %v5629, %v5631
  %v5634 = vtanh.pop %v5632
  %v5635 = vtanh.pop %v5633
  %v5636 = vmul.f32 %v5625, %v5634
  %v5637 = vmul.f32 %v5627, %v5635
  %v5638 = vpack.c.bf16 %v5636, %v5636
  %v5639 = vpack.c.bf16 %v5637, %v5637
  %5640 = vmatprep.subr.bf16.mxu0 %v2269
  %5641 = vmatpush1.bf16.msra.mxu0 %v2268
  %5642 = vmatprep.subr.bf16.mxu0 %v2277
  %5643 = vmatpush1.bf16.msra.mxu0 %v2276
  %5644 = vmatprep.subr.bf16.mxu0 %v2285
  %5645 = vmatpush1.bf16.msra.mxu0 %v2284
  %5646 = vmatprep.subr.bf16.mxu0 %v2293
  %5647 = vmatpush1.bf16.msra.mxu0 %v2292
  %5648 = vmatprep.subr.bf16.mxu0 %v2301
  %5649 = vmatpush1.bf16.msra.mxu0 %v2300
  %5650 = vmatprep.subr.bf16.mxu0 %v2309
  %5651 = vmatpush1.bf16.msra.mxu0 %v2308
  %5652 = vmatprep.subr.bf16.mxu0 %v2317
  %5653 = vmatpush1.bf16.msra.mxu0 %v2316
  %5654 = vmatprep.subr.bf16.mxu0 %v2325
  %5655 = vmatpush1.bf16.msra.mxu0 %v2324
  %5656 = vmatprep.subr.bf16.mxu0 %v2333
  %5657 = vmatpush1.bf16.msra.mxu0 %v2332
  %5658 = vmatprep.subr.bf16.mxu0 %v2341
  %5659 = vmatpush1.bf16.msra.mxu0 %v2340
  %5660 = vmatprep.subr.bf16.mxu0 %v2349
  %5661 = vmatpush1.bf16.msra.mxu0 %v2348
  %5662 = vmatprep.subr.bf16.mxu0 %v2357
  %5663 = vmatpush1.bf16.msra.mxu0 %v2356
  %5664 = vmatprep.subr.bf16.mxu0 %v2365
  %5665 = vmatpush1.bf16.msra.mxu0 %v2364
  %5666 = vmatprep.subr.bf16.mxu0 %v2373
  %5667 = vmatpush1.bf16.msra.mxu0 %v2372
  %5668 = vmatprep.subr.bf16.mxu0 %v2381
  %5669 = vmatpush1.bf16.msra.mxu0 %v2380
  %5670 = vmatprep.subr.bf16.mxu0 %v2389
  %5671 = vmatpush1.bf16.msra.mxu0 %v2388
  %5672 = vmatprep.mubr.bf16.mxu0 %v5639
  %5673 = vmatmul.mubr.bf16.gmra.mrb[0].mxu0 %v5638
  %v5674 = vpop.f32.mrb[0].mxu0
  %v5675 = vadd.f32 0.0, %v5674
  %v5676 = vpop.f32.mrb[0].mxu0
  %v5677 = vadd.f32 0.0, %v5676
  %v5678 = vpop.f32.mrb[0].mxu0
  %v5679 = vpop.f32.mrb[0].mxu0
  %5680 = vdwg.mxu0
  %5681 = vmatprep.subr.bf16.mxu0 %v2271
  %5682 = vmatpush1.bf16.msra.mxu0 %v2270
  %5683 = vmatprep.subr.bf16.mxu0 %v2279
  %5684 = vmatpush1.bf16.msra.mxu0 %v2278
  %5685 = vmatprep.subr.bf16.mxu0 %v2287
  %5686 = vmatpush1.bf16.msra.mxu0 %v2286
  %5687 = vmatprep.subr.bf16.mxu0 %v2295
  %5688 = vmatpush1.bf16.msra.mxu0 %v2294
  %5689 = vmatprep.subr.bf16.mxu0 %v2303
  %5690 = vmatpush1.bf16.msra.mxu0 %v2302
  %5691 = vmatprep.subr.bf16.mxu0 %v2311
  %5692 = vmatpush1.bf16.msra.mxu0 %v2310
  %5693 = vmatprep.subr.bf16.mxu0 %v2319
  %5694 = vmatpush1.bf16.msra.mxu0 %v2318
  %5695 = vmatprep.subr.bf16.mxu0 %v2327
  %5696 = vmatpush1.bf16.msra.mxu0 %v2326
  %5697 = vmatprep.subr.bf16.mxu0 %v2335
  %5698 = vmatpush1.bf16.msra.mxu0 %v2334
  %5699 = vmatprep.subr.bf16.mxu0 %v2343
  %5700 = vmatpush1.bf16.msra.mxu0 %v2342
  %5701 = vmatprep.subr.bf16.mxu0 %v2351
  %5702 = vmatpush1.bf16.msra.mxu0 %v2350
  %5703 = vmatprep.subr.bf16.mxu0 %v2359
  %5704 = vmatpush1.bf16.msra.mxu0 %v2358
  %5705 = vmatprep.subr.bf16.mxu0 %v2367
  %5706 = vmatpush1.bf16.msra.mxu0 %v2366
  %5707 = vmatprep.subr.bf16.mxu0 %v2375
  %5708 = vmatpush1.bf16.msra.mxu0 %v2374
  %5709 = vmatprep.subr.bf16.mxu0 %v2383
  %5710 = vmatpush1.bf16.msra.mxu0 %v2382
  %5711 = vmatprep.subr.bf16.mxu0 %v2391
  %5712 = vmatpush1.bf16.msra.mxu0 %v2390
  %5713 = vmatprep.mubr.bf16.mxu0 %v5639
  %5714 = vmatmul.mubr.bf16.gmra.mrb[0].mxu0 %v5638
  %v5715 = vpop.f32.mrb[0].mxu0
  %v5716 = vadd.f32 0.0, %v5715
  %v5717 = vpop.f32.mrb[0].mxu0
  %v5718 = vadd.f32 0.0, %v5717
  %v5719 = vpop.f32.mrb[0].mxu0
  %v5720 = vpop.f32.mrb[0].mxu0
  %5721 = vdwg.mxu0
  %5722 = vmatprep.subr.bf16.mxu0 %v2273
  %5723 = vmatpush1.bf16.msra.mxu0 %v2272
  %5724 = vmatprep.subr.bf16.mxu0 %v2281
  %5725 = vmatpush1.bf16.msra.mxu0 %v2280
  %5726 = vmatprep.subr.bf16.mxu0 %v2289
  %5727 = vmatpush1.bf16.msra.mxu0 %v2288
  %5728 = vmatprep.subr.bf16.mxu0 %v2297
  %5729 = vmatpush1.bf16.msra.mxu0 %v2296
  %5730 = vmatprep.subr.bf16.mxu0 %v2305
  %5731 = vmatpush1.bf16.msra.mxu0 %v2304
  %5732 = vmatprep.subr.bf16.mxu0 %v2313
  %5733 = vmatpush1.bf16.msra.mxu0 %v2312
  %5734 = vmatprep.subr.bf16.mxu0 %v2321
  %5735 = vmatpush1.bf16.msra.mxu0 %v2320
  %5736 = vmatprep.subr.bf16.mxu0 %v2329
  %5737 = vmatpush1.bf16.msra.mxu0 %v2328
  %5738 = vmatprep.subr.bf16.mxu0 %v2337
  %5739 = vmatpush1.bf16.msra.mxu0 %v2336
  %5740 = vmatprep.subr.bf16.mxu0 %v2345
  %5741 = vmatpush1.bf16.msra.mxu0 %v2344
  %5742 = vmatprep.subr.bf16.mxu0 %v2353
  %5743 = vmatpush1.bf16.msra.mxu0 %v2352
  %5744 = vmatprep.subr.bf16.mxu0 %v2361
  %5745 = vmatpush1.bf16.msra.mxu0 %v2360
  %5746 = vmatprep.subr.bf16.mxu0 %v2369
  %5747 = vmatpush1.bf16.msra.mxu0 %v2368
  %5748 = vmatprep.subr.bf16.mxu0 %v2377
  %5749 = vmatpush1.bf16.msra.mxu0 %v2376
  %5750 = vmatprep.subr.bf16.mxu0 %v2385
  %5751 = vmatpush1.bf16.msra.mxu0 %v2384
  %5752 = vmatprep.subr.bf16.mxu0 %v2393
  %5753 = vmatpush1.bf16.msra.mxu0 %v2392
  %5754 = vmatprep.mubr.bf16.mxu0 %v5639
  %5755 = vmatmul.mubr.bf16.gmra.mrb[0].mxu0 %v5638
  %v5756 = vpop.f32.mrb[0].mxu0
  %v5757 = vadd.f32 0.0, %v5756
  %v5758 = vpop.f32.mrb[0].mxu0
  %v5759 = vadd.f32 0.0, %v5758
  %v5760 = vpop.f32.mrb[0].mxu0
  %v5761 = vpop.f32.mrb[0].mxu0
  %5762 = vdwg.mxu0
  %5763 = vmatprep.subr.bf16.mxu0 %v2275
  %5764 = vmatpush1.bf16.msra.mxu0 %v2274
  %5765 = vmatprep.subr.bf16.mxu0 %v2283
  %5766 = vmatpush1.bf16.msra.mxu0 %v2282
  %5767 = vmatprep.subr.bf16.mxu0 %v2291
  %5768 = vmatpush1.bf16.msra.mxu0 %v2290
  %5769 = vmatprep.subr.bf16.mxu0 %v2299
  %5770 = vmatpush1.bf16.msra.mxu0 %v2298
  %5771 = vmatprep.subr.bf16.mxu0 %v2307
  %5772 = vmatpush1.bf16.msra.mxu0 %v2306
  %5773 = vmatprep.subr.bf16.mxu0 %v2315
  %5774 = vmatpush1.bf16.msra.mxu0 %v2314
  %5775 = vmatprep.subr.bf16.mxu0 %v2323
  %5776 = vmatpush1.bf16.msra.mxu0 %v2322
  %5777 = vmatprep.subr.bf16.mxu0 %v2331
  %5778 = vmatpush1.bf16.msra.mxu0 %v2330
  %5779 = vmatprep.subr.bf16.mxu0 %v2339
  %5780 = vmatpush1.bf16.msra.mxu0 %v2338
  %5781 = vmatprep.subr.bf16.mxu0 %v2347
  %5782 = vmatpush1.bf16.msra.mxu0 %v2346
  %5783 = vmatprep.subr.bf16.mxu0 %v2355
  %5784 = vmatpush1.bf16.msra.mxu0 %v2354
  %5785 = vmatprep.subr.bf16.mxu0 %v2363
  %5786 = vmatpush1.bf16.msra.mxu0 %v2362
  %5787 = vmatprep.subr.bf16.mxu0 %v2371
  %5788 = vmatpush1.bf16.msra.mxu0 %v2370
  %5789 = vmatprep.subr.bf16.mxu0 %v2379
  %5790 = vmatpush1.bf16.msra.mxu0 %v2378
  %5791 = vmatprep.subr.bf16.mxu0 %v2387
  %5792 = vmatpush1.bf16.msra.mxu0 %v2386
  %5793 = vmatprep.subr.bf16.mxu0 %v2395
  %5794 = vmatpush1.bf16.msra.mxu0 %v2394
  %5795 = vmatprep.mubr.bf16.mxu0 %v5639
  %5796 = vmatmul.mubr.bf16.gmra.mrb[0].mxu0 %v5638
  %v5797 = vpop.f32.mrb[0].mxu0
  %v5798 = vadd.f32 0.0, %v5797
  %v5799 = vpop.f32.mrb[0].mxu0
  %v5800 = vadd.f32 0.0, %v5799
  %v5801 = vpop.f32.mrb[0].mxu0
  %v5802 = vpop.f32.mrb[0].mxu0
  %5803 = vdwg.mxu0
  %5804 = vmatprep.subr.bf16.mxu0 %v3073
  %5805 = vmatpush1.bf16.msra.mxu0 %v3072
  %5806 = vmatprep.subr.bf16.mxu0 %v3081
  %5807 = vmatpush1.bf16.msra.mxu0 %v3080
  %5808 = vmatprep.subr.bf16.mxu0 %v3089
  %5809 = vmatpush1.bf16.msra.mxu0 %v3088
  %5810 = vmatprep.subr.bf16.mxu0 %v3097
  %5811 = vmatpush1.bf16.msra.mxu0 %v3096
  %5812 = vmatprep.subr.bf16.mxu0 %v3105
  %5813 = vmatpush1.bf16.msra.mxu0 %v3104
  %5814 = vmatprep.subr.bf16.mxu0 %v3113
  %5815 = vmatpush1.bf16.msra.mxu0 %v3112
  %5816 = vmatprep.subr.bf16.mxu0 %v3121
  %5817 = vmatpush1.bf16.msra.mxu0 %v3120
  %5818 = vmatprep.subr.bf16.mxu0 %v3129
  %5819 = vmatpush1.bf16.msra.mxu0 %v3128
  %5820 = vmatprep.subr.bf16.mxu0 %v3137
  %5821 = vmatpush1.bf16.msra.mxu0 %v3136
  %5822 = vmatprep.subr.bf16.mxu0 %v3145
  %5823 = vmatpush1.bf16.msra.mxu0 %v3144
  %5824 = vmatprep.subr.bf16.mxu0 %v3153
  %5825 = vmatpush1.bf16.msra.mxu0 %v3152
  %5826 = vmatprep.subr.bf16.mxu0 %v3161
  %5827 = vmatpush1.bf16.msra.mxu0 %v3160
  %5828 = vmatprep.subr.bf16.mxu0 %v3169
  %5829 = vmatpush1.bf16.msra.mxu0 %v3168
  %5830 = vmatprep.subr.bf16.mxu0 %v3177
  %5831 = vmatpush1.bf16.msra.mxu0 %v3176
  %5832 = vmatprep.subr.bf16.mxu0 %v3185
  %5833 = vmatpush1.bf16.msra.mxu0 %v3184
  %5834 = vmatprep.subr.bf16.mxu0 %v3193
  %5835 = vmatpush1.bf16.msra.mxu0 %v3192
  %5836 = vmatprep.mubr.bf16.mxu0 %v5406
  %5837 = vmatmul.mubr.bf16.gmra.mrb[0].mxu0 %v5405
  %v5838 = vpop.f32.mrb[0].mxu0
  %v5839 = vadd.f32 %v5675, %v5838
  %v5840 = vpop.f32.mrb[0].mxu0
  %v5841 = vadd.f32 %v5677, %v5840
  %v5842 = vpop.f32.mrb[0].mxu0
  %v5843 = vpop.f32.mrb[0].mxu0
  %5844 = vdwg.mxu0
  %5845 = vmatprep.subr.bf16.mxu0 %v3075
  %5846 = vmatpush1.bf16.msra.mxu0 %v3074
  %5847 = vmatprep.subr.bf16.mxu0 %v3083
  %5848 = vmatpush1.bf16.msra.mxu0 %v3082
  %5849 = vmatprep.subr.bf16.mxu0 %v3091
  %5850 = vmatpush1.bf16.msra.mxu0 %v3090
  %5851 = vmatprep.subr.bf16.mxu0 %v3099
  %5852 = vmatpush1.bf16.msra.mxu0 %v3098
  %5853 = vmatprep.subr.bf16.mxu0 %v3107
  %5854 = vmatpush1.bf16.msra.mxu0 %v3106
  %5855 = vmatprep.subr.bf16.mxu0 %v3115
  %5856 = vmatpush1.bf16.msra.mxu0 %v3114
  %5857 = vmatprep.subr.bf16.mxu0 %v3123
  %5858 = vmatpush1.bf16.msra.mxu0 %v3122
  %5859 = vmatprep.subr.bf16.mxu0 %v3131
  %5860 = vmatpush1.bf16.msra.mxu0 %v3130
  %5861 = vmatprep.subr.bf16.mxu0 %v3139
  %5862 = vmatpush1.bf16.msra.mxu0 %v3138
  %5863 = vmatprep.subr.bf16.mxu0 %v3147
  %5864 = vmatpush1.bf16.msra.mxu0 %v3146
  %5865 = vmatprep.subr.bf16.mxu0 %v3155
  %5866 = vmatpush1.bf16.msra.mxu0 %v3154
  %5867 = vmatprep.subr.bf16.mxu0 %v3163
  %5868 = vmatpush1.bf16.msra.mxu0 %v3162
  %5869 = vmatprep.subr.bf16.mxu0 %v3171
  %5870 = vmatpush1.bf16.msra.mxu0 %v3170
  %5871 = vmatprep.subr.bf16.mxu0 %v3179
  %5872 = vmatpush1.bf16.msra.mxu0 %v3178
  %5873 = vmatprep.subr.bf16.mxu0 %v3187
  %5874 = vmatpush1.bf16.msra.mxu0 %v3186
  %5875 = vmatprep.subr.bf16.mxu0 %v3195
  %5876 = vmatpush1.bf16.msra.mxu0 %v3194
  %5877 = vmatprep.mubr.bf16.mxu0 %v5406
  %5878 = vmatmul.mubr.bf16.gmra.mrb[0].mxu0 %v5405
  %v5879 = vpop.f32.mrb[0].mxu0
  %v5880 = vadd.f32 %v5716, %v5879
  %v5881 = vpop.f32.mrb[0].mxu0
  %v5882 = vadd.f32 %v5718, %v5881
  %v5883 = vpop.f32.mrb[0].mxu0
  %v5884 = vpop.f32.mrb[0].mxu0
  %5885 = vdwg.mxu0
  %5886 = vmatprep.subr.bf16.mxu0 %v3077
  %5887 = vmatpush1.bf16.msra.mxu0 %v3076
  %5888 = vmatprep.subr.bf16.mxu0 %v3085
  %5889 = vmatpush1.bf16.msra.mxu0 %v3084
  %5890 = vmatprep.subr.bf16.mxu0 %v3093
  %5891 = vmatpush1.bf16.msra.mxu0 %v3092
  %5892 = vmatprep.subr.bf16.mxu0 %v3101
  %5893 = vmatpush1.bf16.msra.mxu0 %v3100
  %5894 = vmatprep.subr.bf16.mxu0 %v3109
  %5895 = vmatpush1.bf16.msra.mxu0 %v3108
  %5896 = vmatprep.subr.bf16.mxu0 %v3117
  %5897 = vmatpush1.bf16.msra.mxu0 %v3116
  %5898 = vmatprep.subr.bf16.mxu0 %v3125
  %5899 = vmatpush1.bf16.msra.mxu0 %v3124
  %5900 = vmatprep.subr.bf16.mxu0 %v3133
  %5901 = vmatpush1.bf16.msra.mxu0 %v3132
  %5902 = vmatprep.subr.bf16.mxu0 %v3141
  %5903 = vmatpush1.bf16.msra.mxu0 %v3140
  %5904 = vmatprep.subr.bf16.mxu0 %v3149
  %5905 = vmatpush1.bf16.msra.mxu0 %v3148
  %5906 = vmatprep.subr.bf16.mxu0 %v3157
  %5907 = vmatpush1.bf16.msra.mxu0 %v3156
  %5908 = vmatprep.subr.bf16.mxu0 %v3165
  %5909 = vmatpush1.bf16.msra.mxu0 %v3164
  %5910 = vmatprep.subr.bf16.mxu0 %v3173
  %5911 = vmatpush1.bf16.msra.mxu0 %v3172
  %5912 = vmatprep.subr.bf16.mxu0 %v3181
  %5913 = vmatpush1.bf16.msra.mxu0 %v3180
  %5914 = vmatprep.subr.bf16.mxu0 %v3189
  %5915 = vmatpush1.bf16.msra.mxu0 %v3188
  %5916 = vmatprep.subr.bf16.mxu0 %v3197
  %5917 = vmatpush1.bf16.msra.mxu0 %v3196
  %5918 = vmatprep.mubr.bf16.mxu0 %v5406
  %5919 = vmatmul.mubr.bf16.gmra.mrb[0].mxu0 %v5405
  %v5920 = vpop.f32.mrb[0].mxu0
  %v5921 = vadd.f32 %v5757, %v5920
  %v5922 = vpop.f32.mrb[0].mxu0
  %v5923 = vadd.f32 %v5759, %v5922
  %v5924 = vpop.f32.mrb[0].mxu0
  %v5925 = vpop.f32.mrb[0].mxu0
  %5926 = vdwg.mxu0
  %5927 = vmatprep.subr.bf16.mxu0 %v3079
  %5928 = vmatpush1.bf16.msra.mxu0 %v3078
  %5929 = vmatprep.subr.bf16.mxu0 %v3087
  %5930 = vmatpush1.bf16.msra.mxu0 %v3086
  %5931 = vmatprep.subr.bf16.mxu0 %v3095
  %5932 = vmatpush1.bf16.msra.mxu0 %v3094
  %5933 = vmatprep.subr.bf16.mxu0 %v3103
  %5934 = vmatpush1.bf16.msra.mxu0 %v3102
  %5935 = vmatprep.subr.bf16.mxu0 %v3111
  %5936 = vmatpush1.bf16.msra.mxu0 %v3110
  %5937 = vmatprep.subr.bf16.mxu0 %v3119
  %5938 = vmatpush1.bf16.msra.mxu0 %v3118
  %5939 = vmatprep.subr.bf16.mxu0 %v3127
  %5940 = vmatpush1.bf16.msra.mxu0 %v3126
  %5941 = vmatprep.subr.bf16.mxu0 %v3135
  %5942 = vmatpush1.bf16.msra.mxu0 %v3134
  %5943 = vmatprep.subr.bf16.mxu0 %v3143
  %5944 = vmatpush1.bf16.msra.mxu0 %v3142
  %5945 = vmatprep.subr.bf16.mxu0 %v3151
  %5946 = vmatpush1.bf16.msra.mxu0 %v3150
  %5947 = vmatprep.subr.bf16.mxu0 %v3159
  %5948 = vmatpush1.bf16.msra.mxu0 %v3158
  %5949 = vmatprep.subr.bf16.mxu0 %v3167
  %5950 = vmatpush1.bf16.msra.mxu0 %v3166
  %5951 = vmatprep.subr.bf16.mxu0 %v3175
  %5952 = vmatpush1.bf16.msra.mxu0 %v3174
  %5953 = vmatprep.subr.bf16.mxu0 %v3183
  %5954 = vmatpush1.bf16.msra.mxu0 %v3182
  %5955 = vmatprep.subr.bf16.mxu0 %v3191
  %5956 = vmatpush1.bf16.msra.mxu0 %v3190
  %5957 = vmatprep.subr.bf16.mxu0 %v3199
  %5958 = vmatpush1.bf16.msra.mxu0 %v3198
  %5959 = vmatprep.mubr.bf16.mxu0 %v5406
  %5960 = vmatmul.mubr.bf16.gmra.mrb[0].mxu0 %v5405
  %v5961 = vpop.f32.mrb[0].mxu0
  %v5962 = vadd.f32 %v5798, %v5961
  %v5963 = vpop.f32.mrb[0].mxu0
  %v5964 = vadd.f32 %v5800, %v5963
  %v5965 = vpop.f32.mrb[0].mxu0
  %v5966 = vpop.f32.mrb[0].mxu0
  %5967 = vdwg.mxu0
  %v5968 = vadd.f32 %v5839, %v439
  %v5969 = vadd.f32 %v5841, %v443
  %v5970 = vadd.f32 %v5880, %v447
  %v5971 = vadd.f32 %v5882, %v451
  %v5972 = vadd.f32 %v5921, %v455
  %v5973 = vadd.f32 %v5923, %v459
  %v5974 = vadd.f32 %v5962, %v463
  %v5975 = vadd.f32 %v5964, %v467
  %v5976 = vxor.u32 %v5968, 2147483648
  %v5977 = vxor.u32 %v5969, 2147483648
  %v5978 = vmul.f32 %v5976, 1.442695
  %v5979 = vpow.pop %v5978
  %v5980 = vmul.f32 %v5977, 1.442695
  %v5981 = vpow.pop %v5980
  %v5982 = vadd.f32 %v5979, 1.0
  %v5983 = vadd.f32 %v5981, 1.0
  %v5984 = vrcp.pop %v5982
  %v5985 = vmul.f32 1.0, %v5984
  %v5986 = vrcp.pop %v5983
  %v5987 = vmul.f32 1.0, %v5986
  %v5988 = vxor.u32 %v5970, 2147483648
  %v5989 = vxor.u32 %v5971, 2147483648
  %v5990 = vmul.f32 %v5988, 1.442695
  %v5991 = vpow.pop %v5990
  %v5992 = vmul.f32 %v5989, 1.442695
  %v5993 = vpow.pop %v5992
  %v5994 = vadd.f32 %v5991, 1.0
  %v5995 = vadd.f32 %v5993, 1.0
  %v5996 = vrcp.pop %v5994
  %v5997 = vmul.f32 1.0, %v5996
  %v5998 = vrcp.pop %v5995
  %v5999 = vmul.f32 1.0, %v5998
  %v6000 = vtanh.pop %v5972
  %v6001 = vtanh.pop %v5973
  %v6002 = vxor.u32 %v5974, 2147483648
  %v6003 = vxor.u32 %v5975, 2147483648
  %v6004 = vmul.f32 %v6002, 1.442695
  %v6005 = vpow.pop %v6004
  %v6006 = vmul.f32 %v6003, 1.442695
  %v6007 = vpow.pop %v6006
  %v6008 = vadd.f32 %v6005, 1.0
  %v6009 = vadd.f32 %v6007, 1.0
  %v6010 = vrcp.pop %v6008
  %v6011 = vmul.f32 1.0, %v6010
  %v6012 = vrcp.pop %v6009
  %v6013 = vmul.f32 1.0, %v6012
  %v6014 = vmul.f32 %v5997, %v5399
  %v6015 = vmul.f32 %v5999, %v5400
  %v6016 = vmul.f32 %v5985, %v6000
  %v6017 = vmul.f32 %v5987, %v6001
  %v6018 = vadd.f32 %v6014, %v6016
  %v6019 = vadd.f32 %v6015, %v6017
  %v6020 = vtanh.pop %v6018
  %v6021 = vtanh.pop %v6019
  %v6022 = vmul.f32 %v6011, %v6020
  %v6023 = vmul.f32 %v6013, %v6021
  %v6024 = vpack.c.bf16 %v6022, %v6022
  %v6025 = vpack.c.bf16 %v6023, %v6023
  %s6026 = smul.u32 5, 8
  %s6027 = smul.addr %s6026, 8
  %s6028 = scalar_lea.vmem [#allocation2], %s6027
  %v6029 = vld [vmem:[%s6028] sm:$0xff]
  %v6030 = vld [vmem:[%s6028 + $0x8] sm:$0xff]
  %v6031 = vld [vmem:[%s6028 + $0x10] sm:$0xff]
  %v6032 = vld [vmem:[%s6028 + $0x18] sm:$0xff]
  %v6033 = vld [vmem:[%s6028 + $0x20] sm:$0xff]
  %v6034 = vld [vmem:[%s6028 + $0x28] sm:$0xff]
  %v6035 = vld [vmem:[%s6028 + $0x30] sm:$0xff]
  %v6036 = vld [vmem:[%s6028 + $0x38] sm:$0xff]
  %6037 = vmatprep.subr.bf16.mxu0 %v1407
  %6038 = vmatpush1.bf16.msra.mxu0 %v1406
  %6039 = vmatprep.subr.bf16.mxu0 %v1415
  %6040 = vmatpush1.bf16.msra.mxu0 %v1414
  %6041 = vmatprep.subr.bf16.mxu0 %v1423
  %6042 = vmatpush1.bf16.msra.mxu0 %v1422
  %6043 = vmatprep.subr.bf16.mxu0 %v1431
  %6044 = vmatpush1.bf16.msra.mxu0 %v1430
  %6045 = vmatprep.subr.bf16.mxu0 %v1439
  %6046 = vmatpush1.bf16.msra.mxu0 %v1438
  %6047 = vmatprep.subr.bf16.mxu0 %v1447
  %6048 = vmatpush1.bf16.msra.mxu0 %v1446
  %6049 = vmatprep.subr.bf16.mxu0 %v1455
  %6050 = vmatpush1.bf16.msra.mxu0 %v1454
  %6051 = vmatprep.subr.bf16.mxu0 %v1463
  %6052 = vmatpush1.bf16.msra.mxu0 %v1462
  %6053 = vmatprep.subr.bf16.mxu0 %v1471
  %6054 = vmatpush1.bf16.msra.mxu0 %v1470
  %6055 = vmatprep.subr.bf16.mxu0 %v1479
  %6056 = vmatpush1.bf16.msra.mxu0 %v1478
  %6057 = vmatprep.subr.bf16.mxu0 %v1487
  %6058 = vmatpush1.bf16.msra.mxu0 %v1486
  %6059 = vmatprep.subr.bf16.mxu0 %v1495
  %6060 = vmatpush1.bf16.msra.mxu0 %v1494
  %6061 = vmatprep.subr.bf16.mxu0 %v1503
  %6062 = vmatpush1.bf16.msra.mxu0 %v1502
  %6063 = vmatprep.subr.bf16.mxu0 %v1511
  %6064 = vmatpush1.bf16.msra.mxu0 %v1510
  %6065 = vmatprep.subr.bf16.mxu0 %v1519
  %6066 = vmatpush1.bf16.msra.mxu0 %v1518
  %6067 = vmatprep.subr.bf16.mxu0 %v1527
  %6068 = vmatpush1.bf16.msra.mxu0 %v1526
  %6069 = vmatprep.mubr.bf16.mxu0 %v5639
  %6070 = vmatmul.mubr.bf16.gmra.mrb[0].mxu0 %v5638
  %v6071 = vpop.f32.mrb[0].mxu0
  %v6072 = vadd.f32 0.0, %v6071
  %v6073 = vpop.f32.mrb[0].mxu0
  %v6074 = vadd.f32 0.0, %v6073
  %v6075 = vpop.f32.mrb[0].mxu0
  %v6076 = vpop.f32.mrb[0].mxu0
  %6077 = vdwg.mxu0
  %6078 = vmatprep.subr.bf16.mxu0 %v1409
  %6079 = vmatpush1.bf16.msra.mxu0 %v1408
  %6080 = vmatprep.subr.bf16.mxu0 %v1417
  %6081 = vmatpush1.bf16.msra.mxu0 %v1416
  %6082 = vmatprep.subr.bf16.mxu0 %v1425
  %6083 = vmatpush1.bf16.msra.mxu0 %v1424
  %6084 = vmatprep.subr.bf16.mxu0 %v1433
  %6085 = vmatpush1.bf16.msra.mxu0 %v1432
  %6086 = vmatprep.subr.bf16.mxu0 %v1441
  %6087 = vmatpush1.bf16.msra.mxu0 %v1440
  %6088 = vmatprep.subr.bf16.mxu0 %v1449
  %6089 = vmatpush1.bf16.msra.mxu0 %v1448
  %6090 = vmatprep.subr.bf16.mxu0 %v1457
  %6091 = vmatpush1.bf16.msra.mxu0 %v1456
  %6092 = vmatprep.subr.bf16.mxu0 %v1465
  %6093 = vmatpush1.bf16.msra.mxu0 %v1464
  %6094 = vmatprep.subr.bf16.mxu0 %v1473
  %6095 = vmatpush1.bf16.msra.mxu0 %v1472
  %6096 = vmatprep.subr.bf16.mxu0 %v1481
  %6097 = vmatpush1.bf16.msra.mxu0 %v1480
  %6098 = vmatprep.subr.bf16.mxu0 %v1489
  %6099 = vmatpush1.bf16.msra.mxu0 %v1488
  %6100 = vmatprep.subr.bf16.mxu0 %v1497
  %6101 = vmatpush1.bf16.msra.mxu0 %v1496
  %6102 = vmatprep.subr.bf16.mxu0 %v1505
  %6103 = vmatpush1.bf16.msra.mxu0 %v1504
  %6104 = vmatprep.subr.bf16.mxu0 %v1513
  %6105 = vmatpush1.bf16.msra.mxu0 %v1512
  %6106 = vmatprep.subr.bf16.mxu0 %v1521
  %6107 = vmatpush1.bf16.msra.mxu0 %v1520
  %6108 = vmatprep.subr.bf16.mxu0 %v1529
  %6109 = vmatpush1.bf16.msra.mxu0 %v1528
  %6110 = vmatprep.mubr.bf16.mxu0 %v5639
  %6111 = vmatmul.mubr.bf16.gmra.mrb[0].mxu0 %v5638
  %v6112 = vpop.f32.mrb[0].mxu0
  %v6113 = vadd.f32 0.0, %v6112
  %v6114 = vpop.f32.mrb[0].mxu0
  %v6115 = vadd.f32 0.0, %v6114
  %v6116 = vpop.f32.mrb[0].mxu0
  %v6117 = vpop.f32.mrb[0].mxu0
  %6118 = vdwg.mxu0
  %6119 = vmatprep.subr.bf16.mxu0 %v1411
  %6120 = vmatpush1.bf16.msra.mxu0 %v1410
  %6121 = vmatprep.subr.bf16.mxu0 %v1419
  %6122 = vmatpush1.bf16.msra.mxu0 %v1418
  %6123 = vmatprep.subr.bf16.mxu0 %v1427
  %6124 = vmatpush1.bf16.msra.mxu0 %v1426
  %6125 = vmatprep.subr.bf16.mxu0 %v1435
  %6126 = vmatpush1.bf16.msra.mxu0 %v1434
  %6127 = vmatprep.subr.bf16.mxu0 %v1443
  %6128 = vmatpush1.bf16.msra.mxu0 %v1442
  %6129 = vmatprep.subr.bf16.mxu0 %v1451
  %6130 = vmatpush1.bf16.msra.mxu0 %v1450
  %6131 = vmatprep.subr.bf16.mxu0 %v1459
  %6132 = vmatpush1.bf16.msra.mxu0 %v1458
  %6133 = vmatprep.subr.bf16.mxu0 %v1467
  %6134 = vmatpush1.bf16.msra.mxu0 %v1466
  %6135 = vmatprep.subr.bf16.mxu0 %v1475
  %6136 = vmatpush1.bf16.msra.mxu0 %v1474
  %6137 = vmatprep.subr.bf16.mxu0 %v1483
  %6138 = vmatpush1.bf16.msra.mxu0 %v1482
  %6139 = vmatprep.subr.bf16.mxu0 %v1491
  %6140 = vmatpush1.bf16.msra.mxu0 %v1490
  %6141 = vmatprep.subr.bf16.mxu0 %v1499
  %6142 = vmatpush1.bf16.msra.mxu0 %v1498
  %6143 = vmatprep.subr.bf16.mxu0 %v1507
  %6144 = vmatpush1.bf16.msra.mxu0 %v1506
  %6145 = vmatprep.subr.bf16.mxu0 %v1515
  %6146 = vmatpush1.bf16.msra.mxu0 %v1514
  %6147 = vmatprep.subr.bf16.mxu0 %v1523
  %6148 = vmatpush1.bf16.msra.mxu0 %v1522
  %6149 = vmatprep.subr.bf16.mxu0 %v1531
  %6150 = vmatpush1.bf16.msra.mxu0 %v1530
  %6151 = vmatprep.mubr.bf16.mxu0 %v5639
  %6152 = vmatmul.mubr.bf16.gmra.mrb[0].mxu0 %v5638
  %v6153 = vpop.f32.mrb[0].mxu0
  %v6154 = vadd.f32 0.0, %v6153
  %v6155 = vpop.f32.mrb[0].mxu0
  %v6156 = vadd.f32 0.0, %v6155
  %v6157 = vpop.f32.mrb[0].mxu0
  %v6158 = vpop.f32.mrb[0].mxu0
  %6159 = vdwg.mxu0
  %6160 = vmatprep.subr.bf16.mxu0 %v1413
  %6161 = vmatpush1.bf16.msra.mxu0 %v1412
  %6162 = vmatprep.subr.bf16.mxu0 %v1421
  %6163 = vmatpush1.bf16.msra.mxu0 %v1420
  %6164 = vmatprep.subr.bf16.mxu0 %v1429
  %6165 = vmatpush1.bf16.msra.mxu0 %v1428
  %6166 = vmatprep.subr.bf16.mxu0 %v1437
  %6167 = vmatpush1.bf16.msra.mxu0 %v1436
  %6168 = vmatprep.subr.bf16.mxu0 %v1445
  %6169 = vmatpush1.bf16.msra.mxu0 %v1444
  %6170 = vmatprep.subr.bf16.mxu0 %v1453
  %6171 = vmatpush1.bf16.msra.mxu0 %v1452
  %6172 = vmatprep.subr.bf16.mxu0 %v1461
  %6173 = vmatpush1.bf16.msra.mxu0 %v1460
  %6174 = vmatprep.subr.bf16.mxu0 %v1469
  %6175 = vmatpush1.bf16.msra.mxu0 %v1468
  %6176 = vmatprep.subr.bf16.mxu0 %v1477
  %6177 = vmatpush1.bf16.msra.mxu0 %v1476
  %6178 = vmatprep.subr.bf16.mxu0 %v1485
  %6179 = vmatpush1.bf16.msra.mxu0 %v1484
  %6180 = vmatprep.subr.bf16.mxu0 %v1493
  %6181 = vmatpush1.bf16.msra.mxu0 %v1492
  %6182 = vmatprep.subr.bf16.mxu0 %v1501
  %6183 = vmatpush1.bf16.msra.mxu0 %v1500
  %6184 = vmatprep.subr.bf16.mxu0 %v1509
  %6185 = vmatpush1.bf16.msra.mxu0 %v1508
  %6186 = vmatprep.subr.bf16.mxu0 %v1517
  %6187 = vmatpush1.bf16.msra.mxu0 %v1516
  %6188 = vmatprep.subr.bf16.mxu0 %v1525
  %6189 = vmatpush1.bf16.msra.mxu0 %v1524
  %6190 = vmatprep.subr.bf16.mxu0 %v1533
  %6191 = vmatpush1.bf16.msra.mxu0 %v1532
  %6192 = vmatprep.mubr.bf16.mxu0 %v5639
  %6193 = vmatmul.mubr.bf16.gmra.mrb[0].mxu0 %v5638
  %v6194 = vpop.f32.mrb[0].mxu0
  %v6195 = vadd.f32 0.0, %v6194
  %v6196 = vpop.f32.mrb[0].mxu0
  %v6197 = vadd.f32 0.0, %v6196
  %v6198 = vpop.f32.mrb[0].mxu0
  %v6199 = vpop.f32.mrb[0].mxu0
  %6200 = vdwg.mxu0
  %v6201 = vadd.f32 %v6029, %v6072
  %v6202 = vadd.f32 %v6030, %v6074
  %v6203 = vadd.f32 %v6031, %v6113
  %v6204 = vadd.f32 %v6032, %v6115
  %v6205 = vadd.f32 %v6033, %v6154
  %v6206 = vadd.f32 %v6034, %v6156
  %v6207 = vadd.f32 %v6035, %v6195
  %v6208 = vadd.f32 %v6036, %v6197
  %v6209 = vxor.u32 %v6201, 2147483648
  %v6210 = vxor.u32 %v6202, 2147483648
  %v6211 = vmul.f32 %v6209, 1.442695
  %v6212 = vpow.pop %v6211
  %v6213 = vmul.f32 %v6210, 1.442695
  %v6214 = vpow.pop %v6213
  %v6215 = vadd.f32 %v6212, 1.0
  %v6216 = vadd.f32 %v6214, 1.0
  %v6217 = vrcp.pop %v6215
  %v6218 = vmul.f32 1.0, %v6217
  %v6219 = vrcp.pop %v6216
  %v6220 = vmul.f32 1.0, %v6219
  %v6221 = vxor.u32 %v6203, 2147483648
  %v6222 = vxor.u32 %v6204, 2147483648
  %v6223 = vmul.f32 %v6221, 1.442695
  %v6224 = vpow.pop %v6223
  %v6225 = vmul.f32 %v6222, 1.442695
  %v6226 = vpow.pop %v6225
  %v6227 = vadd.f32 %v6224, 1.0
  %v6228 = vadd.f32 %v6226, 1.0
  %v6229 = vrcp.pop %v6227
  %v6230 = vmul.f32 1.0, %v6229
  %v6231 = vrcp.pop %v6228
  %v6232 = vmul.f32 1.0, %v6231
  %v6233 = vtanh.pop %v6205
  %v6234 = vtanh.pop %v6206
  %v6235 = vxor.u32 %v6207, 2147483648
  %v6236 = vxor.u32 %v6208, 2147483648
  %v6237 = vmul.f32 %v6235, 1.442695
  %v6238 = vpow.pop %v6237
  %v6239 = vmul.f32 %v6236, 1.442695
  %v6240 = vpow.pop %v6239
  %v6241 = vadd.f32 %v6238, 1.0
  %v6242 = vadd.f32 %v6240, 1.0
  %v6243 = vrcp.pop %v6241
  %v6244 = vmul.f32 1.0, %v6243
  %v6245 = vrcp.pop %v6242
  %v6246 = vmul.f32 1.0, %v6245
  %v6247 = vmul.f32 %v6230, %v5632
  %v6248 = vmul.f32 %v6232, %v5633
  %v6249 = vmul.f32 %v6218, %v6233
  %v6250 = vmul.f32 %v6220, %v6234
  %v6251 = vadd.f32 %v6247, %v6249
  %v6252 = vadd.f32 %v6248, %v6250
  %v6253 = vtanh.pop %v6251
  %v6254 = vtanh.pop %v6252
  %v6255 = vmul.f32 %v6244, %v6253
  %v6256 = vmul.f32 %v6246, %v6254
  %v6257 = vpack.c.bf16 %v6255, %v6255
  %v6258 = vpack.c.bf16 %v6256, %v6256
  %6259 = vmatprep.subr.bf16.mxu0 %v2269
  %6260 = vmatpush1.bf16.msra.mxu0 %v2268
  %6261 = vmatprep.subr.bf16.mxu0 %v2277
  %6262 = vmatpush1.bf16.msra.mxu0 %v2276
  %6263 = vmatprep.subr.bf16.mxu0 %v2285
  %6264 = vmatpush1.bf16.msra.mxu0 %v2284
  %6265 = vmatprep.subr.bf16.mxu0 %v2293
  %6266 = vmatpush1.bf16.msra.mxu0 %v2292
  %6267 = vmatprep.subr.bf16.mxu0 %v2301
  %6268 = vmatpush1.bf16.msra.mxu0 %v2300
  %6269 = vmatprep.subr.bf16.mxu0 %v2309
  %6270 = vmatpush1.bf16.msra.mxu0 %v2308
  %6271 = vmatprep.subr.bf16.mxu0 %v2317
  %6272 = vmatpush1.bf16.msra.mxu0 %v2316
  %6273 = vmatprep.subr.bf16.mxu0 %v2325
  %6274 = vmatpush1.bf16.msra.mxu0 %v2324
  %6275 = vmatprep.subr.bf16.mxu0 %v2333
  %6276 = vmatpush1.bf16.msra.mxu0 %v2332
  %6277 = vmatprep.subr.bf16.mxu0 %v2341
  %6278 = vmatpush1.bf16.msra.mxu0 %v2340
  %6279 = vmatprep.subr.bf16.mxu0 %v2349
  %6280 = vmatpush1.bf16.msra.mxu0 %v2348
  %6281 = vmatprep.subr.bf16.mxu0 %v2357
  %6282 = vmatpush1.bf16.msra.mxu0 %v2356
  %6283 = vmatprep.subr.bf16.mxu0 %v2365
  %6284 = vmatpush1.bf16.msra.mxu0 %v2364
  %6285 = vmatprep.subr.bf16.mxu0 %v2373
  %6286 = vmatpush1.bf16.msra.mxu0 %v2372
  %6287 = vmatprep.subr.bf16.mxu0 %v2381
  %6288 = vmatpush1.bf16.msra.mxu0 %v2380
  %6289 = vmatprep.subr.bf16.mxu0 %v2389
  %6290 = vmatpush1.bf16.msra.mxu0 %v2388
  %6291 = vmatprep.mubr.bf16.mxu0 %v6258
  %6292 = vmatmul.mubr.bf16.gmra.mrb[0].mxu0 %v6257
  %v6293 = vpop.f32.mrb[0].mxu0
  %v6294 = vadd.f32 0.0, %v6293
  %v6295 = vpop.f32.mrb[0].mxu0
  %v6296 = vadd.f32 0.0, %v6295
  %v6297 = vpop.f32.mrb[0].mxu0
  %v6298 = vpop.f32.mrb[0].mxu0
  %6299 = vdwg.mxu0
  %6300 = vmatprep.subr.bf16.mxu0 %v2271
  %6301 = vmatpush1.bf16.msra.mxu0 %v2270
  %6302 = vmatprep.subr.bf16.mxu0 %v2279
  %6303 = vmatpush1.bf16.msra.mxu0 %v2278
  %6304 = vmatprep.subr.bf16.mxu0 %v2287
  %6305 = vmatpush1.bf16.msra.mxu0 %v2286
  %6306 = vmatprep.subr.bf16.mxu0 %v2295
  %6307 = vmatpush1.bf16.msra.mxu0 %v2294
  %6308 = vmatprep.subr.bf16.mxu0 %v2303
  %6309 = vmatpush1.bf16.msra.mxu0 %v2302
  %6310 = vmatprep.subr.bf16.mxu0 %v2311
  %6311 = vmatpush1.bf16.msra.mxu0 %v2310
  %6312 = vmatprep.subr.bf16.mxu0 %v2319
  %6313 = vmatpush1.bf16.msra.mxu0 %v2318
  %6314 = vmatprep.subr.bf16.mxu0 %v2327
  %6315 = vmatpush1.bf16.msra.mxu0 %v2326
  %6316 = vmatprep.subr.bf16.mxu0 %v2335
  %6317 = vmatpush1.bf16.msra.mxu0 %v2334
  %6318 = vmatprep.subr.bf16.mxu0 %v2343
  %6319 = vmatpush1.bf16.msra.mxu0 %v2342
  %6320 = vmatprep.subr.bf16.mxu0 %v2351
  %6321 = vmatpush1.bf16.msra.mxu0 %v2350
  %6322 = vmatprep.subr.bf16.mxu0 %v2359
  %6323 = vmatpush1.bf16.msra.mxu0 %v2358
  %6324 = vmatprep.subr.bf16.mxu0 %v2367
  %6325 = vmatpush1.bf16.msra.mxu0 %v2366
  %6326 = vmatprep.subr.bf16.mxu0 %v2375
  %6327 = vmatpush1.bf16.msra.mxu0 %v2374
  %6328 = vmatprep.subr.bf16.mxu0 %v2383
  %6329 = vmatpush1.bf16.msra.mxu0 %v2382
  %6330 = vmatprep.subr.bf16.mxu0 %v2391
  %6331 = vmatpush1.bf16.msra.mxu0 %v2390
  %6332 = vmatprep.mubr.bf16.mxu0 %v6258
  %6333 = vmatmul.mubr.bf16.gmra.mrb[0].mxu0 %v6257
  %v6334 = vpop.f32.mrb[0].mxu0
  %v6335 = vadd.f32 0.0, %v6334
  %v6336 = vpop.f32.mrb[0].mxu0
  %v6337 = vadd.f32 0.0, %v6336
  %v6338 = vpop.f32.mrb[0].mxu0
  %v6339 = vpop.f32.mrb[0].mxu0
  %6340 = vdwg.mxu0
  %6341 = vmatprep.subr.bf16.mxu0 %v2273
  %6342 = vmatpush1.bf16.msra.mxu0 %v2272
  %6343 = vmatprep.subr.bf16.mxu0 %v2281
  %6344 = vmatpush1.bf16.msra.mxu0 %v2280
  %6345 = vmatprep.subr.bf16.mxu0 %v2289
  %6346 = vmatpush1.bf16.msra.mxu0 %v2288
  %6347 = vmatprep.subr.bf16.mxu0 %v2297
  %6348 = vmatpush1.bf16.msra.mxu0 %v2296
  %6349 = vmatprep.subr.bf16.mxu0 %v2305
  %6350 = vmatpush1.bf16.msra.mxu0 %v2304
  %6351 = vmatprep.subr.bf16.mxu0 %v2313
  %6352 = vmatpush1.bf16.msra.mxu0 %v2312
  %6353 = vmatprep.subr.bf16.mxu0 %v2321
  %6354 = vmatpush1.bf16.msra.mxu0 %v2320
  %6355 = vmatprep.subr.bf16.mxu0 %v2329
  %6356 = vmatpush1.bf16.msra.mxu0 %v2328
  %6357 = vmatprep.subr.bf16.mxu0 %v2337
  %6358 = vmatpush1.bf16.msra.mxu0 %v2336
  %6359 = vmatprep.subr.bf16.mxu0 %v2345
  %6360 = vmatpush1.bf16.msra.mxu0 %v2344
  %6361 = vmatprep.subr.bf16.mxu0 %v2353
  %6362 = vmatpush1.bf16.msra.mxu0 %v2352
  %6363 = vmatprep.subr.bf16.mxu0 %v2361
  %6364 = vmatpush1.bf16.msra.mxu0 %v2360
  %6365 = vmatprep.subr.bf16.mxu0 %v2369
  %6366 = vmatpush1.bf16.msra.mxu0 %v2368
  %6367 = vmatprep.subr.bf16.mxu0 %v2377
  %6368 = vmatpush1.bf16.msra.mxu0 %v2376
  %6369 = vmatprep.subr.bf16.mxu0 %v2385
  %6370 = vmatpush1.bf16.msra.mxu0 %v2384
  %6371 = vmatprep.subr.bf16.mxu0 %v2393
  %6372 = vmatpush1.bf16.msra.mxu0 %v2392
  %6373 = vmatprep.mubr.bf16.mxu0 %v6258
  %6374 = vmatmul.mubr.bf16.gmra.mrb[0].mxu0 %v6257
  %v6375 = vpop.f32.mrb[0].mxu0
  %v6376 = vadd.f32 0.0, %v6375
  %v6377 = vpop.f32.mrb[0].mxu0
  %v6378 = vadd.f32 0.0, %v6377
  %v6379 = vpop.f32.mrb[0].mxu0
  %v6380 = vpop.f32.mrb[0].mxu0
  %6381 = vdwg.mxu0
  %6382 = vmatprep.subr.bf16.mxu0 %v2275
  %6383 = vmatpush1.bf16.msra.mxu0 %v2274
  %6384 = vmatprep.subr.bf16.mxu0 %v2283
  %6385 = vmatpush1.bf16.msra.mxu0 %v2282
  %6386 = vmatprep.subr.bf16.mxu0 %v2291
  %6387 = vmatpush1.bf16.msra.mxu0 %v2290
  %6388 = vmatprep.subr.bf16.mxu0 %v2299
  %6389 = vmatpush1.bf16.msra.mxu0 %v2298
  %6390 = vmatprep.subr.bf16.mxu0 %v2307
  %6391 = vmatpush1.bf16.msra.mxu0 %v2306
  %6392 = vmatprep.subr.bf16.mxu0 %v2315
  %6393 = vmatpush1.bf16.msra.mxu0 %v2314
  %6394 = vmatprep.subr.bf16.mxu0 %v2323
  %6395 = vmatpush1.bf16.msra.mxu0 %v2322
  %6396 = vmatprep.subr.bf16.mxu0 %v2331
  %6397 = vmatpush1.bf16.msra.mxu0 %v2330
  %6398 = vmatprep.subr.bf16.mxu0 %v2339
  %6399 = vmatpush1.bf16.msra.mxu0 %v2338
  %6400 = vmatprep.subr.bf16.mxu0 %v2347
  %6401 = vmatpush1.bf16.msra.mxu0 %v2346
  %6402 = vmatprep.subr.bf16.mxu0 %v2355
  %6403 = vmatpush1.bf16.msra.mxu0 %v2354
  %6404 = vmatprep.subr.bf16.mxu0 %v2363
  %6405 = vmatpush1.bf16.msra.mxu0 %v2362
  %6406 = vmatprep.subr.bf16.mxu0 %v2371
  %6407 = vmatpush1.bf16.msra.mxu0 %v2370
  %6408 = vmatprep.subr.bf16.mxu0 %v2379
  %6409 = vmatpush1.bf16.msra.mxu0 %v2378
  %6410 = vmatprep.subr.bf16.mxu0 %v2387
  %6411 = vmatpush1.bf16.msra.mxu0 %v2386
  %6412 = vmatprep.subr.bf16.mxu0 %v2395
  %6413 = vmatpush1.bf16.msra.mxu0 %v2394
  %6414 = vmatprep.mubr.bf16.mxu0 %v6258
  %6415 = vmatmul.mubr.bf16.gmra.mrb[0].mxu0 %v6257
  %v6416 = vpop.f32.mrb[0].mxu0
  %v6417 = vadd.f32 0.0, %v6416
  %v6418 = vpop.f32.mrb[0].mxu0
  %v6419 = vadd.f32 0.0, %v6418
  %v6420 = vpop.f32.mrb[0].mxu0
  %v6421 = vpop.f32.mrb[0].mxu0
  %6422 = vdwg.mxu0
  %6423 = vmatprep.subr.bf16.mxu0 %v3073
  %6424 = vmatpush1.bf16.msra.mxu0 %v3072
  %6425 = vmatprep.subr.bf16.mxu0 %v3081
  %6426 = vmatpush1.bf16.msra.mxu0 %v3080
  %6427 = vmatprep.subr.bf16.mxu0 %v3089
  %6428 = vmatpush1.bf16.msra.mxu0 %v3088
  %6429 = vmatprep.subr.bf16.mxu0 %v3097
  %6430 = vmatpush1.bf16.msra.mxu0 %v3096
  %6431 = vmatprep.subr.bf16.mxu0 %v3105
  %6432 = vmatpush1.bf16.msra.mxu0 %v3104
  %6433 = vmatprep.subr.bf16.mxu0 %v3113
  %6434 = vmatpush1.bf16.msra.mxu0 %v3112
  %6435 = vmatprep.subr.bf16.mxu0 %v3121
  %6436 = vmatpush1.bf16.msra.mxu0 %v3120
  %6437 = vmatprep.subr.bf16.mxu0 %v3129
  %6438 = vmatpush1.bf16.msra.mxu0 %v3128
  %6439 = vmatprep.subr.bf16.mxu0 %v3137
  %6440 = vmatpush1.bf16.msra.mxu0 %v3136
  %6441 = vmatprep.subr.bf16.mxu0 %v3145
  %6442 = vmatpush1.bf16.msra.mxu0 %v3144
  %6443 = vmatprep.subr.bf16.mxu0 %v3153
  %6444 = vmatpush1.bf16.msra.mxu0 %v3152
  %6445 = vmatprep.subr.bf16.mxu0 %v3161
  %6446 = vmatpush1.bf16.msra.mxu0 %v3160
  %6447 = vmatprep.subr.bf16.mxu0 %v3169
  %6448 = vmatpush1.bf16.msra.mxu0 %v3168
  %6449 = vmatprep.subr.bf16.mxu0 %v3177
  %6450 = vmatpush1.bf16.msra.mxu0 %v3176
  %6451 = vmatprep.subr.bf16.mxu0 %v3185
  %6452 = vmatpush1.bf16.msra.mxu0 %v3184
  %6453 = vmatprep.subr.bf16.mxu0 %v3193
  %6454 = vmatpush1.bf16.msra.mxu0 %v3192
  %6455 = vmatprep.mubr.bf16.mxu0 %v6025
  %6456 = vmatmul.mubr.bf16.gmra.mrb[0].mxu0 %v6024
  %v6457 = vpop.f32.mrb[0].mxu0
  %v6458 = vadd.f32 %v6294, %v6457
  %v6459 = vpop.f32.mrb[0].mxu0
  %v6460 = vadd.f32 %v6296, %v6459
  %v6461 = vpop.f32.mrb[0].mxu0
  %v6462 = vpop.f32.mrb[0].mxu0
  %6463 = vdwg.mxu0
  %6464 = vmatprep.subr.bf16.mxu0 %v3075
  %6465 = vmatpush1.bf16.msra.mxu0 %v3074
  %6466 = vmatprep.subr.bf16.mxu0 %v3083
  %6467 = vmatpush1.bf16.msra.mxu0 %v3082
  %6468 = vmatprep.subr.bf16.mxu0 %v3091
  %6469 = vmatpush1.bf16.msra.mxu0 %v3090
  %6470 = vmatprep.subr.bf16.mxu0 %v3099
  %6471 = vmatpush1.bf16.msra.mxu0 %v3098
  %6472 = vmatprep.subr.bf16.mxu0 %v3107
  %6473 = vmatpush1.bf16.msra.mxu0 %v3106
  %6474 = vmatprep.subr.bf16.mxu0 %v3115
  %6475 = vmatpush1.bf16.msra.mxu0 %v3114
  %6476 = vmatprep.subr.bf16.mxu0 %v3123
  %6477 = vmatpush1.bf16.msra.mxu0 %v3122
  %6478 = vmatprep.subr.bf16.mxu0 %v3131
  %6479 = vmatpush1.bf16.msra.mxu0 %v3130
  %6480 = vmatprep.subr.bf16.mxu0 %v3139
  %6481 = vmatpush1.bf16.msra.mxu0 %v3138
  %6482 = vmatprep.subr.bf16.mxu0 %v3147
  %6483 = vmatpush1.bf16.msra.mxu0 %v3146
  %6484 = vmatprep.subr.bf16.mxu0 %v3155
  %6485 = vmatpush1.bf16.msra.mxu0 %v3154
  %6486 = vmatprep.subr.bf16.mxu0 %v3163
  %6487 = vmatpush1.bf16.msra.mxu0 %v3162
  %6488 = vmatprep.subr.bf16.mxu0 %v3171
  %6489 = vmatpush1.bf16.msra.mxu0 %v3170
  %6490 = vmatprep.subr.bf16.mxu0 %v3179
  %6491 = vmatpush1.bf16.msra.mxu0 %v3178
  %6492 = vmatprep.subr.bf16.mxu0 %v3187
  %6493 = vmatpush1.bf16.msra.mxu0 %v3186
  %6494 = vmatprep.subr.bf16.mxu0 %v3195
  %6495 = vmatpush1.bf16.msra.mxu0 %v3194
  %6496 = vmatprep.mubr.bf16.mxu0 %v6025
  %6497 = vmatmul.mubr.bf16.gmra.mrb[0].mxu0 %v6024
  %v6498 = vpop.f32.mrb[0].mxu0
  %v6499 = vadd.f32 %v6335, %v6498
  %v6500 = vpop.f32.mrb[0].mxu0
  %v6501 = vadd.f32 %v6337, %v6500
  %v6502 = vpop.f32.mrb[0].mxu0
  %v6503 = vpop.f32.mrb[0].mxu0
  %6504 = vdwg.mxu0
  %6505 = vmatprep.subr.bf16.mxu0 %v3077
  %6506 = vmatpush1.bf16.msra.mxu0 %v3076
  %6507 = vmatprep.subr.bf16.mxu0 %v3085
  %6508 = vmatpush1.bf16.msra.mxu0 %v3084
  %6509 = vmatprep.subr.bf16.mxu0 %v3093
  %6510 = vmatpush1.bf16.msra.mxu0 %v3092
  %6511 = vmatprep.subr.bf16.mxu0 %v3101
  %6512 = vmatpush1.bf16.msra.mxu0 %v3100
  %6513 = vmatprep.subr.bf16.mxu0 %v3109
  %6514 = vmatpush1.bf16.msra.mxu0 %v3108
  %6515 = vmatprep.subr.bf16.mxu0 %v3117
  %6516 = vmatpush1.bf16.msra.mxu0 %v3116
  %6517 = vmatprep.subr.bf16.mxu0 %v3125
  %6518 = vmatpush1.bf16.msra.mxu0 %v3124
  %6519 = vmatprep.subr.bf16.mxu0 %v3133
  %6520 = vmatpush1.bf16.msra.mxu0 %v3132
  %6521 = vmatprep.subr.bf16.mxu0 %v3141
  %6522 = vmatpush1.bf16.msra.mxu0 %v3140
  %6523 = vmatprep.subr.bf16.mxu0 %v3149
  %6524 = vmatpush1.bf16.msra.mxu0 %v3148
  %6525 = vmatprep.subr.bf16.mxu0 %v3157
  %6526 = vmatpush1.bf16.msra.mxu0 %v3156
  %6527 = vmatprep.subr.bf16.mxu0 %v3165
  %6528 = vmatpush1.bf16.msra.mxu0 %v3164
  %6529 = vmatprep.subr.bf16.mxu0 %v3173
  %6530 = vmatpush1.bf16.msra.mxu0 %v3172
  %6531 = vmatprep.subr.bf16.mxu0 %v3181
  %6532 = vmatpush1.bf16.msra.mxu0 %v3180
  %6533 = vmatprep.subr.bf16.mxu0 %v3189
  %6534 = vmatpush1.bf16.msra.mxu0 %v3188
  %6535 = vmatprep.subr.bf16.mxu0 %v3197
  %6536 = vmatpush1.bf16.msra.mxu0 %v3196
  %6537 = vmatprep.mubr.bf16.mxu0 %v6025
  %6538 = vmatmul.mubr.bf16.gmra.mrb[0].mxu0 %v6024
  %v6539 = vpop.f32.mrb[0].mxu0
  %v6540 = vadd.f32 %v6376, %v6539
  %v6541 = vpop.f32.mrb[0].mxu0
  %v6542 = vadd.f32 %v6378, %v6541
  %v6543 = vpop.f32.mrb[0].mxu0
  %v6544 = vpop.f32.mrb[0].mxu0
  %6545 = vdwg.mxu0
  %6546 = vmatprep.subr.bf16.mxu0 %v3079
  %6547 = vmatpush1.bf16.msra.mxu0 %v3078
  %6548 = vmatprep.subr.bf16.mxu0 %v3087
  %6549 = vmatpush1.bf16.msra.mxu0 %v3086
  %6550 = vmatprep.subr.bf16.mxu0 %v3095
  %6551 = vmatpush1.bf16.msra.mxu0 %v3094
  %6552 = vmatprep.subr.bf16.mxu0 %v3103
  %6553 = vmatpush1.bf16.msra.mxu0 %v3102
  %6554 = vmatprep.subr.bf16.mxu0 %v3111
  %6555 = vmatpush1.bf16.msra.mxu0 %v3110
  %6556 = vmatprep.subr.bf16.mxu0 %v3119
  %6557 = vmatpush1.bf16.msra.mxu0 %v3118
  %6558 = vmatprep.subr.bf16.mxu0 %v3127
  %6559 = vmatpush1.bf16.msra.mxu0 %v3126
  %6560 = vmatprep.subr.bf16.mxu0 %v3135
  %6561 = vmatpush1.bf16.msra.mxu0 %v3134
  %6562 = vmatprep.subr.bf16.mxu0 %v3143
  %6563 = vmatpush1.bf16.msra.mxu0 %v3142
  %6564 = vmatprep.subr.bf16.mxu0 %v3151
  %6565 = vmatpush1.bf16.msra.mxu0 %v3150
  %6566 = vmatprep.subr.bf16.mxu0 %v3159
  %6567 = vmatpush1.bf16.msra.mxu0 %v3158
  %6568 = vmatprep.subr.bf16.mxu0 %v3167
  %6569 = vmatpush1.bf16.msra.mxu0 %v3166
  %6570 = vmatprep.subr.bf16.mxu0 %v3175
  %6571 = vmatpush1.bf16.msra.mxu0 %v3174
  %6572 = vmatprep.subr.bf16.mxu0 %v3183
  %6573 = vmatpush1.bf16.msra.mxu0 %v3182
  %6574 = vmatprep.subr.bf16.mxu0 %v3191
  %6575 = vmatpush1.bf16.msra.mxu0 %v3190
  %6576 = vmatprep.subr.bf16.mxu0 %v3199
  %6577 = vmatpush1.bf16.msra.mxu0 %v3198
  %6578 = vmatprep.mubr.bf16.mxu0 %v6025
  %6579 = vmatmul.mubr.bf16.gmra.mrb[0].mxu0 %v6024
  %v6580 = vpop.f32.mrb[0].mxu0
  %v6581 = vadd.f32 %v6417, %v6580
  %v6582 = vpop.f32.mrb[0].mxu0
  %v6583 = vadd.f32 %v6419, %v6582
  %v6584 = vpop.f32.mrb[0].mxu0
  %v6585 = vpop.f32.mrb[0].mxu0
  %6586 = vdwg.mxu0
  %v6587 = vadd.f32 %v6458, %v439
  %v6588 = vadd.f32 %v6460, %v443
  %v6589 = vadd.f32 %v6499, %v447
  %v6590 = vadd.f32 %v6501, %v451
  %v6591 = vadd.f32 %v6540, %v455
  %v6592 = vadd.f32 %v6542, %v459
  %v6593 = vadd.f32 %v6581, %v463
  %v6594 = vadd.f32 %v6583, %v467
  %v6595 = vxor.u32 %v6587, 2147483648
  %v6596 = vxor.u32 %v6588, 2147483648
  %v6597 = vmul.f32 %v6595, 1.442695
  %v6598 = vpow.pop %v6597
  %v6599 = vmul.f32 %v6596, 1.442695
  %v6600 = vpow.pop %v6599
  %v6601 = vadd.f32 %v6598, 1.0
  %v6602 = vadd.f32 %v6600, 1.0
  %v6603 = vrcp.pop %v6601
  %v6604 = vmul.f32 1.0, %v6603
  %v6605 = vrcp.pop %v6602
  %v6606 = vmul.f32 1.0, %v6605
  %v6607 = vxor.u32 %v6589, 2147483648
  %v6608 = vxor.u32 %v6590, 2147483648
  %v6609 = vmul.f32 %v6607, 1.442695
  %v6610 = vpow.pop %v6609
  %v6611 = vmul.f32 %v6608, 1.442695
  %v6612 = vpow.pop %v6611
  %v6613 = vadd.f32 %v6610, 1.0
  %v6614 = vadd.f32 %v6612, 1.0
  %v6615 = vrcp.pop %v6613
  %v6616 = vmul.f32 1.0, %v6615
  %v6617 = vrcp.pop %v6614
  %v6618 = vmul.f32 1.0, %v6617
  %v6619 = vtanh.pop %v6591
  %v6620 = vtanh.pop %v6592
  %v6621 = vxor.u32 %v6593, 2147483648
  %v6622 = vxor.u32 %v6594, 2147483648
  %v6623 = vmul.f32 %v6621, 1.442695
  %v6624 = vpow.pop %v6623
  %v6625 = vmul.f32 %v6622, 1.442695
  %v6626 = vpow.pop %v6625
  %v6627 = vadd.f32 %v6624, 1.0
  %v6628 = vadd.f32 %v6626, 1.0
  %v6629 = vrcp.pop %v6627
  %v6630 = vmul.f32 1.0, %v6629
  %v6631 = vrcp.pop %v6628
  %v6632 = vmul.f32 1.0, %v6631
  %v6633 = vmul.f32 %v6616, %v6018
  %v6634 = vmul.f32 %v6618, %v6019
  %v6635 = vmul.f32 %v6604, %v6619
  %v6636 = vmul.f32 %v6606, %v6620
  %v6637 = vadd.f32 %v6633, %v6635
  %v6638 = vadd.f32 %v6634, %v6636
  %v6639 = vtanh.pop %v6637
  %v6640 = vtanh.pop %v6638
  %v6641 = vmul.f32 %v6630, %v6639
  %v6642 = vmul.f32 %v6632, %v6640
  %v6643 = vpack.c.bf16 %v6641, %v6641
  %v6644 = vpack.c.bf16 %v6642, %v6642
  %s6645 = smul.u32 6, 8
  %s6646 = smul.addr %s6645, 8
  %s6647 = scalar_lea.vmem [#allocation2], %s6646
  %v6648 = vld [vmem:[%s6647] sm:$0xff]
  %v6649 = vld [vmem:[%s6647 + $0x8] sm:$0xff]
  %v6650 = vld [vmem:[%s6647 + $0x10] sm:$0xff]
  %v6651 = vld [vmem:[%s6647 + $0x18] sm:$0xff]
  %v6652 = vld [vmem:[%s6647 + $0x20] sm:$0xff]
  %v6653 = vld [vmem:[%s6647 + $0x28] sm:$0xff]
  %v6654 = vld [vmem:[%s6647 + $0x30] sm:$0xff]
  %v6655 = vld [vmem:[%s6647 + $0x38] sm:$0xff]
  %6656 = vmatprep.subr.bf16.mxu0 %v1407
  %6657 = vmatpush1.bf16.msra.mxu0 %v1406
  %6658 = vmatprep.subr.bf16.mxu0 %v1415
  %6659 = vmatpush1.bf16.msra.mxu0 %v1414
  %6660 = vmatprep.subr.bf16.mxu0 %v1423
  %6661 = vmatpush1.bf16.msra.mxu0 %v1422
  %6662 = vmatprep.subr.bf16.mxu0 %v1431
  %6663 = vmatpush1.bf16.msra.mxu0 %v1430
  %6664 = vmatprep.subr.bf16.mxu0 %v1439
  %6665 = vmatpush1.bf16.msra.mxu0 %v1438
  %6666 = vmatprep.subr.bf16.mxu0 %v1447
  %6667 = vmatpush1.bf16.msra.mxu0 %v1446
  %6668 = vmatprep.subr.bf16.mxu0 %v1455
  %6669 = vmatpush1.bf16.msra.mxu0 %v1454
  %6670 = vmatprep.subr.bf16.mxu0 %v1463
  %6671 = vmatpush1.bf16.msra.mxu0 %v1462
  %6672 = vmatprep.subr.bf16.mxu0 %v1471
  %6673 = vmatpush1.bf16.msra.mxu0 %v1470
  %6674 = vmatprep.subr.bf16.mxu0 %v1479
  %6675 = vmatpush1.bf16.msra.mxu0 %v1478
  %6676 = vmatprep.subr.bf16.mxu0 %v1487
  %6677 = vmatpush1.bf16.msra.mxu0 %v1486
  %6678 = vmatprep.subr.bf16.mxu0 %v1495
  %6679 = vmatpush1.bf16.msra.mxu0 %v1494
  %6680 = vmatprep.subr.bf16.mxu0 %v1503
  %6681 = vmatpush1.bf16.msra.mxu0 %v1502
  %6682 = vmatprep.subr.bf16.mxu0 %v1511
  %6683 = vmatpush1.bf16.msra.mxu0 %v1510
  %6684 = vmatprep.subr.bf16.mxu0 %v1519
  %6685 = vmatpush1.bf16.msra.mxu0 %v1518
  %6686 = vmatprep.subr.bf16.mxu0 %v1527
  %6687 = vmatpush1.bf16.msra.mxu0 %v1526
  %6688 = vmatprep.mubr.bf16.mxu0 %v6258
  %6689 = vmatmul.mubr.bf16.gmra.mrb[0].mxu0 %v6257
  %v6690 = vpop.f32.mrb[0].mxu0
  %v6691 = vadd.f32 0.0, %v6690
  %v6692 = vpop.f32.mrb[0].mxu0
  %v6693 = vadd.f32 0.0, %v6692
  %v6694 = vpop.f32.mrb[0].mxu0
  %v6695 = vpop.f32.mrb[0].mxu0
  %6696 = vdwg.mxu0
  %6697 = vmatprep.subr.bf16.mxu0 %v1409
  %6698 = vmatpush1.bf16.msra.mxu0 %v1408
  %6699 = vmatprep.subr.bf16.mxu0 %v1417
  %6700 = vmatpush1.bf16.msra.mxu0 %v1416
  %6701 = vmatprep.subr.bf16.mxu0 %v1425
  %6702 = vmatpush1.bf16.msra.mxu0 %v1424
  %6703 = vmatprep.subr.bf16.mxu0 %v1433
  %6704 = vmatpush1.bf16.msra.mxu0 %v1432
  %6705 = vmatprep.subr.bf16.mxu0 %v1441
  %6706 = vmatpush1.bf16.msra.mxu0 %v1440
  %6707 = vmatprep.subr.bf16.mxu0 %v1449
  %6708 = vmatpush1.bf16.msra.mxu0 %v1448
  %6709 = vmatprep.subr.bf16.mxu0 %v1457
  %6710 = vmatpush1.bf16.msra.mxu0 %v1456
  %6711 = vmatprep.subr.bf16.mxu0 %v1465
  %6712 = vmatpush1.bf16.msra.mxu0 %v1464
  %6713 = vmatprep.subr.bf16.mxu0 %v1473
  %6714 = vmatpush1.bf16.msra.mxu0 %v1472
  %6715 = vmatprep.subr.bf16.mxu0 %v1481
  %6716 = vmatpush1.bf16.msra.mxu0 %v1480
  %6717 = vmatprep.subr.bf16.mxu0 %v1489
  %6718 = vmatpush1.bf16.msra.mxu0 %v1488
  %6719 = vmatprep.subr.bf16.mxu0 %v1497
  %6720 = vmatpush1.bf16.msra.mxu0 %v1496
  %6721 = vmatprep.subr.bf16.mxu0 %v1505
  %6722 = vmatpush1.bf16.msra.mxu0 %v1504
  %6723 = vmatprep.subr.bf16.mxu0 %v1513
  %6724 = vmatpush1.bf16.msra.mxu0 %v1512
  %6725 = vmatprep.subr.bf16.mxu0 %v1521
  %6726 = vmatpush1.bf16.msra.mxu0 %v1520
  %6727 = vmatprep.subr.bf16.mxu0 %v1529
  %6728 = vmatpush1.bf16.msra.mxu0 %v1528
  %6729 = vmatprep.mubr.bf16.mxu0 %v6258
  %6730 = vmatmul.mubr.bf16.gmra.mrb[0].mxu0 %v6257
  %v6731 = vpop.f32.mrb[0].mxu0
  %v6732 = vadd.f32 0.0, %v6731
  %v6733 = vpop.f32.mrb[0].mxu0
  %v6734 = vadd.f32 0.0, %v6733
  %v6735 = vpop.f32.mrb[0].mxu0
  %v6736 = vpop.f32.mrb[0].mxu0
  %6737 = vdwg.mxu0
  %6738 = vmatprep.subr.bf16.mxu0 %v1411
  %6739 = vmatpush1.bf16.msra.mxu0 %v1410
  %6740 = vmatprep.subr.bf16.mxu0 %v1419
  %6741 = vmatpush1.bf16.msra.mxu0 %v1418
  %6742 = vmatprep.subr.bf16.mxu0 %v1427
  %6743 = vmatpush1.bf16.msra.mxu0 %v1426
  %6744 = vmatprep.subr.bf16.mxu0 %v1435
  %6745 = vmatpush1.bf16.msra.mxu0 %v1434
  %6746 = vmatprep.subr.bf16.mxu0 %v1443
  %6747 = vmatpush1.bf16.msra.mxu0 %v1442
  %6748 = vmatprep.subr.bf16.mxu0 %v1451
  %6749 = vmatpush1.bf16.msra.mxu0 %v1450
  %6750 = vmatprep.subr.bf16.mxu0 %v1459
  %6751 = vmatpush1.bf16.msra.mxu0 %v1458
  %6752 = vmatprep.subr.bf16.mxu0 %v1467
  %6753 = vmatpush1.bf16.msra.mxu0 %v1466
  %6754 = vmatprep.subr.bf16.mxu0 %v1475
  %6755 = vmatpush1.bf16.msra.mxu0 %v1474
  %6756 = vmatprep.subr.bf16.mxu0 %v1483
  %6757 = vmatpush1.bf16.msra.mxu0 %v1482
  %6758 = vmatprep.subr.bf16.mxu0 %v1491
  %6759 = vmatpush1.bf16.msra.mxu0 %v1490
  %6760 = vmatprep.subr.bf16.mxu0 %v1499
  %6761 = vmatpush1.bf16.msra.mxu0 %v1498
  %6762 = vmatprep.subr.bf16.mxu0 %v1507
  %6763 = vmatpush1.bf16.msra.mxu0 %v1506
  %6764 = vmatprep.subr.bf16.mxu0 %v1515
  %6765 = vmatpush1.bf16.msra.mxu0 %v1514
  %6766 = vmatprep.subr.bf16.mxu0 %v1523
  %6767 = vmatpush1.bf16.msra.mxu0 %v1522
  %6768 = vmatprep.subr.bf16.mxu0 %v1531
  %6769 = vmatpush1.bf16.msra.mxu0 %v1530
  %6770 = vmatprep.mubr.bf16.mxu0 %v6258
  %6771 = vmatmul.mubr.bf16.gmra.mrb[0].mxu0 %v6257
  %v6772 = vpop.f32.mrb[0].mxu0
  %v6773 = vadd.f32 0.0, %v6772
  %v6774 = vpop.f32.mrb[0].mxu0
  %v6775 = vadd.f32 0.0, %v6774
  %v6776 = vpop.f32.mrb[0].mxu0
  %v6777 = vpop.f32.mrb[0].mxu0
  %6778 = vdwg.mxu0
  %6779 = vmatprep.subr.bf16.mxu0 %v1413
  %6780 = vmatpush1.bf16.msra.mxu0 %v1412
  %6781 = vmatprep.subr.bf16.mxu0 %v1421
  %6782 = vmatpush1.bf16.msra.mxu0 %v1420
  %6783 = vmatprep.subr.bf16.mxu0 %v1429
  %6784 = vmatpush1.bf16.msra.mxu0 %v1428
  %6785 = vmatprep.subr.bf16.mxu0 %v1437
  %6786 = vmatpush1.bf16.msra.mxu0 %v1436
  %6787 = vmatprep.subr.bf16.mxu0 %v1445
  %6788 = vmatpush1.bf16.msra.mxu0 %v1444
  %6789 = vmatprep.subr.bf16.mxu0 %v1453
  %6790 = vmatpush1.bf16.msra.mxu0 %v1452
  %6791 = vmatprep.subr.bf16.mxu0 %v1461
  %6792 = vmatpush1.bf16.msra.mxu0 %v1460
  %6793 = vmatprep.subr.bf16.mxu0 %v1469
  %6794 = vmatpush1.bf16.msra.mxu0 %v1468
  %6795 = vmatprep.subr.bf16.mxu0 %v1477
  %6796 = vmatpush1.bf16.msra.mxu0 %v1476
  %6797 = vmatprep.subr.bf16.mxu0 %v1485
  %6798 = vmatpush1.bf16.msra.mxu0 %v1484
  %6799 = vmatprep.subr.bf16.mxu0 %v1493
  %6800 = vmatpush1.bf16.msra.mxu0 %v1492
  %6801 = vmatprep.subr.bf16.mxu0 %v1501
  %6802 = vmatpush1.bf16.msra.mxu0 %v1500
  %6803 = vmatprep.subr.bf16.mxu0 %v1509
  %6804 = vmatpush1.bf16.msra.mxu0 %v1508
  %6805 = vmatprep.subr.bf16.mxu0 %v1517
  %6806 = vmatpush1.bf16.msra.mxu0 %v1516
  %6807 = vmatprep.subr.bf16.mxu0 %v1525
  %6808 = vmatpush1.bf16.msra.mxu0 %v1524
  %6809 = vmatprep.subr.bf16.mxu0 %v1533
  %6810 = vmatpush1.bf16.msra.mxu0 %v1532
  %6811 = vmatprep.mubr.bf16.mxu0 %v6258
  %6812 = vmatmul.mubr.bf16.gmra.mrb[0].mxu0 %v6257
  %v6813 = vpop.f32.mrb[0].mxu0
  %v6814 = vadd.f32 0.0, %v6813
  %v6815 = vpop.f32.mrb[0].mxu0
  %v6816 = vadd.f32 0.0, %v6815
  %v6817 = vpop.f32.mrb[0].mxu0
  %v6818 = vpop.f32.mrb[0].mxu0
  %6819 = vdwg.mxu0
  %v6820 = vadd.f32 %v6648, %v6691
  %v6821 = vadd.f32 %v6649, %v6693
  %v6822 = vadd.f32 %v6650, %v6732
  %v6823 = vadd.f32 %v6651, %v6734
  %v6824 = vadd.f32 %v6652, %v6773
  %v6825 = vadd.f32 %v6653, %v6775
  %v6826 = vadd.f32 %v6654, %v6814
  %v6827 = vadd.f32 %v6655, %v6816
  %v6828 = vxor.u32 %v6820, 2147483648
  %v6829 = vxor.u32 %v6821, 2147483648
  %v6830 = vmul.f32 %v6828, 1.442695
  %v6831 = vpow.pop %v6830
  %v6832 = vmul.f32 %v6829, 1.442695
  %v6833 = vpow.pop %v6832
  %v6834 = vadd.f32 %v6831, 1.0
  %v6835 = vadd.f32 %v6833, 1.0
  %v6836 = vrcp.pop %v6834
  %v6837 = vmul.f32 1.0, %v6836
  %v6838 = vrcp.pop %v6835
  %v6839 = vmul.f32 1.0, %v6838
  %v6840 = vxor.u32 %v6822, 2147483648
  %v6841 = vxor.u32 %v6823, 2147483648
  %v6842 = vmul.f32 %v6840, 1.442695
  %v6843 = vpow.pop %v6842
  %v6844 = vmul.f32 %v6841, 1.442695
  %v6845 = vpow.pop %v6844
  %v6846 = vadd.f32 %v6843, 1.0
  %v6847 = vadd.f32 %v6845, 1.0
  %v6848 = vrcp.pop %v6846
  %v6849 = vmul.f32 1.0, %v6848
  %v6850 = vrcp.pop %v6847
  %v6851 = vmul.f32 1.0, %v6850
  %v6852 = vtanh.pop %v6824
  %v6853 = vtanh.pop %v6825
  %v6854 = vxor.u32 %v6826, 2147483648
  %v6855 = vxor.u32 %v6827, 2147483648
  %v6856 = vmul.f32 %v6854, 1.442695
  %v6857 = vpow.pop %v6856
  %v6858 = vmul.f32 %v6855, 1.442695
  %v6859 = vpow.pop %v6858
  %v6860 = vadd.f32 %v6857, 1.0
  %v6861 = vadd.f32 %v6859, 1.0
  %v6862 = vrcp.pop %v6860
  %v6863 = vmul.f32 1.0, %v6862
  %v6864 = vrcp.pop %v6861
  %v6865 = vmul.f32 1.0, %v6864
  %v6866 = vmul.f32 %v6849, %v6251
  %v6867 = vmul.f32 %v6851, %v6252
  %v6868 = vmul.f32 %v6837, %v6852
  %v6869 = vmul.f32 %v6839, %v6853
  %v6870 = vadd.f32 %v6866, %v6868
  %v6871 = vadd.f32 %v6867, %v6869
  %v6872 = vtanh.pop %v6870
  %v6873 = vtanh.pop %v6871
  %v6874 = vmul.f32 %v6863, %v6872
  %v6875 = vmul.f32 %v6865, %v6873
  %v6876 = vpack.c.bf16 %v6874, %v6874
  %v6877 = vpack.c.bf16 %v6875, %v6875
  %6878 = vmatprep.subr.bf16.mxu0 %v2269
  %6879 = vmatpush1.bf16.msra.mxu0 %v2268
  %6880 = vmatprep.subr.bf16.mxu0 %v2277
  %6881 = vmatpush1.bf16.msra.mxu0 %v2276
  %6882 = vmatprep.subr.bf16.mxu0 %v2285
  %6883 = vmatpush1.bf16.msra.mxu0 %v2284
  %6884 = vmatprep.subr.bf16.mxu0 %v2293
  %6885 = vmatpush1.bf16.msra.mxu0 %v2292
  %6886 = vmatprep.subr.bf16.mxu0 %v2301
  %6887 = vmatpush1.bf16.msra.mxu0 %v2300
  %6888 = vmatprep.subr.bf16.mxu0 %v2309
  %6889 = vmatpush1.bf16.msra.mxu0 %v2308
  %6890 = vmatprep.subr.bf16.mxu0 %v2317
  %6891 = vmatpush1.bf16.msra.mxu0 %v2316
  %6892 = vmatprep.subr.bf16.mxu0 %v2325
  %6893 = vmatpush1.bf16.msra.mxu0 %v2324
  %6894 = vmatprep.subr.bf16.mxu0 %v2333
  %6895 = vmatpush1.bf16.msra.mxu0 %v2332
  %6896 = vmatprep.subr.bf16.mxu0 %v2341
  %6897 = vmatpush1.bf16.msra.mxu0 %v2340
  %6898 = vmatprep.subr.bf16.mxu0 %v2349
  %6899 = vmatpush1.bf16.msra.mxu0 %v2348
  %6900 = vmatprep.subr.bf16.mxu0 %v2357
  %6901 = vmatpush1.bf16.msra.mxu0 %v2356
  %6902 = vmatprep.subr.bf16.mxu0 %v2365
  %6903 = vmatpush1.bf16.msra.mxu0 %v2364
  %6904 = vmatprep.subr.bf16.mxu0 %v2373
  %6905 = vmatpush1.bf16.msra.mxu0 %v2372
  %6906 = vmatprep.subr.bf16.mxu0 %v2381
  %6907 = vmatpush1.bf16.msra.mxu0 %v2380
  %6908 = vmatprep.subr.bf16.mxu0 %v2389
  %6909 = vmatpush1.bf16.msra.mxu0 %v2388
  %6910 = vmatprep.mubr.bf16.mxu0 %v6877
  %6911 = vmatmul.mubr.bf16.gmra.mrb[0].mxu0 %v6876
  %v6912 = vpop.f32.mrb[0].mxu0
  %v6913 = vadd.f32 0.0, %v6912
  %v6914 = vpop.f32.mrb[0].mxu0
  %v6915 = vadd.f32 0.0, %v6914
  %v6916 = vpop.f32.mrb[0].mxu0
  %v6917 = vpop.f32.mrb[0].mxu0
  %6918 = vdwg.mxu0
  %6919 = vmatprep.subr.bf16.mxu0 %v2271
  %6920 = vmatpush1.bf16.msra.mxu0 %v2270
  %6921 = vmatprep.subr.bf16.mxu0 %v2279
  %6922 = vmatpush1.bf16.msra.mxu0 %v2278
  %6923 = vmatprep.subr.bf16.mxu0 %v2287
  %6924 = vmatpush1.bf16.msra.mxu0 %v2286
  %6925 = vmatprep.subr.bf16.mxu0 %v2295
  %6926 = vmatpush1.bf16.msra.mxu0 %v2294
  %6927 = vmatprep.subr.bf16.mxu0 %v2303
  %6928 = vmatpush1.bf16.msra.mxu0 %v2302
  %6929 = vmatprep.subr.bf16.mxu0 %v2311
  %6930 = vmatpush1.bf16.msra.mxu0 %v2310
  %6931 = vmatprep.subr.bf16.mxu0 %v2319
  %6932 = vmatpush1.bf16.msra.mxu0 %v2318
  %6933 = vmatprep.subr.bf16.mxu0 %v2327
  %6934 = vmatpush1.bf16.msra.mxu0 %v2326
  %6935 = vmatprep.subr.bf16.mxu0 %v2335
  %6936 = vmatpush1.bf16.msra.mxu0 %v2334
  %6937 = vmatprep.subr.bf16.mxu0 %v2343
  %6938 = vmatpush1.bf16.msra.mxu0 %v2342
  %6939 = vmatprep.subr.bf16.mxu0 %v2351
  %6940 = vmatpush1.bf16.msra.mxu0 %v2350
  %6941 = vmatprep.subr.bf16.mxu0 %v2359
  %6942 = vmatpush1.bf16.msra.mxu0 %v2358
  %6943 = vmatprep.subr.bf16.mxu0 %v2367
  %6944 = vmatpush1.bf16.msra.mxu0 %v2366
  %6945 = vmatprep.subr.bf16.mxu0 %v2375
  %6946 = vmatpush1.bf16.msra.mxu0 %v2374
  %6947 = vmatprep.subr.bf16.mxu0 %v2383
  %6948 = vmatpush1.bf16.msra.mxu0 %v2382
  %6949 = vmatprep.subr.bf16.mxu0 %v2391
  %6950 = vmatpush1.bf16.msra.mxu0 %v2390
  %6951 = vmatprep.mubr.bf16.mxu0 %v6877
  %6952 = vmatmul.mubr.bf16.gmra.mrb[0].mxu0 %v6876
  %v6953 = vpop.f32.mrb[0].mxu0
  %v6954 = vadd.f32 0.0, %v6953
  %v6955 = vpop.f32.mrb[0].mxu0
  %v6956 = vadd.f32 0.0, %v6955
  %v6957 = vpop.f32.mrb[0].mxu0
  %v6958 = vpop.f32.mrb[0].mxu0
  %6959 = vdwg.mxu0
  %6960 = vmatprep.subr.bf16.mxu0 %v2273
  %6961 = vmatpush1.bf16.msra.mxu0 %v2272
  %6962 = vmatprep.subr.bf16.mxu0 %v2281
  %6963 = vmatpush1.bf16.msra.mxu0 %v2280
  %6964 = vmatprep.subr.bf16.mxu0 %v2289
  %6965 = vmatpush1.bf16.msra.mxu0 %v2288
  %6966 = vmatprep.subr.bf16.mxu0 %v2297
  %6967 = vmatpush1.bf16.msra.mxu0 %v2296
  %6968 = vmatprep.subr.bf16.mxu0 %v2305
  %6969 = vmatpush1.bf16.msra.mxu0 %v2304
  %6970 = vmatprep.subr.bf16.mxu0 %v2313
  %6971 = vmatpush1.bf16.msra.mxu0 %v2312
  %6972 = vmatprep.subr.bf16.mxu0 %v2321
  %6973 = vmatpush1.bf16.msra.mxu0 %v2320
  %6974 = vmatprep.subr.bf16.mxu0 %v2329
  %6975 = vmatpush1.bf16.msra.mxu0 %v2328
  %6976 = vmatprep.subr.bf16.mxu0 %v2337
  %6977 = vmatpush1.bf16.msra.mxu0 %v2336
  %6978 = vmatprep.subr.bf16.mxu0 %v2345
  %6979 = vmatpush1.bf16.msra.mxu0 %v2344
  %6980 = vmatprep.subr.bf16.mxu0 %v2353
  %6981 = vmatpush1.bf16.msra.mxu0 %v2352
  %6982 = vmatprep.subr.bf16.mxu0 %v2361
  %6983 = vmatpush1.bf16.msra.mxu0 %v2360
  %6984 = vmatprep.subr.bf16.mxu0 %v2369
  %6985 = vmatpush1.bf16.msra.mxu0 %v2368
  %6986 = vmatprep.subr.bf16.mxu0 %v2377
  %6987 = vmatpush1.bf16.msra.mxu0 %v2376
  %6988 = vmatprep.subr.bf16.mxu0 %v2385
  %6989 = vmatpush1.bf16.msra.mxu0 %v2384
  %6990 = vmatprep.subr.bf16.mxu0 %v2393
  %6991 = vmatpush1.bf16.msra.mxu0 %v2392
  %6992 = vmatprep.mubr.bf16.mxu0 %v6877
  %6993 = vmatmul.mubr.bf16.gmra.mrb[0].mxu0 %v6876
  %v6994 = vpop.f32.mrb[0].mxu0
  %v6995 = vadd.f32 0.0, %v6994
  %v6996 = vpop.f32.mrb[0].mxu0
  %v6997 = vadd.f32 0.0, %v6996
  %v6998 = vpop.f32.mrb[0].mxu0
  %v6999 = vpop.f32.mrb[0].mxu0
  %7000 = vdwg.mxu0
  %7001 = vmatprep.subr.bf16.mxu0 %v2275
  %7002 = vmatpush1.bf16.msra.mxu0 %v2274
  %7003 = vmatprep.subr.bf16.mxu0 %v2283
  %7004 = vmatpush1.bf16.msra.mxu0 %v2282
  %7005 = vmatprep.subr.bf16.mxu0 %v2291
  %7006 = vmatpush1.bf16.msra.mxu0 %v2290
  %7007 = vmatprep.subr.bf16.mxu0 %v2299
  %7008 = vmatpush1.bf16.msra.mxu0 %v2298
  %7009 = vmatprep.subr.bf16.mxu0 %v2307
  %7010 = vmatpush1.bf16.msra.mxu0 %v2306
  %7011 = vmatprep.subr.bf16.mxu0 %v2315
  %7012 = vmatpush1.bf16.msra.mxu0 %v2314
  %7013 = vmatprep.subr.bf16.mxu0 %v2323
  %7014 = vmatpush1.bf16.msra.mxu0 %v2322
  %7015 = vmatprep.subr.bf16.mxu0 %v2331
  %7016 = vmatpush1.bf16.msra.mxu0 %v2330
  %7017 = vmatprep.subr.bf16.mxu0 %v2339
  %7018 = vmatpush1.bf16.msra.mxu0 %v2338
  %7019 = vmatprep.subr.bf16.mxu0 %v2347
  %7020 = vmatpush1.bf16.msra.mxu0 %v2346
  %7021 = vmatprep.subr.bf16.mxu0 %v2355
  %7022 = vmatpush1.bf16.msra.mxu0 %v2354
  %7023 = vmatprep.subr.bf16.mxu0 %v2363
  %7024 = vmatpush1.bf16.msra.mxu0 %v2362
  %7025 = vmatprep.subr.bf16.mxu0 %v2371
  %7026 = vmatpush1.bf16.msra.mxu0 %v2370
  %7027 = vmatprep.subr.bf16.mxu0 %v2379
  %7028 = vmatpush1.bf16.msra.mxu0 %v2378
  %7029 = vmatprep.subr.bf16.mxu0 %v2387
  %7030 = vmatpush1.bf16.msra.mxu0 %v2386
  %7031 = vmatprep.subr.bf16.mxu0 %v2395
  %7032 = vmatpush1.bf16.msra.mxu0 %v2394
  %7033 = vmatprep.mubr.bf16.mxu0 %v6877
  %7034 = vmatmul.mubr.bf16.gmra.mrb[0].mxu0 %v6876
  %v7035 = vpop.f32.mrb[0].mxu0
  %v7036 = vadd.f32 0.0, %v7035
  %v7037 = vpop.f32.mrb[0].mxu0
  %v7038 = vadd.f32 0.0, %v7037
  %v7039 = vpop.f32.mrb[0].mxu0
  %v7040 = vpop.f32.mrb[0].mxu0
  %7041 = vdwg.mxu0
  %7042 = vmatprep.subr.bf16.mxu0 %v3073
  %7043 = vmatpush1.bf16.msra.mxu0 %v3072
  %7044 = vmatprep.subr.bf16.mxu0 %v3081
  %7045 = vmatpush1.bf16.msra.mxu0 %v3080
  %7046 = vmatprep.subr.bf16.mxu0 %v3089
  %7047 = vmatpush1.bf16.msra.mxu0 %v3088
  %7048 = vmatprep.subr.bf16.mxu0 %v3097
  %7049 = vmatpush1.bf16.msra.mxu0 %v3096
  %7050 = vmatprep.subr.bf16.mxu0 %v3105
  %7051 = vmatpush1.bf16.msra.mxu0 %v3104
  %7052 = vmatprep.subr.bf16.mxu0 %v3113
  %7053 = vmatpush1.bf16.msra.mxu0 %v3112
  %7054 = vmatprep.subr.bf16.mxu0 %v3121
  %7055 = vmatpush1.bf16.msra.mxu0 %v3120
  %7056 = vmatprep.subr.bf16.mxu0 %v3129
  %7057 = vmatpush1.bf16.msra.mxu0 %v3128
  %7058 = vmatprep.subr.bf16.mxu0 %v3137
  %7059 = vmatpush1.bf16.msra.mxu0 %v3136
  %7060 = vmatprep.subr.bf16.mxu0 %v3145
  %7061 = vmatpush1.bf16.msra.mxu0 %v3144
  %7062 = vmatprep.subr.bf16.mxu0 %v3153
  %7063 = vmatpush1.bf16.msra.mxu0 %v3152
  %7064 = vmatprep.subr.bf16.mxu0 %v3161
  %7065 = vmatpush1.bf16.msra.mxu0 %v3160
  %7066 = vmatprep.subr.bf16.mxu0 %v3169
  %7067 = vmatpush1.bf16.msra.mxu0 %v3168
  %7068 = vmatprep.subr.bf16.mxu0 %v3177
  %7069 = vmatpush1.bf16.msra.mxu0 %v3176
  %7070 = vmatprep.subr.bf16.mxu0 %v3185
  %7071 = vmatpush1.bf16.msra.mxu0 %v3184
  %7072 = vmatprep.subr.bf16.mxu0 %v3193
  %7073 = vmatpush1.bf16.msra.mxu0 %v3192
  %7074 = vmatprep.mubr.bf16.mxu0 %v6644
  %7075 = vmatmul.mubr.bf16.gmra.mrb[0].mxu0 %v6643
  %v7076 = vpop.f32.mrb[0].mxu0
  %v7077 = vadd.f32 %v6913, %v7076
  %v7078 = vpop.f32.mrb[0].mxu0
  %v7079 = vadd.f32 %v6915, %v7078
  %v7080 = vpop.f32.mrb[0].mxu0
  %v7081 = vpop.f32.mrb[0].mxu0
  %7082 = vdwg.mxu0
  %7083 = vmatprep.subr.bf16.mxu0 %v3075
  %7084 = vmatpush1.bf16.msra.mxu0 %v3074
  %7085 = vmatprep.subr.bf16.mxu0 %v3083
  %7086 = vmatpush1.bf16.msra.mxu0 %v3082
  %7087 = vmatprep.subr.bf16.mxu0 %v3091
  %7088 = vmatpush1.bf16.msra.mxu0 %v3090
  %7089 = vmatprep.subr.bf16.mxu0 %v3099
  %7090 = vmatpush1.bf16.msra.mxu0 %v3098
  %7091 = vmatprep.subr.bf16.mxu0 %v3107
  %7092 = vmatpush1.bf16.msra.mxu0 %v3106
  %7093 = vmatprep.subr.bf16.mxu0 %v3115
  %7094 = vmatpush1.bf16.msra.mxu0 %v3114
  %7095 = vmatprep.subr.bf16.mxu0 %v3123
  %7096 = vmatpush1.bf16.msra.mxu0 %v3122
  %7097 = vmatprep.subr.bf16.mxu0 %v3131
  %7098 = vmatpush1.bf16.msra.mxu0 %v3130
  %7099 = vmatprep.subr.bf16.mxu0 %v3139
  %7100 = vmatpush1.bf16.msra.mxu0 %v3138
  %7101 = vmatprep.subr.bf16.mxu0 %v3147
  %7102 = vmatpush1.bf16.msra.mxu0 %v3146
  %7103 = vmatprep.subr.bf16.mxu0 %v3155
  %7104 = vmatpush1.bf16.msra.mxu0 %v3154
  %7105 = vmatprep.subr.bf16.mxu0 %v3163
  %7106 = vmatpush1.bf16.msra.mxu0 %v3162
  %7107 = vmatprep.subr.bf16.mxu0 %v3171
  %7108 = vmatpush1.bf16.msra.mxu0 %v3170
  %7109 = vmatprep.subr.bf16.mxu0 %v3179
  %7110 = vmatpush1.bf16.msra.mxu0 %v3178
  %7111 = vmatprep.subr.bf16.mxu0 %v3187
  %7112 = vmatpush1.bf16.msra.mxu0 %v3186
  %7113 = vmatprep.subr.bf16.mxu0 %v3195
  %7114 = vmatpush1.bf16.msra.mxu0 %v3194
  %7115 = vmatprep.mubr.bf16.mxu0 %v6644
  %7116 = vmatmul.mubr.bf16.gmra.mrb[0].mxu0 %v6643
  %v7117 = vpop.f32.mrb[0].mxu0
  %v7118 = vadd.f32 %v6954, %v7117
  %v7119 = vpop.f32.mrb[0].mxu0
  %v7120 = vadd.f32 %v6956, %v7119
  %v7121 = vpop.f32.mrb[0].mxu0
  %v7122 = vpop.f32.mrb[0].mxu0
  %7123 = vdwg.mxu0
  %7124 = vmatprep.subr.bf16.mxu0 %v3077
  %7125 = vmatpush1.bf16.msra.mxu0 %v3076
  %7126 = vmatprep.subr.bf16.mxu0 %v3085
  %7127 = vmatpush1.bf16.msra.mxu0 %v3084
  %7128 = vmatprep.subr.bf16.mxu0 %v3093
  %7129 = vmatpush1.bf16.msra.mxu0 %v3092
  %7130 = vmatprep.subr.bf16.mxu0 %v3101
  %7131 = vmatpush1.bf16.msra.mxu0 %v3100
  %7132 = vmatprep.subr.bf16.mxu0 %v3109
  %7133 = vmatpush1.bf16.msra.mxu0 %v3108
  %7134 = vmatprep.subr.bf16.mxu0 %v3117
  %7135 = vmatpush1.bf16.msra.mxu0 %v3116
  %7136 = vmatprep.subr.bf16.mxu0 %v3125
  %7137 = vmatpush1.bf16.msra.mxu0 %v3124
  %7138 = vmatprep.subr.bf16.mxu0 %v3133
  %7139 = vmatpush1.bf16.msra.mxu0 %v3132
  %7140 = vmatprep.subr.bf16.mxu0 %v3141
  %7141 = vmatpush1.bf16.msra.mxu0 %v3140
  %7142 = vmatprep.subr.bf16.mxu0 %v3149
  %7143 = vmatpush1.bf16.msra.mxu0 %v3148
  %7144 = vmatprep.subr.bf16.mxu0 %v3157
  %7145 = vmatpush1.bf16.msra.mxu0 %v3156
  %7146 = vmatprep.subr.bf16.mxu0 %v3165
  %7147 = vmatpush1.bf16.msra.mxu0 %v3164
  %7148 = vmatprep.subr.bf16.mxu0 %v3173
  %7149 = vmatpush1.bf16.msra.mxu0 %v3172
  %7150 = vmatprep.subr.bf16.mxu0 %v3181
  %7151 = vmatpush1.bf16.msra.mxu0 %v3180
  %7152 = vmatprep.subr.bf16.mxu0 %v3189
  %7153 = vmatpush1.bf16.msra.mxu0 %v3188
  %7154 = vmatprep.subr.bf16.mxu0 %v3197
  %7155 = vmatpush1.bf16.msra.mxu0 %v3196
  %7156 = vmatprep.mubr.bf16.mxu0 %v6644
  %7157 = vmatmul.mubr.bf16.gmra.mrb[0].mxu0 %v6643
  %v7158 = vpop.f32.mrb[0].mxu0
  %v7159 = vadd.f32 %v6995, %v7158
  %v7160 = vpop.f32.mrb[0].mxu0
  %v7161 = vadd.f32 %v6997, %v7160
  %v7162 = vpop.f32.mrb[0].mxu0
  %v7163 = vpop.f32.mrb[0].mxu0
  %7164 = vdwg.mxu0
  %7165 = vmatprep.subr.bf16.mxu0 %v3079
  %7166 = vmatpush1.bf16.msra.mxu0 %v3078
  %7167 = vmatprep.subr.bf16.mxu0 %v3087
  %7168 = vmatpush1.bf16.msra.mxu0 %v3086
  %7169 = vmatprep.subr.bf16.mxu0 %v3095
  %7170 = vmatpush1.bf16.msra.mxu0 %v3094
  %7171 = vmatprep.subr.bf16.mxu0 %v3103
  %7172 = vmatpush1.bf16.msra.mxu0 %v3102
  %7173 = vmatprep.subr.bf16.mxu0 %v3111
  %7174 = vmatpush1.bf16.msra.mxu0 %v3110
  %7175 = vmatprep.subr.bf16.mxu0 %v3119
  %7176 = vmatpush1.bf16.msra.mxu0 %v3118
  %7177 = vmatprep.subr.bf16.mxu0 %v3127
  %7178 = vmatpush1.bf16.msra.mxu0 %v3126
  %7179 = vmatprep.subr.bf16.mxu0 %v3135
  %7180 = vmatpush1.bf16.msra.mxu0 %v3134
  %7181 = vmatprep.subr.bf16.mxu0 %v3143
  %7182 = vmatpush1.bf16.msra.mxu0 %v3142
  %7183 = vmatprep.subr.bf16.mxu0 %v3151
  %7184 = vmatpush1.bf16.msra.mxu0 %v3150
  %7185 = vmatprep.subr.bf16.mxu0 %v3159
  %7186 = vmatpush1.bf16.msra.mxu0 %v3158
  %7187 = vmatprep.subr.bf16.mxu0 %v3167
  %7188 = vmatpush1.bf16.msra.mxu0 %v3166
  %7189 = vmatprep.subr.bf16.mxu0 %v3175
  %7190 = vmatpush1.bf16.msra.mxu0 %v3174
  %7191 = vmatprep.subr.bf16.mxu0 %v3183
  %7192 = vmatpush1.bf16.msra.mxu0 %v3182
  %7193 = vmatprep.subr.bf16.mxu0 %v3191
  %7194 = vmatpush1.bf16.msra.mxu0 %v3190
  %7195 = vmatprep.subr.bf16.mxu0 %v3199
  %7196 = vmatpush1.bf16.msra.mxu0 %v3198
  %7197 = vmatprep.mubr.bf16.mxu0 %v6644
  %7198 = vmatmul.mubr.bf16.gmra.mrb[0].mxu0 %v6643
  %v7199 = vpop.f32.mrb[0].mxu0
  %v7200 = vadd.f32 %v7036, %v7199
  %v7201 = vpop.f32.mrb[0].mxu0
  %v7202 = vadd.f32 %v7038, %v7201
  %v7203 = vpop.f32.mrb[0].mxu0
  %v7204 = vpop.f32.mrb[0].mxu0
  %7205 = vdwg.mxu0
  %v7206 = vadd.f32 %v7077, %v439
  %v7207 = vadd.f32 %v7079, %v443
  %v7208 = vadd.f32 %v7118, %v447
  %v7209 = vadd.f32 %v7120, %v451
  %v7210 = vadd.f32 %v7159, %v455
  %v7211 = vadd.f32 %v7161, %v459
  %v7212 = vadd.f32 %v7200, %v463
  %v7213 = vadd.f32 %v7202, %v467
  %v7214 = vxor.u32 %v7206, 2147483648
  %v7215 = vxor.u32 %v7207, 2147483648
  %v7216 = vmul.f32 %v7214, 1.442695
  %v7217 = vpow.pop %v7216
  %v7218 = vmul.f32 %v7215, 1.442695
  %v7219 = vpow.pop %v7218
  %v7220 = vadd.f32 %v7217, 1.0
  %v7221 = vadd.f32 %v7219, 1.0
  %v7222 = vrcp.pop %v7220
  %v7223 = vmul.f32 1.0, %v7222
  %v7224 = vrcp.pop %v7221
  %v7225 = vmul.f32 1.0, %v7224
  %v7226 = vxor.u32 %v7208, 2147483648
  %v7227 = vxor.u32 %v7209, 2147483648
  %v7228 = vmul.f32 %v7226, 1.442695
  %v7229 = vpow.pop %v7228
  %v7230 = vmul.f32 %v7227, 1.442695
  %v7231 = vpow.pop %v7230
  %v7232 = vadd.f32 %v7229, 1.0
  %v7233 = vadd.f32 %v7231, 1.0
  %v7234 = vrcp.pop %v7232
  %v7235 = vmul.f32 1.0, %v7234
  %v7236 = vrcp.pop %v7233
  %v7237 = vmul.f32 1.0, %v7236
  %v7238 = vtanh.pop %v7210
  %v7239 = vtanh.pop %v7211
  %v7240 = vxor.u32 %v7212, 2147483648
  %v7241 = vxor.u32 %v7213, 2147483648
  %v7242 = vmul.f32 %v7240, 1.442695
  %v7243 = vpow.pop %v7242
  %v7244 = vmul.f32 %v7241, 1.442695
  %v7245 = vpow.pop %v7244
  %v7246 = vadd.f32 %v7243, 1.0
  %v7247 = vadd.f32 %v7245, 1.0
  %v7248 = vrcp.pop %v7246
  %v7249 = vmul.f32 1.0, %v7248
  %v7250 = vrcp.pop %v7247
  %v7251 = vmul.f32 1.0, %v7250
  %v7252 = vmul.f32 %v7235, %v6637
  %v7253 = vmul.f32 %v7237, %v6638
  %v7254 = vmul.f32 %v7223, %v7238
  %v7255 = vmul.f32 %v7225, %v7239
  %v7256 = vadd.f32 %v7252, %v7254
  %v7257 = vadd.f32 %v7253, %v7255
  %v7258 = vtanh.pop %v7256
  %v7259 = vtanh.pop %v7257
  %v7260 = vmul.f32 %v7249, %v7258
  %v7261 = vmul.f32 %v7251, %v7259
  %v7262 = vpack.c.bf16 %v7260, %v7260
  %v7263 = vpack.c.bf16 %v7261, %v7261
  %s7264 = smul.u32 7, 8
  %s7265 = smul.addr %s7264, 8
  %s7266 = scalar_lea.vmem [#allocation2], %s7265
  %v7267 = vld [vmem:[%s7266] sm:$0xff]
  %v7268 = vld [vmem:[%s7266 + $0x8] sm:$0xff]
  %v7269 = vld [vmem:[%s7266 + $0x10] sm:$0xff]
  %v7270 = vld [vmem:[%s7266 + $0x18] sm:$0xff]
  %v7271 = vld [vmem:[%s7266 + $0x20] sm:$0xff]
  %v7272 = vld [vmem:[%s7266 + $0x28] sm:$0xff]
  %v7273 = vld [vmem:[%s7266 + $0x30] sm:$0xff]
  %v7274 = vld [vmem:[%s7266 + $0x38] sm:$0xff]
  %7275 = vmatprep.subr.bf16.mxu0 %v1407
  %7276 = vmatpush1.bf16.msra.mxu0 %v1406
  %7277 = vmatprep.subr.bf16.mxu0 %v1415
  %7278 = vmatpush1.bf16.msra.mxu0 %v1414
  %7279 = vmatprep.subr.bf16.mxu0 %v1423
  %7280 = vmatpush1.bf16.msra.mxu0 %v1422
  %7281 = vmatprep.subr.bf16.mxu0 %v1431
  %7282 = vmatpush1.bf16.msra.mxu0 %v1430
  %7283 = vmatprep.subr.bf16.mxu0 %v1439
  %7284 = vmatpush1.bf16.msra.mxu0 %v1438
  %7285 = vmatprep.subr.bf16.mxu0 %v1447
  %7286 = vmatpush1.bf16.msra.mxu0 %v1446
  %7287 = vmatprep.subr.bf16.mxu0 %v1455
  %7288 = vmatpush1.bf16.msra.mxu0 %v1454
  %7289 = vmatprep.subr.bf16.mxu0 %v1463
  %7290 = vmatpush1.bf16.msra.mxu0 %v1462
  %7291 = vmatprep.subr.bf16.mxu0 %v1471
  %7292 = vmatpush1.bf16.msra.mxu0 %v1470
  %7293 = vmatprep.subr.bf16.mxu0 %v1479
  %7294 = vmatpush1.bf16.msra.mxu0 %v1478
  %7295 = vmatprep.subr.bf16.mxu0 %v1487
  %7296 = vmatpush1.bf16.msra.mxu0 %v1486
  %7297 = vmatprep.subr.bf16.mxu0 %v1495
  %7298 = vmatpush1.bf16.msra.mxu0 %v1494
  %7299 = vmatprep.subr.bf16.mxu0 %v1503
  %7300 = vmatpush1.bf16.msra.mxu0 %v1502
  %7301 = vmatprep.subr.bf16.mxu0 %v1511
  %7302 = vmatpush1.bf16.msra.mxu0 %v1510
  %7303 = vmatprep.subr.bf16.mxu0 %v1519
  %7304 = vmatpush1.bf16.msra.mxu0 %v1518
  %7305 = vmatprep.subr.bf16.mxu0 %v1527
  %7306 = vmatpush1.bf16.msra.mxu0 %v1526
  %7307 = vmatprep.mubr.bf16.mxu0 %v6877
  %7308 = vmatmul.mubr.bf16.gmra.mrb[0].mxu0 %v6876
  %v7309 = vpop.f32.mrb[0].mxu0
  %v7310 = vadd.f32 0.0, %v7309
  %v7311 = vpop.f32.mrb[0].mxu0
  %v7312 = vadd.f32 0.0, %v7311
  %v7313 = vpop.f32.mrb[0].mxu0
  %v7314 = vpop.f32.mrb[0].mxu0
  %7315 = vdwg.mxu0
  %7316 = vmatprep.subr.bf16.mxu0 %v1409
  %7317 = vmatpush1.bf16.msra.mxu0 %v1408
  %7318 = vmatprep.subr.bf16.mxu0 %v1417
  %7319 = vmatpush1.bf16.msra.mxu0 %v1416
  %7320 = vmatprep.subr.bf16.mxu0 %v1425
  %7321 = vmatpush1.bf16.msra.mxu0 %v1424
  %7322 = vmatprep.subr.bf16.mxu0 %v1433
  %7323 = vmatpush1.bf16.msra.mxu0 %v1432
  %7324 = vmatprep.subr.bf16.mxu0 %v1441
  %7325 = vmatpush1.bf16.msra.mxu0 %v1440
  %7326 = vmatprep.subr.bf16.mxu0 %v1449
  %7327 = vmatpush1.bf16.msra.mxu0 %v1448
  %7328 = vmatprep.subr.bf16.mxu0 %v1457
  %7329 = vmatpush1.bf16.msra.mxu0 %v1456
  %7330 = vmatprep.subr.bf16.mxu0 %v1465
  %7331 = vmatpush1.bf16.msra.mxu0 %v1464
  %7332 = vmatprep.subr.bf16.mxu0 %v1473
  %7333 = vmatpush1.bf16.msra.mxu0 %v1472
  %7334 = vmatprep.subr.bf16.mxu0 %v1481
  %7335 = vmatpush1.bf16.msra.mxu0 %v1480
  %7336 = vmatprep.subr.bf16.mxu0 %v1489
  %7337 = vmatpush1.bf16.msra.mxu0 %v1488
  %7338 = vmatprep.subr.bf16.mxu0 %v1497
  %7339 = vmatpush1.bf16.msra.mxu0 %v1496
  %7340 = vmatprep.subr.bf16.mxu0 %v1505
  %7341 = vmatpush1.bf16.msra.mxu0 %v1504
  %7342 = vmatprep.subr.bf16.mxu0 %v1513
  %7343 = vmatpush1.bf16.msra.mxu0 %v1512
  %7344 = vmatprep.subr.bf16.mxu0 %v1521
  %7345 = vmatpush1.bf16.msra.mxu0 %v1520
  %7346 = vmatprep.subr.bf16.mxu0 %v1529
  %7347 = vmatpush1.bf16.msra.mxu0 %v1528
  %7348 = vmatprep.mubr.bf16.mxu0 %v6877
  %7349 = vmatmul.mubr.bf16.gmra.mrb[0].mxu0 %v6876
  %v7350 = vpop.f32.mrb[0].mxu0
  %v7351 = vadd.f32 0.0, %v7350
  %v7352 = vpop.f32.mrb[0].mxu0
  %v7353 = vadd.f32 0.0, %v7352
  %v7354 = vpop.f32.mrb[0].mxu0
  %v7355 = vpop.f32.mrb[0].mxu0
  %7356 = vdwg.mxu0
  %7357 = vmatprep.subr.bf16.mxu0 %v1411
  %7358 = vmatpush1.bf16.msra.mxu0 %v1410
  %7359 = vmatprep.subr.bf16.mxu0 %v1419
  %7360 = vmatpush1.bf16.msra.mxu0 %v1418
  %7361 = vmatprep.subr.bf16.mxu0 %v1427
  %7362 = vmatpush1.bf16.msra.mxu0 %v1426
  %7363 = vmatprep.subr.bf16.mxu0 %v1435
  %7364 = vmatpush1.bf16.msra.mxu0 %v1434
  %7365 = vmatprep.subr.bf16.mxu0 %v1443
  %7366 = vmatpush1.bf16.msra.mxu0 %v1442
  %7367 = vmatprep.subr.bf16.mxu0 %v1451
  %7368 = vmatpush1.bf16.msra.mxu0 %v1450
  %7369 = vmatprep.subr.bf16.mxu0 %v1459
  %7370 = vmatpush1.bf16.msra.mxu0 %v1458
  %7371 = vmatprep.subr.bf16.mxu0 %v1467
  %7372 = vmatpush1.bf16.msra.mxu0 %v1466
  %7373 = vmatprep.subr.bf16.mxu0 %v1475
  %7374 = vmatpush1.bf16.msra.mxu0 %v1474
  %7375 = vmatprep.subr.bf16.mxu0 %v1483
  %7376 = vmatpush1.bf16.msra.mxu0 %v1482
  %7377 = vmatprep.subr.bf16.mxu0 %v1491
  %7378 = vmatpush1.bf16.msra.mxu0 %v1490
  %7379 = vmatprep.subr.bf16.mxu0 %v1499
  %7380 = vmatpush1.bf16.msra.mxu0 %v1498
  %7381 = vmatprep.subr.bf16.mxu0 %v1507
  %7382 = vmatpush1.bf16.msra.mxu0 %v1506
  %7383 = vmatprep.subr.bf16.mxu0 %v1515
  %7384 = vmatpush1.bf16.msra.mxu0 %v1514
  %7385 = vmatprep.subr.bf16.mxu0 %v1523
  %7386 = vmatpush1.bf16.msra.mxu0 %v1522
  %7387 = vmatprep.subr.bf16.mxu0 %v1531
  %7388 = vmatpush1.bf16.msra.mxu0 %v1530
  %7389 = vmatprep.mubr.bf16.mxu0 %v6877
  %7390 = vmatmul.mubr.bf16.gmra.mrb[0].mxu0 %v6876
  %v7391 = vpop.f32.mrb[0].mxu0
  %v7392 = vadd.f32 0.0, %v7391
  %v7393 = vpop.f32.mrb[0].mxu0
  %v7394 = vadd.f32 0.0, %v7393
  %v7395 = vpop.f32.mrb[0].mxu0
  %v7396 = vpop.f32.mrb[0].mxu0
  %7397 = vdwg.mxu0
  %7398 = vmatprep.subr.bf16.mxu0 %v1413
  %7399 = vmatpush1.bf16.msra.mxu0 %v1412
  %7400 = vmatprep.subr.bf16.mxu0 %v1421
  %7401 = vmatpush1.bf16.msra.mxu0 %v1420
  %7402 = vmatprep.subr.bf16.mxu0 %v1429
  %7403 = vmatpush1.bf16.msra.mxu0 %v1428
  %7404 = vmatprep.subr.bf16.mxu0 %v1437
  %7405 = vmatpush1.bf16.msra.mxu0 %v1436
  %7406 = vmatprep.subr.bf16.mxu0 %v1445
  %7407 = vmatpush1.bf16.msra.mxu0 %v1444
  %7408 = vmatprep.subr.bf16.mxu0 %v1453
  %7409 = vmatpush1.bf16.msra.mxu0 %v1452
  %7410 = vmatprep.subr.bf16.mxu0 %v1461
  %7411 = vmatpush1.bf16.msra.mxu0 %v1460
  %7412 = vmatprep.subr.bf16.mxu0 %v1469
  %7413 = vmatpush1.bf16.msra.mxu0 %v1468
  %7414 = vmatprep.subr.bf16.mxu0 %v1477
  %7415 = vmatpush1.bf16.msra.mxu0 %v1476
  %7416 = vmatprep.subr.bf16.mxu0 %v1485
  %7417 = vmatpush1.bf16.msra.mxu0 %v1484
  %7418 = vmatprep.subr.bf16.mxu0 %v1493
  %7419 = vmatpush1.bf16.msra.mxu0 %v1492
  %7420 = vmatprep.subr.bf16.mxu0 %v1501
  %7421 = vmatpush1.bf16.msra.mxu0 %v1500
  %7422 = vmatprep.subr.bf16.mxu0 %v1509
  %7423 = vmatpush1.bf16.msra.mxu0 %v1508
  %7424 = vmatprep.subr.bf16.mxu0 %v1517
  %7425 = vmatpush1.bf16.msra.mxu0 %v1516
  %7426 = vmatprep.subr.bf16.mxu0 %v1525
  %7427 = vmatpush1.bf16.msra.mxu0 %v1524
  %7428 = vmatprep.subr.bf16.mxu0 %v1533
  %7429 = vmatpush1.bf16.msra.mxu0 %v1532
  %7430 = vmatprep.mubr.bf16.mxu0 %v6877
  %7431 = vmatmul.mubr.bf16.gmra.mrb[0].mxu0 %v6876
  %v7432 = vpop.f32.mrb[0].mxu0
  %v7433 = vadd.f32 0.0, %v7432
  %v7434 = vpop.f32.mrb[0].mxu0
  %v7435 = vadd.f32 0.0, %v7434
  %v7436 = vpop.f32.mrb[0].mxu0
  %v7437 = vpop.f32.mrb[0].mxu0
  %7438 = vdwg.mxu0
  %v7439 = vadd.f32 %v7267, %v7310
  %v7440 = vadd.f32 %v7268, %v7312
  %v7441 = vadd.f32 %v7269, %v7351
  %v7442 = vadd.f32 %v7270, %v7353
  %v7443 = vadd.f32 %v7271, %v7392
  %v7444 = vadd.f32 %v7272, %v7394
  %v7445 = vadd.f32 %v7273, %v7433
  %v7446 = vadd.f32 %v7274, %v7435
  %v7447 = vxor.u32 %v7439, 2147483648
  %v7448 = vxor.u32 %v7440, 2147483648
  %v7449 = vmul.f32 %v7447, 1.442695
  %v7450 = vpow.pop %v7449
  %v7451 = vmul.f32 %v7448, 1.442695
  %v7452 = vpow.pop %v7451
  %v7453 = vadd.f32 %v7450, 1.0
  %v7454 = vadd.f32 %v7452, 1.0
  %v7455 = vrcp.pop %v7453
  %v7456 = vmul.f32 1.0, %v7455
  %v7457 = vrcp.pop %v7454
  %v7458 = vmul.f32 1.0, %v7457
  %v7459 = vxor.u32 %v7441, 2147483648
  %v7460 = vxor.u32 %v7442, 2147483648
  %v7461 = vmul.f32 %v7459, 1.442695
  %v7462 = vpow.pop %v7461
  %v7463 = vmul.f32 %v7460, 1.442695
  %v7464 = vpow.pop %v7463
  %v7465 = vadd.f32 %v7462, 1.0
  %v7466 = vadd.f32 %v7464, 1.0
  %v7467 = vrcp.pop %v7465
  %v7468 = vmul.f32 1.0, %v7467
  %v7469 = vrcp.pop %v7466
  %v7470 = vmul.f32 1.0, %v7469
  %v7471 = vtanh.pop %v7443
  %v7472 = vtanh.pop %v7444
  %v7473 = vxor.u32 %v7445, 2147483648
  %v7474 = vxor.u32 %v7446, 2147483648
  %v7475 = vmul.f32 %v7473, 1.442695
  %v7476 = vpow.pop %v7475
  %v7477 = vmul.f32 %v7474, 1.442695
  %v7478 = vpow.pop %v7477
  %v7479 = vadd.f32 %v7476, 1.0
  %v7480 = vadd.f32 %v7478, 1.0
  %v7481 = vrcp.pop %v7479
  %v7482 = vmul.f32 1.0, %v7481
  %v7483 = vrcp.pop %v7480
  %v7484 = vmul.f32 1.0, %v7483
  %v7485 = vmul.f32 %v7468, %v6870
  %v7486 = vmul.f32 %v7470, %v6871
  %v7487 = vmul.f32 %v7456, %v7471
  %v7488 = vmul.f32 %v7458, %v7472
  %v7489 = vadd.f32 %v7485, %v7487
  %v7490 = vadd.f32 %v7486, %v7488
  %v7491 = vtanh.pop %v7489
  %v7492 = vtanh.pop %v7490
  %v7493 = vmul.f32 %v7482, %v7491
  %v7494 = vmul.f32 %v7484, %v7492
  %v7495 = vpack.c.bf16 %v7493, %v7493
  %v7496 = vpack.c.bf16 %v7494, %v7494
  %7497 = vmatprep.subr.bf16.mxu0 %v2269
  %7498 = vmatpush1.bf16.msra.mxu0 %v2268
  %7499 = vmatprep.subr.bf16.mxu0 %v2277
  %7500 = vmatpush1.bf16.msra.mxu0 %v2276
  %7501 = vmatprep.subr.bf16.mxu0 %v2285
  %7502 = vmatpush1.bf16.msra.mxu0 %v2284
  %7503 = vmatprep.subr.bf16.mxu0 %v2293
  %7504 = vmatpush1.bf16.msra.mxu0 %v2292
  %7505 = vmatprep.subr.bf16.mxu0 %v2301
  %7506 = vmatpush1.bf16.msra.mxu0 %v2300
  %7507 = vmatprep.subr.bf16.mxu0 %v2309
  %7508 = vmatpush1.bf16.msra.mxu0 %v2308
  %7509 = vmatprep.subr.bf16.mxu0 %v2317
  %7510 = vmatpush1.bf16.msra.mxu0 %v2316
  %7511 = vmatprep.subr.bf16.mxu0 %v2325
  %7512 = vmatpush1.bf16.msra.mxu0 %v2324
  %7513 = vmatprep.subr.bf16.mxu0 %v2333
  %7514 = vmatpush1.bf16.msra.mxu0 %v2332
  %7515 = vmatprep.subr.bf16.mxu0 %v2341
  %7516 = vmatpush1.bf16.msra.mxu0 %v2340
  %7517 = vmatprep.subr.bf16.mxu0 %v2349
  %7518 = vmatpush1.bf16.msra.mxu0 %v2348
  %7519 = vmatprep.subr.bf16.mxu0 %v2357
  %7520 = vmatpush1.bf16.msra.mxu0 %v2356
  %7521 = vmatprep.subr.bf16.mxu0 %v2365
  %7522 = vmatpush1.bf16.msra.mxu0 %v2364
  %7523 = vmatprep.subr.bf16.mxu0 %v2373
  %7524 = vmatpush1.bf16.msra.mxu0 %v2372
  %7525 = vmatprep.subr.bf16.mxu0 %v2381
  %7526 = vmatpush1.bf16.msra.mxu0 %v2380
  %7527 = vmatprep.subr.bf16.mxu0 %v2389
  %7528 = vmatpush1.bf16.msra.mxu0 %v2388
  %7529 = vmatprep.mubr.bf16.mxu0 %v7496
  %7530 = vmatmul.mubr.bf16.gmra.mrb[0].mxu0 %v7495
  %v7531 = vpop.f32.mrb[0].mxu0
  %v7532 = vadd.f32 0.0, %v7531
  %v7533 = vpop.f32.mrb[0].mxu0
  %v7534 = vadd.f32 0.0, %v7533
  %v7535 = vpop.f32.mrb[0].mxu0
  %v7536 = vpop.f32.mrb[0].mxu0
  %7537 = vdwg.mxu0
  %7538 = vmatprep.subr.bf16.mxu0 %v2271
  %7539 = vmatpush1.bf16.msra.mxu0 %v2270
  %7540 = vmatprep.subr.bf16.mxu0 %v2279
  %7541 = vmatpush1.bf16.msra.mxu0 %v2278
  %7542 = vmatprep.subr.bf16.mxu0 %v2287
  %7543 = vmatpush1.bf16.msra.mxu0 %v2286
  %7544 = vmatprep.subr.bf16.mxu0 %v2295
  %7545 = vmatpush1.bf16.msra.mxu0 %v2294
  %7546 = vmatprep.subr.bf16.mxu0 %v2303
  %7547 = vmatpush1.bf16.msra.mxu0 %v2302
  %7548 = vmatprep.subr.bf16.mxu0 %v2311
  %7549 = vmatpush1.bf16.msra.mxu0 %v2310
  %7550 = vmatprep.subr.bf16.mxu0 %v2319
  %7551 = vmatpush1.bf16.msra.mxu0 %v2318
  %7552 = vmatprep.subr.bf16.mxu0 %v2327
  %7553 = vmatpush1.bf16.msra.mxu0 %v2326
  %7554 = vmatprep.subr.bf16.mxu0 %v2335
  %7555 = vmatpush1.bf16.msra.mxu0 %v2334
  %7556 = vmatprep.subr.bf16.mxu0 %v2343
  %7557 = vmatpush1.bf16.msra.mxu0 %v2342
  %7558 = vmatprep.subr.bf16.mxu0 %v2351
  %7559 = vmatpush1.bf16.msra.mxu0 %v2350
  %7560 = vmatprep.subr.bf16.mxu0 %v2359
  %7561 = vmatpush1.bf16.msra.mxu0 %v2358
  %7562 = vmatprep.subr.bf16.mxu0 %v2367
  %7563 = vmatpush1.bf16.msra.mxu0 %v2366
  %7564 = vmatprep.subr.bf16.mxu0 %v2375
  %7565 = vmatpush1.bf16.msra.mxu0 %v2374
  %7566 = vmatprep.subr.bf16.mxu0 %v2383
  %7567 = vmatpush1.bf16.msra.mxu0 %v2382
  %7568 = vmatprep.subr.bf16.mxu0 %v2391
  %7569 = vmatpush1.bf16.msra.mxu0 %v2390
  %7570 = vmatprep.mubr.bf16.mxu0 %v7496
  %7571 = vmatmul.mubr.bf16.gmra.mrb[0].mxu0 %v7495
  %v7572 = vpop.f32.mrb[0].mxu0
  %v7573 = vadd.f32 0.0, %v7572
  %v7574 = vpop.f32.mrb[0].mxu0
  %v7575 = vadd.f32 0.0, %v7574
  %v7576 = vpop.f32.mrb[0].mxu0
  %v7577 = vpop.f32.mrb[0].mxu0
  %7578 = vdwg.mxu0
  %7579 = vmatprep.subr.bf16.mxu0 %v2273
  %7580 = vmatpush1.bf16.msra.mxu0 %v2272
  %7581 = vmatprep.subr.bf16.mxu0 %v2281
  %7582 = vmatpush1.bf16.msra.mxu0 %v2280
  %7583 = vmatprep.subr.bf16.mxu0 %v2289
  %7584 = vmatpush1.bf16.msra.mxu0 %v2288
  %7585 = vmatprep.subr.bf16.mxu0 %v2297
  %7586 = vmatpush1.bf16.msra.mxu0 %v2296
  %7587 = vmatprep.subr.bf16.mxu0 %v2305
  %7588 = vmatpush1.bf16.msra.mxu0 %v2304
  %7589 = vmatprep.subr.bf16.mxu0 %v2313
  %7590 = vmatpush1.bf16.msra.mxu0 %v2312
  %7591 = vmatprep.subr.bf16.mxu0 %v2321
  %7592 = vmatpush1.bf16.msra.mxu0 %v2320
  %7593 = vmatprep.subr.bf16.mxu0 %v2329
  %7594 = vmatpush1.bf16.msra.mxu0 %v2328
  %7595 = vmatprep.subr.bf16.mxu0 %v2337
  %7596 = vmatpush1.bf16.msra.mxu0 %v2336
  %7597 = vmatprep.subr.bf16.mxu0 %v2345
  %7598 = vmatpush1.bf16.msra.mxu0 %v2344
  %7599 = vmatprep.subr.bf16.mxu0 %v2353
  %7600 = vmatpush1.bf16.msra.mxu0 %v2352
  %7601 = vmatprep.subr.bf16.mxu0 %v2361
  %7602 = vmatpush1.bf16.msra.mxu0 %v2360
  %7603 = vmatprep.subr.bf16.mxu0 %v2369
  %7604 = vmatpush1.bf16.msra.mxu0 %v2368
  %7605 = vmatprep.subr.bf16.mxu0 %v2377
  %7606 = vmatpush1.bf16.msra.mxu0 %v2376
  %7607 = vmatprep.subr.bf16.mxu0 %v2385
  %7608 = vmatpush1.bf16.msra.mxu0 %v2384
  %7609 = vmatprep.subr.bf16.mxu0 %v2393
  %7610 = vmatpush1.bf16.msra.mxu0 %v2392
  %7611 = vmatprep.mubr.bf16.mxu0 %v7496
  %7612 = vmatmul.mubr.bf16.gmra.mrb[0].mxu0 %v7495
  %v7613 = vpop.f32.mrb[0].mxu0
  %v7614 = vadd.f32 0.0, %v7613
  %v7615 = vpop.f32.mrb[0].mxu0
  %v7616 = vadd.f32 0.0, %v7615
  %v7617 = vpop.f32.mrb[0].mxu0
  %v7618 = vpop.f32.mrb[0].mxu0
  %7619 = vdwg.mxu0
  %7620 = vmatprep.subr.bf16.mxu0 %v2275
  %7621 = vmatpush1.bf16.msra.mxu0 %v2274
  %7622 = vmatprep.subr.bf16.mxu0 %v2283
  %7623 = vmatpush1.bf16.msra.mxu0 %v2282
  %7624 = vmatprep.subr.bf16.mxu0 %v2291
  %7625 = vmatpush1.bf16.msra.mxu0 %v2290
  %7626 = vmatprep.subr.bf16.mxu0 %v2299
  %7627 = vmatpush1.bf16.msra.mxu0 %v2298
  %7628 = vmatprep.subr.bf16.mxu0 %v2307
  %7629 = vmatpush1.bf16.msra.mxu0 %v2306
  %7630 = vmatprep.subr.bf16.mxu0 %v2315
  %7631 = vmatpush1.bf16.msra.mxu0 %v2314
  %7632 = vmatprep.subr.bf16.mxu0 %v2323
  %7633 = vmatpush1.bf16.msra.mxu0 %v2322
  %7634 = vmatprep.subr.bf16.mxu0 %v2331
  %7635 = vmatpush1.bf16.msra.mxu0 %v2330
  %7636 = vmatprep.subr.bf16.mxu0 %v2339
  %7637 = vmatpush1.bf16.msra.mxu0 %v2338
  %7638 = vmatprep.subr.bf16.mxu0 %v2347
  %7639 = vmatpush1.bf16.msra.mxu0 %v2346
  %7640 = vmatprep.subr.bf16.mxu0 %v2355
  %7641 = vmatpush1.bf16.msra.mxu0 %v2354
  %7642 = vmatprep.subr.bf16.mxu0 %v2363
  %7643 = vmatpush1.bf16.msra.mxu0 %v2362
  %7644 = vmatprep.subr.bf16.mxu0 %v2371
  %7645 = vmatpush1.bf16.msra.mxu0 %v2370
  %7646 = vmatprep.subr.bf16.mxu0 %v2379
  %7647 = vmatpush1.bf16.msra.mxu0 %v2378
  %7648 = vmatprep.subr.bf16.mxu0 %v2387
  %7649 = vmatpush1.bf16.msra.mxu0 %v2386
  %7650 = vmatprep.subr.bf16.mxu0 %v2395
  %7651 = vmatpush1.bf16.msra.mxu0 %v2394
  %7652 = vmatprep.mubr.bf16.mxu0 %v7496
  %7653 = vmatmul.mubr.bf16.gmra.mrb[0].mxu0 %v7495
  %v7654 = vpop.f32.mrb[0].mxu0
  %v7655 = vadd.f32 0.0, %v7654
  %v7656 = vpop.f32.mrb[0].mxu0
  %v7657 = vadd.f32 0.0, %v7656
  %v7658 = vpop.f32.mrb[0].mxu0
  %v7659 = vpop.f32.mrb[0].mxu0
  %7660 = vdwg.mxu0
  %7661 = vmatprep.subr.bf16.mxu0 %v3073
  %7662 = vmatpush1.bf16.msra.mxu0 %v3072
  %7663 = vmatprep.subr.bf16.mxu0 %v3081
  %7664 = vmatpush1.bf16.msra.mxu0 %v3080
  %7665 = vmatprep.subr.bf16.mxu0 %v3089
  %7666 = vmatpush1.bf16.msra.mxu0 %v3088
  %7667 = vmatprep.subr.bf16.mxu0 %v3097
  %7668 = vmatpush1.bf16.msra.mxu0 %v3096
  %7669 = vmatprep.subr.bf16.mxu0 %v3105
  %7670 = vmatpush1.bf16.msra.mxu0 %v3104
  %7671 = vmatprep.subr.bf16.mxu0 %v3113
  %7672 = vmatpush1.bf16.msra.mxu0 %v3112
  %7673 = vmatprep.subr.bf16.mxu0 %v3121
  %7674 = vmatpush1.bf16.msra.mxu0 %v3120
  %7675 = vmatprep.subr.bf16.mxu0 %v3129
  %7676 = vmatpush1.bf16.msra.mxu0 %v3128
  %7677 = vmatprep.subr.bf16.mxu0 %v3137
  %7678 = vmatpush1.bf16.msra.mxu0 %v3136
  %7679 = vmatprep.subr.bf16.mxu0 %v3145
  %7680 = vmatpush1.bf16.msra.mxu0 %v3144
  %7681 = vmatprep.subr.bf16.mxu0 %v3153
  %7682 = vmatpush1.bf16.msra.mxu0 %v3152
  %7683 = vmatprep.subr.bf16.mxu0 %v3161
  %7684 = vmatpush1.bf16.msra.mxu0 %v3160
  %7685 = vmatprep.subr.bf16.mxu0 %v3169
  %7686 = vmatpush1.bf16.msra.mxu0 %v3168
  %7687 = vmatprep.subr.bf16.mxu0 %v3177
  %7688 = vmatpush1.bf16.msra.mxu0 %v3176
  %7689 = vmatprep.subr.bf16.mxu0 %v3185
  %7690 = vmatpush1.bf16.msra.mxu0 %v3184
  %7691 = vmatprep.subr.bf16.mxu0 %v3193
  %7692 = vmatpush1.bf16.msra.mxu0 %v3192
  %7693 = vmatprep.mubr.bf16.mxu0 %v7263
  %7694 = vmatmul.mubr.bf16.gmra.mrb[0].mxu0 %v7262
  %v7695 = vpop.f32.mrb[0].mxu0
  %v7696 = vadd.f32 %v7532, %v7695
  %v7697 = vpop.f32.mrb[0].mxu0
  %v7698 = vadd.f32 %v7534, %v7697
  %v7699 = vpop.f32.mrb[0].mxu0
  %v7700 = vpop.f32.mrb[0].mxu0
  %7701 = vdwg.mxu0
  %7702 = vmatprep.subr.bf16.mxu0 %v3075
  %7703 = vmatpush1.bf16.msra.mxu0 %v3074
  %7704 = vmatprep.subr.bf16.mxu0 %v3083
  %7705 = vmatpush1.bf16.msra.mxu0 %v3082
  %7706 = vmatprep.subr.bf16.mxu0 %v3091
  %7707 = vmatpush1.bf16.msra.mxu0 %v3090
  %7708 = vmatprep.subr.bf16.mxu0 %v3099
  %7709 = vmatpush1.bf16.msra.mxu0 %v3098
  %7710 = vmatprep.subr.bf16.mxu0 %v3107
  %7711 = vmatpush1.bf16.msra.mxu0 %v3106
  %7712 = vmatprep.subr.bf16.mxu0 %v3115
  %7713 = vmatpush1.bf16.msra.mxu0 %v3114
  %7714 = vmatprep.subr.bf16.mxu0 %v3123
  %7715 = vmatpush1.bf16.msra.mxu0 %v3122
  %7716 = vmatprep.subr.bf16.mxu0 %v3131
  %7717 = vmatpush1.bf16.msra.mxu0 %v3130
  %7718 = vmatprep.subr.bf16.mxu0 %v3139
  %7719 = vmatpush1.bf16.msra.mxu0 %v3138
  %7720 = vmatprep.subr.bf16.mxu0 %v3147
  %7721 = vmatpush1.bf16.msra.mxu0 %v3146
  %7722 = vmatprep.subr.bf16.mxu0 %v3155
  %7723 = vmatpush1.bf16.msra.mxu0 %v3154
  %7724 = vmatprep.subr.bf16.mxu0 %v3163
  %7725 = vmatpush1.bf16.msra.mxu0 %v3162
  %7726 = vmatprep.subr.bf16.mxu0 %v3171
  %7727 = vmatpush1.bf16.msra.mxu0 %v3170
  %7728 = vmatprep.subr.bf16.mxu0 %v3179
  %7729 = vmatpush1.bf16.msra.mxu0 %v3178
  %7730 = vmatprep.subr.bf16.mxu0 %v3187
  %7731 = vmatpush1.bf16.msra.mxu0 %v3186
  %7732 = vmatprep.subr.bf16.mxu0 %v3195
  %7733 = vmatpush1.bf16.msra.mxu0 %v3194
  %7734 = vmatprep.mubr.bf16.mxu0 %v7263
  %7735 = vmatmul.mubr.bf16.gmra.mrb[0].mxu0 %v7262
  %v7736 = vpop.f32.mrb[0].mxu0
  %v7737 = vadd.f32 %v7573, %v7736
  %v7738 = vpop.f32.mrb[0].mxu0
  %v7739 = vadd.f32 %v7575, %v7738
  %v7740 = vpop.f32.mrb[0].mxu0
  %v7741 = vpop.f32.mrb[0].mxu0
  %7742 = vdwg.mxu0
  %7743 = vmatprep.subr.bf16.mxu0 %v3077
  %7744 = vmatpush1.bf16.msra.mxu0 %v3076
  %7745 = vmatprep.subr.bf16.mxu0 %v3085
  %7746 = vmatpush1.bf16.msra.mxu0 %v3084
  %7747 = vmatprep.subr.bf16.mxu0 %v3093
  %7748 = vmatpush1.bf16.msra.mxu0 %v3092
  %7749 = vmatprep.subr.bf16.mxu0 %v3101
  %7750 = vmatpush1.bf16.msra.mxu0 %v3100
  %7751 = vmatprep.subr.bf16.mxu0 %v3109
  %7752 = vmatpush1.bf16.msra.mxu0 %v3108
  %7753 = vmatprep.subr.bf16.mxu0 %v3117
  %7754 = vmatpush1.bf16.msra.mxu0 %v3116
  %7755 = vmatprep.subr.bf16.mxu0 %v3125
  %7756 = vmatpush1.bf16.msra.mxu0 %v3124
  %7757 = vmatprep.subr.bf16.mxu0 %v3133
  %7758 = vmatpush1.bf16.msra.mxu0 %v3132
  %7759 = vmatprep.subr.bf16.mxu0 %v3141
  %7760 = vmatpush1.bf16.msra.mxu0 %v3140
  %7761 = vmatprep.subr.bf16.mxu0 %v3149
  %7762 = vmatpush1.bf16.msra.mxu0 %v3148
  %7763 = vmatprep.subr.bf16.mxu0 %v3157
  %7764 = vmatpush1.bf16.msra.mxu0 %v3156
  %7765 = vmatprep.subr.bf16.mxu0 %v3165
  %7766 = vmatpush1.bf16.msra.mxu0 %v3164
  %7767 = vmatprep.subr.bf16.mxu0 %v3173
  %7768 = vmatpush1.bf16.msra.mxu0 %v3172
  %7769 = vmatprep.subr.bf16.mxu0 %v3181
  %7770 = vmatpush1.bf16.msra.mxu0 %v3180
  %7771 = vmatprep.subr.bf16.mxu0 %v3189
  %7772 = vmatpush1.bf16.msra.mxu0 %v3188
  %7773 = vmatprep.subr.bf16.mxu0 %v3197
  %7774 = vmatpush1.bf16.msra.mxu0 %v3196
  %7775 = vmatprep.mubr.bf16.mxu0 %v7263
  %7776 = vmatmul.mubr.bf16.gmra.mrb[0].mxu0 %v7262
  %v7777 = vpop.f32.mrb[0].mxu0
  %v7778 = vadd.f32 %v7614, %v7777
  %v7779 = vpop.f32.mrb[0].mxu0
  %v7780 = vadd.f32 %v7616, %v7779
  %v7781 = vpop.f32.mrb[0].mxu0
  %v7782 = vpop.f32.mrb[0].mxu0
  %7783 = vdwg.mxu0
  %7784 = vmatprep.subr.bf16.mxu0 %v3079
  %7785 = vmatpush1.bf16.msra.mxu0 %v3078
  %7786 = vmatprep.subr.bf16.mxu0 %v3087
  %7787 = vmatpush1.bf16.msra.mxu0 %v3086
  %7788 = vmatprep.subr.bf16.mxu0 %v3095
  %7789 = vmatpush1.bf16.msra.mxu0 %v3094
  %7790 = vmatprep.subr.bf16.mxu0 %v3103
  %7791 = vmatpush1.bf16.msra.mxu0 %v3102
  %7792 = vmatprep.subr.bf16.mxu0 %v3111
  %7793 = vmatpush1.bf16.msra.mxu0 %v3110
  %7794 = vmatprep.subr.bf16.mxu0 %v3119
  %7795 = vmatpush1.bf16.msra.mxu0 %v3118
  %7796 = vmatprep.subr.bf16.mxu0 %v3127
  %7797 = vmatpush1.bf16.msra.mxu0 %v3126
  %7798 = vmatprep.subr.bf16.mxu0 %v3135
  %7799 = vmatpush1.bf16.msra.mxu0 %v3134
  %7800 = vmatprep.subr.bf16.mxu0 %v3143
  %7801 = vmatpush1.bf16.msra.mxu0 %v3142
  %7802 = vmatprep.subr.bf16.mxu0 %v3151
  %7803 = vmatpush1.bf16.msra.mxu0 %v3150
  %7804 = vmatprep.subr.bf16.mxu0 %v3159
  %7805 = vmatpush1.bf16.msra.mxu0 %v3158
  %7806 = vmatprep.subr.bf16.mxu0 %v3167
  %7807 = vmatpush1.bf16.msra.mxu0 %v3166
  %7808 = vmatprep.subr.bf16.mxu0 %v3175
  %7809 = vmatpush1.bf16.msra.mxu0 %v3174
  %7810 = vmatprep.subr.bf16.mxu0 %v3183
  %7811 = vmatpush1.bf16.msra.mxu0 %v3182
  %7812 = vmatprep.subr.bf16.mxu0 %v3191
  %7813 = vmatpush1.bf16.msra.mxu0 %v3190
  %7814 = vmatprep.subr.bf16.mxu0 %v3199
  %7815 = vmatpush1.bf16.msra.mxu0 %v3198
  %7816 = vmatprep.mubr.bf16.mxu0 %v7263
  %7817 = vmatmul.mubr.bf16.gmra.mrb[0].mxu0 %v7262
  %v7818 = vpop.f32.mrb[0].mxu0
  %v7819 = vadd.f32 %v7655, %v7818
  %v7820 = vpop.f32.mrb[0].mxu0
  %v7821 = vadd.f32 %v7657, %v7820
  %v7822 = vpop.f32.mrb[0].mxu0
  %v7823 = vpop.f32.mrb[0].mxu0
  %7824 = vdwg.mxu0
  %v7825 = vadd.f32 %v7696, %v439
  %v7826 = vadd.f32 %v7698, %v443
  %v7827 = vadd.f32 %v7737, %v447
  %v7828 = vadd.f32 %v7739, %v451
  %v7829 = vadd.f32 %v7778, %v455
  %v7830 = vadd.f32 %v7780, %v459
  %v7831 = vadd.f32 %v7819, %v463
  %v7832 = vadd.f32 %v7821, %v467
  %v7833 = vxor.u32 %v7825, 2147483648
  %v7834 = vxor.u32 %v7826, 2147483648
  %v7835 = vmul.f32 %v7833, 1.442695
  %v7836 = vpow.pop %v7835
  %v7837 = vmul.f32 %v7834, 1.442695
  %v7838 = vpow.pop %v7837
  %v7839 = vadd.f32 %v7836, 1.0
  %v7840 = vadd.f32 %v7838, 1.0
  %v7841 = vrcp.pop %v7839
  %v7842 = vmul.f32 1.0, %v7841
  %v7843 = vrcp.pop %v7840
  %v7844 = vmul.f32 1.0, %v7843
  %v7845 = vxor.u32 %v7827, 2147483648
  %v7846 = vxor.u32 %v7828, 2147483648
  %v7847 = vmul.f32 %v7845, 1.442695
  %v7848 = vpow.pop %v7847
  %v7849 = vmul.f32 %v7846, 1.442695
  %v7850 = vpow.pop %v7849
  %v7851 = vadd.f32 %v7848, 1.0
  %v7852 = vadd.f32 %v7850, 1.0
  %v7853 = vrcp.pop %v7851
  %v7854 = vmul.f32 1.0, %v7853
  %v7855 = vrcp.pop %v7852
  %v7856 = vmul.f32 1.0, %v7855
  %v7857 = vtanh.pop %v7829
  %v7858 = vtanh.pop %v7830
  %v7859 = vxor.u32 %v7831, 2147483648
  %v7860 = vxor.u32 %v7832, 2147483648
  %v7861 = vmul.f32 %v7859, 1.442695
  %v7862 = vpow.pop %v7861
  %v7863 = vmul.f32 %v7860, 1.442695
  %v7864 = vpow.pop %v7863
  %v7865 = vadd.f32 %v7862, 1.0
  %v7866 = vadd.f32 %v7864, 1.0
  %v7867 = vrcp.pop %v7865
  %v7868 = vmul.f32 1.0, %v7867
  %v7869 = vrcp.pop %v7866
  %v7870 = vmul.f32 1.0, %v7869
  %v7871 = vmul.f32 %v7854, %v7256
  %v7872 = vmul.f32 %v7856, %v7257
  %v7873 = vmul.f32 %v7842, %v7857
  %v7874 = vmul.f32 %v7844, %v7858
  %v7875 = vadd.f32 %v7871, %v7873
  %v7876 = vadd.f32 %v7872, %v7874
  %v7877 = vtanh.pop %v7875
  %v7878 = vtanh.pop %v7876
  %v7879 = vmul.f32 %v7868, %v7877
  %v7880 = vmul.f32 %v7870, %v7878
  %vm7881 = vcmp.gt.f32.partialorder %v7879, 0.0
  %vm7882 = vcmp.gt.f32.partialorder %v7880, 0.0
  %v7883 = vmul.f32 %v7879, 0.01
  %v7884 = vmul.f32 %v7880, 0.01
  %v7885 = vsel %vm7881, %v7879, %v7883
  %v7886 = vsel %vm7882, %v7880, %v7884
  %v7887 = vpack.c.bf16 %v7885, %v7885
  %v7888 = vpack.c.bf16 %v7886, %v7886
  %v7889 = vld [vmem:[%s7] sm:$0xf]
  %v7890 = vld [vmem:[%s7 + $0x4] sm:$0xf]
  %v7891 = vld [vmem:[%s7 + $0x8] sm:$0xf]
  %v7892 = vld [vmem:[%s7 + $0xc] sm:$0xf]
  %v7893 = vld [vmem:[%s7 + $0x10] sm:$0xf]
  %v7894 = vld [vmem:[%s7 + $0x14] sm:$0xf]
  %v7895 = vld [vmem:[%s7 + $0x18] sm:$0xf]
  %v7896 = vld [vmem:[%s7 + $0x1c] sm:$0xf]
  %v7897 = vld [vmem:[%s7 + $0x20] sm:$0xf]
  %v7898 = vld [vmem:[%s7 + $0x24] sm:$0xf]
  %v7899 = vld [vmem:[%s7 + $0x28] sm:$0xf]
  %v7900 = vld [vmem:[%s7 + $0x2c] sm:$0xf]
  %v7901 = vld [vmem:[%s7 + $0x30] sm:$0xf]
  %v7902 = vld [vmem:[%s7 + $0x34] sm:$0xf]
  %v7903 = vld [vmem:[%s7 + $0x38] sm:$0xf]
  %v7904 = vld [vmem:[%s7 + $0x3c] sm:$0xf]
  %v7905 = vld [vmem:[%s7 + $0x40] sm:$0xf]
  %v7906 = vld [vmem:[%s7 + $0x44] sm:$0xf]
  %v7907 = vld [vmem:[%s7 + $0x48] sm:$0xf]
  %v7908 = vld [vmem:[%s7 + $0x4c] sm:$0xf]
  %v7909 = vld [vmem:[%s7 + $0x50] sm:$0xf]
  %v7910 = vld [vmem:[%s7 + $0x54] sm:$0xf]
  %v7911 = vld [vmem:[%s7 + $0x58] sm:$0xf]
  %v7912 = vld [vmem:[%s7 + $0x5c] sm:$0xf]
  %v7913 = vld [vmem:[%s7 + $0x60] sm:$0xf]
  %v7914 = vld [vmem:[%s7 + $0x64] sm:$0xf]
  %v7915 = vld [vmem:[%s7 + $0x68] sm:$0xf]
  %v7916 = vld [vmem:[%s7 + $0x6c] sm:$0xf]
  %v7917 = vld [vmem:[%s7 + $0x70] sm:$0xf]
  %v7918 = vld [vmem:[%s7 + $0x74] sm:$0xf]
  %v7919 = vld [vmem:[%s7 + $0x78] sm:$0xf]
  %v7920 = vld [vmem:[%s7 + $0x7c] sm:$0xf]
  %v7921 = vld [vmem:[%s8] sm:$0x1]
  %v7923 = vlaneseq
  %v7924 = vshrl.u32 %v7923, 7
  %v7925 = vsub.s32 0, %v7924
  %v7926 = vrot.slane %v7921, %v7925
  %v7960 = vunpack.c.l.b16 %v7889
  %v7961 = vunpack.c.l.b16 %v7890
  %v7962 = vunpack.c.l.b16 %v7891
  %v7963 = vunpack.c.l.b16 %v7892
  %v7964 = vunpack.c.l.b16 %v7893
  %v7965 = vunpack.c.l.b16 %v7894
  %v7966 = vunpack.c.l.b16 %v7895
  %v7967 = vunpack.c.l.b16 %v7896
  %v7968 = vunpack.c.l.b16 %v7897
  %v7969 = vunpack.c.l.b16 %v7898
  %v7970 = vunpack.c.l.b16 %v7899
  %v7971 = vunpack.c.l.b16 %v7900
  %v7972 = vunpack.c.l.b16 %v7901
  %v7973 = vunpack.c.l.b16 %v7902
  %v7974 = vunpack.c.l.b16 %v7903
  %v7975 = vunpack.c.l.b16 %v7904
  %v7976 = vunpack.c.l.b16 %v7905
  %v7977 = vunpack.c.l.b16 %v7906
  %v7978 = vunpack.c.l.b16 %v7907
  %v7979 = vunpack.c.l.b16 %v7908
  %v7980 = vunpack.c.l.b16 %v7909
  %v7981 = vunpack.c.l.b16 %v7910
  %v7982 = vunpack.c.l.b16 %v7911
  %v7983 = vunpack.c.l.b16 %v7912
  %v7984 = vunpack.c.l.b16 %v7913
  %v7985 = vunpack.c.l.b16 %v7914
  %v7986 = vunpack.c.l.b16 %v7915
  %v7987 = vunpack.c.l.b16 %v7916
  %v7988 = vunpack.c.l.b16 %v7917
  %v7989 = vunpack.c.l.b16 %v7918
  %v7990 = vunpack.c.l.b16 %v7919
  %v7991 = vunpack.c.l.b16 %v7920
  %v7992 = vpack.c.b16 %v7961, %v7960
  %v7993 = vpack.c.b16 %v7963, %v7962
  %v7994 = vpack.c.b16 %v7965, %v7964
  %v7995 = vpack.c.b16 %v7967, %v7966
  %v7996 = vpack.c.b16 %v7969, %v7968
  %v7997 = vpack.c.b16 %v7971, %v7970
  %v7998 = vpack.c.b16 %v7973, %v7972
  %v7999 = vpack.c.b16 %v7975, %v7974
  %v8000 = vpack.c.b16 %v7977, %v7976
  %v8001 = vpack.c.b16 %v7979, %v7978
  %v8002 = vpack.c.b16 %v7981, %v7980
  %v8003 = vpack.c.b16 %v7983, %v7982
  %v8004 = vpack.c.b16 %v7985, %v7984
  %v8005 = vpack.c.b16 %v7987, %v7986
  %v8006 = vpack.c.b16 %v7989, %v7988
  %v8007 = vpack.c.b16 %v7991, %v7990
  %8024 = vmatprep.subr.bf16.mxu0 0
  %8025 = vmatpush1.bf16.msra.mxu0 %v7992
  %8026 = vmatprep.subr.bf16.mxu0 0
  %8027 = vmatpush1.bf16.msra.mxu0 %v7993
  %8028 = vmatprep.subr.bf16.mxu0 0
  %8029 = vmatpush1.bf16.msra.mxu0 %v7994
  %8030 = vmatprep.subr.bf16.mxu0 0
  %8031 = vmatpush1.bf16.msra.mxu0 %v7995
  %8032 = vmatprep.subr.bf16.mxu0 0
  %8033 = vmatpush1.bf16.msra.mxu0 %v7996
  %8034 = vmatprep.subr.bf16.mxu0 0
  %8035 = vmatpush1.bf16.msra.mxu0 %v7997
  %8036 = vmatprep.subr.bf16.mxu0 0
  %8037 = vmatpush1.bf16.msra.mxu0 %v7998
  %8038 = vmatprep.subr.bf16.mxu0 0
  %8039 = vmatpush1.bf16.msra.mxu0 %v7999
  %8040 = vmatprep.subr.bf16.mxu0 0
  %8041 = vmatpush1.bf16.msra.mxu0 %v8000
  %8042 = vmatprep.subr.bf16.mxu0 0
  %8043 = vmatpush1.bf16.msra.mxu0 %v8001
  %8044 = vmatprep.subr.bf16.mxu0 0
  %8045 = vmatpush1.bf16.msra.mxu0 %v8002
  %8046 = vmatprep.subr.bf16.mxu0 0
  %8047 = vmatpush1.bf16.msra.mxu0 %v8003
  %8048 = vmatprep.subr.bf16.mxu0 0
  %8049 = vmatpush1.bf16.msra.mxu0 %v8004
  %8050 = vmatprep.subr.bf16.mxu0 0
  %8051 = vmatpush1.bf16.msra.mxu0 %v8005
  %8052 = vmatprep.subr.bf16.mxu0 0
  %8053 = vmatpush1.bf16.msra.mxu0 %v8006
  %8054 = vmatprep.subr.bf16.mxu0 0
  %8055 = vmatpush1.bf16.msra.mxu0 %v8007
  %8056 = vmatprep.mubr.bf16.mxu0 %v7888
  %8057 = vmatmul.mubr.bf16.gmra.mrb[0].mxu0 %v7887
  %v8058 = vpop.f32.mrb[0].mxu0
  %v8059 = vadd.f32 %v7926, %v8058
  %v8060 = vpop.f32.mrb[0].mxu0
  %v8061 = vpop.f32.mrb[0].mxu0
  %v8062 = vpop.f32.mrb[0].mxu0
  %8063 = vdwg.mxu0
  %v8064 = vmul.f32 %v8059, %v8059
  %8065 = vadd.xlane.f32.xlu0 %v8064
  %v8066 = vpop.xlane.xlu0 %8065
  %v8067 = vrsqrt.pop %v8066
  %v8068 = vmul.f32 %v8066, %v8067
  %vm8069 = vcmp.eq.f32.partialorder %v8066, inf
  %v8070 = vsel %vm8069, %v8066, %v8068
  %vm8071 = vcmp.eq.f32.partialorder %v8066, 0.0
  %v8072 = vand.u32 %v8066, 2147483648
  %v8073 = vsel %vm8071, %v8072, %v8070
  %v8074 = vmax.f32 %v8073, 1e-12
  %v8075 = vrcp.pop %v8074
  %v8076 = vmul.f32 %v8059, %v8075
  %8077 = vst [vmem:[%s9] sm:$0xff] %v8076
  // Predicated region
  $region38: #{lstm_forward.1} parent=0 // pred_check
    _
  $region39: #{lstm_forward.1} parent=0 // pred_check_branch
    %8079 = sbr.rel (0) target = $region41
  $region40: #{lstm_forward.1} parent=0 // pred_region
    _
  $region41: #{lstm_forward.1} parent=0 // pred_fallthru
    _
  // Predicated region
  $region42: #{lstm_forward.1} parent=0 // pred_check
    _
  $region43: #{lstm_forward.1} parent=0 // pred_check_branch
    %8081 = sbr.rel (0) target = $region45
  $region44: #{lstm_forward.1} parent=0 // pred_region
    _
  $region45: #{lstm_forward.1} parent=0 // pred_fallthru
    _

</llo_original>
